<compile_context>
chip_gen: v5e
topology: v5e:2x2
jax: 0.10.0
libtpu: 0.0.40
codegen_flags: <defaults>
</compile_context>

<pallas_src>
import functools

import jax
import jax.numpy as jnp
from jax.experimental import pallas as pl
from jax.experimental.pallas import tpu as pltpu


def _pick_batch_tile(B, T, max_rows=512):
    """Largest divisor Bt of B such that the per-step matmul M dim Bt*T <= max_rows."""
    bt = 1
    for cand in range(1, B + 1):
        if B % cand == 0 and cand * T <= max_rows:
            bt = cand
    return bt


# ----------------------------------------------------------------------------
# Fused WaveBlock kernel:
#   1x1 conv -> [K-tap dilated gated conv (ONE matmul) -> 1x1 -> +res] x L -> BN+ReLU
# ----------------------------------------------------------------------------
def _waveblock_kernel(x_ref, w_in_ref, b_in_ref, wfg_ref, bfg_ref, w1_ref, b1_ref,
                      bn_ref, o_ref, zpad_ref, zcat_ref,
                      *, K, dilations, T, pad_max, Bt):
    C = o_ref.shape[-1]
    Cin = x_ref.shape[-1]
    x = x_ref[...].reshape(Bt * T, Cin)
    # input 1x1 conv (Conv1d kernel_size=1): one (Bt*T, Cin)@(Cin, C) MXU dot
    z = jnp.dot(x, w_in_ref[...], preferred_element_type=jnp.float32) + b_in_ref[...]
    res = z
    # zero ONLY the halo bands: the interior is overwritten every level, and the
    # halo must read as zeros for every dilation (<= pad_max).
    if pad_max > 0:
        zpad_ref[:, 0:pad_max, :] = jnp.zeros((Bt, pad_max, C), jnp.float32)
        zpad_ref[:, pad_max + T:, :] = jnp.zeros((Bt, pad_max, C), jnp.float32)
    # NOTE: static Python loop is fine for small L; switch to lax.fori_loop over the
    # stacked (L, ...) weights for configs with many dilation levels.
    for l, d in enumerate(dilations):
        pad = d * (K - 1) // 2
        z3 = z.reshape(Bt, T, C)
        for bb in range(Bt):
            zpad_ref[bb, pad_max:pad_max + T, :] = z3[bb]
            # gather the K dilated taps into a contiguous (T, K*C) slab so the
            # filter+gate conv is ONE matmul with a K*C-deep contraction.
            for j in range(K):
                start = pad_max - pad + j * d
                zcat_ref[bb, :, j * C:(j + 1) * C] = zpad_ref[bb, start:start + T, :]
        fg = jnp.dot(zcat_ref[...].reshape(Bt * T, K * C), wfg_ref[l],
                     preferred_element_type=jnp.float32) + bfg_ref[l]
        gated = jnp.tanh(fg[:, :C]) * jax.nn.sigmoid(fg[:, C:])
        z = jnp.dot(gated, w1_ref[l], preferred_element_type=jnp.float32) + b1_ref[l]
        res = res + z
    # BatchNorm1d (inference) folded to affine + ReLU
    h = res * bn_ref[0:1, :] + bn_ref[1:2, :]
    o_ref[...] = jnp.maximum(h, 0.0).reshape(Bt, T, C).astype(o_ref.dtype)


def waveblock_fused(x, wb, bn_scale, bn_shift, block_b=None):
    B, T, Cin = x.shape
    C = wb["w_in"].shape[1]
    levels = wb["levels"]
    L = len(levels)
    K = levels[0]["wf"].shape[0]
    dilations = tuple(2 ** i for i in range(L))
    pad_max = max(d * (K - 1) // 2 for d in dilations)
    Bt = block_b if block_b is not None else _pick_batch_tile(B, T)
    assert B % Bt == 0

    # stack per-level weights; filter+gate concatenated on the output axis, then the
    # K taps folded into the contraction axis: (L, K*C, 2C).
    wfg = jnp.stack([jnp.concatenate([lv["wf"], lv["wg"]], axis=-1) for lv in levels])
    wfg = wfg.reshape(L, K * C, 2 * C)
    bfg = jnp.stack([jnp.concatenate([lv["bf"], lv["bg"]], axis=-1)
                     for lv in levels])[:, None, :]                                    # (L,1,2C)
    w1s = jnp.stack([lv["w1"] for lv in levels])                                       # (L,C,C)
    b1s = jnp.stack([lv["b1"] for lv in levels])[:, None, :]                           # (L,1,C)
    bn = jnp.stack([bn_scale, bn_shift])                                               # (2,C)

    kernel = functools.partial(_waveblock_kernel, K=K, dilations=dilations,
                               T=T, pad_max=pad_max, Bt=Bt)
    return pl.pallas_call(
        kernel,
        grid=(B // Bt,),
        in_specs=[
            pl.BlockSpec((Bt, T, Cin), lambda b: (b, 0, 0)),
            pl.BlockSpec((Cin, C), lambda b: (0, 0)),
            pl.BlockSpec((1, C), lambda b: (0, 0)),
            pl.BlockSpec((L, K * C, 2 * C), lambda b: (0, 0, 0)),
            pl.BlockSpec((L, 1, 2 * C), lambda b: (0, 0, 0)),
            pl.BlockSpec((L, C, C), lambda b: (0, 0, 0)),
            pl.BlockSpec((L, 1, C), lambda b: (0, 0, 0)),
            pl.BlockSpec((2, C), lambda b: (0, 0)),
        ],
        out_specs=pl.BlockSpec((Bt, T, C), lambda b: (b, 0, 0)),
        out_shape=jax.ShapeDtypeStruct((B, T, C), jnp.float32),
        scratch_shapes=[pltpu.VMEM((Bt, T + 2 * pad_max, C), jnp.float32),
                        pltpu.VMEM((Bt, T, K * C), jnp.float32)],
        compiler_params=pltpu.CompilerParams(
            dimension_semantics=("parallel",),
            vmem_limit_bytes=32 * 1024 * 1024),
    )(x, wb["w_in"], wb["b_in"].reshape(1, C), wfg, bfg, w1s, b1s, bn)


# ----------------------------------------------------------------------------
# Fully fused DNN path + merge:
#   layer1 (depthwise 5x5 on 1 ch -> pointwise+BN+ReLU -> pool 5)
#   layer2/3 (im2col depthwise+pointwise+BN as ONE matmul -> ReLU -> pool 4 / 2)
#   Conv2d(2->1, 1x1) merge with x1 -> Linear -> ReLU
# All intermediates stay resident in VMEM; one (T, C) HBM store per batch element.
# ----------------------------------------------------------------------------
def _dnn_merge_kernel(x_ref, x1_ref, dw1_ref, ps1_ref, sh1_ref,
                      w2_ref, sh2_ref, w3_ref, sh3_ref,
                      mw_ref, fcw_ref, fcb_ref, o_ref,
                      gpad1_ref, gpad2_ref, cols2_ref, gpad3_ref, cols3_ref,
                      *, T, F, pools, KH, KW, C):
    F1 = F // pools[0]
    F2 = F1 // pools[1]
    HH, HW = KH // 2, KW // 2

    # ---- zero ONLY the halo bands (interiors are fully overwritten below) ----
    gpad1_ref[0:HH, :] = jnp.zeros((HH, F + 2 * HW), jnp.float32)
    gpad1_ref[HH + T:, :] = jnp.zeros((HH, F + 2 * HW), jnp.float32)
    gpad1_ref[:, 0:HW] = jnp.zeros((T + 2 * HH, HW), jnp.float32)
    gpad1_ref[:, HW + F:] = jnp.zeros((T + 2 * HH, HW), jnp.float32)

    def zero_halo_3d(gref, Fi):
        gref[0:HW] = jnp.zeros((HW, T + 2 * HH, C), jnp.float32)
        gref[HW + Fi:] = jnp.zeros((HW, T + 2 * HH, C), jnp.float32)
        gref[:, 0:HH, :] = jnp.zeros((Fi + 2 * HW, HH, C), jnp.float32)
        gref[:, HH + T:, :] = jnp.zeros((Fi + 2 * HW, HH, C), jnp.float32)

    zero_halo_3d(gpad2_ref, F1)
    zero_halo_3d(gpad3_ref, F2)

    # ================= layer 1: depthwise 5x5 (Cin=1) + pointwise/BN/ReLU + pool ====
    gpad1_ref[HH:HH + T, HW:HW + F] = x_ref[0]
    acc = None
    for i in range(KH):
        for j in range(KW):
            c = gpad1_ref[i:i + T, j:j + F] * dw1_ref[i, j]
            acc = c if acc is None else acc + c
    # relu(max_f(s*a+b)) == relu(s*max_f(a)+b) for s>=0 else relu(s*min_f(a)+b):
    # pool the single-channel depthwise output first, expand channels after.
    ps = ps1_ref[...]                      # (1, C) = pw * bn_scale
    sh = sh1_ref[...]                      # (1, C) = bn_shift
    pos = ps >= 0.0
    p0 = pools[0]
    for p in range(F1):
        amax = acc[:, p * p0:p * p0 + 1]
        amin = amax
        for w in range(1, p0):
            col = acc[:, p * p0 + w:p * p0 + w + 1]
            amax = jnp.maximum(amax, col)
            amin = jnp.minimum(amin, col)
        y = jnp.where(pos, amax * ps, amin * ps) + sh            # (T,1)*(1,C) -> (T,C)
        # write straight into layer-2's padded VMEM input (freq-major interior)
        gpad2_ref[HW + p, HH:HH + T, :] = jnp.maximum(y, 0.0)

    # ============ deep DWS layers: im2col slab + ONE (F*T, 25C)@(25C, C) matmul =====
    def dws_layer(gpad_src, cols_dst, w_ref, sh_ref, Fi):
        for i in range(KH):          # time taps
            for j in range(KW):      # freq taps
                k = i * KW + j
                cols_dst[:, k * C:(k + 1) * C] = (
                    gpad_src[j:j + Fi, i:i + T, :].reshape(Fi * T, C))
        y = jnp.dot(cols_dst[...], w_ref[...],
                    preferred_element_type=jnp.float32) + sh_ref[...]
        return jnp.maximum(y, 0.0)                               # (Fi*T, C), f-major rows

    # ---- layer 2: pool 4 over freq, result feeds layer-3's padded buffer ----
    y2 = dws_layer(gpad2_ref, cols2_ref, w2_ref, sh2_ref, F1)
    p1 = pools[1]
    for p in range(F2):
        m = y2[p * p1 * T:(p * p1 + 1) * T, :]
        for w in range(1, p1):
            m = jnp.maximum(m, y2[(p * p1 + w) * T:(p * p1 + w + 1) * T, :])
        gpad3_ref[HW + p, HH:HH + T, :] = m

    # ---- layer 3: pool the remaining F2 freq bins down to 1 ----
    y3 = dws_layer(gpad3_ref, cols3_ref, w3_ref, sh3_ref, F2)
    x2 = y3[0:T, :]
    for w in range(1, F2):
        x2 = jnp.maximum(x2, y3[w * T:(w + 1) * T, :])

    # ---- merge Conv2d(2->1, 1x1): w0*x2 + w1*x1 + b, then Linear + ReLU ----
    merged = x2 * mw_ref[0] + x1_ref[0] * mw_ref[1] + mw_ref[2]
    out = jnp.dot(merged, fcw_ref[...], preferred_element_type=jnp.float32) + fcb_ref[...]
    o_ref[0] = jnp.maximum(out, 0.0).astype(o_ref.dtype)


def dnn_and_merge(x, x1, dnn_params, merge_w, fc_w, fc_b, pools):
    B, T, F = x.shape
    C = fc_w.shape[1]
    KH, KW = 5, 5
    d0, d1, d2 = dnn_params
    F1 = F // pools[0]
    F2 = F1 // pools[1]
    assert F % pools[0] == 0 and F1 % pools[1] == 0 and F2 == pools[2], \
        "DWS freq pools must reduce the mel bins to exactly 1"

    # layer 1: single input channel -> scalar depthwise taps + rank-1 pointwise
    dw1 = d0["dw_w"][:, :, 0]                                   # (5,5) scalars -> SMEM
    ps1 = (d0["pw_w"][0] * d0["bn_scale"]).reshape(1, C)        # pw * bn_scale
    sh1 = d0["bn_shift"].reshape(1, C)

    # deep layers: fold depthwise x pointwise x BN into one (25*Cin, C) im2col weight
    def im2col_weight(d):
        pw_s = d["pw_w"] * d["bn_scale"][None, :]               # (Cin, C)
        w = d["dw_w"][:, :, :, None] * pw_s[None, None, :, :]   # (KH, KW, Cin, C)
        return w.reshape(KH * KW * d["pw_w"].shape[0], C)

    w2 = im2col_weight(d1)
    sh2 = d1["bn_shift"].reshape(1, C)
    w3 = im2col_weight(d2)
    sh3 = d2["bn_shift"].reshape(1, C)

    kernel = functools.partial(_dnn_merge_kernel, T=T, F=F, pools=pools,
                               KH=KH, KW=KW, C=C)
    return pl.pallas_call(
        kernel,
        grid=(B,),
        in_specs=[
            pl.BlockSpec((1, T, F), lambda b: (b, 0, 0)),
            pl.BlockSpec((1, T, C), lambda b: (b, 0, 0)),
            pl.BlockSpec(memory_space=pltpu.MemorySpace.SMEM),   # dw1 (5,5)
            pl.BlockSpec((1, C), lambda b: (0, 0)),
            pl.BlockSpec((1, C), lambda b: (0, 0)),
            pl.BlockSpec((KH * KW * C, C), lambda b: (0, 0)),
            pl.BlockSpec((1, C), lambda b: (0, 0)),
            pl.BlockSpec((KH * KW * C, C), lambda b: (0, 0)),
            pl.BlockSpec((1, C), lambda b: (0, 0)),
            pl.BlockSpec(memory_space=pltpu.MemorySpace.SMEM),   # merge_w (3,)
            pl.BlockSpec((C, C), lambda b: (0, 0)),
            pl.BlockSpec((1, C), lambda b: (0, 0)),
        ],
        out_specs=pl.BlockSpec((1, T, C), lambda b: (b, 0, 0)),
        out_shape=jax.ShapeDtypeStruct((B, T, C), jnp.float32),
        scratch_shapes=[
            pltpu.VMEM((T + KH - 1, F + KW - 1), jnp.float32),            # gpad1
            pltpu.VMEM((F1 + KW - 1, T + KH - 1, C), jnp.float32),        # gpad2
            pltpu.VMEM((F1 * T, KH * KW * C), jnp.float32),               # cols2
            pltpu.VMEM((F2 + KW - 1, T + KH - 1, C), jnp.float32),        # gpad3
            pltpu.VMEM((F2 * T, KH * KW * C), jnp.float32),               # cols3
        ],
        compiler_params=pltpu.CompilerParams(
            dimension_semantics=("parallel",),
            vmem_limit_bytes=32 * 1024 * 1024),
    )(x, x1, dw1, ps1, sh1, w2, sh2, w3, sh3, merge_w, fc_w, fc_b.reshape(1, C))


# ----------------------------------------------------------------------------
# Parameter initialization (deterministic, synthetic; BN folded to scale/shift)
# ----------------------------------------------------------------------------
def init_params(key, in_channels, out_waveblock, kernel_size, dilation_rates, last_dim):
    keys = iter(jax.random.split(key, 512))

    def nrm(shape, s=0.1):
        return jax.random.normal(next(keys), shape, jnp.float32) * s

    def bn_affine(c):
        gamma = jax.random.uniform(next(keys), (c,), jnp.float32, 0.8, 1.2)
        beta = nrm((c,))
        mean = nrm((c,))
        var = jax.random.uniform(next(keys), (c,), jnp.float32, 0.8, 1.2)
        scale = gamma / jnp.sqrt(var + 1e-5)
        shift = beta - mean * scale
        return scale, shift

    params = {"wave_blocks": [], "bn": [], "dnn": []}
    cin = in_channels
    for cout, nrates in zip(out_waveblock, dilation_rates):
        wb = {"w_in": nrm((cin, cout)), "b_in": nrm((cout,)), "levels": []}
        for _ in range(nrates):
            wb["levels"].append({
                "wf": nrm((kernel_size, cout, cout)), "bf": nrm((cout,)),
                "wg": nrm((kernel_size, cout, cout)), "bg": nrm((cout,)),
                "w1": nrm((cout, cout)), "b1": nrm((cout,)),
            })
        params["wave_blocks"].append(wb)
        s, sh = bn_affine(cout)
        params["bn"].append({"scale": s, "shift": sh})
        cin = cout

    C = out_waveblock[-1]
    for cin2 in (1, C, C):
        s, sh = bn_affine(C)
        params["dnn"].append({
            "dw_w": nrm((5, 5, cin2)),        # depthwise 5x5, bias-free
            "pw_w": nrm((cin2, C)),           # pointwise (inner_kernel_size=1), bias-free
            "bn_scale": s, "bn_shift": sh,
        })

    params["pw"] = nrm((3,), 0.5)             # Conv2d(2,1,1): [w_x2, w_x1, bias]
    params["fc_w"] = nrm((last_dim, last_dim))
    params["fc_b"] = nrm((last_dim,))
    return params


# ----------------------------------------------------------------------------
# Forward pass (len(wave_blocks) + 1 fused pallas_calls)
# ----------------------------------------------------------------------------
def wavenet_encoder10_forward(x, params):
    B, T, MEL = x.shape
    assert MEL == 40, "DWS-DNN freq pools (5,4,2) require 40 mel bins"

    # ---- WaveBlock path: one fused, batch-tiled kernel per block ----
    h = x
    for wb, bn in zip(params["wave_blocks"], params["bn"]):
        h = waveblock_fused(h, wb, bn["scale"], bn["shift"])
    x1 = h                                    # (B, T, C)

    # ---- DNN path + merge + FC: a single fused kernel ----
    out = dnn_and_merge(x, x1, params["dnn"], params["pw"], params["fc_w"],
                        params["fc_b"], pools=(5, 4, 2))
    return out                                # (B, T, last_dim)


# ----------------------------------------------------------------------------
# Pure-JAX reference (same reconstructed semantics) for correctness checking
# ----------------------------------------------------------------------------
def reference_forward(x, params, kernel_size=3, precision=jax.lax.Precision.HIGHEST):
    B, T, _ = x.shape

    h = x
    for wb, bn in zip(params["wave_blocks"], params["bn"]):
        C = wb["w_in"].shape[1]
        z = jnp.einsum("btc,cd->btd", h, wb["w_in"], precision=precision) + wb["b_in"]
        res = z
        for lidx, lvl in enumerate(wb["levels"]):
            d = 2 ** lidx
            pad = d * (kernel_size - 1) // 2
            zp = jnp.pad(z, ((0, 0), (pad, pad), (0, 0)))
            f = jnp.zeros((B, T, C), jnp.float32) + lvl["bf"]
            g = jnp.zeros((B, T, C), jnp.float32) + lvl["bg"]
            for j in range(kernel_size):
                xs = zp[:, j * d:j * d + T, :]
                f = f + jnp.einsum("btc,cd->btd", xs, lvl["wf"][j], precision=precision)
                g = g + jnp.einsum("btc,cd->btd", xs, lvl["wg"][j], precision=precision)
            gated = jnp.tanh(f) * jax.nn.sigmoid(g)
            z = jnp.einsum("btc,cd->btd", gated, lvl["w1"], precision=precision) + lvl["b1"]
            res = res + z
        h = jnp.maximum(res * bn["scale"] + bn["shift"], 0.0)
    x1 = h

    g = x[..., None]                                   # (B, T, F, 1)
    for layer, pool in zip(params["dnn"], (5, 4, 2)):
        Bq, Tq, Fq, Cq = g.shape
        gp = jnp.pad(g, ((0, 0), (2, 2), (2, 2), (0, 0)))
        dacc = jnp.zeros_like(g)
        for i in range(5):
            for j in range(5):
                dacc = dacc + gp[:, i:i + Tq, j:j + Fq, :] * layer["dw_w"][i, j]
        y = jnp.einsum("btfc,co->btfo", dacc, layer["pw_w"], precision=precision)
        y = jnp.maximum(y * layer["bn_scale"] + layer["bn_shift"], 0.0)
        Cout = layer["pw_w"].shape[1]
        g = y.reshape(Bq, Tq, Fq // pool, pool, Cout).max(axis=3)
    x2 = g[:, :, 0, :]

    merged = x2 * params["pw"][0] + x1 * params["pw"][1] + params["pw"][2]
    out = jnp.einsum("btc,cd->btd", merged, params["fc_w"], precision=precision) + params["fc_b"]
    return jnp.maximum(out, 0.0)


# ----------------------------------------------------------------------------
if __name__ == "__main__":
    # Small, forward-consistent config: mel_bins must be 40 (freq pools 5*4*2 -> 1).
    B, T, MEL = 2, 16, 40
    out_waveblock = [16, 16]
    kernel_size = 3
    dilation_rates = [2, 2]            # number of dilated levels per WaveBlock
    last_dim = out_waveblock[-1]

    key = jax.random.PRNGKey(0)
    kx, kp = jax.random.split(key)
    x = jax.random.normal(kx, (B, T, MEL), jnp.float32)
    params = init_params(kp, MEL, out_waveblock, kernel_size, dilation_rates, last_dim)

    fwd = jax.jit(wavenet_encoder10_forward)
    y = jax.block_until_ready(fwd(x, params))
    assert y.shape == (B, T, last_dim)
    assert bool(jnp.all(jnp.isfinite(y)))

    # Correctness: tight 1e-3 floor when the in-kernel f32 MXU path is (near-)exact;
    # if this platform's f32 matmuls use reduced-precision passes, scale the bound by
    # the platform's own DEFAULT-vs-HIGHEST matmul gap instead of a loose fixed 2e-2.
    y_hi = reference_forward(x, params, kernel_size=kernel_size,
                             precision=jax.lax.Precision.HIGHEST)
    y_lo = reference_forward(x, params, kernel_size=kernel_size,
                             precision=jax.lax.Precision.DEFAULT)
    mxu_gap = float(jnp.max(jnp.abs(y_lo - y_hi)))
    tol = max(1e-3, 8.0 * mxu_gap)
    err = float(jnp.max(jnp.abs(y - y_hi)))
    assert err < tol, f"mismatch vs pure-JAX reference: max abs err = {err} (tol {tol})"
    print("KERNEL_OK")
</pallas_src>

<mosaic_0001>
module attributes {stable_mosaic.version = 11 : i64} {
  func.func @_waveblock_kernel(%arg0: i32, %arg1: memref<2x16x40xf32, #tpu.memory_space<vmem>>, %arg2: memref<40x16xf32, #tpu.memory_space<vmem>>, %arg3: memref<1x16xf32, #tpu.memory_space<vmem>>, %arg4: memref<2x48x32xf32, #tpu.memory_space<vmem>>, %arg5: memref<2x1x32xf32, #tpu.memory_space<vmem>>, %arg6: memref<2x16x16xf32, #tpu.memory_space<vmem>>, %arg7: memref<2x1x16xf32, #tpu.memory_space<vmem>>, %arg8: memref<2x16xf32, #tpu.memory_space<vmem>>, %arg9: memref<2x16x16xf32, #tpu.memory_space<vmem>>, %arg10: memref<2x20x16xf32, #tpu.memory_space<vmem>>, %arg11: memref<2x16x48xf32, #tpu.memory_space<vmem>>) attributes {dimension_semantics = [#tpu.dimension_semantics<parallel>], iteration_bounds = array<i64: 1>, scalar_prefetch = 0 : i64, scratch_operands = 2 : i64, tpu.core_type = #tpu.core_type<tc>, window_params = [{transform_indices = @transform_0, window_bounds = array<i64: 2, 16, 40>}, {pipeline_mode = #tpu.pipeline_mode<synchronous>, transform_indices = @transform_1, window_bounds = array<i64: 40, 16>}, {pipeline_mode = #tpu.pipeline_mode<synchronous>, transform_indices = @transform_2, window_bounds = array<i64: 1, 16>}, {pipeline_mode = #tpu.pipeline_mode<synchronous>, transform_indices = @transform_3, window_bounds = array<i64: 2, 48, 32>}, {pipeline_mode = #tpu.pipeline_mode<synchronous>, transform_indices = @transform_4, window_bounds = array<i64: 2, 1, 32>}, {pipeline_mode = #tpu.pipeline_mode<synchronous>, transform_indices = @transform_5, window_bounds = array<i64: 2, 16, 16>}, {pipeline_mode = #tpu.pipeline_mode<synchronous>, transform_indices = @transform_6, window_bounds = array<i64: 2, 1, 16>}, {pipeline_mode = #tpu.pipeline_mode<synchronous>, transform_indices = @transform_7, window_bounds = array<i64: 2, 16>}, {transform_indices = @transform_8, window_bounds = array<i64: 2, 16, 16>}]} {
    %c0 = arith.constant 0 : index
    %c0_0 = arith.constant 0 : index
    %c0_1 = arith.constant 0 : index
    %0 = vector.load %arg1[%c0, %c0_0, %c0_1] : memref<2x16x40xf32, #tpu.memory_space<vmem>>, vector<2x16x40xf32>
    %1 = vector.shape_cast %0 : vector<2x16x40xf32> to vector<32x40xf32>
    %c0_2 = arith.constant 0 : index
    %c0_3 = arith.constant 0 : index
    %2 = vector.load %arg2[%c0_2, %c0_3] : memref<40x16xf32, #tpu.memory_space<vmem>>, vector<40x16xf32>
    %cst = arith.constant dense<0.000000e+00> : vector<32x16xf32>
    %3 = tpu.matmul %1, %2, %cst {dimension_numbers = #tpu.dot_dimension_numbers<[1], [0], [0], [1], [0, 0, 1, 1], [], []>} : vector<32x40xf32>, vector<40x16xf32>, vector<32x16xf32> -> vector<32x16xf32>
    %c0_4 = arith.constant 0 : index
    %c0_5 = arith.constant 0 : index
    %4 = vector.load %arg3[%c0_4, %c0_5] : memref<1x16xf32, #tpu.memory_space<vmem>>, vector<1x16xf32>
    %5 = vector.broadcast %4 : vector<1x16xf32> to vector<32x16xf32>
    %6 = arith.addf %3, %5 : vector<32x16xf32>
    %cst_6 = arith.constant 0.000000e+00 : f32
    %7 = vector.broadcast %cst_6 : f32 to vector<2x2x16xf32>
    %c0_7 = arith.constant 0 : index
    %c0_8 = arith.constant 0 : index
    %c0_9 = arith.constant 0 : index
    %8 = vector.load %arg10[%c0_7, %c0_8, %c0_9] : memref<2x20x16xf32, #tpu.memory_space<vmem>>, vector<2x2x16xf32>
    tpu.vector_store %arg10[%c0_7, %c0_8, %c0_9], %7 {strides = array<i32>} : memref<2x20x16xf32, #tpu.memory_space<vmem>>, vector<2x2x16xf32>,
    %cst_10 = arith.constant 0.000000e+00 : f32
    %9 = vector.broadcast %cst_10 : f32 to vector<2x2x16xf32>
    %c0_11 = arith.constant 0 : index
    %c18 = arith.constant 18 : index
    %c0_12 = arith.constant 0 : index
    %10 = vector.load %arg10[%c0_11, %c18, %c0_12] : memref<2x20x16xf32, #tpu.memory_space<vmem>>, vector<2x2x16xf32>
    tpu.vector_store %arg10[%c0_11, %c18, %c0_12], %9 {strides = array<i32>} : memref<2x20x16xf32, #tpu.memory_space<vmem>>, vector<2x2x16xf32>,
    %11 = vector.shape_cast %6 : vector<32x16xf32> to vector<2x16x16xf32>
    %12 = vector.extract_strided_slice %11 {offsets = [0, 0, 0], sizes = [1, 16, 16], strides = [1, 1, 1]} : vector<2x16x16xf32> to vector<1x16x16xf32>
    %13 = vector.shape_cast %12 : vector<1x16x16xf32> to vector<16x16xf32>
    %c0_13 = arith.constant 0 : index
    %c2 = arith.constant 2 : index
    %c0_14 = arith.constant 0 : index
    %14 = vector.load %arg10[%c0_13, %c2, %c0_14] : memref<2x20x16xf32, #tpu.memory_space<vmem>>, vector<1x16x16xf32>
    %15 = vector.shape_cast %14 : vector<1x16x16xf32> to vector<16x16xf32>
    %16 = vector.shape_cast %13 : vector<16x16xf32> to vector<1x16x16xf32>
    tpu.vector_store %arg10[%c0_13, %c2, %c0_14], %16 {strides = array<i32>} : memref<2x20x16xf32, #tpu.memory_space<vmem>>, vector<1x16x16xf32>,
    %c0_15 = arith.constant 0 : index
    %c1 = arith.constant 1 : index
    %c0_16 = arith.constant 0 : index
    %17 = vector.load %arg10[%c0_15, %c1, %c0_16] : memref<2x20x16xf32, #tpu.memory_space<vmem>>, vector<1x16x16xf32>
    %18 = vector.shape_cast %17 : vector<1x16x16xf32> to vector<16x16xf32>
    %c0_17 = arith.constant 0 : index
    %c0_18 = arith.constant 0 : index
    %c0_19 = arith.constant 0 : index
    %19 = vector.load %arg11[%c0_17, %c0_18, %c0_19] : memref<2x16x48xf32, #tpu.memory_space<vmem>>, vector<1x16x16xf32>
    %20 = vector.shape_cast %19 : vector<1x16x16xf32> to vector<16x16xf32>
    %21 = vector.shape_cast %18 : vector<16x16xf32> to vector<1x16x16xf32>
    tpu.vector_store %arg11[%c0_17, %c0_18, %c0_19], %21 {strides = array<i32>} : memref<2x16x48xf32, #tpu.memory_space<vmem>>, vector<1x16x16xf32>,
    %c0_20 = arith.constant 0 : index
    %c2_21 = arith.constant 2 : index
    %c0_22 = arith.constant 0 : index
    %22 = vector.load %arg10[%c0_20, %c2_21, %c0_22] : memref<2x20x16xf32, #tpu.memory_space<vmem>>, vector<1x16x16xf32>
    %23 = vector.shape_cast %22 : vector<1x16x16xf32> to vector<16x16xf32>
    %c0_23 = arith.constant 0 : index
    %c0_24 = arith.constant 0 : index
    %c16 = arith.constant 16 : index
    %24 = vector.load %arg11[%c0_23, %c0_24, %c16] : memref<2x16x48xf32, #tpu.memory_space<vmem>>, vector<1x16x16xf32>
    %25 = vector.shape_cast %24 : vector<1x16x16xf32> to vector<16x16xf32>
    %26 = vector.shape_cast %23 : vector<16x16xf32> to vector<1x16x16xf32>
    tpu.vector_store %arg11[%c0_23, %c0_24, %c16], %26 {strides = array<i32>} : memref<2x16x48xf32, #tpu.memory_space<vmem>>, vector<1x16x16xf32>,
    %c0_25 = arith.constant 0 : index
    %c3 = arith.constant 3 : index
    %c0_26 = arith.constant 0 : index
    %27 = vector.load %arg10[%c0_25, %c3, %c0_26] : memref<2x20x16xf32, #tpu.memory_space<vmem>>, vector<1x16x16xf32>
    %28 = vector.shape_cast %27 : vector<1x16x16xf32> to vector<16x16xf32>
    %c0_27 = arith.constant 0 : index
    %c0_28 = arith.constant 0 : index
    %c32 = arith.constant 32 : index
    %29 = vector.load %arg11[%c0_27, %c0_28, %c32] : memref<2x16x48xf32, #tpu.memory_space<vmem>>, vector<1x16x16xf32>
    %30 = vector.shape_cast %29 : vector<1x16x16xf32> to vector<16x16xf32>
    %31 = vector.shape_cast %28 : vector<16x16xf32> to vector<1x16x16xf32>
    tpu.vector_store %arg11[%c0_27, %c0_28, %c32], %31 {strides = array<i32>} : memref<2x16x48xf32, #tpu.memory_space<vmem>>, vector<1x16x16xf32>,
    %32 = vector.extract_strided_slice %11 {offsets = [1, 0, 0], sizes = [1, 16, 16], strides = [1, 1, 1]} : vector<2x16x16xf32> to vector<1x16x16xf32>
    %33 = vector.shape_cast %32 : vector<1x16x16xf32> to vector<16x16xf32>
    %c1_29 = arith.constant 1 : index
    %c2_30 = arith.constant 2 : index
    %c0_31 = arith.constant 0 : index
    %34 = vector.load %arg10[%c1_29, %c2_30, %c0_31] : memref<2x20x16xf32, #tpu.memory_space<vmem>>, vector<1x16x16xf32>
    %35 = vector.shape_cast %34 : vector<1x16x16xf32> to vector<16x16xf32>
    %36 = vector.shape_cast %33 : vector<16x16xf32> to vector<1x16x16xf32>
    tpu.vector_store %arg10[%c1_29, %c2_30, %c0_31], %36 {strides = array<i32>} : memref<2x20x16xf32, #tpu.memory_space<vmem>>, vector<1x16x16xf32>,
    %c1_32 = arith.constant 1 : index
    %c1_33 = arith.constant 1 : index
    %c0_34 = arith.constant 0 : index
    %37 = vector.load %arg10[%c1_32, %c1_33, %c0_34] : memref<2x20x16xf32, #tpu.memory_space<vmem>>, vector<1x16x16xf32>
    %38 = vector.shape_cast %37 : vector<1x16x16xf32> to vector<16x16xf32>
    %c1_35 = arith.constant 1 : index
    %c0_36 = arith.constant 0 : index
    %c0_37 = arith.constant 0 : index
    %39 = vector.load %arg11[%c1_35, %c0_36, %c0_37] : memref<2x16x48xf32, #tpu.memory_space<vmem>>, vector<1x16x16xf32>
    %40 = vector.shape_cast %39 : vector<1x16x16xf32> to vector<16x16xf32>
    %41 = vector.shape_cast %38 : vector<16x16xf32> to vector<1x16x16xf32>
    tpu.vector_store %arg11[%c1_35, %c0_36, %c0_37], %41 {strides = array<i32>} : memref<2x16x48xf32, #tpu.memory_space<vmem>>, vector<1x16x16xf32>,
    %c1_38 = arith.constant 1 : index
    %c2_39 = arith.constant 2 : index
    %c0_40 = arith.constant 0 : index
    %42 = vector.load %arg10[%c1_38, %c2_39, %c0_40] : memref<2x20x16xf32, #tpu.memory_space<vmem>>, vector<1x16x16xf32>
    %43 = vector.shape_cast %42 : vector<1x16x16xf32> to vector<16x16xf32>
    %c1_41 = arith.constant 1 : index
    %c0_42 = arith.constant 0 : index
    %c16_43 = arith.constant 16 : index
    %44 = vector.load %arg11[%c1_41, %c0_42, %c16_43] : memref<2x16x48xf32, #tpu.memory_space<vmem>>, vector<1x16x16xf32>
    %45 = vector.shape_cast %44 : vector<1x16x16xf32> to vector<16x16xf32>
    %46 = vector.shape_cast %43 : vector<16x16xf32> to vector<1x16x16xf32>
    tpu.vector_store %arg11[%c1_41, %c0_42, %c16_43], %46 {strides = array<i32>} : memref<2x16x48xf32, #tpu.memory_space<vmem>>, vector<1x16x16xf32>,
    %c1_44 = arith.constant 1 : index
    %c3_45 = arith.constant 3 : index
    %c0_46 = arith.constant 0 : index
    %47 = vector.load %arg10[%c1_44, %c3_45, %c0_46] : memref<2x20x16xf32, #tpu.memory_space<vmem>>, vector<1x16x16xf32>
    %48 = vector.shape_cast %47 : vector<1x16x16xf32> to vector<16x16xf32>
    %c1_47 = arith.constant 1 : index
    %c0_48 = arith.constant 0 : index
    %c32_49 = arith.constant 32 : index
    %49 = vector.load %arg11[%c1_47, %c0_48, %c32_49] : memref<2x16x48xf32, #tpu.memory_space<vmem>>, vector<1x16x16xf32>
    %50 = vector.shape_cast %49 : vector<1x16x16xf32> to vector<16x16xf32>
    %51 = vector.shape_cast %48 : vector<16x16xf32> to vector<1x16x16xf32>
    tpu.vector_store %arg11[%c1_47, %c0_48, %c32_49], %51 {strides = array<i32>} : memref<2x16x48xf32, #tpu.memory_space<vmem>>, vector<1x16x16xf32>,
    %c0_50 = arith.constant 0 : index
    %c0_51 = arith.constant 0 : index
    %c0_52 = arith.constant 0 : index
    %52 = vector.load %arg11[%c0_50, %c0_51, %c0_52] : memref<2x16x48xf32, #tpu.memory_space<vmem>>, vector<2x16x48xf32>
    %53 = vector.shape_cast %52 : vector<2x16x48xf32> to vector<32x48xf32>
    %c0_53 = arith.constant 0 : index
    %c0_54 = arith.constant 0 : index
    %c0_55 = arith.constant 0 : index
    %54 = vector.load %arg4[%c0_53, %c0_54, %c0_55] : memref<2x48x32xf32, #tpu.memory_space<vmem>>, vector<1x48x32xf32>
    %55 = vector.shape_cast %54 : vector<1x48x32xf32> to vector<48x32xf32>
    %cst_56 = arith.constant dense<0.000000e+00> : vector<32x32xf32>
    %56 = tpu.matmul %53, %55, %cst_56 {dimension_numbers = #tpu.dot_dimension_numbers<[1], [0], [0], [1], [0, 0, 1, 1], [], []>} : vector<32x48xf32>, vector<48x32xf32>, vector<32x32xf32> -> vector<32x32xf32>
    %c0_57 = arith.constant 0 : index
    %c0_58 = arith.constant 0 : index
    %c0_59 = arith.constant 0 : index
    %57 = vector.load %arg5[%c0_57, %c0_58, %c0_59] : memref<2x1x32xf32, #tpu.memory_space<vmem>>, vector<1x1x32xf32>
    %58 = vector.shape_cast %57 : vector<1x1x32xf32> to vector<1x32xf32>
    %59 = vector.broadcast %58 : vector<1x32xf32> to vector<32x32xf32>
    %60 = arith.addf %56, %59 : vector<32x32xf32>
    %61 = vector.extract_strided_slice %60 {offsets = [0, 0], sizes = [32, 16], strides = [1, 1]} : vector<32x32xf32> to vector<32x16xf32>
    %62 = math.tanh %61 : vector<32x16xf32>
    %63 = vector.extract_strided_slice %60 {offsets = [0, 16], sizes = [32, 16], strides = [1, 1]} : vector<32x32xf32> to vector<32x16xf32>
    %64 = arith.negf %63 : vector<32x16xf32>
    %65 = math.exp %64 : vector<32x16xf32>
    %cst_60 = arith.constant 1.000000e+00 : f32
    %66 = vector.broadcast %cst_60 : f32 to vector<32x16xf32>
    %67 = arith.addf %66, %65 : vector<32x16xf32>
    %68 = arith.divf %66, %67 : vector<32x16xf32>
    %69 = arith.mulf %62, %68 : vector<32x16xf32>
    %c0_61 = arith.constant 0 : index
    %c0_62 = arith.constant 0 : index
    %c0_63 = arith.constant 0 : index
    %70 = vector.load %arg6[%c0_61, %c0_62, %c0_63] : memref<2x16x16xf32, #tpu.memory_space<vmem>>, vector<1x16x16xf32>
    %71 = vector.shape_cast %70 : vector<1x16x16xf32> to vector<16x16xf32>
    %cst_64 = arith.constant dense<0.000000e+00> : vector<32x16xf32>
    %72 = tpu.matmul %69, %71, %cst_64 {dimension_numbers = #tpu.dot_dimension_numbers<[1], [0], [0], [1], [0, 0, 1, 1], [], []>} : vector<32x16xf32>, vector<16x16xf32>, vector<32x16xf32> -> vector<32x16xf32>
    %c0_65 = arith.constant 0 : index
    %c0_66 = arith.constant 0 : index
    %c0_67 = arith.constant 0 : index
    %73 = vector.load %arg7[%c0_65, %c0_66, %c0_67] : memref<2x1x16xf32, #tpu.memory_space<vmem>>, vector<1x1x16xf32>
    %74 = vector.shape_cast %73 : vector<1x1x16xf32> to vector<1x16xf32>
    %75 = vector.broadcast %74 : vector<1x16xf32> to vector<32x16xf32>
    %76 = arith.addf %72, %75 : vector<32x16xf32>
    %77 = arith.addf %6, %76 : vector<32x16xf32>
    %78 = vector.shape_cast %76 : vector<32x16xf32> to vector<2x16x16xf32>
    %79 = vector.extract_strided_slice %78 {offsets = [0, 0, 0], sizes = [1, 16, 16], strides = [1, 1, 1]} : vector<2x16x16xf32> to vector<1x16x16xf32>
    %80 = vector.shape_cast %79 : vector<1x16x16xf32> to vector<16x16xf32>
    %c0_68 = arith.constant 0 : index
    %c2_69 = arith.constant 2 : index
    %c0_70 = arith.constant 0 : index
    %81 = vector.load %arg10[%c0_68, %c2_69, %c0_70] : memref<2x20x16xf32, #tpu.memory_space<vmem>>, vector<1x16x16xf32>
    %82 = vector.shape_cast %81 : vector<1x16x16xf32> to vector<16x16xf32>
    %83 = vector.shape_cast %80 : vector<16x16xf32> to vector<1x16x16xf32>
    tpu.vector_store %arg10[%c0_68, %c2_69, %c0_70], %83 {strides = array<i32>} : memref<2x20x16xf32, #tpu.memory_space<vmem>>, vector<1x16x16xf32>,
    %c0_71 = arith.constant 0 : index
    %c0_72 = arith.constant 0 : index
    %c0_73 = arith.constant 0 : index
    %84 = vector.load %arg10[%c0_71, %c0_72, %c0_73] : memref<2x20x16xf32, #tpu.memory_space<vmem>>, vector<1x16x16xf32>
    %85 = vector.shape_cast %84 : vector<1x16x16xf32> to vector<16x16xf32>
    %c0_74 = arith.constant 0 : index
    %c0_75 = arith.constant 0 : index
    %c0_76 = arith.constant 0 : index
    %86 = vector.load %arg11[%c0_74, %c0_75, %c0_76] : memref<2x16x48xf32, #tpu.memory_space<vmem>>, vector<1x16x16xf32>
    %87 = vector.shape_cast %86 : vector<1x16x16xf32> to vector<16x16xf32>
    %88 = vector.shape_cast %85 : vector<16x16xf32> to vector<1x16x16xf32>
    tpu.vector_store %arg11[%c0_74, %c0_75, %c0_76], %88 {strides = array<i32>} : memref<2x16x48xf32, #tpu.memory_space<vmem>>, vector<1x16x16xf32>,
    %c0_77 = arith.constant 0 : index
    %c2_78 = arith.constant 2 : index
    %c0_79 = arith.constant 0 : index
    %89 = vector.load %arg10[%c0_77, %c2_78, %c0_79] : memref<2x20x16xf32, #tpu.memory_space<vmem>>, vector<1x16x16xf32>
    %90 = vector.shape_cast %89 : vector<1x16x16xf32> to vector<16x16xf32>
    %c0_80 = arith.constant 0 : index
    %c0_81 = arith.constant 0 : index
    %c16_82 = arith.constant 16 : index
    %91 = vector.load %arg11[%c0_80, %c0_81, %c16_82] : memref<2x16x48xf32, #tpu.memory_space<vmem>>, vector<1x16x16xf32>
    %92 = vector.shape_cast %91 : vector<1x16x16xf32> to vector<16x16xf32>
    %93 = vector.shape_cast %90 : vector<16x16xf32> to vector<1x16x16xf32>
    tpu.vector_store %arg11[%c0_80, %c0_81, %c16_82], %93 {strides = array<i32>} : memref<2x16x48xf32, #tpu.memory_space<vmem>>, vector<1x16x16xf32>,
    %c0_83 = arith.constant 0 : index
    %c4 = arith.constant 4 : index
    %c0_84 = arith.constant 0 : index
    %94 = vector.load %arg10[%c0_83, %c4, %c0_84] : memref<2x20x16xf32, #tpu.memory_space<vmem>>, vector<1x16x16xf32>
    %95 = vector.shape_cast %94 : vector<1x16x16xf32> to vector<16x16xf32>
    %c0_85 = arith.constant 0 : index
    %c0_86 = arith.constant 0 : index
    %c32_87 = arith.constant 32 : index
    %96 = vector.load %arg11[%c0_85, %c0_86, %c32_87] : memref<2x16x48xf32, #tpu.memory_space<vmem>>, vector<1x16x16xf32>
    %97 = vector.shape_cast %96 : vector<1x16x16xf32> to vector<16x16xf32>
    %98 = vector.shape_cast %95 : vector<16x16xf32> to vector<1x16x16xf32>
    tpu.vector_store %arg11[%c0_85, %c0_86, %c32_87], %98 {strides = array<i32>} : memref<2x16x48xf32, #tpu.memory_space<vmem>>, vector<1x16x16xf32>,
    %99 = vector.extract_strided_slice %78 {offsets = [1, 0, 0], sizes = [1, 16, 16], strides = [1, 1, 1]} : vector<2x16x16xf32> to vector<1x16x16xf32>
    %100 = vector.shape_cast %99 : vector<1x16x16xf32> to vector<16x16xf32>
    %c1_88 = arith.constant 1 : index
    %c2_89 = arith.constant 2 : index
    %c0_90 = arith.constant 0 : index
    %101 = vector.load %arg10[%c1_88, %c2_89, %c0_90] : memref<2x20x16xf32, #tpu.memory_space<vmem>>, vector<1x16x16xf32>
    %102 = vector.shape_cast %101 : vector<1x16x16xf32> to vector<16x16xf32>
    %103 = vector.shape_cast %100 : vector<16x16xf32> to vector<1x16x16xf32>
    tpu.vector_store %arg10[%c1_88, %c2_89, %c0_90], %103 {strides = array<i32>} : memref<2x20x16xf32, #tpu.memory_space<vmem>>, vector<1x16x16xf32>,
    %c1_91 = arith.constant 1 : index
    %c0_92 = arith.constant 0 : index
    %c0_93 = arith.constant 0 : index
    %104 = vector.load %arg10[%c1_91, %c0_92, %c0_93] : memref<2x20x16xf32, #tpu.memory_space<vmem>>, vector<1x16x16xf32>
    %105 = vector.shape_cast %104 : vector<1x16x16xf32> to vector<16x16xf32>
    %c1_94 = arith.constant 1 : index
    %c0_95 = arith.constant 0 : index
    %c0_96 = arith.constant 0 : index
    %106 = vector.load %arg11[%c1_94, %c0_95, %c0_96] : memref<2x16x48xf32, #tpu.memory_space<vmem>>, vector<1x16x16xf32>
    %107 = vector.shape_cast %106 : vector<1x16x16xf32> to vector<16x16xf32>
    %108 = vector.shape_cast %105 : vector<16x16xf32> to vector<1x16x16xf32>
    tpu.vector_store %arg11[%c1_94, %c0_95, %c0_96], %108 {strides = array<i32>} : memref<2x16x48xf32, #tpu.memory_space<vmem>>, vector<1x16x16xf32>,
    %c1_97 = arith.constant 1 : index
    %c2_98 = arith.constant 2 : index
    %c0_99 = arith.constant 0 : index
    %109 = vector.load %arg10[%c1_97, %c2_98, %c0_99] : memref<2x20x16xf32, #tpu.memory_space<vmem>>, vector<1x16x16xf32>
    %110 = vector.shape_cast %109 : vector<1x16x16xf32> to vector<16x16xf32>
    %c1_100 = arith.constant 1 : index
    %c0_101 = arith.constant 0 : index
    %c16_102 = arith.constant 16 : index
    %111 = vector.load %arg11[%c1_100, %c0_101, %c16_102] : memref<2x16x48xf32, #tpu.memory_space<vmem>>, vector<1x16x16xf32>
    %112 = vector.shape_cast %111 : vector<1x16x16xf32> to vector<16x16xf32>
    %113 = vector.shape_cast %110 : vector<16x16xf32> to vector<1x16x16xf32>
    tpu.vector_store %arg11[%c1_100, %c0_101, %c16_102], %113 {strides = array<i32>} : memref<2x16x48xf32, #tpu.memory_space<vmem>>, vector<1x16x16xf32>,
    %c1_103 = arith.constant 1 : index
    %c4_104 = arith.constant 4 : index
    %c0_105 = arith.constant 0 : index
    %114 = vector.load %arg10[%c1_103, %c4_104, %c0_105] : memref<2x20x16xf32, #tpu.memory_space<vmem>>, vector<1x16x16xf32>
    %115 = vector.shape_cast %114 : vector<1x16x16xf32> to vector<16x16xf32>
    %c1_106 = arith.constant 1 : index
    %c0_107 = arith.constant 0 : index
    %c32_108 = arith.constant 32 : index
    %116 = vector.load %arg11[%c1_106, %c0_107, %c32_108] : memref<2x16x48xf32, #tpu.memory_space<vmem>>, vector<1x16x16xf32>
    %117 = vector.shape_cast %116 : vector<1x16x16xf32> to vector<16x16xf32>
    %118 = vector.shape_cast %115 : vector<16x16xf32> to vector<1x16x16xf32>
    tpu.vector_store %arg11[%c1_106, %c0_107, %c32_108], %118 {strides = array<i32>} : memref<2x16x48xf32, #tpu.memory_space<vmem>>, vector<1x16x16xf32>,
    %c0_109 = arith.constant 0 : index
    %c0_110 = arith.constant 0 : index
    %c0_111 = arith.constant 0 : index
    %119 = vector.load %arg11[%c0_109, %c0_110, %c0_111] : memref<2x16x48xf32, #tpu.memory_space<vmem>>, vector<2x16x48xf32>
    %120 = vector.shape_cast %119 : vector<2x16x48xf32> to vector<32x48xf32>
    %c1_112 = arith.constant 1 : index
    %c0_113 = arith.constant 0 : index
    %c0_114 = arith.constant 0 : index
    %121 = vector.load %arg4[%c1_112, %c0_113, %c0_114] : memref<2x48x32xf32, #tpu.memory_space<vmem>>, vector<1x48x32xf32>
    %122 = vector.shape_cast %121 : vector<1x48x32xf32> to vector<48x32xf32>
    %cst_115 = arith.constant dense<0.000000e+00> : vector<32x32xf32>
    %123 = tpu.matmul %120, %122, %cst_115 {dimension_numbers = #tpu.dot_dimension_numbers<[1], [0], [0], [1], [0, 0, 1, 1], [], []>} : vector<32x48xf32>, vector<48x32xf32>, vector<32x32xf32> -> vector<32x32xf32>
    %c1_116 = arith.constant 1 : index
    %c0_117 = arith.constant 0 : index
    %c0_118 = arith.constant 0 : index
    %124 = vector.load %arg5[%c1_116, %c0_117, %c0_118] : memref<2x1x32xf32, #tpu.memory_space<vmem>>, vector<1x1x32xf32>
    %125 = vector.shape_cast %124 : vector<1x1x32xf32> to vector<1x32xf32>
    %126 = vector.broadcast %125 : vector<1x32xf32> to vector<32x32xf32>
    %127 = arith.addf %123, %126 : vector<32x32xf32>
    %128 = vector.extract_strided_slice %127 {offsets = [0, 0], sizes = [32, 16], strides = [1, 1]} : vector<32x32xf32> to vector<32x16xf32>
    %129 = math.tanh %128 : vector<32x16xf32>
    %130 = vector.extract_strided_slice %127 {offsets = [0, 16], sizes = [32, 16], strides = [1, 1]} : vector<32x32xf32> to vector<32x16xf32>
    %131 = arith.negf %130 : vector<32x16xf32>
    %132 = math.exp %131 : vector<32x16xf32>
    %cst_119 = arith.constant 1.000000e+00 : f32
    %133 = vector.broadcast %cst_119 : f32 to vector<32x16xf32>
    %134 = arith.addf %133, %132 : vector<32x16xf32>
    %135 = arith.divf %133, %134 : vector<32x16xf32>
    %136 = arith.mulf %129, %135 : vector<32x16xf32>
    %c1_120 = arith.constant 1 : index
    %c0_121 = arith.constant 0 : index
    %c0_122 = arith.constant 0 : index
    %137 = vector.load %arg6[%c1_120, %c0_121, %c0_122] : memref<2x16x16xf32, #tpu.memory_space<vmem>>, vector<1x16x16xf32>
    %138 = vector.shape_cast %137 : vector<1x16x16xf32> to vector<16x16xf32>
    %cst_123 = arith.constant dense<0.000000e+00> : vector<32x16xf32>
    %139 = tpu.matmul %136, %138, %cst_123 {dimension_numbers = #tpu.dot_dimension_numbers<[1], [0], [0], [1], [0, 0, 1, 1], [], []>} : vector<32x16xf32>, vector<16x16xf32>, vector<32x16xf32> -> vector<32x16xf32>
    %c1_124 = arith.constant 1 : index
    %c0_125 = arith.constant 0 : index
    %c0_126 = arith.constant 0 : index
    %140 = vector.load %arg7[%c1_124, %c0_125, %c0_126] : memref<2x1x16xf32, #tpu.memory_space<vmem>>, vector<1x1x16xf32>
    %141 = vector.shape_cast %140 : vector<1x1x16xf32> to vector<1x16xf32>
    %142 = vector.broadcast %141 : vector<1x16xf32> to vector<32x16xf32>
    %143 = arith.addf %139, %142 : vector<32x16xf32>
    %144 = arith.addf %77, %143 : vector<32x16xf32>
    %c0_127 = arith.constant 0 : index
    %c0_128 = arith.constant 0 : index
    %145 = vector.load %arg8[%c0_127, %c0_128] : memref<2x16xf32, #tpu.memory_space<vmem>>, vector<1x16xf32>
    %146 = vector.broadcast %145 : vector<1x16xf32> to vector<32x16xf32>
    %147 = arith.mulf %144, %146 : vector<32x16xf32>
    %c1_129 = arith.constant 1 : index
    %c0_130 = arith.constant 0 : index
    %148 = vector.load %arg8[%c1_129, %c0_130] : memref<2x16xf32, #tpu.memory_space<vmem>>, vector<1x16xf32>
    %149 = vector.broadcast %148 : vector<1x16xf32> to vector<32x16xf32>
    %150 = arith.addf %147, %149 : vector<32x16xf32>
    %cst_131 = arith.constant 0.000000e+00 : f32
    %151 = vector.broadcast %cst_131 : f32 to vector<32x16xf32>
    %152 = arith.maximumf %150, %151 : vector<32x16xf32>
    %153 = vector.shape_cast %152 : vector<32x16xf32> to vector<2x16x16xf32>
    %c0_132 = arith.constant 0 : index
    %c0_133 = arith.constant 0 : index
    %c0_134 = arith.constant 0 : index
    %154 = vector.load %arg9[%c0_132, %c0_133, %c0_134] : memref<2x16x16xf32, #tpu.memory_space<vmem>>, vector<2x16x16xf32>
    tpu.vector_store %arg9[%c0_132, %c0_133, %c0_134], %153 {strides = array<i32>} : memref<2x16x16xf32, #tpu.memory_space<vmem>>, vector<2x16x16xf32>,
    return
  }
  func.func @transform_0(%arg0: i32) -> (i32, i32, i32) {
    %c0_i32 = arith.constant 0 : i32
    %c0_i32_0 = arith.constant 0 : i32
    %c0_i32_1 = arith.constant 0 : i32
    return %arg0, %c0_i32, %c0_i32_0 : i32, i32, i32
  }
  func.func @transform_1(%arg0: i32) -> (i32, i32) {
    %c0_i32 = arith.constant 0 : i32
    %c0_i32_0 = arith.constant 0 : i32
    %c0_i32_1 = arith.constant 0 : i32
    return %c0_i32, %c0_i32_0 : i32, i32
  }
  func.func @transform_2(%arg0: i32) -> (i32, i32) {
    %c0_i32 = arith.constant 0 : i32
    %c0_i32_0 = arith.constant 0 : i32
    %c0_i32_1 = arith.constant 0 : i32
    return %c0_i32, %c0_i32_0 : i32, i32
  }
  func.func @transform_3(%arg0: i32) -> (i32, i32, i32) {
    %c0_i32 = arith.constant 0 : i32
    %c0_i32_0 = arith.constant 0 : i32
    %c0_i32_1 = arith.constant 0 : i32
    %c0_i32_2 = arith.constant 0 : i32
    return %c0_i32, %c0_i32_0, %c0_i32_1 : i32, i32, i32
  }
  func.func @transform_4(%arg0: i32) -> (i32, i32, i32) {
    %c0_i32 = arith.constant 0 : i32
    %c0_i32_0 = arith.constant 0 : i32
    %c0_i32_1 = arith.constant 0 : i32
    %c0_i32_2 = arith.constant 0 : i32
    return %c0_i32, %c0_i32_0, %c0_i32_1 : i32, i32, i32
  }
  func.func @transform_5(%arg0: i32) -> (i32, i32, i32) {
    %c0_i32 = arith.constant 0 : i32
    %c0_i32_0 = arith.constant 0 : i32
    %c0_i32_1 = arith.constant 0 : i32
    %c0_i32_2 = arith.constant 0 : i32
    return %c0_i32, %c0_i32_0, %c0_i32_1 : i32, i32, i32
  }
  func.func @transform_6(%arg0: i32) -> (i32, i32, i32) {
    %c0_i32 = arith.constant 0 : i32
    %c0_i32_0 = arith.constant 0 : i32
    %c0_i32_1 = arith.constant 0 : i32
    %c0_i32_2 = arith.constant 0 : i32
    return %c0_i32, %c0_i32_0, %c0_i32_1 : i32, i32, i32
  }
  func.func @transform_7(%arg0: i32) -> (i32, i32) {
    %c0_i32 = arith.constant 0 : i32
    %c0_i32_0 = arith.constant 0 : i32
    %c0_i32_1 = arith.constant 0 : i32
    return %c0_i32, %c0_i32_0 : i32, i32
  }
  func.func @transform_8(%arg0: i32) -> (i32, i32, i32) {
    %c0_i32 = arith.constant 0 : i32
    %c0_i32_0 = arith.constant 0 : i32
    %c0_i32_1 = arith.constant 0 : i32
    return %arg0, %c0_i32, %c0_i32_0 : i32, i32, i32
  }
}

module attributes {stable_mosaic.version = 11 : i64} {
  func.func @_waveblock_kernel(%arg0: i32, %arg1: memref<2x16x16xf32, #tpu.memory_space<vmem>>, %arg2: memref<16x16xf32, #tpu.memory_space<vmem>>, %arg3: memref<1x16xf32, #tpu.memory_space<vmem>>, %arg4: memref<2x48x32xf32, #tpu.memory_space<vmem>>, %arg5: memref<2x1x32xf32, #tpu.memory_space<vmem>>, %arg6: memref<2x16x16xf32, #tpu.memory_space<vmem>>, %arg7: memref<2x1x16xf32, #tpu.memory_space<vmem>>, %arg8: memref<2x16xf32, #tpu.memory_space<vmem>>, %arg9: memref<2x16x16xf32, #tpu.memory_space<vmem>>, %arg10: memref<2x20x16xf32, #tpu.memory_space<vmem>>, %arg11: memref<2x16x48xf32, #tpu.memory_space<vmem>>) attributes {dimension_semantics = [#tpu.dimension_semantics<parallel>], iteration_bounds = array<i64: 1>, scalar_prefetch = 0 : i64, scratch_operands = 2 : i64, tpu.core_type = #tpu.core_type<tc>, window_params = [{transform_indices = @transform_0, window_bounds = array<i64: 2, 16, 16>}, {pipeline_mode = #tpu.pipeline_mode<synchronous>, transform_indices = @transform_1, window_bounds = array<i64: 16, 16>}, {pipeline_mode = #tpu.pipeline_mode<synchronous>, transform_indices = @transform_2, window_bounds = array<i64: 1, 16>}, {pipeline_mode = #tpu.pipeline_mode<synchronous>, transform_indices = @transform_3, window_bounds = array<i64: 2, 48, 32>}, {pipeline_mode = #tpu.pipeline_mode<synchronous>, transform_indices = @transform_4, window_bounds = array<i64: 2, 1, 32>}, {pipeline_mode = #tpu.pipeline_mode<synchronous>, transform_indices = @transform_5, window_bounds = array<i64: 2, 16, 16>}, {pipeline_mode = #tpu.pipeline_mode<synchronous>, transform_indices = @transform_6, window_bounds = array<i64: 2, 1, 16>}, {pipeline_mode = #tpu.pipeline_mode<synchronous>, transform_indices = @transform_7, window_bounds = array<i64: 2, 16>}, {transform_indices = @transform_8, window_bounds = array<i64: 2, 16, 16>}]} {
    %c0 = arith.constant 0 : index
    %c0_0 = arith.constant 0 : index
    %c0_1 = arith.constant 0 : index
    %0 = vector.load %arg1[%c0, %c0_0, %c0_1] : memref<2x16x16xf32, #tpu.memory_space<vmem>>, vector<2x16x16xf32>
    %1 = vector.shape_cast %0 : vector<2x16x16xf32> to vector<32x16xf32>
    %c0_2 = arith.constant 0 : index
    %c0_3 = arith.constant 0 : index
    %2 = vector.load %arg2[%c0_2, %c0_3] : memref<16x16xf32, #tpu.memory_space<vmem>>, vector<16x16xf32>
    %cst = arith.constant dense<0.000000e+00> : vector<32x16xf32>
    %3 = tpu.matmul %1, %2, %cst {dimension_numbers = #tpu.dot_dimension_numbers<[1], [0], [0], [1], [0, 0, 1, 1], [], []>} : vector<32x16xf32>, vector<16x16xf32>, vector<32x16xf32> -> vector<32x16xf32>
    %c0_4 = arith.constant 0 : index
    %c0_5 = arith.constant 0 : index
    %4 = vector.load %arg3[%c0_4, %c0_5] : memref<1x16xf32, #tpu.memory_space<vmem>>, vector<1x16xf32>
    %5 = vector.broadcast %4 : vector<1x16xf32> to vector<32x16xf32>
    %6 = arith.addf %3, %5 : vector<32x16xf32>
    %cst_6 = arith.constant 0.000000e+00 : f32
    %7 = vector.broadcast %cst_6 : f32 to vector<2x2x16xf32>
    %c0_7 = arith.constant 0 : index
    %c0_8 = arith.constant 0 : index
    %c0_9 = arith.constant 0 : index
    %8 = vector.load %arg10[%c0_7, %c0_8, %c0_9] : memref<2x20x16xf32, #tpu.memory_space<vmem>>, vector<2x2x16xf32>
    tpu.vector_store %arg10[%c0_7, %c0_8, %c0_9], %7 {strides = array<i32>} : memref<2x20x16xf32, #tpu.memory_space<vmem>>, vector<2x2x16xf32>,
    %cst_10 = arith.constant 0.000000e+00 : f32
    %9 = vector.broadcast %cst_10 : f32 to vector<2x2x16xf32>
    %c0_11 = arith.constant 0 : index
    %c18 = arith.constant 18 : index
    %c0_12 = arith.constant 0 : index
    %10 = vector.load %arg10[%c0_11, %c18, %c0_12] : memref<2x20x16xf32, #tpu.memory_space<vmem>>, vector<2x2x16xf32>
    tpu.vector_store %arg10[%c0_11, %c18, %c0_12], %9 {strides = array<i32>} : memref<2x20x16xf32, #tpu.memory_space<vmem>>, vector<2x2x16xf32>,
    %11 = vector.shape_cast %6 : vector<32x16xf32> to vector<2x16x16xf32>
    %12 = vector.extract_strided_slice %11 {offsets = [0, 0, 0], sizes = [1, 16, 16], strides = [1, 1, 1]} : vector<2x16x16xf32> to vector<1x16x16xf32>
    %13 = vector.shape_cast %12 : vector<1x16x16xf32> to vector<16x16xf32>
    %c0_13 = arith.constant 0 : index
    %c2 = arith.constant 2 : index
    %c0_14 = arith.constant 0 : index
    %14 = vector.load %arg10[%c0_13, %c2, %c0_14] : memref<2x20x16xf32, #tpu.memory_space<vmem>>, vector<1x16x16xf32>
    %15 = vector.shape_cast %14 : vector<1x16x16xf32> to vector<16x16xf32>
    %16 = vector.shape_cast %13 : vector<16x16xf32> to vector<1x16x16xf32>
    tpu.vector_store %arg10[%c0_13, %c2, %c0_14], %16 {strides = array<i32>} : memref<2x20x16xf32, #tpu.memory_space<vmem>>, vector<1x16x16xf32>,
    %c0_15 = arith.constant 0 : index
    %c1 = arith.constant 1 : index
    %c0_16 = arith.constant 0 : index
    %17 = vector.load %arg10[%c0_15, %c1, %c0_16] : memref<2x20x16xf32, #tpu.memory_space<vmem>>, vector<1x16x16xf32>
    %18 = vector.shape_cast %17 : vector<1x16x16xf32> to vector<16x16xf32>
    %c0_17 = arith.constant 0 : index
    %c0_18 = arith.constant 0 : index
    %c0_19 = arith.constant 0 : index
    %19 = vector.load %arg11[%c0_17, %c0_18, %c0_19] : memref<2x16x48xf32, #tpu.memory_space<vmem>>, vector<1x16x16xf32>
    %20 = vector.shape_cast %19 : vector<1x16x16xf32> to vector<16x16xf32>
    %21 = vector.shape_cast %18 : vector<16x16xf32> to vector<1x16x16xf32>
    tpu.vector_store %arg11[%c0_17, %c0_18, %c0_19], %21 {strides = array<i32>} : memref<2x16x48xf32, #tpu.memory_space<vmem>>, vector<1x16x16xf32>,
    %c0_20 = arith.constant 0 : index
    %c2_21 = arith.constant 2 : index
    %c0_22 = arith.constant 0 : index
    %22 = vector.load %arg10[%c0_20, %c2_21, %c0_22] : memref<2x20x16xf32, #tpu.memory_space<vmem>>, vector<1x16x16xf32>
    %23 = vector.shape_cast %22 : vector<1x16x16xf32> to vector<16x16xf32>
    %c0_23 = arith.constant 0 : index
    %c0_24 = arith.constant 0 : index
    %c16 = arith.constant 16 : index
    %24 = vector.load %arg11[%c0_23, %c0_24, %c16] : memref<2x16x48xf32, #tpu.memory_space<vmem>>, vector<1x16x16xf32>
    %25 = vector.shape_cast %24 : vector<1x16x16xf32> to vector<16x16xf32>
    %26 = vector.shape_cast %23 : vector<16x16xf32> to vector<1x16x16xf32>
    tpu.vector_store %arg11[%c0_23, %c0_24, %c16], %26 {strides = array<i32>} : memref<2x16x48xf32, #tpu.memory_space<vmem>>, vector<1x16x16xf32>,
    %c0_25 = arith.constant 0 : index
    %c3 = arith.constant 3 : index
    %c0_26 = arith.constant 0 : index
    %27 = vector.load %arg10[%c0_25, %c3, %c0_26] : memref<2x20x16xf32, #tpu.memory_space<vmem>>, vector<1x16x16xf32>
    %28 = vector.shape_cast %27 : vector<1x16x16xf32> to vector<16x16xf32>
    %c0_27 = arith.constant 0 : index
    %c0_28 = arith.constant 0 : index
    %c32 = arith.constant 32 : index
    %29 = vector.load %arg11[%c0_27, %c0_28, %c32] : memref<2x16x48xf32, #tpu.memory_space<vmem>>, vector<1x16x16xf32>
    %30 = vector.shape_cast %29 : vector<1x16x16xf32> to vector<16x16xf32>
    %31 = vector.shape_cast %28 : vector<16x16xf32> to vector<1x16x16xf32>
    tpu.vector_store %arg11[%c0_27, %c0_28, %c32], %31 {strides = array<i32>} : memref<2x16x48xf32, #tpu.memory_space<vmem>>, vector<1x16x16xf32>,
    %32 = vector.extract_strided_slice %11 {offsets = [1, 0, 0], sizes = [1, 16, 16], strides = [1, 1, 1]} : vector<2x16x16xf32> to vector<1x16x16xf32>
    %33 = vector.shape_cast %32 : vector<1x16x16xf32> to vector<16x16xf32>
    %c1_29 = arith.constant 1 : index
    %c2_30 = arith.constant 2 : index
    %c0_31 = arith.constant 0 : index
    %34 = vector.load %arg10[%c1_29, %c2_30, %c0_31] : memref<2x20x16xf32, #tpu.memory_space<vmem>>, vector<1x16x16xf32>
    %35 = vector.shape_cast %34 : vector<1x16x16xf32> to vector<16x16xf32>
    %36 = vector.shape_cast %33 : vector<16x16xf32> to vector<1x16x16xf32>
    tpu.vector_store %arg10[%c1_29, %c2_30, %c0_31], %36 {strides = array<i32>} : memref<2x20x16xf32, #tpu.memory_space<vmem>>, vector<1x16x16xf32>,
    %c1_32 = arith.constant 1 : index
    %c1_33 = arith.constant 1 : index
    %c0_34 = arith.constant 0 : index
    %37 = vector.load %arg10[%c1_32, %c1_33, %c0_34] : memref<2x20x16xf32, #tpu.memory_space<vmem>>, vector<1x16x16xf32>
    %38 = vector.shape_cast %37 : vector<1x16x16xf32> to vector<16x16xf32>
    %c1_35 = arith.constant 1 : index
    %c0_36 = arith.constant 0 : index
    %c0_37 = arith.constant 0 : index
    %39 = vector.load %arg11[%c1_35, %c0_36, %c0_37] : memref<2x16x48xf32, #tpu.memory_space<vmem>>, vector<1x16x16xf32>
    %40 = vector.shape_cast %39 : vector<1x16x16xf32> to vector<16x16xf32>
    %41 = vector.shape_cast %38 : vector<16x16xf32> to vector<1x16x16xf32>
    tpu.vector_store %arg11[%c1_35, %c0_36, %c0_37], %41 {strides = array<i32>} : memref<2x16x48xf32, #tpu.memory_space<vmem>>, vector<1x16x16xf32>,
    %c1_38 = arith.constant 1 : index
    %c2_39 = arith.constant 2 : index
    %c0_40 = arith.constant 0 : index
    %42 = vector.load %arg10[%c1_38, %c2_39, %c0_40] : memref<2x20x16xf32, #tpu.memory_space<vmem>>, vector<1x16x16xf32>
    %43 = vector.shape_cast %42 : vector<1x16x16xf32> to vector<16x16xf32>
    %c1_41 = arith.constant 1 : index
    %c0_42 = arith.constant 0 : index
    %c16_43 = arith.constant 16 : index
    %44 = vector.load %arg11[%c1_41, %c0_42, %c16_43] : memref<2x16x48xf32, #tpu.memory_space<vmem>>, vector<1x16x16xf32>
    %45 = vector.shape_cast %44 : vector<1x16x16xf32> to vector<16x16xf32>
    %46 = vector.shape_cast %43 : vector<16x16xf32> to vector<1x16x16xf32>
    tpu.vector_store %arg11[%c1_41, %c0_42, %c16_43], %46 {strides = array<i32>} : memref<2x16x48xf32, #tpu.memory_space<vmem>>, vector<1x16x16xf32>,
    %c1_44 = arith.constant 1 : index
    %c3_45 = arith.constant 3 : index
    %c0_46 = arith.constant 0 : index
    %47 = vector.load %arg10[%c1_44, %c3_45, %c0_46] : memref<2x20x16xf32, #tpu.memory_space<vmem>>, vector<1x16x16xf32>
    %48 = vector.shape_cast %47 : vector<1x16x16xf32> to vector<16x16xf32>
    %c1_47 = arith.constant 1 : index
    %c0_48 = arith.constant 0 : index
    %c32_49 = arith.constant 32 : index
    %49 = vector.load %arg11[%c1_47, %c0_48, %c32_49] : memref<2x16x48xf32, #tpu.memory_space<vmem>>, vector<1x16x16xf32>
    %50 = vector.shape_cast %49 : vector<1x16x16xf32> to vector<16x16xf32>
    %51 = vector.shape_cast %48 : vector<16x16xf32> to vector<1x16x16xf32>
    tpu.vector_store %arg11[%c1_47, %c0_48, %c32_49], %51 {strides = array<i32>} : memref<2x16x48xf32, #tpu.memory_space<vmem>>, vector<1x16x16xf32>,
    %c0_50 = arith.constant 0 : index
    %c0_51 = arith.constant 0 : index
    %c0_52 = arith.constant 0 : index
    %52 = vector.load %arg11[%c0_50, %c0_51, %c0_52] : memref<2x16x48xf32, #tpu.memory_space<vmem>>, vector<2x16x48xf32>
    %53 = vector.shape_cast %52 : vector<2x16x48xf32> to vector<32x48xf32>
    %c0_53 = arith.constant 0 : index
    %c0_54 = arith.constant 0 : index
    %c0_55 = arith.constant 0 : index
    %54 = vector.load %arg4[%c0_53, %c0_54, %c0_55] : memref<2x48x32xf32, #tpu.memory_space<vmem>>, vector<1x48x32xf32>
    %55 = vector.shape_cast %54 : vector<1x48x32xf32> to vector<48x32xf32>
    %cst_56 = arith.constant dense<0.000000e+00> : vector<32x32xf32>
    %56 = tpu.matmul %53, %55, %cst_56 {dimension_numbers = #tpu.dot_dimension_numbers<[1], [0], [0], [1], [0, 0, 1, 1], [], []>} : vector<32x48xf32>, vector<48x32xf32>, vector<32x32xf32> -> vector<32x32xf32>
    %c0_57 = arith.constant 0 : index
    %c0_58 = arith.constant 0 : index
    %c0_59 = arith.constant 0 : index
    %57 = vector.load %arg5[%c0_57, %c0_58, %c0_59] : memref<2x1x32xf32, #tpu.memory_space<vmem>>, vector<1x1x32xf32>
    %58 = vector.shape_cast %57 : vector<1x1x32xf32> to vector<1x32xf32>
    %59 = vector.broadcast %58 : vector<1x32xf32> to vector<32x32xf32>
    %60 = arith.addf %56, %59 : vector<32x32xf32>
    %61 = vector.extract_strided_slice %60 {offsets = [0, 0], sizes = [32, 16], strides = [1, 1]} : vector<32x32xf32> to vector<32x16xf32>
    %62 = math.tanh %61 : vector<32x16xf32>
    %63 = vector.extract_strided_slice %60 {offsets = [0, 16], sizes = [32, 16], strides = [1, 1]} : vector<32x32xf32> to vector<32x16xf32>
    %64 = arith.negf %63 : vector<32x16xf32>
    %65 = math.exp %64 : vector<32x16xf32>
    %cst_60 = arith.constant 1.000000e+00 : f32
    %66 = vector.broadcast %cst_60 : f32 to vector<32x16xf32>
    %67 = arith.addf %66, %65 : vector<32x16xf32>
    %68 = arith.divf %66, %67 : vector<32x16xf32>
    %69 = arith.mulf %62, %68 : vector<32x16xf32>
    %c0_61 = arith.constant 0 : index
    %c0_62 = arith.constant 0 : index
    %c0_63 = arith.constant 0 : index
    %70 = vector.load %arg6[%c0_61, %c0_62, %c0_63] : memref<2x16x16xf32, #tpu.memory_space<vmem>>, vector<1x16x16xf32>
    %71 = vector.shape_cast %70 : vector<1x16x16xf32> to vector<16x16xf32>
    %cst_64 = arith.constant dense<0.000000e+00> : vector<32x16xf32>
    %72 = tpu.matmul %69, %71, %cst_64 {dimension_numbers = #tpu.dot_dimension_numbers<[1], [0], [0], [1], [0, 0, 1, 1], [], []>} : vector<32x16xf32>, vector<16x16xf32>, vector<32x16xf32> -> vector<32x16xf32>
    %c0_65 = arith.constant 0 : index
    %c0_66 = arith.constant 0 : index
    %c0_67 = arith.constant 0 : index
    %73 = vector.load %arg7[%c0_65, %c0_66, %c0_67] : memref<2x1x16xf32, #tpu.memory_space<vmem>>, vector<1x1x16xf32>
    %74 = vector.shape_cast %73 : vector<1x1x16xf32> to vector<1x16xf32>
    %75 = vector.broadcast %74 : vector<1x16xf32> to vector<32x16xf32>
    %76 = arith.addf %72, %75 : vector<32x16xf32>
    %77 = arith.addf %6, %76 : vector<32x16xf32>
    %78 = vector.shape_cast %76 : vector<32x16xf32> to vector<2x16x16xf32>
    %79 = vector.extract_strided_slice %78 {offsets = [0, 0, 0], sizes = [1, 16, 16], strides = [1, 1, 1]} : vector<2x16x16xf32> to vector<1x16x16xf32>
    %80 = vector.shape_cast %79 : vector<1x16x16xf32> to vector<16x16xf32>
    %c0_68 = arith.constant 0 : index
    %c2_69 = arith.constant 2 : index
    %c0_70 = arith.constant 0 : index
    %81 = vector.load %arg10[%c0_68, %c2_69, %c0_70] : memref<2x20x16xf32, #tpu.memory_space<vmem>>, vector<1x16x16xf32>
    %82 = vector.shape_cast %81 : vector<1x16x16xf32> to vector<16x16xf32>
    %83 = vector.shape_cast %80 : vector<16x16xf32> to vector<1x16x16xf32>
    tpu.vector_store %arg10[%c0_68, %c2_69, %c0_70], %83 {strides = array<i32>} : memref<2x20x16xf32, #tpu.memory_space<vmem>>, vector<1x16x16xf32>,
    %c0_71 = arith.constant 0 : index
    %c0_72 = arith.constant 0 : index
    %c0_73 = arith.constant 0 : index
    %84 = vector.load %arg10[%c0_71, %c0_72, %c0_73] : memref<2x20x16xf32, #tpu.memory_space<vmem>>, vector<1x16x16xf32>
    %85 = vector.shape_cast %84 : vector<1x16x16xf32> to vector<16x16xf32>
    %c0_74 = arith.constant 0 : index
    %c0_75 = arith.constant 0 : index
    %c0_76 = arith.constant 0 : index
    %86 = vector.load %arg11[%c0_74, %c0_75, %c0_76] : memref<2x16x48xf32, #tpu.memory_space<vmem>>, vector<1x16x16xf32>
    %87 = vector.shape_cast %86 : vector<1x16x16xf32> to vector<16x16xf32>
    %88 = vector.shape_cast %85 : vector<16x16xf32> to vector<1x16x16xf32>
    tpu.vector_store %arg11[%c0_74, %c0_75, %c0_76], %88 {strides = array<i32>} : memref<2x16x48xf32, #tpu.memory_space<vmem>>, vector<1x16x16xf32>,
    %c0_77 = arith.constant 0 : index
    %c2_78 = arith.constant 2 : index
    %c0_79 = arith.constant 0 : index
    %89 = vector.load %arg10[%c0_77, %c2_78, %c0_79] : memref<2x20x16xf32, #tpu.memory_space<vmem>>, vector<1x16x16xf32>
    %90 = vector.shape_cast %89 : vector<1x16x16xf32> to vector<16x16xf32>
    %c0_80 = arith.constant 0 : index
    %c0_81 = arith.constant 0 : index
    %c16_82 = arith.constant 16 : index
    %91 = vector.load %arg11[%c0_80, %c0_81, %c16_82] : memref<2x16x48xf32, #tpu.memory_space<vmem>>, vector<1x16x16xf32>
    %92 = vector.shape_cast %91 : vector<1x16x16xf32> to vector<16x16xf32>
    %93 = vector.shape_cast %90 : vector<16x16xf32> to vector<1x16x16xf32>
    tpu.vector_store %arg11[%c0_80, %c0_81, %c16_82], %93 {strides = array<i32>} : memref<2x16x48xf32, #tpu.memory_space<vmem>>, vector<1x16x16xf32>,
    %c0_83 = arith.constant 0 : index
    %c4 = arith.constant 4 : index
    %c0_84 = arith.constant 0 : index
    %94 = vector.load %arg10[%c0_83, %c4, %c0_84] : memref<2x20x16xf32, #tpu.memory_space<vmem>>, vector<1x16x16xf32>
    %95 = vector.shape_cast %94 : vector<1x16x16xf32> to vector<16x16xf32>
    %c0_85 = arith.constant 0 : index
    %c0_86 = arith.constant 0 : index
    %c32_87 = arith.constant 32 : index
    %96 = vector.load %arg11[%c0_85, %c0_86, %c32_87] : memref<2x16x48xf32, #tpu.memory_space<vmem>>, vector<1x16x16xf32>
    %97 = vector.shape_cast %96 : vector<1x16x16xf32> to vector<16x16xf32>
    %98 = vector.shape_cast %95 : vector<16x16xf32> to vector<1x16x16xf32>
    tpu.vector_store %arg11[%c0_85, %c0_86, %c32_87], %98 {strides = array<i32>} : memref<2x16x48xf32, #tpu.memory_space<vmem>>, vector<1x16x16xf32>,
    %99 = vector.extract_strided_slice %78 {offsets = [1, 0, 0], sizes = [1, 16, 16], strides = [1, 1, 1]} : vector<2x16x16xf32> to vector<1x16x16xf32>
    %100 = vector.shape_cast %99 : vector<1x16x16xf32> to vector<16x16xf32>
    %c1_88 = arith.constant 1 : index
    %c2_89 = arith.constant 2 : index
    %c0_90 = arith.constant 0 : index
    %101 = vector.load %arg10[%c1_88, %c2_89, %c0_90] : memref<2x20x16xf32, #tpu.memory_space<vmem>>, vector<1x16x16xf32>
    %102 = vector.shape_cast %101 : vector<1x16x16xf32> to vector<16x16xf32>
    %103 = vector.shape_cast %100 : vector<16x16xf32> to vector<1x16x16xf32>
    tpu.vector_store %arg10[%c1_88, %c2_89, %c0_90], %103 {strides = array<i32>} : memref<2x20x16xf32, #tpu.memory_space<vmem>>, vector<1x16x16xf32>,
    %c1_91 = arith.constant 1 : index
    %c0_92 = arith.constant 0 : index
    %c0_93 = arith.constant 0 : index
    %104 = vector.load %arg10[%c1_91, %c0_92, %c0_93] : memref<2x20x16xf32, #tpu.memory_space<vmem>>, vector<1x16x16xf32>
    %105 = vector.shape_cast %104 : vector<1x16x16xf32> to vector<16x16xf32>
    %c1_94 = arith.constant 1 : index
    %c0_95 = arith.constant 0 : index
    %c0_96 = arith.constant 0 : index
    %106 = vector.load %arg11[%c1_94, %c0_95, %c0_96] : memref<2x16x48xf32, #tpu.memory_space<vmem>>, vector<1x16x16xf32>
    %107 = vector.shape_cast %106 : vector<1x16x16xf32> to vector<16x16xf32>
    %108 = vector.shape_cast %105 : vector<16x16xf32> to vector<1x16x16xf32>
    tpu.vector_store %arg11[%c1_94, %c0_95, %c0_96], %108 {strides = array<i32>} : memref<2x16x48xf32, #tpu.memory_space<vmem>>, vector<1x16x16xf32>,
    %c1_97 = arith.constant 1 : index
    %c2_98 = arith.constant 2 : index
    %c0_99 = arith.constant 0 : index
    %109 = vector.load %arg10[%c1_97, %c2_98, %c0_99] : memref<2x20x16xf32, #tpu.memory_space<vmem>>, vector<1x16x16xf32>
    %110 = vector.shape_cast %109 : vector<1x16x16xf32> to vector<16x16xf32>
    %c1_100 = arith.constant 1 : index
    %c0_101 = arith.constant 0 : index
    %c16_102 = arith.constant 16 : index
    %111 = vector.load %arg11[%c1_100, %c0_101, %c16_102] : memref<2x16x48xf32, #tpu.memory_space<vmem>>, vector<1x16x16xf32>
    %112 = vector.shape_cast %111 : vector<1x16x16xf32> to vector<16x16xf32>
    %113 = vector.shape_cast %110 : vector<16x16xf32> to vector<1x16x16xf32>
    tpu.vector_store %arg11[%c1_100, %c0_101, %c16_102], %113 {strides = array<i32>} : memref<2x16x48xf32, #tpu.memory_space<vmem>>, vector<1x16x16xf32>,
    %c1_103 = arith.constant 1 : index
    %c4_104 = arith.constant 4 : index
    %c0_105 = arith.constant 0 : index
    %114 = vector.load %arg10[%c1_103, %c4_104, %c0_105] : memref<2x20x16xf32, #tpu.memory_space<vmem>>, vector<1x16x16xf32>
    %115 = vector.shape_cast %114 : vector<1x16x16xf32> to vector<16x16xf32>
    %c1_106 = arith.constant 1 : index
    %c0_107 = arith.constant 0 : index
    %c32_108 = arith.constant 32 : index
    %116 = vector.load %arg11[%c1_106, %c0_107, %c32_108] : memref<2x16x48xf32, #tpu.memory_space<vmem>>, vector<1x16x16xf32>
    %117 = vector.shape_cast %116 : vector<1x16x16xf32> to vector<16x16xf32>
    %118 = vector.shape_cast %115 : vector<16x16xf32> to vector<1x16x16xf32>
    tpu.vector_store %arg11[%c1_106, %c0_107, %c32_108], %118 {strides = array<i32>} : memref<2x16x48xf32, #tpu.memory_space<vmem>>, vector<1x16x16xf32>,
    %c0_109 = arith.constant 0 : index
    %c0_110 = arith.constant 0 : index
    %c0_111 = arith.constant 0 : index
    %119 = vector.load %arg11[%c0_109, %c0_110, %c0_111] : memref<2x16x48xf32, #tpu.memory_space<vmem>>, vector<2x16x48xf32>
    %120 = vector.shape_cast %119 : vector<2x16x48xf32> to vector<32x48xf32>
    %c1_112 = arith.constant 1 : index
    %c0_113 = arith.constant 0 : index
    %c0_114 = arith.constant 0 : index
    %121 = vector.load %arg4[%c1_112, %c0_113, %c0_114] : memref<2x48x32xf32, #tpu.memory_space<vmem>>, vector<1x48x32xf32>
    %122 = vector.shape_cast %121 : vector<1x48x32xf32> to vector<48x32xf32>
    %cst_115 = arith.constant dense<0.000000e+00> : vector<32x32xf32>
    %123 = tpu.matmul %120, %122, %cst_115 {dimension_numbers = #tpu.dot_dimension_numbers<[1], [0], [0], [1], [0, 0, 1, 1], [], []>} : vector<32x48xf32>, vector<48x32xf32>, vector<32x32xf32> -> vector<32x32xf32>
    %c1_116 = arith.constant 1 : index
    %c0_117 = arith.constant 0 : index
    %c0_118 = arith.constant 0 : index
    %124 = vector.load %arg5[%c1_116, %c0_117, %c0_118] : memref<2x1x32xf32, #tpu.memory_space<vmem>>, vector<1x1x32xf32>
    %125 = vector.shape_cast %124 : vector<1x1x32xf32> to vector<1x32xf32>
    %126 = vector.broadcast %125 : vector<1x32xf32> to vector<32x32xf32>
    %127 = arith.addf %123, %126 : vector<32x32xf32>
    %128 = vector.extract_strided_slice %127 {offsets = [0, 0], sizes = [32, 16], strides = [1, 1]} : vector<32x32xf32> to vector<32x16xf32>
    %129 = math.tanh %128 : vector<32x16xf32>
    %130 = vector.extract_strided_slice %127 {offsets = [0, 16], sizes = [32, 16], strides = [1, 1]} : vector<32x32xf32> to vector<32x16xf32>
    %131 = arith.negf %130 : vector<32x16xf32>
    %132 = math.exp %131 : vector<32x16xf32>
    %cst_119 = arith.constant 1.000000e+00 : f32
    %133 = vector.broadcast %cst_119 : f32 to vector<32x16xf32>
    %134 = arith.addf %133, %132 : vector<32x16xf32>
    %135 = arith.divf %133, %134 : vector<32x16xf32>
    %136 = arith.mulf %129, %135 : vector<32x16xf32>
    %c1_120 = arith.constant 1 : index
    %c0_121 = arith.constant 0 : index
    %c0_122 = arith.constant 0 : index
    %137 = vector.load %arg6[%c1_120, %c0_121, %c0_122] : memref<2x16x16xf32, #tpu.memory_space<vmem>>, vector<1x16x16xf32>
    %138 = vector.shape_cast %137 : vector<1x16x16xf32> to vector<16x16xf32>
    %cst_123 = arith.constant dense<0.000000e+00> : vector<32x16xf32>
    %139 = tpu.matmul %136, %138, %cst_123 {dimension_numbers = #tpu.dot_dimension_numbers<[1], [0], [0], [1], [0, 0, 1, 1], [], []>} : vector<32x16xf32>, vector<16x16xf32>, vector<32x16xf32> -> vector<32x16xf32>
    %c1_124 = arith.constant 1 : index
    %c0_125 = arith.constant 0 : index
    %c0_126 = arith.constant 0 : index
    %140 = vector.load %arg7[%c1_124, %c0_125, %c0_126] : memref<2x1x16xf32, #tpu.memory_space<vmem>>, vector<1x1x16xf32>
    %141 = vector.shape_cast %140 : vector<1x1x16xf32> to vector<1x16xf32>
    %142 = vector.broadcast %141 : vector<1x16xf32> to vector<32x16xf32>
    %143 = arith.addf %139, %142 : vector<32x16xf32>
    %144 = arith.addf %77, %143 : vector<32x16xf32>
    %c0_127 = arith.constant 0 : index
    %c0_128 = arith.constant 0 : index
    %145 = vector.load %arg8[%c0_127, %c0_128] : memref<2x16xf32, #tpu.memory_space<vmem>>, vector<1x16xf32>
    %146 = vector.broadcast %145 : vector<1x16xf32> to vector<32x16xf32>
    %147 = arith.mulf %144, %146 : vector<32x16xf32>
    %c1_129 = arith.constant 1 : index
    %c0_130 = arith.constant 0 : index
    %148 = vector.load %arg8[%c1_129, %c0_130] : memref<2x16xf32, #tpu.memory_space<vmem>>, vector<1x16xf32>
    %149 = vector.broadcast %148 : vector<1x16xf32> to vector<32x16xf32>
    %150 = arith.addf %147, %149 : vector<32x16xf32>
    %cst_131 = arith.constant 0.000000e+00 : f32
    %151 = vector.broadcast %cst_131 : f32 to vector<32x16xf32>
    %152 = arith.maximumf %150, %151 : vector<32x16xf32>
    %153 = vector.shape_cast %152 : vector<32x16xf32> to vector<2x16x16xf32>
    %c0_132 = arith.constant 0 : index
    %c0_133 = arith.constant 0 : index
    %c0_134 = arith.constant 0 : index
    %154 = vector.load %arg9[%c0_132, %c0_133, %c0_134] : memref<2x16x16xf32, #tpu.memory_space<vmem>>, vector<2x16x16xf32>
    tpu.vector_store %arg9[%c0_132, %c0_133, %c0_134], %153 {strides = array<i32>} : memref<2x16x16xf32, #tpu.memory_space<vmem>>, vector<2x16x16xf32>,
    return
  }
  func.func @transform_0(%arg0: i32) -> (i32, i32, i32) {
    %c0_i32 = arith.constant 0 : i32
    %c0_i32_0 = arith.constant 0 : i32
    %c0_i32_1 = arith.constant 0 : i32
    return %arg0, %c0_i32, %c0_i32_0 : i32, i32, i32
  }
  func.func @transform_1(%arg0: i32) -> (i32, i32) {
    %c0_i32 = arith.constant 0 : i32
    %c0_i32_0 = arith.constant 0 : i32
    %c0_i32_1 = arith.constant 0 : i32
    return %c0_i32, %c0_i32_0 : i32, i32
  }
  func.func @transform_2(%arg0: i32) -> (i32, i32) {
    %c0_i32 = arith.constant 0 : i32
    %c0_i32_0 = arith.constant 0 : i32
    %c0_i32_1 = arith.constant 0 : i32
    return %c0_i32, %c0_i32_0 : i32, i32
  }
  func.func @transform_3(%arg0: i32) -> (i32, i32, i32) {
    %c0_i32 = arith.constant 0 : i32
    %c0_i32_0 = arith.constant 0 : i32
    %c0_i32_1 = arith.constant 0 : i32
    %c0_i32_2 = arith.constant 0 : i32
    return %c0_i32, %c0_i32_0, %c0_i32_1 : i32, i32, i32
  }
  func.func @transform_4(%arg0: i32) -> (i32, i32, i32) {
    %c0_i32 = arith.constant 0 : i32
    %c0_i32_0 = arith.constant 0 : i32
    %c0_i32_1 = arith.constant 0 : i32
    %c0_i32_2 = arith.constant 0 : i32
    return %c0_i32, %c0_i32_0, %c0_i32_1 : i32, i32, i32
  }
  func.func @transform_5(%arg0: i32) -> (i32, i32, i32) {
    %c0_i32 = arith.constant 0 : i32
    %c0_i32_0 = arith.constant 0 : i32
    %c0_i32_1 = arith.constant 0 : i32
    %c0_i32_2 = arith.constant 0 : i32
    return %c0_i32, %c0_i32_0, %c0_i32_1 : i32, i32, i32
  }
  func.func @transform_6(%arg0: i32) -> (i32, i32, i32) {
    %c0_i32 = arith.constant 0 : i32
    %c0_i32_0 = arith.constant 0 : i32
    %c0_i32_1 = arith.constant 0 : i32
    %c0_i32_2 = arith.constant 0 : i32
    return %c0_i32, %c0_i32_0, %c0_i32_1 : i32, i32, i32
  }
  func.func @transform_7(%arg0: i32) -> (i32, i32) {
    %c0_i32 = arith.constant 0 : i32
    %c0_i32_0 = arith.constant 0 : i32
    %c0_i32_1 = arith.constant 0 : i32
    return %c0_i32, %c0_i32_0 : i32, i32
  }
  func.func @transform_8(%arg0: i32) -> (i32, i32, i32) {
    %c0_i32 = arith.constant 0 : i32
    %c0_i32_0 = arith.constant 0 : i32
    %c0_i32_1 = arith.constant 0 : i32
    return %arg0, %c0_i32, %c0_i32_0 : i32, i32, i32
  }
}

module attributes {stable_mosaic.version = 11 : i64} {
  func.func @_dnn_merge_kernel(%arg0: i32, %arg1: memref<1x16x40xf32, #tpu.memory_space<vmem>>, %arg2: memref<1x16x16xf32, #tpu.memory_space<vmem>>, %arg3: memref<5x5xf32, #tpu.memory_space<smem>>, %arg4: memref<1x16xf32, #tpu.memory_space<vmem>>, %arg5: memref<1x16xf32, #tpu.memory_space<vmem>>, %arg6: memref<400x16xf32, #tpu.memory_space<vmem>>, %arg7: memref<1x16xf32, #tpu.memory_space<vmem>>, %arg8: memref<400x16xf32, #tpu.memory_space<vmem>>, %arg9: memref<1x16xf32, #tpu.memory_space<vmem>>, %arg10: memref<3xf32, #tpu.memory_space<smem>>, %arg11: memref<16x16xf32, #tpu.memory_space<vmem>>, %arg12: memref<1x16xf32, #tpu.memory_space<vmem>>, %arg13: memref<1x16x16xf32, #tpu.memory_space<vmem>>, %arg14: memref<20x44xf32, #tpu.memory_space<vmem>>, %arg15: memref<12x20x16xf32, #tpu.memory_space<vmem>>, %arg16: memref<128x400xf32, #tpu.memory_space<vmem>>, %arg17: memref<6x20x16xf32, #tpu.memory_space<vmem>>, %arg18: memref<32x400xf32, #tpu.memory_space<vmem>>) attributes {dimension_semantics = [#tpu.dimension_semantics<parallel>], iteration_bounds = array<i64: 2>, scalar_prefetch = 0 : i64, scratch_operands = 5 : i64, tpu.core_type = #tpu.core_type<tc>, window_params = [{transform_indices = @transform_0, window_bounds = array<i64: 1, 16, 40>}, {transform_indices = @transform_1, window_bounds = array<i64: 1, 16, 16>}, {transform_indices = @transform_2, window_bounds = array<i64: 5, 5>}, {pipeline_mode = #tpu.pipeline_mode<synchronous>, transform_indices = @transform_3, window_bounds = array<i64: 1, 16>}, {pipeline_mode = #tpu.pipeline_mode<synchronous>, transform_indices = @transform_4, window_bounds = array<i64: 1, 16>}, {pipeline_mode = #tpu.pipeline_mode<synchronous>, transform_indices = @transform_5, window_bounds = array<i64: 400, 16>}, {pipeline_mode = #tpu.pipeline_mode<synchronous>, transform_indices = @transform_6, window_bounds = array<i64: 1, 16>}, {pipeline_mode = #tpu.pipeline_mode<synchronous>, transform_indices = @transform_7, window_bounds = array<i64: 400, 16>}, {pipeline_mode = #tpu.pipeline_mode<synchronous>, transform_indices = @transform_8, window_bounds = array<i64: 1, 16>}, {transform_indices = @transform_9, window_bounds = array<i64: 3>}, {pipeline_mode = #tpu.pipeline_mode<synchronous>, transform_indices = @transform_10, window_bounds = array<i64: 16, 16>}, {pipeline_mode = #tpu.pipeline_mode<synchronous>, transform_indices = @transform_11, window_bounds = array<i64: 1, 16>}, {transform_indices = @transform_12, window_bounds = array<i64: 1, 16, 16>}]} {
    %cst = arith.constant 0.000000e+00 : f32
    %0 = vector.broadcast %cst : f32 to vector<2x44xf32>
    %c0 = arith.constant 0 : index
    %c0_0 = arith.constant 0 : index
    %1 = vector.load %arg14[%c0, %c0_0] : memref<20x44xf32, #tpu.memory_space<vmem>>, vector<2x44xf32>
    tpu.vector_store %arg14[%c0, %c0_0], %0 {strides = array<i32>} : memref<20x44xf32, #tpu.memory_space<vmem>>, vector<2x44xf32>,
    %cst_1 = arith.constant 0.000000e+00 : f32
    %2 = vector.broadcast %cst_1 : f32 to vector<2x44xf32>
    %c18 = arith.constant 18 : index
    %c0_2 = arith.constant 0 : index
    %3 = vector.load %arg14[%c18, %c0_2] : memref<20x44xf32, #tpu.memory_space<vmem>>, vector<2x44xf32>
    tpu.vector_store %arg14[%c18, %c0_2], %2 {strides = array<i32>} : memref<20x44xf32, #tpu.memory_space<vmem>>, vector<2x44xf32>,
    %cst_3 = arith.constant 0.000000e+00 : f32
    %4 = vector.broadcast %cst_3 : f32 to vector<20x2xf32>
    %c0_4 = arith.constant 0 : index
    %c0_5 = arith.constant 0 : index
    %5 = vector.load %arg14[%c0_4, %c0_5] : memref<20x44xf32, #tpu.memory_space<vmem>>, vector<20x2xf32>
    tpu.vector_store %arg14[%c0_4, %c0_5], %4 {strides = array<i32>} : memref<20x44xf32, #tpu.memory_space<vmem>>, vector<20x2xf32>,
    %cst_6 = arith.constant 0.000000e+00 : f32
    %6 = vector.broadcast %cst_6 : f32 to vector<20x2xf32>
    %c0_7 = arith.constant 0 : index
    %c42 = arith.constant 42 : index
    %7 = vector.load %arg14[%c0_7, %c42] : memref<20x44xf32, #tpu.memory_space<vmem>>, vector<20x2xf32>
    tpu.vector_store %arg14[%c0_7, %c42], %6 {strides = array<i32>} : memref<20x44xf32, #tpu.memory_space<vmem>>, vector<20x2xf32>,
    %cst_8 = arith.constant 0.000000e+00 : f32
    %8 = vector.broadcast %cst_8 : f32 to vector<2x20x16xf32>
    %c0_9 = arith.constant 0 : index
    %c0_10 = arith.constant 0 : index
    %c0_11 = arith.constant 0 : index
    %9 = vector.load %arg15[%c0_9, %c0_10, %c0_11] : memref<12x20x16xf32, #tpu.memory_space<vmem>>, vector<2x20x16xf32>
    tpu.vector_store %arg15[%c0_9, %c0_10, %c0_11], %8 {strides = array<i32>} : memref<12x20x16xf32, #tpu.memory_space<vmem>>, vector<2x20x16xf32>,
    %cst_12 = arith.constant 0.000000e+00 : f32
    %10 = vector.broadcast %cst_12 : f32 to vector<2x20x16xf32>
    %c10 = arith.constant 10 : index
    %c0_13 = arith.constant 0 : index
    %c0_14 = arith.constant 0 : index
    %11 = vector.load %arg15[%c10, %c0_13, %c0_14] : memref<12x20x16xf32, #tpu.memory_space<vmem>>, vector<2x20x16xf32>
    tpu.vector_store %arg15[%c10, %c0_13, %c0_14], %10 {strides = array<i32>} : memref<12x20x16xf32, #tpu.memory_space<vmem>>, vector<2x20x16xf32>,
    %cst_15 = arith.constant 0.000000e+00 : f32
    %12 = vector.broadcast %cst_15 : f32 to vector<12x2x16xf32>
    %c0_16 = arith.constant 0 : index
    %c0_17 = arith.constant 0 : index
    %c0_18 = arith.constant 0 : index
    %13 = vector.load %arg15[%c0_16, %c0_17, %c0_18] : memref<12x20x16xf32, #tpu.memory_space<vmem>>, vector<12x2x16xf32>
    tpu.vector_store %arg15[%c0_16, %c0_17, %c0_18], %12 {strides = array<i32>} : memref<12x20x16xf32, #tpu.memory_space<vmem>>, vector<12x2x16xf32>,
    %cst_19 = arith.constant 0.000000e+00 : f32
    %14 = vector.broadcast %cst_19 : f32 to vector<12x2x16xf32>
    %c0_20 = arith.constant 0 : index
    %c18_21 = arith.constant 18 : index
    %c0_22 = arith.constant 0 : index
    %15 = vector.load %arg15[%c0_20, %c18_21, %c0_22] : memref<12x20x16xf32, #tpu.memory_space<vmem>>, vector<12x2x16xf32>
    tpu.vector_store %arg15[%c0_20, %c18_21, %c0_22], %14 {strides = array<i32>} : memref<12x20x16xf32, #tpu.memory_space<vmem>>, vector<12x2x16xf32>,
    %cst_23 = arith.constant 0.000000e+00 : f32
    %16 = vector.broadcast %cst_23 : f32 to vector<2x20x16xf32>
    %c0_24 = arith.constant 0 : index
    %c0_25 = arith.constant 0 : index
    %c0_26 = arith.constant 0 : index
    %17 = vector.load %arg17[%c0_24, %c0_25, %c0_26] : memref<6x20x16xf32, #tpu.memory_space<vmem>>, vector<2x20x16xf32>
    tpu.vector_store %arg17[%c0_24, %c0_25, %c0_26], %16 {strides = array<i32>} : memref<6x20x16xf32, #tpu.memory_space<vmem>>, vector<2x20x16xf32>,
    %cst_27 = arith.constant 0.000000e+00 : f32
    %18 = vector.broadcast %cst_27 : f32 to vector<2x20x16xf32>
    %c4 = arith.constant 4 : index
    %c0_28 = arith.constant 0 : index
    %c0_29 = arith.constant 0 : index
    %19 = vector.load %arg17[%c4, %c0_28, %c0_29] : memref<6x20x16xf32, #tpu.memory_space<vmem>>, vector<2x20x16xf32>
    tpu.vector_store %arg17[%c4, %c0_28, %c0_29], %18 {strides = array<i32>} : memref<6x20x16xf32, #tpu.memory_space<vmem>>, vector<2x20x16xf32>,
    %cst_30 = arith.constant 0.000000e+00 : f32
    %20 = vector.broadcast %cst_30 : f32 to vector<6x2x16xf32>
    %c0_31 = arith.constant 0 : index
    %c0_32 = arith.constant 0 : index
    %c0_33 = arith.constant 0 : index
    %21 = vector.load %arg17[%c0_31, %c0_32, %c0_33] : memref<6x20x16xf32, #tpu.memory_space<vmem>>, vector<6x2x16xf32>
    tpu.vector_store %arg17[%c0_31, %c0_32, %c0_33], %20 {strides = array<i32>} : memref<6x20x16xf32, #tpu.memory_space<vmem>>, vector<6x2x16xf32>,
    %cst_34 = arith.constant 0.000000e+00 : f32
    %22 = vector.broadcast %cst_34 : f32 to vector<6x2x16xf32>
    %c0_35 = arith.constant 0 : index
    %c18_36 = arith.constant 18 : index
    %c0_37 = arith.constant 0 : index
    %23 = vector.load %arg17[%c0_35, %c18_36, %c0_37] : memref<6x20x16xf32, #tpu.memory_space<vmem>>, vector<6x2x16xf32>
    tpu.vector_store %arg17[%c0_35, %c18_36, %c0_37], %22 {strides = array<i32>} : memref<6x20x16xf32, #tpu.memory_space<vmem>>, vector<6x2x16xf32>,
    %c0_38 = arith.constant 0 : index
    %c0_39 = arith.constant 0 : index
    %c0_40 = arith.constant 0 : index
    %24 = vector.load %arg1[%c0_38, %c0_39, %c0_40] : memref<1x16x40xf32, #tpu.memory_space<vmem>>, vector<1x16x40xf32>
    %25 = vector.shape_cast %24 : vector<1x16x40xf32> to vector<16x40xf32>
    %c2 = arith.constant 2 : index
    %c2_41 = arith.constant 2 : index
    %26 = vector.load %arg14[%c2, %c2_41] : memref<20x44xf32, #tpu.memory_space<vmem>>, vector<16x40xf32>
    tpu.vector_store %arg14[%c2, %c2_41], %25 {strides = array<i32>} : memref<20x44xf32, #tpu.memory_space<vmem>>, vector<16x40xf32>,
    %c0_42 = arith.constant 0 : index
    %c0_43 = arith.constant 0 : index
    %27 = vector.load %arg14[%c0_42, %c0_43] : memref<20x44xf32, #tpu.memory_space<vmem>>, vector<16x40xf32>
    %c0_44 = arith.constant 0 : index
    %c0_45 = arith.constant 0 : index
    %28 = memref.load %arg3[%c0_44, %c0_45] : memref<5x5xf32, #tpu.memory_space<smem>>
    %29 = vector.broadcast %28 : f32 to vector<16x40xf32>
    %30 = arith.mulf %27, %29 : vector<16x40xf32>
    %c0_46 = arith.constant 0 : index
    %c1 = arith.constant 1 : index
    %31 = vector.load %arg14[%c0_46, %c1] : memref<20x44xf32, #tpu.memory_space<vmem>>, vector<16x40xf32>
    %c0_47 = arith.constant 0 : index
    %c1_48 = arith.constant 1 : index
    %32 = memref.load %arg3[%c0_47, %c1_48] : memref<5x5xf32, #tpu.memory_space<smem>>
    %33 = vector.broadcast %32 : f32 to vector<16x40xf32>
    %34 = arith.mulf %31, %33 : vector<16x40xf32>
    %35 = arith.addf %30, %34 : vector<16x40xf32>
    %c0_49 = arith.constant 0 : index
    %c2_50 = arith.constant 2 : index
    %36 = vector.load %arg14[%c0_49, %c2_50] : memref<20x44xf32, #tpu.memory_space<vmem>>, vector<16x40xf32>
    %c0_51 = arith.constant 0 : index
    %c2_52 = arith.constant 2 : index
    %37 = memref.load %arg3[%c0_51, %c2_52] : memref<5x5xf32, #tpu.memory_space<smem>>
    %38 = vector.broadcast %37 : f32 to vector<16x40xf32>
    %39 = arith.mulf %36, %38 : vector<16x40xf32>
    %40 = arith.addf %35, %39 : vector<16x40xf32>
    %c0_53 = arith.constant 0 : index
    %c3 = arith.constant 3 : index
    %41 = vector.load %arg14[%c0_53, %c3] : memref<20x44xf32, #tpu.memory_space<vmem>>, vector<16x40xf32>
    %c0_54 = arith.constant 0 : index
    %c3_55 = arith.constant 3 : index
    %42 = memref.load %arg3[%c0_54, %c3_55] : memref<5x5xf32, #tpu.memory_space<smem>>
    %43 = vector.broadcast %42 : f32 to vector<16x40xf32>
    %44 = arith.mulf %41, %43 : vector<16x40xf32>
    %45 = arith.addf %40, %44 : vector<16x40xf32>
    %c0_56 = arith.constant 0 : index
    %c4_57 = arith.constant 4 : index
    %46 = vector.load %arg14[%c0_56, %c4_57] : memref<20x44xf32, #tpu.memory_space<vmem>>, vector<16x40xf32>
    %c0_58 = arith.constant 0 : index
    %c4_59 = arith.constant 4 : index
    %47 = memref.load %arg3[%c0_58, %c4_59] : memref<5x5xf32, #tpu.memory_space<smem>>
    %48 = vector.broadcast %47 : f32 to vector<16x40xf32>
    %49 = arith.mulf %46, %48 : vector<16x40xf32>
    %50 = arith.addf %45, %49 : vector<16x40xf32>
    %c1_60 = arith.constant 1 : index
    %c0_61 = arith.constant 0 : index
    %51 = vector.load %arg14[%c1_60, %c0_61] : memref<20x44xf32, #tpu.memory_space<vmem>>, vector<16x40xf32>
    %c1_62 = arith.constant 1 : index
    %c0_63 = arith.constant 0 : index
    %52 = memref.load %arg3[%c1_62, %c0_63] : memref<5x5xf32, #tpu.memory_space<smem>>
    %53 = vector.broadcast %52 : f32 to vector<16x40xf32>
    %54 = arith.mulf %51, %53 : vector<16x40xf32>
    %55 = arith.addf %50, %54 : vector<16x40xf32>
    %c1_64 = arith.constant 1 : index
    %c1_65 = arith.constant 1 : index
    %56 = vector.load %arg14[%c1_64, %c1_65] : memref<20x44xf32, #tpu.memory_space<vmem>>, vector<16x40xf32>
    %c1_66 = arith.constant 1 : index
    %c1_67 = arith.constant 1 : index
    %57 = memref.load %arg3[%c1_66, %c1_67] : memref<5x5xf32, #tpu.memory_space<smem>>
    %58 = vector.broadcast %57 : f32 to vector<16x40xf32>
    %59 = arith.mulf %56, %58 : vector<16x40xf32>
    %60 = arith.addf %55, %59 : vector<16x40xf32>
    %c1_68 = arith.constant 1 : index
    %c2_69 = arith.constant 2 : index
    %61 = vector.load %arg14[%c1_68, %c2_69] : memref<20x44xf32, #tpu.memory_space<vmem>>, vector<16x40xf32>
    %c1_70 = arith.constant 1 : index
    %c2_71 = arith.constant 2 : index
    %62 = memref.load %arg3[%c1_70, %c2_71] : memref<5x5xf32, #tpu.memory_space<smem>>
    %63 = vector.broadcast %62 : f32 to vector<16x40xf32>
    %64 = arith.mulf %61, %63 : vector<16x40xf32>
    %65 = arith.addf %60, %64 : vector<16x40xf32>
    %c1_72 = arith.constant 1 : index
    %c3_73 = arith.constant 3 : index
    %66 = vector.load %arg14[%c1_72, %c3_73] : memref<20x44xf32, #tpu.memory_space<vmem>>, vector<16x40xf32>
    %c1_74 = arith.constant 1 : index
    %c3_75 = arith.constant 3 : index
    %67 = memref.load %arg3[%c1_74, %c3_75] : memref<5x5xf32, #tpu.memory_space<smem>>
    %68 = vector.broadcast %67 : f32 to vector<16x40xf32>
    %69 = arith.mulf %66, %68 : vector<16x40xf32>
    %70 = arith.addf %65, %69 : vector<16x40xf32>
    %c1_76 = arith.constant 1 : index
    %c4_77 = arith.constant 4 : index
    %71 = vector.load %arg14[%c1_76, %c4_77] : memref<20x44xf32, #tpu.memory_space<vmem>>, vector<16x40xf32>
    %c1_78 = arith.constant 1 : index
    %c4_79 = arith.constant 4 : index
    %72 = memref.load %arg3[%c1_78, %c4_79] : memref<5x5xf32, #tpu.memory_space<smem>>
    %73 = vector.broadcast %72 : f32 to vector<16x40xf32>
    %74 = arith.mulf %71, %73 : vector<16x40xf32>
    %75 = arith.addf %70, %74 : vector<16x40xf32>
    %c2_80 = arith.constant 2 : index
    %c0_81 = arith.constant 0 : index
    %76 = vector.load %arg14[%c2_80, %c0_81] : memref<20x44xf32, #tpu.memory_space<vmem>>, vector<16x40xf32>
    %c2_82 = arith.constant 2 : index
    %c0_83 = arith.constant 0 : index
    %77 = memref.load %arg3[%c2_82, %c0_83] : memref<5x5xf32, #tpu.memory_space<smem>>
    %78 = vector.broadcast %77 : f32 to vector<16x40xf32>
    %79 = arith.mulf %76, %78 : vector<16x40xf32>
    %80 = arith.addf %75, %79 : vector<16x40xf32>
    %c2_84 = arith.constant 2 : index
    %c1_85 = arith.constant 1 : index
    %81 = vector.load %arg14[%c2_84, %c1_85] : memref<20x44xf32, #tpu.memory_space<vmem>>, vector<16x40xf32>
    %c2_86 = arith.constant 2 : index
    %c1_87 = arith.constant 1 : index
    %82 = memref.load %arg3[%c2_86, %c1_87] : memref<5x5xf32, #tpu.memory_space<smem>>
    %83 = vector.broadcast %82 : f32 to vector<16x40xf32>
    %84 = arith.mulf %81, %83 : vector<16x40xf32>
    %85 = arith.addf %80, %84 : vector<16x40xf32>
    %c2_88 = arith.constant 2 : index
    %c2_89 = arith.constant 2 : index
    %86 = vector.load %arg14[%c2_88, %c2_89] : memref<20x44xf32, #tpu.memory_space<vmem>>, vector<16x40xf32>
    %c2_90 = arith.constant 2 : index
    %c2_91 = arith.constant 2 : index
    %87 = memref.load %arg3[%c2_90, %c2_91] : memref<5x5xf32, #tpu.memory_space<smem>>
    %88 = vector.broadcast %87 : f32 to vector<16x40xf32>
    %89 = arith.mulf %86, %88 : vector<16x40xf32>
    %90 = arith.addf %85, %89 : vector<16x40xf32>
    %c2_92 = arith.constant 2 : index
    %c3_93 = arith.constant 3 : index
    %91 = vector.load %arg14[%c2_92, %c3_93] : memref<20x44xf32, #tpu.memory_space<vmem>>, vector<16x40xf32>
    %c2_94 = arith.constant 2 : index
    %c3_95 = arith.constant 3 : index
    %92 = memref.load %arg3[%c2_94, %c3_95] : memref<5x5xf32, #tpu.memory_space<smem>>
    %93 = vector.broadcast %92 : f32 to vector<16x40xf32>
    %94 = arith.mulf %91, %93 : vector<16x40xf32>
    %95 = arith.addf %90, %94 : vector<16x40xf32>
    %c2_96 = arith.constant 2 : index
    %c4_97 = arith.constant 4 : index
    %96 = vector.load %arg14[%c2_96, %c4_97] : memref<20x44xf32, #tpu.memory_space<vmem>>, vector<16x40xf32>
    %c2_98 = arith.constant 2 : index
    %c4_99 = arith.constant 4 : index
    %97 = memref.load %arg3[%c2_98, %c4_99] : memref<5x5xf32, #tpu.memory_space<smem>>
    %98 = vector.broadcast %97 : f32 to vector<16x40xf32>
    %99 = arith.mulf %96, %98 : vector<16x40xf32>
    %100 = arith.addf %95, %99 : vector<16x40xf32>
    %c3_100 = arith.constant 3 : index
    %c0_101 = arith.constant 0 : index
    %101 = vector.load %arg14[%c3_100, %c0_101] : memref<20x44xf32, #tpu.memory_space<vmem>>, vector<16x40xf32>
    %c3_102 = arith.constant 3 : index
    %c0_103 = arith.constant 0 : index
    %102 = memref.load %arg3[%c3_102, %c0_103] : memref<5x5xf32, #tpu.memory_space<smem>>
    %103 = vector.broadcast %102 : f32 to vector<16x40xf32>
    %104 = arith.mulf %101, %103 : vector<16x40xf32>
    %105 = arith.addf %100, %104 : vector<16x40xf32>
    %c3_104 = arith.constant 3 : index
    %c1_105 = arith.constant 1 : index
    %106 = vector.load %arg14[%c3_104, %c1_105] : memref<20x44xf32, #tpu.memory_space<vmem>>, vector<16x40xf32>
    %c3_106 = arith.constant 3 : index
    %c1_107 = arith.constant 1 : index
    %107 = memref.load %arg3[%c3_106, %c1_107] : memref<5x5xf32, #tpu.memory_space<smem>>
    %108 = vector.broadcast %107 : f32 to vector<16x40xf32>
    %109 = arith.mulf %106, %108 : vector<16x40xf32>
    %110 = arith.addf %105, %109 : vector<16x40xf32>
    %c3_108 = arith.constant 3 : index
    %c2_109 = arith.constant 2 : index
    %111 = vector.load %arg14[%c3_108, %c2_109] : memref<20x44xf32, #tpu.memory_space<vmem>>, vector<16x40xf32>
    %c3_110 = arith.constant 3 : index
    %c2_111 = arith.constant 2 : index
    %112 = memref.load %arg3[%c3_110, %c2_111] : memref<5x5xf32, #tpu.memory_space<smem>>
    %113 = vector.broadcast %112 : f32 to vector<16x40xf32>
    %114 = arith.mulf %111, %113 : vector<16x40xf32>
    %115 = arith.addf %110, %114 : vector<16x40xf32>
    %c3_112 = arith.constant 3 : index
    %c3_113 = arith.constant 3 : index
    %116 = vector.load %arg14[%c3_112, %c3_113] : memref<20x44xf32, #tpu.memory_space<vmem>>, vector<16x40xf32>
    %c3_114 = arith.constant 3 : index
    %c3_115 = arith.constant 3 : index
    %117 = memref.load %arg3[%c3_114, %c3_115] : memref<5x5xf32, #tpu.memory_space<smem>>
    %118 = vector.broadcast %117 : f32 to vector<16x40xf32>
    %119 = arith.mulf %116, %118 : vector<16x40xf32>
    %120 = arith.addf %115, %119 : vector<16x40xf32>
    %c3_116 = arith.constant 3 : index
    %c4_117 = arith.constant 4 : index
    %121 = vector.load %arg14[%c3_116, %c4_117] : memref<20x44xf32, #tpu.memory_space<vmem>>, vector<16x40xf32>
    %c3_118 = arith.constant 3 : index
    %c4_119 = arith.constant 4 : index
    %122 = memref.load %arg3[%c3_118, %c4_119] : memref<5x5xf32, #tpu.memory_space<smem>>
    %123 = vector.broadcast %122 : f32 to vector<16x40xf32>
    %124 = arith.mulf %121, %123 : vector<16x40xf32>
    %125 = arith.addf %120, %124 : vector<16x40xf32>
    %c4_120 = arith.constant 4 : index
    %c0_121 = arith.constant 0 : index
    %126 = vector.load %arg14[%c4_120, %c0_121] : memref<20x44xf32, #tpu.memory_space<vmem>>, vector<16x40xf32>
    %c4_122 = arith.constant 4 : index
    %c0_123 = arith.constant 0 : index
    %127 = memref.load %arg3[%c4_122, %c0_123] : memref<5x5xf32, #tpu.memory_space<smem>>
    %128 = vector.broadcast %127 : f32 to vector<16x40xf32>
    %129 = arith.mulf %126, %128 : vector<16x40xf32>
    %130 = arith.addf %125, %129 : vector<16x40xf32>
    %c4_124 = arith.constant 4 : index
    %c1_125 = arith.constant 1 : index
    %131 = vector.load %arg14[%c4_124, %c1_125] : memref<20x44xf32, #tpu.memory_space<vmem>>, vector<16x40xf32>
    %c4_126 = arith.constant 4 : index
    %c1_127 = arith.constant 1 : index
    %132 = memref.load %arg3[%c4_126, %c1_127] : memref<5x5xf32, #tpu.memory_space<smem>>
    %133 = vector.broadcast %132 : f32 to vector<16x40xf32>
    %134 = arith.mulf %131, %133 : vector<16x40xf32>
    %135 = arith.addf %130, %134 : vector<16x40xf32>
    %c4_128 = arith.constant 4 : index
    %c2_129 = arith.constant 2 : index
    %136 = vector.load %arg14[%c4_128, %c2_129] : memref<20x44xf32, #tpu.memory_space<vmem>>, vector<16x40xf32>
    %c4_130 = arith.constant 4 : index
    %c2_131 = arith.constant 2 : index
    %137 = memref.load %arg3[%c4_130, %c2_131] : memref<5x5xf32, #tpu.memory_space<smem>>
    %138 = vector.broadcast %137 : f32 to vector<16x40xf32>
    %139 = arith.mulf %136, %138 : vector<16x40xf32>
    %140 = arith.addf %135, %139 : vector<16x40xf32>
    %c4_132 = arith.constant 4 : index
    %c3_133 = arith.constant 3 : index
    %141 = vector.load %arg14[%c4_132, %c3_133] : memref<20x44xf32, #tpu.memory_space<vmem>>, vector<16x40xf32>
    %c4_134 = arith.constant 4 : index
    %c3_135 = arith.constant 3 : index
    %142 = memref.load %arg3[%c4_134, %c3_135] : memref<5x5xf32, #tpu.memory_space<smem>>
    %143 = vector.broadcast %142 : f32 to vector<16x40xf32>
    %144 = arith.mulf %141, %143 : vector<16x40xf32>
    %145 = arith.addf %140, %144 : vector<16x40xf32>
    %c4_136 = arith.constant 4 : index
    %c4_137 = arith.constant 4 : index
    %146 = vector.load %arg14[%c4_136, %c4_137] : memref<20x44xf32, #tpu.memory_space<vmem>>, vector<16x40xf32>
    %c4_138 = arith.constant 4 : index
    %c4_139 = arith.constant 4 : index
    %147 = memref.load %arg3[%c4_138, %c4_139] : memref<5x5xf32, #tpu.memory_space<smem>>
    %148 = vector.broadcast %147 : f32 to vector<16x40xf32>
    %149 = arith.mulf %146, %148 : vector<16x40xf32>
    %150 = arith.addf %145, %149 : vector<16x40xf32>
    %c0_140 = arith.constant 0 : index
    %c0_141 = arith.constant 0 : index
    %151 = vector.load %arg4[%c0_140, %c0_141] : memref<1x16xf32, #tpu.memory_space<vmem>>, vector<1x16xf32>
    %c0_142 = arith.constant 0 : index
    %c0_143 = arith.constant 0 : index
    %152 = vector.load %arg5[%c0_142, %c0_143] : memref<1x16xf32, #tpu.memory_space<vmem>>, vector<1x16xf32>
    %cst_144 = arith.constant 0.000000e+00 : f32
    %153 = vector.broadcast %cst_144 : f32 to vector<1x16xf32>
    %154 = arith.cmpf oge, %151, %153 : vector<1x16xf32>
    %155 = vector.extract_strided_slice %150 {offsets = [0, 0], sizes = [16, 1], strides = [1, 1]} : vector<16x40xf32> to vector<16x1xf32>
    %156 = vector.extract_strided_slice %150 {offsets = [0, 1], sizes = [16, 1], strides = [1, 1]} : vector<16x40xf32> to vector<16x1xf32>
    %157 = arith.maximumf %155, %156 : vector<16x1xf32>
    %158 = arith.minimumf %155, %156 : vector<16x1xf32>
    %159 = vector.extract_strided_slice %150 {offsets = [0, 2], sizes = [16, 1], strides = [1, 1]} : vector<16x40xf32> to vector<16x1xf32>
    %160 = arith.maximumf %157, %159 : vector<16x1xf32>
    %161 = arith.minimumf %158, %159 : vector<16x1xf32>
    %162 = vector.extract_strided_slice %150 {offsets = [0, 3], sizes = [16, 1], strides = [1, 1]} : vector<16x40xf32> to vector<16x1xf32>
    %163 = arith.maximumf %160, %162 : vector<16x1xf32>
    %164 = arith.minimumf %161, %162 : vector<16x1xf32>
    %165 = vector.extract_strided_slice %150 {offsets = [0, 4], sizes = [16, 1], strides = [1, 1]} : vector<16x40xf32> to vector<16x1xf32>
    %166 = arith.maximumf %163, %165 : vector<16x1xf32>
    %167 = arith.minimumf %164, %165 : vector<16x1xf32>
    %168 = vector.broadcast %166 : vector<16x1xf32> to vector<16x16xf32>
    %169 = vector.broadcast %151 : vector<1x16xf32> to vector<16x16xf32>
    %170 = arith.mulf %168, %169 : vector<16x16xf32>
    %171 = vector.broadcast %167 : vector<16x1xf32> to vector<16x16xf32>
    %172 = vector.broadcast %151 : vector<1x16xf32> to vector<16x16xf32>
    %173 = arith.mulf %171, %172 : vector<16x16xf32>
    %174 = vector.shape_cast %154 : vector<1x16xi1> to vector<1x16xi1>
    %175 = vector.broadcast %174 : vector<1x16xi1> to vector<16x16xi1>
    %176 = arith.select %175, %170, %173 : vector<16x16xi1>, vector<16x16xf32>
    %177 = vector.broadcast %152 : vector<1x16xf32> to vector<16x16xf32>
    %178 = arith.addf %176, %177 : vector<16x16xf32>
    %cst_145 = arith.constant 0.000000e+00 : f32
    %179 = vector.broadcast %cst_145 : f32 to vector<16x16xf32>
    %180 = arith.maximumf %178, %179 : vector<16x16xf32>
    %c2_146 = arith.constant 2 : index
    %c2_147 = arith.constant 2 : index
    %c0_148 = arith.constant 0 : index
    %181 = vector.load %arg15[%c2_146, %c2_147, %c0_148] : memref<12x20x16xf32, #tpu.memory_space<vmem>>, vector<1x16x16xf32>
    %182 = vector.shape_cast %181 : vector<1x16x16xf32> to vector<16x16xf32>
    %183 = vector.shape_cast %180 : vector<16x16xf32> to vector<1x16x16xf32>
    tpu.vector_store %arg15[%c2_146, %c2_147, %c0_148], %183 {strides = array<i32>} : memref<12x20x16xf32, #tpu.memory_space<vmem>>, vector<1x16x16xf32>,
    %184 = vector.extract_strided_slice %150 {offsets = [0, 5], sizes = [16, 1], strides = [1, 1]} : vector<16x40xf32> to vector<16x1xf32>
    %185 = vector.extract_strided_slice %150 {offsets = [0, 6], sizes = [16, 1], strides = [1, 1]} : vector<16x40xf32> to vector<16x1xf32>
    %186 = arith.maximumf %184, %185 : vector<16x1xf32>
    %187 = arith.minimumf %184, %185 : vector<16x1xf32>
    %188 = vector.extract_strided_slice %150 {offsets = [0, 7], sizes = [16, 1], strides = [1, 1]} : vector<16x40xf32> to vector<16x1xf32>
    %189 = arith.maximumf %186, %188 : vector<16x1xf32>
    %190 = arith.minimumf %187, %188 : vector<16x1xf32>
    %191 = vector.extract_strided_slice %150 {offsets = [0, 8], sizes = [16, 1], strides = [1, 1]} : vector<16x40xf32> to vector<16x1xf32>
    %192 = arith.maximumf %189, %191 : vector<16x1xf32>
    %193 = arith.minimumf %190, %191 : vector<16x1xf32>
    %194 = vector.extract_strided_slice %150 {offsets = [0, 9], sizes = [16, 1], strides = [1, 1]} : vector<16x40xf32> to vector<16x1xf32>
    %195 = arith.maximumf %192, %194 : vector<16x1xf32>
    %196 = arith.minimumf %193, %194 : vector<16x1xf32>
    %197 = vector.broadcast %195 : vector<16x1xf32> to vector<16x16xf32>
    %198 = vector.broadcast %151 : vector<1x16xf32> to vector<16x16xf32>
    %199 = arith.mulf %197, %198 : vector<16x16xf32>
    %200 = vector.broadcast %196 : vector<16x1xf32> to vector<16x16xf32>
    %201 = vector.broadcast %151 : vector<1x16xf32> to vector<16x16xf32>
    %202 = arith.mulf %200, %201 : vector<16x16xf32>
    %203 = vector.shape_cast %154 : vector<1x16xi1> to vector<1x16xi1>
    %204 = vector.broadcast %203 : vector<1x16xi1> to vector<16x16xi1>
    %205 = arith.select %204, %199, %202 : vector<16x16xi1>, vector<16x16xf32>
    %206 = vector.broadcast %152 : vector<1x16xf32> to vector<16x16xf32>
    %207 = arith.addf %205, %206 : vector<16x16xf32>
    %cst_149 = arith.constant 0.000000e+00 : f32
    %208 = vector.broadcast %cst_149 : f32 to vector<16x16xf32>
    %209 = arith.maximumf %207, %208 : vector<16x16xf32>
    %c3_150 = arith.constant 3 : index
    %c2_151 = arith.constant 2 : index
    %c0_152 = arith.constant 0 : index
    %210 = vector.load %arg15[%c3_150, %c2_151, %c0_152] : memref<12x20x16xf32, #tpu.memory_space<vmem>>, vector<1x16x16xf32>
    %211 = vector.shape_cast %210 : vector<1x16x16xf32> to vector<16x16xf32>
    %212 = vector.shape_cast %209 : vector<16x16xf32> to vector<1x16x16xf32>
    tpu.vector_store %arg15[%c3_150, %c2_151, %c0_152], %212 {strides = array<i32>} : memref<12x20x16xf32, #tpu.memory_space<vmem>>, vector<1x16x16xf32>,
    %213 = vector.extract_strided_slice %150 {offsets = [0, 10], sizes = [16, 1], strides = [1, 1]} : vector<16x40xf32> to vector<16x1xf32>
    %214 = vector.extract_strided_slice %150 {offsets = [0, 11], sizes = [16, 1], strides = [1, 1]} : vector<16x40xf32> to vector<16x1xf32>
    %215 = arith.maximumf %213, %214 : vector<16x1xf32>
    %216 = arith.minimumf %213, %214 : vector<16x1xf32>
    %217 = vector.extract_strided_slice %150 {offsets = [0, 12], sizes = [16, 1], strides = [1, 1]} : vector<16x40xf32> to vector<16x1xf32>
    %218 = arith.maximumf %215, %217 : vector<16x1xf32>
    %219 = arith.minimumf %216, %217 : vector<16x1xf32>
    %220 = vector.extract_strided_slice %150 {offsets = [0, 13], sizes = [16, 1], strides = [1, 1]} : vector<16x40xf32> to vector<16x1xf32>
    %221 = arith.maximumf %218, %220 : vector<16x1xf32>
    %222 = arith.minimumf %219, %220 : vector<16x1xf32>
    %223 = vector.extract_strided_slice %150 {offsets = [0, 14], sizes = [16, 1], strides = [1, 1]} : vector<16x40xf32> to vector<16x1xf32>
    %224 = arith.maximumf %221, %223 : vector<16x1xf32>
    %225 = arith.minimumf %222, %223 : vector<16x1xf32>
    %226 = vector.broadcast %224 : vector<16x1xf32> to vector<16x16xf32>
    %227 = vector.broadcast %151 : vector<1x16xf32> to vector<16x16xf32>
    %228 = arith.mulf %226, %227 : vector<16x16xf32>
    %229 = vector.broadcast %225 : vector<16x1xf32> to vector<16x16xf32>
    %230 = vector.broadcast %151 : vector<1x16xf32> to vector<16x16xf32>
    %231 = arith.mulf %229, %230 : vector<16x16xf32>
    %232 = vector.shape_cast %154 : vector<1x16xi1> to vector<1x16xi1>
    %233 = vector.broadcast %232 : vector<1x16xi1> to vector<16x16xi1>
    %234 = arith.select %233, %228, %231 : vector<16x16xi1>, vector<16x16xf32>
    %235 = vector.broadcast %152 : vector<1x16xf32> to vector<16x16xf32>
    %236 = arith.addf %234, %235 : vector<16x16xf32>
    %cst_153 = arith.constant 0.000000e+00 : f32
    %237 = vector.broadcast %cst_153 : f32 to vector<16x16xf32>
    %238 = arith.maximumf %236, %237 : vector<16x16xf32>
    %c4_154 = arith.constant 4 : index
    %c2_155 = arith.constant 2 : index
    %c0_156 = arith.constant 0 : index
    %239 = vector.load %arg15[%c4_154, %c2_155, %c0_156] : memref<12x20x16xf32, #tpu.memory_space<vmem>>, vector<1x16x16xf32>
    %240 = vector.shape_cast %239 : vector<1x16x16xf32> to vector<16x16xf32>
    %241 = vector.shape_cast %238 : vector<16x16xf32> to vector<1x16x16xf32>
    tpu.vector_store %arg15[%c4_154, %c2_155, %c0_156], %241 {strides = array<i32>} : memref<12x20x16xf32, #tpu.memory_space<vmem>>, vector<1x16x16xf32>,
    %242 = vector.extract_strided_slice %150 {offsets = [0, 15], sizes = [16, 1], strides = [1, 1]} : vector<16x40xf32> to vector<16x1xf32>
    %243 = vector.extract_strided_slice %150 {offsets = [0, 16], sizes = [16, 1], strides = [1, 1]} : vector<16x40xf32> to vector<16x1xf32>
    %244 = arith.maximumf %242, %243 : vector<16x1xf32>
    %245 = arith.minimumf %242, %243 : vector<16x1xf32>
    %246 = vector.extract_strided_slice %150 {offsets = [0, 17], sizes = [16, 1], strides = [1, 1]} : vector<16x40xf32> to vector<16x1xf32>
    %247 = arith.maximumf %244, %246 : vector<16x1xf32>
    %248 = arith.minimumf %245, %246 : vector<16x1xf32>
    %249 = vector.extract_strided_slice %150 {offsets = [0, 18], sizes = [16, 1], strides = [1, 1]} : vector<16x40xf32> to vector<16x1xf32>
    %250 = arith.maximumf %247, %249 : vector<16x1xf32>
    %251 = arith.minimumf %248, %249 : vector<16x1xf32>
    %252 = vector.extract_strided_slice %150 {offsets = [0, 19], sizes = [16, 1], strides = [1, 1]} : vector<16x40xf32> to vector<16x1xf32>
    %253 = arith.maximumf %250, %252 : vector<16x1xf32>
    %254 = arith.minimumf %251, %252 : vector<16x1xf32>
    %255 = vector.broadcast %253 : vector<16x1xf32> to vector<16x16xf32>
    %256 = vector.broadcast %151 : vector<1x16xf32> to vector<16x16xf32>
    %257 = arith.mulf %255, %256 : vector<16x16xf32>
    %258 = vector.broadcast %254 : vector<16x1xf32> to vector<16x16xf32>
    %259 = vector.broadcast %151 : vector<1x16xf32> to vector<16x16xf32>
    %260 = arith.mulf %258, %259 : vector<16x16xf32>
    %261 = vector.shape_cast %154 : vector<1x16xi1> to vector<1x16xi1>
    %262 = vector.broadcast %261 : vector<1x16xi1> to vector<16x16xi1>
    %263 = arith.select %262, %257, %260 : vector<16x16xi1>, vector<16x16xf32>
    %264 = vector.broadcast %152 : vector<1x16xf32> to vector<16x16xf32>
    %265 = arith.addf %263, %264 : vector<16x16xf32>
    %cst_157 = arith.constant 0.000000e+00 : f32
    %266 = vector.broadcast %cst_157 : f32 to vector<16x16xf32>
    %267 = arith.maximumf %265, %266 : vector<16x16xf32>
    %c5 = arith.constant 5 : index
    %c2_158 = arith.constant 2 : index
    %c0_159 = arith.constant 0 : index
    %268 = vector.load %arg15[%c5, %c2_158, %c0_159] : memref<12x20x16xf32, #tpu.memory_space<vmem>>, vector<1x16x16xf32>
    %269 = vector.shape_cast %268 : vector<1x16x16xf32> to vector<16x16xf32>
    %270 = vector.shape_cast %267 : vector<16x16xf32> to vector<1x16x16xf32>
    tpu.vector_store %arg15[%c5, %c2_158, %c0_159], %270 {strides = array<i32>} : memref<12x20x16xf32, #tpu.memory_space<vmem>>, vector<1x16x16xf32>,
    %271 = vector.extract_strided_slice %150 {offsets = [0, 20], sizes = [16, 1], strides = [1, 1]} : vector<16x40xf32> to vector<16x1xf32>
    %272 = vector.extract_strided_slice %150 {offsets = [0, 21], sizes = [16, 1], strides = [1, 1]} : vector<16x40xf32> to vector<16x1xf32>
    %273 = arith.maximumf %271, %272 : vector<16x1xf32>
    %274 = arith.minimumf %271, %272 : vector<16x1xf32>
    %275 = vector.extract_strided_slice %150 {offsets = [0, 22], sizes = [16, 1], strides = [1, 1]} : vector<16x40xf32> to vector<16x1xf32>
    %276 = arith.maximumf %273, %275 : vector<16x1xf32>
    %277 = arith.minimumf %274, %275 : vector<16x1xf32>
    %278 = vector.extract_strided_slice %150 {offsets = [0, 23], sizes = [16, 1], strides = [1, 1]} : vector<16x40xf32> to vector<16x1xf32>
    %279 = arith.maximumf %276, %278 : vector<16x1xf32>
    %280 = arith.minimumf %277, %278 : vector<16x1xf32>
    %281 = vector.extract_strided_slice %150 {offsets = [0, 24], sizes = [16, 1], strides = [1, 1]} : vector<16x40xf32> to vector<16x1xf32>
    %282 = arith.maximumf %279, %281 : vector<16x1xf32>
    %283 = arith.minimumf %280, %281 : vector<16x1xf32>
    %284 = vector.broadcast %282 : vector<16x1xf32> to vector<16x16xf32>
    %285 = vector.broadcast %151 : vector<1x16xf32> to vector<16x16xf32>
    %286 = arith.mulf %284, %285 : vector<16x16xf32>
    %287 = vector.broadcast %283 : vector<16x1xf32> to vector<16x16xf32>
    %288 = vector.broadcast %151 : vector<1x16xf32> to vector<16x16xf32>
    %289 = arith.mulf %287, %288 : vector<16x16xf32>
    %290 = vector.shape_cast %154 : vector<1x16xi1> to vector<1x16xi1>
    %291 = vector.broadcast %290 : vector<1x16xi1> to vector<16x16xi1>
    %292 = arith.select %291, %286, %289 : vector<16x16xi1>, vector<16x16xf32>
    %293 = vector.broadcast %152 : vector<1x16xf32> to vector<16x16xf32>
    %294 = arith.addf %292, %293 : vector<16x16xf32>
    %cst_160 = arith.constant 0.000000e+00 : f32
    %295 = vector.broadcast %cst_160 : f32 to vector<16x16xf32>
    %296 = arith.maximumf %294, %295 : vector<16x16xf32>
    %c6 = arith.constant 6 : index
    %c2_161 = arith.constant 2 : index
    %c0_162 = arith.constant 0 : index
    %297 = vector.load %arg15[%c6, %c2_161, %c0_162] : memref<12x20x16xf32, #tpu.memory_space<vmem>>, vector<1x16x16xf32>
    %298 = vector.shape_cast %297 : vector<1x16x16xf32> to vector<16x16xf32>
    %299 = vector.shape_cast %296 : vector<16x16xf32> to vector<1x16x16xf32>
    tpu.vector_store %arg15[%c6, %c2_161, %c0_162], %299 {strides = array<i32>} : memref<12x20x16xf32, #tpu.memory_space<vmem>>, vector<1x16x16xf32>,
    %300 = vector.extract_strided_slice %150 {offsets = [0, 25], sizes = [16, 1], strides = [1, 1]} : vector<16x40xf32> to vector<16x1xf32>
    %301 = vector.extract_strided_slice %150 {offsets = [0, 26], sizes = [16, 1], strides = [1, 1]} : vector<16x40xf32> to vector<16x1xf32>
    %302 = arith.maximumf %300, %301 : vector<16x1xf32>
    %303 = arith.minimumf %300, %301 : vector<16x1xf32>
    %304 = vector.extract_strided_slice %150 {offsets = [0, 27], sizes = [16, 1], strides = [1, 1]} : vector<16x40xf32> to vector<16x1xf32>
    %305 = arith.maximumf %302, %304 : vector<16x1xf32>
    %306 = arith.minimumf %303, %304 : vector<16x1xf32>
    %307 = vector.extract_strided_slice %150 {offsets = [0, 28], sizes = [16, 1], strides = [1, 1]} : vector<16x40xf32> to vector<16x1xf32>
    %308 = arith.maximumf %305, %307 : vector<16x1xf32>
    %309 = arith.minimumf %306, %307 : vector<16x1xf32>
    %310 = vector.extract_strided_slice %150 {offsets = [0, 29], sizes = [16, 1], strides = [1, 1]} : vector<16x40xf32> to vector<16x1xf32>
    %311 = arith.maximumf %308, %310 : vector<16x1xf32>
    %312 = arith.minimumf %309, %310 : vector<16x1xf32>
    %313 = vector.broadcast %311 : vector<16x1xf32> to vector<16x16xf32>
    %314 = vector.broadcast %151 : vector<1x16xf32> to vector<16x16xf32>
    %315 = arith.mulf %313, %314 : vector<16x16xf32>
    %316 = vector.broadcast %312 : vector<16x1xf32> to vector<16x16xf32>
    %317 = vector.broadcast %151 : vector<1x16xf32> to vector<16x16xf32>
    %318 = arith.mulf %316, %317 : vector<16x16xf32>
    %319 = vector.shape_cast %154 : vector<1x16xi1> to vector<1x16xi1>
    %320 = vector.broadcast %319 : vector<1x16xi1> to vector<16x16xi1>
    %321 = arith.select %320, %315, %318 : vector<16x16xi1>, vector<16x16xf32>
    %322 = vector.broadcast %152 : vector<1x16xf32> to vector<16x16xf32>
    %323 = arith.addf %321, %322 : vector<16x16xf32>
    %cst_163 = arith.constant 0.000000e+00 : f32
    %324 = vector.broadcast %cst_163 : f32 to vector<16x16xf32>
    %325 = arith.maximumf %323, %324 : vector<16x16xf32>
    %c7 = arith.constant 7 : index
    %c2_164 = arith.constant 2 : index
    %c0_165 = arith.constant 0 : index
    %326 = vector.load %arg15[%c7, %c2_164, %c0_165] : memref<12x20x16xf32, #tpu.memory_space<vmem>>, vector<1x16x16xf32>
    %327 = vector.shape_cast %326 : vector<1x16x16xf32> to vector<16x16xf32>
    %328 = vector.shape_cast %325 : vector<16x16xf32> to vector<1x16x16xf32>
    tpu.vector_store %arg15[%c7, %c2_164, %c0_165], %328 {strides = array<i32>} : memref<12x20x16xf32, #tpu.memory_space<vmem>>, vector<1x16x16xf32>,
    %329 = vector.extract_strided_slice %150 {offsets = [0, 30], sizes = [16, 1], strides = [1, 1]} : vector<16x40xf32> to vector<16x1xf32>
    %330 = vector.extract_strided_slice %150 {offsets = [0, 31], sizes = [16, 1], strides = [1, 1]} : vector<16x40xf32> to vector<16x1xf32>
    %331 = arith.maximumf %329, %330 : vector<16x1xf32>
    %332 = arith.minimumf %329, %330 : vector<16x1xf32>
    %333 = vector.extract_strided_slice %150 {offsets = [0, 32], sizes = [16, 1], strides = [1, 1]} : vector<16x40xf32> to vector<16x1xf32>
    %334 = arith.maximumf %331, %333 : vector<16x1xf32>
    %335 = arith.minimumf %332, %333 : vector<16x1xf32>
    %336 = vector.extract_strided_slice %150 {offsets = [0, 33], sizes = [16, 1], strides = [1, 1]} : vector<16x40xf32> to vector<16x1xf32>
    %337 = arith.maximumf %334, %336 : vector<16x1xf32>
    %338 = arith.minimumf %335, %336 : vector<16x1xf32>
    %339 = vector.extract_strided_slice %150 {offsets = [0, 34], sizes = [16, 1], strides = [1, 1]} : vector<16x40xf32> to vector<16x1xf32>
    %340 = arith.maximumf %337, %339 : vector<16x1xf32>
    %341 = arith.minimumf %338, %339 : vector<16x1xf32>
    %342 = vector.broadcast %340 : vector<16x1xf32> to vector<16x16xf32>
    %343 = vector.broadcast %151 : vector<1x16xf32> to vector<16x16xf32>
    %344 = arith.mulf %342, %343 : vector<16x16xf32>
    %345 = vector.broadcast %341 : vector<16x1xf32> to vector<16x16xf32>
    %346 = vector.broadcast %151 : vector<1x16xf32> to vector<16x16xf32>
    %347 = arith.mulf %345, %346 : vector<16x16xf32>
    %348 = vector.shape_cast %154 : vector<1x16xi1> to vector<1x16xi1>
    %349 = vector.broadcast %348 : vector<1x16xi1> to vector<16x16xi1>
    %350 = arith.select %349, %344, %347 : vector<16x16xi1>, vector<16x16xf32>
    %351 = vector.broadcast %152 : vector<1x16xf32> to vector<16x16xf32>
    %352 = arith.addf %350, %351 : vector<16x16xf32>
    %cst_166 = arith.constant 0.000000e+00 : f32
    %353 = vector.broadcast %cst_166 : f32 to vector<16x16xf32>
    %354 = arith.maximumf %352, %353 : vector<16x16xf32>
    %c8 = arith.constant 8 : index
    %c2_167 = arith.constant 2 : index
    %c0_168 = arith.constant 0 : index
    %355 = vector.load %arg15[%c8, %c2_167, %c0_168] : memref<12x20x16xf32, #tpu.memory_space<vmem>>, vector<1x16x16xf32>
    %356 = vector.shape_cast %355 : vector<1x16x16xf32> to vector<16x16xf32>
    %357 = vector.shape_cast %354 : vector<16x16xf32> to vector<1x16x16xf32>
    tpu.vector_store %arg15[%c8, %c2_167, %c0_168], %357 {strides = array<i32>} : memref<12x20x16xf32, #tpu.memory_space<vmem>>, vector<1x16x16xf32>,
    %358 = vector.extract_strided_slice %150 {offsets = [0, 35], sizes = [16, 1], strides = [1, 1]} : vector<16x40xf32> to vector<16x1xf32>
    %359 = vector.extract_strided_slice %150 {offsets = [0, 36], sizes = [16, 1], strides = [1, 1]} : vector<16x40xf32> to vector<16x1xf32>
    %360 = arith.maximumf %358, %359 : vector<16x1xf32>
    %361 = arith.minimumf %358, %359 : vector<16x1xf32>
    %362 = vector.extract_strided_slice %150 {offsets = [0, 37], sizes = [16, 1], strides = [1, 1]} : vector<16x40xf32> to vector<16x1xf32>
    %363 = arith.maximumf %360, %362 : vector<16x1xf32>
    %364 = arith.minimumf %361, %362 : vector<16x1xf32>
    %365 = vector.extract_strided_slice %150 {offsets = [0, 38], sizes = [16, 1], strides = [1, 1]} : vector<16x40xf32> to vector<16x1xf32>
    %366 = arith.maximumf %363, %365 : vector<16x1xf32>
    %367 = arith.minimumf %364, %365 : vector<16x1xf32>
    %368 = vector.extract_strided_slice %150 {offsets = [0, 39], sizes = [16, 1], strides = [1, 1]} : vector<16x40xf32> to vector<16x1xf32>
    %369 = arith.maximumf %366, %368 : vector<16x1xf32>
    %370 = arith.minimumf %367, %368 : vector<16x1xf32>
    %371 = vector.broadcast %369 : vector<16x1xf32> to vector<16x16xf32>
    %372 = vector.broadcast %151 : vector<1x16xf32> to vector<16x16xf32>
    %373 = arith.mulf %371, %372 : vector<16x16xf32>
    %374 = vector.broadcast %370 : vector<16x1xf32> to vector<16x16xf32>
    %375 = vector.broadcast %151 : vector<1x16xf32> to vector<16x16xf32>
    %376 = arith.mulf %374, %375 : vector<16x16xf32>
    %377 = vector.shape_cast %154 : vector<1x16xi1> to vector<1x16xi1>
    %378 = vector.broadcast %377 : vector<1x16xi1> to vector<16x16xi1>
    %379 = arith.select %378, %373, %376 : vector<16x16xi1>, vector<16x16xf32>
    %380 = vector.broadcast %152 : vector<1x16xf32> to vector<16x16xf32>
    %381 = arith.addf %379, %380 : vector<16x16xf32>
    %cst_169 = arith.constant 0.000000e+00 : f32
    %382 = vector.broadcast %cst_169 : f32 to vector<16x16xf32>
    %383 = arith.maximumf %381, %382 : vector<16x16xf32>
    %c9 = arith.constant 9 : index
    %c2_170 = arith.constant 2 : index
    %c0_171 = arith.constant 0 : index
    %384 = vector.load %arg15[%c9, %c2_170, %c0_171] : memref<12x20x16xf32, #tpu.memory_space<vmem>>, vector<1x16x16xf32>
    %385 = vector.shape_cast %384 : vector<1x16x16xf32> to vector<16x16xf32>
    %386 = vector.shape_cast %383 : vector<16x16xf32> to vector<1x16x16xf32>
    tpu.vector_store %arg15[%c9, %c2_170, %c0_171], %386 {strides = array<i32>} : memref<12x20x16xf32, #tpu.memory_space<vmem>>, vector<1x16x16xf32>,
    %c0_172 = arith.constant 0 : index
    %c0_173 = arith.constant 0 : index
    %c0_174 = arith.constant 0 : index
    %387 = vector.load %arg15[%c0_172, %c0_173, %c0_174] : memref<12x20x16xf32, #tpu.memory_space<vmem>>, vector<8x16x16xf32>
    %388 = vector.shape_cast %387 : vector<8x16x16xf32> to vector<128x16xf32>
    %c0_175 = arith.constant 0 : index
    %c0_176 = arith.constant 0 : index
    %389 = vector.load %arg16[%c0_175, %c0_176] : memref<128x400xf32, #tpu.memory_space<vmem>>, vector<128x16xf32>
    tpu.vector_store %arg16[%c0_175, %c0_176], %388 {strides = array<i32>} : memref<128x400xf32, #tpu.memory_space<vmem>>, vector<128x16xf32>,
    %c1_177 = arith.constant 1 : index
    %c0_178 = arith.constant 0 : index
    %c0_179 = arith.constant 0 : index
    %390 = vector.load %arg15[%c1_177, %c0_178, %c0_179] : memref<12x20x16xf32, #tpu.memory_space<vmem>>, vector<8x16x16xf32>
    %391 = vector.shape_cast %390 : vector<8x16x16xf32> to vector<128x16xf32>
    %c0_180 = arith.constant 0 : index
    %c16 = arith.constant 16 : index
    %392 = vector.load %arg16[%c0_180, %c16] : memref<128x400xf32, #tpu.memory_space<vmem>>, vector<128x16xf32>
    tpu.vector_store %arg16[%c0_180, %c16], %391 {strides = array<i32>} : memref<128x400xf32, #tpu.memory_space<vmem>>, vector<128x16xf32>,
    %c2_181 = arith.constant 2 : index
    %c0_182 = arith.constant 0 : index
    %c0_183 = arith.constant 0 : index
    %393 = vector.load %arg15[%c2_181, %c0_182, %c0_183] : memref<12x20x16xf32, #tpu.memory_space<vmem>>, vector<8x16x16xf32>
    %394 = vector.shape_cast %393 : vector<8x16x16xf32> to vector<128x16xf32>
    %c0_184 = arith.constant 0 : index
    %c32 = arith.constant 32 : index
    %395 = vector.load %arg16[%c0_184, %c32] : memref<128x400xf32, #tpu.memory_space<vmem>>, vector<128x16xf32>
    tpu.vector_store %arg16[%c0_184, %c32], %394 {strides = array<i32>} : memref<128x400xf32, #tpu.memory_space<vmem>>, vector<128x16xf32>,
    %c3_185 = arith.constant 3 : index
    %c0_186 = arith.constant 0 : index
    %c0_187 = arith.constant 0 : index
    %396 = vector.load %arg15[%c3_185, %c0_186, %c0_187] : memref<12x20x16xf32, #tpu.memory_space<vmem>>, vector<8x16x16xf32>
    %397 = vector.shape_cast %396 : vector<8x16x16xf32> to vector<128x16xf32>
    %c0_188 = arith.constant 0 : index
    %c48 = arith.constant 48 : index
    %398 = vector.load %arg16[%c0_188, %c48] : memref<128x400xf32, #tpu.memory_space<vmem>>, vector<128x16xf32>
    tpu.vector_store %arg16[%c0_188, %c48], %397 {strides = array<i32>} : memref<128x400xf32, #tpu.memory_space<vmem>>, vector<128x16xf32>,
    %c4_189 = arith.constant 4 : index
    %c0_190 = arith.constant 0 : index
    %c0_191 = arith.constant 0 : index
    %399 = vector.load %arg15[%c4_189, %c0_190, %c0_191] : memref<12x20x16xf32, #tpu.memory_space<vmem>>, vector<8x16x16xf32>
    %400 = vector.shape_cast %399 : vector<8x16x16xf32> to vector<128x16xf32>
    %c0_192 = arith.constant 0 : index
    %c64 = arith.constant 64 : index
    %401 = vector.load %arg16[%c0_192, %c64] : memref<128x400xf32, #tpu.memory_space<vmem>>, vector<128x16xf32>
    tpu.vector_store %arg16[%c0_192, %c64], %400 {strides = array<i32>} : memref<128x400xf32, #tpu.memory_space<vmem>>, vector<128x16xf32>,
    %c0_193 = arith.constant 0 : index
    %c1_194 = arith.constant 1 : index
    %c0_195 = arith.constant 0 : index
    %402 = vector.load %arg15[%c0_193, %c1_194, %c0_195] : memref<12x20x16xf32, #tpu.memory_space<vmem>>, vector<8x16x16xf32>
    %403 = vector.shape_cast %402 : vector<8x16x16xf32> to vector<128x16xf32>
    %c0_196 = arith.constant 0 : index
    %c80 = arith.constant 80 : index
    %404 = vector.load %arg16[%c0_196, %c80] : memref<128x400xf32, #tpu.memory_space<vmem>>, vector<128x16xf32>
    tpu.vector_store %arg16[%c0_196, %c80], %403 {strides = array<i32>} : memref<128x400xf32, #tpu.memory_space<vmem>>, vector<128x16xf32>,
    %c1_197 = arith.constant 1 : index
    %c1_198 = arith.constant 1 : index
    %c0_199 = arith.constant 0 : index
    %405 = vector.load %arg15[%c1_197, %c1_198, %c0_199] : memref<12x20x16xf32, #tpu.memory_space<vmem>>, vector<8x16x16xf32>
    %406 = vector.shape_cast %405 : vector<8x16x16xf32> to vector<128x16xf32>
    %c0_200 = arith.constant 0 : index
    %c96 = arith.constant 96 : index
    %407 = vector.load %arg16[%c0_200, %c96] : memref<128x400xf32, #tpu.memory_space<vmem>>, vector<128x16xf32>
    tpu.vector_store %arg16[%c0_200, %c96], %406 {strides = array<i32>} : memref<128x400xf32, #tpu.memory_space<vmem>>, vector<128x16xf32>,
    %c2_201 = arith.constant 2 : index
    %c1_202 = arith.constant 1 : index
    %c0_203 = arith.constant 0 : index
    %408 = vector.load %arg15[%c2_201, %c1_202, %c0_203] : memref<12x20x16xf32, #tpu.memory_space<vmem>>, vector<8x16x16xf32>
    %409 = vector.shape_cast %408 : vector<8x16x16xf32> to vector<128x16xf32>
    %c0_204 = arith.constant 0 : index
    %c112 = arith.constant 112 : index
    %410 = vector.load %arg16[%c0_204, %c112] : memref<128x400xf32, #tpu.memory_space<vmem>>, vector<128x16xf32>
    tpu.vector_store %arg16[%c0_204, %c112], %409 {strides = array<i32>} : memref<128x400xf32, #tpu.memory_space<vmem>>, vector<128x16xf32>,
    %c3_205 = arith.constant 3 : index
    %c1_206 = arith.constant 1 : index
    %c0_207 = arith.constant 0 : index
    %411 = vector.load %arg15[%c3_205, %c1_206, %c0_207] : memref<12x20x16xf32, #tpu.memory_space<vmem>>, vector<8x16x16xf32>
    %412 = vector.shape_cast %411 : vector<8x16x16xf32> to vector<128x16xf32>
    %c0_208 = arith.constant 0 : index
    %c128 = arith.constant 128 : index
    %413 = vector.load %arg16[%c0_208, %c128] : memref<128x400xf32, #tpu.memory_space<vmem>>, vector<128x16xf32>
    tpu.vector_store %arg16[%c0_208, %c128], %412 {strides = array<i32>} : memref<128x400xf32, #tpu.memory_space<vmem>>, vector<128x16xf32>,
    %c4_209 = arith.constant 4 : index
    %c1_210 = arith.constant 1 : index
    %c0_211 = arith.constant 0 : index
    %414 = vector.load %arg15[%c4_209, %c1_210, %c0_211] : memref<12x20x16xf32, #tpu.memory_space<vmem>>, vector<8x16x16xf32>
    %415 = vector.shape_cast %414 : vector<8x16x16xf32> to vector<128x16xf32>
    %c0_212 = arith.constant 0 : index
    %c144 = arith.constant 144 : index
    %416 = vector.load %arg16[%c0_212, %c144] : memref<128x400xf32, #tpu.memory_space<vmem>>, vector<128x16xf32>
    tpu.vector_store %arg16[%c0_212, %c144], %415 {strides = array<i32>} : memref<128x400xf32, #tpu.memory_space<vmem>>, vector<128x16xf32>,
    %c0_213 = arith.constant 0 : index
    %c2_214 = arith.constant 2 : index
    %c0_215 = arith.constant 0 : index
    %417 = vector.load %arg15[%c0_213, %c2_214, %c0_215] : memref<12x20x16xf32, #tpu.memory_space<vmem>>, vector<8x16x16xf32>
    %418 = vector.shape_cast %417 : vector<8x16x16xf32> to vector<128x16xf32>
    %c0_216 = arith.constant 0 : index
    %c160 = arith.constant 160 : index
    %419 = vector.load %arg16[%c0_216, %c160] : memref<128x400xf32, #tpu.memory_space<vmem>>, vector<128x16xf32>
    tpu.vector_store %arg16[%c0_216, %c160], %418 {strides = array<i32>} : memref<128x400xf32, #tpu.memory_space<vmem>>, vector<128x16xf32>,
    %c1_217 = arith.constant 1 : index
    %c2_218 = arith.constant 2 : index
    %c0_219 = arith.constant 0 : index
    %420 = vector.load %arg15[%c1_217, %c2_218, %c0_219] : memref<12x20x16xf32, #tpu.memory_space<vmem>>, vector<8x16x16xf32>
    %421 = vector.shape_cast %420 : vector<8x16x16xf32> to vector<128x16xf32>
    %c0_220 = arith.constant 0 : index
    %c176 = arith.constant 176 : index
    %422 = vector.load %arg16[%c0_220, %c176] : memref<128x400xf32, #tpu.memory_space<vmem>>, vector<128x16xf32>
    tpu.vector_store %arg16[%c0_220, %c176], %421 {strides = array<i32>} : memref<128x400xf32, #tpu.memory_space<vmem>>, vector<128x16xf32>,
    %c2_221 = arith.constant 2 : index
    %c2_222 = arith.constant 2 : index
    %c0_223 = arith.constant 0 : index
    %423 = vector.load %arg15[%c2_221, %c2_222, %c0_223] : memref<12x20x16xf32, #tpu.memory_space<vmem>>, vector<8x16x16xf32>
    %424 = vector.shape_cast %423 : vector<8x16x16xf32> to vector<128x16xf32>
    %c0_224 = arith.constant 0 : index
    %c192 = arith.constant 192 : index
    %425 = vector.load %arg16[%c0_224, %c192] : memref<128x400xf32, #tpu.memory_space<vmem>>, vector<128x16xf32>
    tpu.vector_store %arg16[%c0_224, %c192], %424 {strides = array<i32>} : memref<128x400xf32, #tpu.memory_space<vmem>>, vector<128x16xf32>,
    %c3_225 = arith.constant 3 : index
    %c2_226 = arith.constant 2 : index
    %c0_227 = arith.constant 0 : index
    %426 = vector.load %arg15[%c3_225, %c2_226, %c0_227] : memref<12x20x16xf32, #tpu.memory_space<vmem>>, vector<8x16x16xf32>
    %427 = vector.shape_cast %426 : vector<8x16x16xf32> to vector<128x16xf32>
    %c0_228 = arith.constant 0 : index
    %c208 = arith.constant 208 : index
    %428 = vector.load %arg16[%c0_228, %c208] : memref<128x400xf32, #tpu.memory_space<vmem>>, vector<128x16xf32>
    tpu.vector_store %arg16[%c0_228, %c208], %427 {strides = array<i32>} : memref<128x400xf32, #tpu.memory_space<vmem>>, vector<128x16xf32>,
    %c4_229 = arith.constant 4 : index
    %c2_230 = arith.constant 2 : index
    %c0_231 = arith.constant 0 : index
    %429 = vector.load %arg15[%c4_229, %c2_230, %c0_231] : memref<12x20x16xf32, #tpu.memory_space<vmem>>, vector<8x16x16xf32>
    %430 = vector.shape_cast %429 : vector<8x16x16xf32> to vector<128x16xf32>
    %c0_232 = arith.constant 0 : index
    %c224 = arith.constant 224 : index
    %431 = vector.load %arg16[%c0_232, %c224] : memref<128x400xf32, #tpu.memory_space<vmem>>, vector<128x16xf32>
    tpu.vector_store %arg16[%c0_232, %c224], %430 {strides = array<i32>} : memref<128x400xf32, #tpu.memory_space<vmem>>, vector<128x16xf32>,
    %c0_233 = arith.constant 0 : index
    %c3_234 = arith.constant 3 : index
    %c0_235 = arith.constant 0 : index
    %432 = vector.load %arg15[%c0_233, %c3_234, %c0_235] : memref<12x20x16xf32, #tpu.memory_space<vmem>>, vector<8x16x16xf32>
    %433 = vector.shape_cast %432 : vector<8x16x16xf32> to vector<128x16xf32>
    %c0_236 = arith.constant 0 : index
    %c240 = arith.constant 240 : index
    %434 = vector.load %arg16[%c0_236, %c240] : memref<128x400xf32, #tpu.memory_space<vmem>>, vector<128x16xf32>
    tpu.vector_store %arg16[%c0_236, %c240], %433 {strides = array<i32>} : memref<128x400xf32, #tpu.memory_space<vmem>>, vector<128x16xf32>,
    %c1_237 = arith.constant 1 : index
    %c3_238 = arith.constant 3 : index
    %c0_239 = arith.constant 0 : index
    %435 = vector.load %arg15[%c1_237, %c3_238, %c0_239] : memref<12x20x16xf32, #tpu.memory_space<vmem>>, vector<8x16x16xf32>
    %436 = vector.shape_cast %435 : vector<8x16x16xf32> to vector<128x16xf32>
    %c0_240 = arith.constant 0 : index
    %c256 = arith.constant 256 : index
    %437 = vector.load %arg16[%c0_240, %c256] : memref<128x400xf32, #tpu.memory_space<vmem>>, vector<128x16xf32>
    tpu.vector_store %arg16[%c0_240, %c256], %436 {strides = array<i32>} : memref<128x400xf32, #tpu.memory_space<vmem>>, vector<128x16xf32>,
    %c2_241 = arith.constant 2 : index
    %c3_242 = arith.constant 3 : index
    %c0_243 = arith.constant 0 : index
    %438 = vector.load %arg15[%c2_241, %c3_242, %c0_243] : memref<12x20x16xf32, #tpu.memory_space<vmem>>, vector<8x16x16xf32>
    %439 = vector.shape_cast %438 : vector<8x16x16xf32> to vector<128x16xf32>
    %c0_244 = arith.constant 0 : index
    %c272 = arith.constant 272 : index
    %440 = vector.load %arg16[%c0_244, %c272] : memref<128x400xf32, #tpu.memory_space<vmem>>, vector<128x16xf32>
    tpu.vector_store %arg16[%c0_244, %c272], %439 {strides = array<i32>} : memref<128x400xf32, #tpu.memory_space<vmem>>, vector<128x16xf32>,
    %c3_245 = arith.constant 3 : index
    %c3_246 = arith.constant 3 : index
    %c0_247 = arith.constant 0 : index
    %441 = vector.load %arg15[%c3_245, %c3_246, %c0_247] : memref<12x20x16xf32, #tpu.memory_space<vmem>>, vector<8x16x16xf32>
    %442 = vector.shape_cast %441 : vector<8x16x16xf32> to vector<128x16xf32>
    %c0_248 = arith.constant 0 : index
    %c288 = arith.constant 288 : index
    %443 = vector.load %arg16[%c0_248, %c288] : memref<128x400xf32, #tpu.memory_space<vmem>>, vector<128x16xf32>
    tpu.vector_store %arg16[%c0_248, %c288], %442 {strides = array<i32>} : memref<128x400xf32, #tpu.memory_space<vmem>>, vector<128x16xf32>,
    %c4_249 = arith.constant 4 : index
    %c3_250 = arith.constant 3 : index
    %c0_251 = arith.constant 0 : index
    %444 = vector.load %arg15[%c4_249, %c3_250, %c0_251] : memref<12x20x16xf32, #tpu.memory_space<vmem>>, vector<8x16x16xf32>
    %445 = vector.shape_cast %444 : vector<8x16x16xf32> to vector<128x16xf32>
    %c0_252 = arith.constant 0 : index
    %c304 = arith.constant 304 : index
    %446 = vector.load %arg16[%c0_252, %c304] : memref<128x400xf32, #tpu.memory_space<vmem>>, vector<128x16xf32>
    tpu.vector_store %arg16[%c0_252, %c304], %445 {strides = array<i32>} : memref<128x400xf32, #tpu.memory_space<vmem>>, vector<128x16xf32>,
    %c0_253 = arith.constant 0 : index
    %c4_254 = arith.constant 4 : index
    %c0_255 = arith.constant 0 : index
    %447 = vector.load %arg15[%c0_253, %c4_254, %c0_255] : memref<12x20x16xf32, #tpu.memory_space<vmem>>, vector<8x16x16xf32>
    %448 = vector.shape_cast %447 : vector<8x16x16xf32> to vector<128x16xf32>
    %c0_256 = arith.constant 0 : index
    %c320 = arith.constant 320 : index
    %449 = vector.load %arg16[%c0_256, %c320] : memref<128x400xf32, #tpu.memory_space<vmem>>, vector<128x16xf32>
    tpu.vector_store %arg16[%c0_256, %c320], %448 {strides = array<i32>} : memref<128x400xf32, #tpu.memory_space<vmem>>, vector<128x16xf32>,
    %c1_257 = arith.constant 1 : index
    %c4_258 = arith.constant 4 : index
    %c0_259 = arith.constant 0 : index
    %450 = vector.load %arg15[%c1_257, %c4_258, %c0_259] : memref<12x20x16xf32, #tpu.memory_space<vmem>>, vector<8x16x16xf32>
    %451 = vector.shape_cast %450 : vector<8x16x16xf32> to vector<128x16xf32>
    %c0_260 = arith.constant 0 : index
    %c336 = arith.constant 336 : index
    %452 = vector.load %arg16[%c0_260, %c336] : memref<128x400xf32, #tpu.memory_space<vmem>>, vector<128x16xf32>
    tpu.vector_store %arg16[%c0_260, %c336], %451 {strides = array<i32>} : memref<128x400xf32, #tpu.memory_space<vmem>>, vector<128x16xf32>,
    %c2_261 = arith.constant 2 : index
    %c4_262 = arith.constant 4 : index
    %c0_263 = arith.constant 0 : index
    %453 = vector.load %arg15[%c2_261, %c4_262, %c0_263] : memref<12x20x16xf32, #tpu.memory_space<vmem>>, vector<8x16x16xf32>
    %454 = vector.shape_cast %453 : vector<8x16x16xf32> to vector<128x16xf32>
    %c0_264 = arith.constant 0 : index
    %c352 = arith.constant 352 : index
    %455 = vector.load %arg16[%c0_264, %c352] : memref<128x400xf32, #tpu.memory_space<vmem>>, vector<128x16xf32>
    tpu.vector_store %arg16[%c0_264, %c352], %454 {strides = array<i32>} : memref<128x400xf32, #tpu.memory_space<vmem>>, vector<128x16xf32>,
    %c3_265 = arith.constant 3 : index
    %c4_266 = arith.constant 4 : index
    %c0_267 = arith.constant 0 : index
    %456 = vector.load %arg15[%c3_265, %c4_266, %c0_267] : memref<12x20x16xf32, #tpu.memory_space<vmem>>, vector<8x16x16xf32>
    %457 = vector.shape_cast %456 : vector<8x16x16xf32> to vector<128x16xf32>
    %c0_268 = arith.constant 0 : index
    %c368 = arith.constant 368 : index
    %458 = vector.load %arg16[%c0_268, %c368] : memref<128x400xf32, #tpu.memory_space<vmem>>, vector<128x16xf32>
    tpu.vector_store %arg16[%c0_268, %c368], %457 {strides = array<i32>} : memref<128x400xf32, #tpu.memory_space<vmem>>, vector<128x16xf32>,
    %c4_269 = arith.constant 4 : index
    %c4_270 = arith.constant 4 : index
    %c0_271 = arith.constant 0 : index
    %459 = vector.load %arg15[%c4_269, %c4_270, %c0_271] : memref<12x20x16xf32, #tpu.memory_space<vmem>>, vector<8x16x16xf32>
    %460 = vector.shape_cast %459 : vector<8x16x16xf32> to vector<128x16xf32>
    %c0_272 = arith.constant 0 : index
    %c384 = arith.constant 384 : index
    %461 = vector.load %arg16[%c0_272, %c384] : memref<128x400xf32, #tpu.memory_space<vmem>>, vector<128x16xf32>
    tpu.vector_store %arg16[%c0_272, %c384], %460 {strides = array<i32>} : memref<128x400xf32, #tpu.memory_space<vmem>>, vector<128x16xf32>,
    %c0_273 = arith.constant 0 : index
    %c0_274 = arith.constant 0 : index
    %462 = vector.load %arg16[%c0_273, %c0_274] : memref<128x400xf32, #tpu.memory_space<vmem>>, vector<128x400xf32>
    %c0_275 = arith.constant 0 : index
    %c0_276 = arith.constant 0 : index
    %463 = vector.load %arg6[%c0_275, %c0_276] : memref<400x16xf32, #tpu.memory_space<vmem>>, vector<400x16xf32>
    %cst_277 = arith.constant dense<0.000000e+00> : vector<128x16xf32>
    %464 = tpu.matmul %462, %463, %cst_277 {dimension_numbers = #tpu.dot_dimension_numbers<[1], [0], [0], [1], [0, 0, 1, 1], [], []>} : vector<128x400xf32>, vector<400x16xf32>, vector<128x16xf32> -> vector<128x16xf32>
    %c0_278 = arith.constant 0 : index
    %c0_279 = arith.constant 0 : index
    %465 = vector.load %arg7[%c0_278, %c0_279] : memref<1x16xf32, #tpu.memory_space<vmem>>, vector<1x16xf32>
    %466 = vector.broadcast %465 : vector<1x16xf32> to vector<128x16xf32>
    %467 = arith.addf %464, %466 : vector<128x16xf32>
    %cst_280 = arith.constant 0.000000e+00 : f32
    %468 = vector.broadcast %cst_280 : f32 to vector<128x16xf32>
    %469 = arith.maximumf %467, %468 : vector<128x16xf32>
    %470 = vector.extract_strided_slice %469 {offsets = [0, 0], sizes = [16, 16], strides = [1, 1]} : vector<128x16xf32> to vector<16x16xf32>
    %471 = vector.extract_strided_slice %469 {offsets = [16, 0], sizes = [16, 16], strides = [1, 1]} : vector<128x16xf32> to vector<16x16xf32>
    %472 = arith.maximumf %470, %471 : vector<16x16xf32>
    %473 = vector.extract_strided_slice %469 {offsets = [32, 0], sizes = [16, 16], strides = [1, 1]} : vector<128x16xf32> to vector<16x16xf32>
    %474 = arith.maximumf %472, %473 : vector<16x16xf32>
    %475 = vector.extract_strided_slice %469 {offsets = [48, 0], sizes = [16, 16], strides = [1, 1]} : vector<128x16xf32> to vector<16x16xf32>
    %476 = arith.maximumf %474, %475 : vector<16x16xf32>
    %c2_281 = arith.constant 2 : index
    %c2_282 = arith.constant 2 : index
    %c0_283 = arith.constant 0 : index
    %477 = vector.load %arg17[%c2_281, %c2_282, %c0_283] : memref<6x20x16xf32, #tpu.memory_space<vmem>>, vector<1x16x16xf32>
    %478 = vector.shape_cast %477 : vector<1x16x16xf32> to vector<16x16xf32>
    %479 = vector.shape_cast %476 : vector<16x16xf32> to vector<1x16x16xf32>
    tpu.vector_store %arg17[%c2_281, %c2_282, %c0_283], %479 {strides = array<i32>} : memref<6x20x16xf32, #tpu.memory_space<vmem>>, vector<1x16x16xf32>,
    %480 = vector.extract_strided_slice %469 {offsets = [64, 0], sizes = [16, 16], strides = [1, 1]} : vector<128x16xf32> to vector<16x16xf32>
    %481 = vector.extract_strided_slice %469 {offsets = [80, 0], sizes = [16, 16], strides = [1, 1]} : vector<128x16xf32> to vector<16x16xf32>
    %482 = arith.maximumf %480, %481 : vector<16x16xf32>
    %483 = vector.extract_strided_slice %469 {offsets = [96, 0], sizes = [16, 16], strides = [1, 1]} : vector<128x16xf32> to vector<16x16xf32>
    %484 = arith.maximumf %482, %483 : vector<16x16xf32>
    %485 = vector.extract_strided_slice %469 {offsets = [112, 0], sizes = [16, 16], strides = [1, 1]} : vector<128x16xf32> to vector<16x16xf32>
    %486 = arith.maximumf %484, %485 : vector<16x16xf32>
    %c3_284 = arith.constant 3 : index
    %c2_285 = arith.constant 2 : index
    %c0_286 = arith.constant 0 : index
    %487 = vector.load %arg17[%c3_284, %c2_285, %c0_286] : memref<6x20x16xf32, #tpu.memory_space<vmem>>, vector<1x16x16xf32>
    %488 = vector.shape_cast %487 : vector<1x16x16xf32> to vector<16x16xf32>
    %489 = vector.shape_cast %486 : vector<16x16xf32> to vector<1x16x16xf32>
    tpu.vector_store %arg17[%c3_284, %c2_285, %c0_286], %489 {strides = array<i32>} : memref<6x20x16xf32, #tpu.memory_space<vmem>>, vector<1x16x16xf32>,
    %c0_287 = arith.constant 0 : index
    %c0_288 = arith.constant 0 : index
    %c0_289 = arith.constant 0 : index
    %490 = vector.load %arg17[%c0_287, %c0_288, %c0_289] : memref<6x20x16xf32, #tpu.memory_space<vmem>>, vector<2x16x16xf32>
    %491 = vector.shape_cast %490 : vector<2x16x16xf32> to vector<32x16xf32>
    %c0_290 = arith.constant 0 : index
    %c0_291 = arith.constant 0 : index
    %492 = vector.load %arg18[%c0_290, %c0_291] : memref<32x400xf32, #tpu.memory_space<vmem>>, vector<32x16xf32>
    tpu.vector_store %arg18[%c0_290, %c0_291], %491 {strides = array<i32>} : memref<32x400xf32, #tpu.memory_space<vmem>>, vector<32x16xf32>,
    %c1_292 = arith.constant 1 : index
    %c0_293 = arith.constant 0 : index
    %c0_294 = arith.constant 0 : index
    %493 = vector.load %arg17[%c1_292, %c0_293, %c0_294] : memref<6x20x16xf32, #tpu.memory_space<vmem>>, vector<2x16x16xf32>
    %494 = vector.shape_cast %493 : vector<2x16x16xf32> to vector<32x16xf32>
    %c0_295 = arith.constant 0 : index
    %c16_296 = arith.constant 16 : index
    %495 = vector.load %arg18[%c0_295, %c16_296] : memref<32x400xf32, #tpu.memory_space<vmem>>, vector<32x16xf32>
    tpu.vector_store %arg18[%c0_295, %c16_296], %494 {strides = array<i32>} : memref<32x400xf32, #tpu.memory_space<vmem>>, vector<32x16xf32>,
    %c2_297 = arith.constant 2 : index
    %c0_298 = arith.constant 0 : index
    %c0_299 = arith.constant 0 : index
    %496 = vector.load %arg17[%c2_297, %c0_298, %c0_299] : memref<6x20x16xf32, #tpu.memory_space<vmem>>, vector<2x16x16xf32>
    %497 = vector.shape_cast %496 : vector<2x16x16xf32> to vector<32x16xf32>
    %c0_300 = arith.constant 0 : index
    %c32_301 = arith.constant 32 : index
    %498 = vector.load %arg18[%c0_300, %c32_301] : memref<32x400xf32, #tpu.memory_space<vmem>>, vector<32x16xf32>
    tpu.vector_store %arg18[%c0_300, %c32_301], %497 {strides = array<i32>} : memref<32x400xf32, #tpu.memory_space<vmem>>, vector<32x16xf32>,
    %c3_302 = arith.constant 3 : index
    %c0_303 = arith.constant 0 : index
    %c0_304 = arith.constant 0 : index
    %499 = vector.load %arg17[%c3_302, %c0_303, %c0_304] : memref<6x20x16xf32, #tpu.memory_space<vmem>>, vector<2x16x16xf32>
    %500 = vector.shape_cast %499 : vector<2x16x16xf32> to vector<32x16xf32>
    %c0_305 = arith.constant 0 : index
    %c48_306 = arith.constant 48 : index
    %501 = vector.load %arg18[%c0_305, %c48_306] : memref<32x400xf32, #tpu.memory_space<vmem>>, vector<32x16xf32>
    tpu.vector_store %arg18[%c0_305, %c48_306], %500 {strides = array<i32>} : memref<32x400xf32, #tpu.memory_space<vmem>>, vector<32x16xf32>,
    %c4_307 = arith.constant 4 : index
    %c0_308 = arith.constant 0 : index
    %c0_309 = arith.constant 0 : index
    %502 = vector.load %arg17[%c4_307, %c0_308, %c0_309] : memref<6x20x16xf32, #tpu.memory_space<vmem>>, vector<2x16x16xf32>
    %503 = vector.shape_cast %502 : vector<2x16x16xf32> to vector<32x16xf32>
    %c0_310 = arith.constant 0 : index
    %c64_311 = arith.constant 64 : index
    %504 = vector.load %arg18[%c0_310, %c64_311] : memref<32x400xf32, #tpu.memory_space<vmem>>, vector<32x16xf32>
    tpu.vector_store %arg18[%c0_310, %c64_311], %503 {strides = array<i32>} : memref<32x400xf32, #tpu.memory_space<vmem>>, vector<32x16xf32>,
    %c0_312 = arith.constant 0 : index
    %c1_313 = arith.constant 1 : index
    %c0_314 = arith.constant 0 : index
    %505 = vector.load %arg17[%c0_312, %c1_313, %c0_314] : memref<6x20x16xf32, #tpu.memory_space<vmem>>, vector<2x16x16xf32>
    %506 = vector.shape_cast %505 : vector<2x16x16xf32> to vector<32x16xf32>
    %c0_315 = arith.constant 0 : index
    %c80_316 = arith.constant 80 : index
    %507 = vector.load %arg18[%c0_315, %c80_316] : memref<32x400xf32, #tpu.memory_space<vmem>>, vector<32x16xf32>
    tpu.vector_store %arg18[%c0_315, %c80_316], %506 {strides = array<i32>} : memref<32x400xf32, #tpu.memory_space<vmem>>, vector<32x16xf32>,
    %c1_317 = arith.constant 1 : index
    %c1_318 = arith.constant 1 : index
    %c0_319 = arith.constant 0 : index
    %508 = vector.load %arg17[%c1_317, %c1_318, %c0_319] : memref<6x20x16xf32, #tpu.memory_space<vmem>>, vector<2x16x16xf32>
    %509 = vector.shape_cast %508 : vector<2x16x16xf32> to vector<32x16xf32>
    %c0_320 = arith.constant 0 : index
    %c96_321 = arith.constant 96 : index
    %510 = vector.load %arg18[%c0_320, %c96_321] : memref<32x400xf32, #tpu.memory_space<vmem>>, vector<32x16xf32>
    tpu.vector_store %arg18[%c0_320, %c96_321], %509 {strides = array<i32>} : memref<32x400xf32, #tpu.memory_space<vmem>>, vector<32x16xf32>,
    %c2_322 = arith.constant 2 : index
    %c1_323 = arith.constant 1 : index
    %c0_324 = arith.constant 0 : index
    %511 = vector.load %arg17[%c2_322, %c1_323, %c0_324] : memref<6x20x16xf32, #tpu.memory_space<vmem>>, vector<2x16x16xf32>
    %512 = vector.shape_cast %511 : vector<2x16x16xf32> to vector<32x16xf32>
    %c0_325 = arith.constant 0 : index
    %c112_326 = arith.constant 112 : index
    %513 = vector.load %arg18[%c0_325, %c112_326] : memref<32x400xf32, #tpu.memory_space<vmem>>, vector<32x16xf32>
    tpu.vector_store %arg18[%c0_325, %c112_326], %512 {strides = array<i32>} : memref<32x400xf32, #tpu.memory_space<vmem>>, vector<32x16xf32>,
    %c3_327 = arith.constant 3 : index
    %c1_328 = arith.constant 1 : index
    %c0_329 = arith.constant 0 : index
    %514 = vector.load %arg17[%c3_327, %c1_328, %c0_329] : memref<6x20x16xf32, #tpu.memory_space<vmem>>, vector<2x16x16xf32>
    %515 = vector.shape_cast %514 : vector<2x16x16xf32> to vector<32x16xf32>
    %c0_330 = arith.constant 0 : index
    %c128_331 = arith.constant 128 : index
    %516 = vector.load %arg18[%c0_330, %c128_331] : memref<32x400xf32, #tpu.memory_space<vmem>>, vector<32x16xf32>
    tpu.vector_store %arg18[%c0_330, %c128_331], %515 {strides = array<i32>} : memref<32x400xf32, #tpu.memory_space<vmem>>, vector<32x16xf32>,
    %c4_332 = arith.constant 4 : index
    %c1_333 = arith.constant 1 : index
    %c0_334 = arith.constant 0 : index
    %517 = vector.load %arg17[%c4_332, %c1_333, %c0_334] : memref<6x20x16xf32, #tpu.memory_space<vmem>>, vector<2x16x16xf32>
    %518 = vector.shape_cast %517 : vector<2x16x16xf32> to vector<32x16xf32>
    %c0_335 = arith.constant 0 : index
    %c144_336 = arith.constant 144 : index
    %519 = vector.load %arg18[%c0_335, %c144_336] : memref<32x400xf32, #tpu.memory_space<vmem>>, vector<32x16xf32>
    tpu.vector_store %arg18[%c0_335, %c144_336], %518 {strides = array<i32>} : memref<32x400xf32, #tpu.memory_space<vmem>>, vector<32x16xf32>,
    %c0_337 = arith.constant 0 : index
    %c2_338 = arith.constant 2 : index
    %c0_339 = arith.constant 0 : index
    %520 = vector.load %arg17[%c0_337, %c2_338, %c0_339] : memref<6x20x16xf32, #tpu.memory_space<vmem>>, vector<2x16x16xf32>
    %521 = vector.shape_cast %520 : vector<2x16x16xf32> to vector<32x16xf32>
    %c0_340 = arith.constant 0 : index
    %c160_341 = arith.constant 160 : index
    %522 = vector.load %arg18[%c0_340, %c160_341] : memref<32x400xf32, #tpu.memory_space<vmem>>, vector<32x16xf32>
    tpu.vector_store %arg18[%c0_340, %c160_341], %521 {strides = array<i32>} : memref<32x400xf32, #tpu.memory_space<vmem>>, vector<32x16xf32>,
    %c1_342 = arith.constant 1 : index
    %c2_343 = arith.constant 2 : index
    %c0_344 = arith.constant 0 : index
    %523 = vector.load %arg17[%c1_342, %c2_343, %c0_344] : memref<6x20x16xf32, #tpu.memory_space<vmem>>, vector<2x16x16xf32>
    %524 = vector.shape_cast %523 : vector<2x16x16xf32> to vector<32x16xf32>
    %c0_345 = arith.constant 0 : index
    %c176_346 = arith.constant 176 : index
    %525 = vector.load %arg18[%c0_345, %c176_346] : memref<32x400xf32, #tpu.memory_space<vmem>>, vector<32x16xf32>
    tpu.vector_store %arg18[%c0_345, %c176_346], %524 {strides = array<i32>} : memref<32x400xf32, #tpu.memory_space<vmem>>, vector<32x16xf32>,
    %c2_347 = arith.constant 2 : index
    %c2_348 = arith.constant 2 : index
    %c0_349 = arith.constant 0 : index
    %526 = vector.load %arg17[%c2_347, %c2_348, %c0_349] : memref<6x20x16xf32, #tpu.memory_space<vmem>>, vector<2x16x16xf32>
    %527 = vector.shape_cast %526 : vector<2x16x16xf32> to vector<32x16xf32>
    %c0_350 = arith.constant 0 : index
    %c192_351 = arith.constant 192 : index
    %528 = vector.load %arg18[%c0_350, %c192_351] : memref<32x400xf32, #tpu.memory_space<vmem>>, vector<32x16xf32>
    tpu.vector_store %arg18[%c0_350, %c192_351], %527 {strides = array<i32>} : memref<32x400xf32, #tpu.memory_space<vmem>>, vector<32x16xf32>,
    %c3_352 = arith.constant 3 : index
    %c2_353 = arith.constant 2 : index
    %c0_354 = arith.constant 0 : index
    %529 = vector.load %arg17[%c3_352, %c2_353, %c0_354] : memref<6x20x16xf32, #tpu.memory_space<vmem>>, vector<2x16x16xf32>
    %530 = vector.shape_cast %529 : vector<2x16x16xf32> to vector<32x16xf32>
    %c0_355 = arith.constant 0 : index
    %c208_356 = arith.constant 208 : index
    %531 = vector.load %arg18[%c0_355, %c208_356] : memref<32x400xf32, #tpu.memory_space<vmem>>, vector<32x16xf32>
    tpu.vector_store %arg18[%c0_355, %c208_356], %530 {strides = array<i32>} : memref<32x400xf32, #tpu.memory_space<vmem>>, vector<32x16xf32>,
    %c4_357 = arith.constant 4 : index
    %c2_358 = arith.constant 2 : index
    %c0_359 = arith.constant 0 : index
    %532 = vector.load %arg17[%c4_357, %c2_358, %c0_359] : memref<6x20x16xf32, #tpu.memory_space<vmem>>, vector<2x16x16xf32>
    %533 = vector.shape_cast %532 : vector<2x16x16xf32> to vector<32x16xf32>
    %c0_360 = arith.constant 0 : index
    %c224_361 = arith.constant 224 : index
    %534 = vector.load %arg18[%c0_360, %c224_361] : memref<32x400xf32, #tpu.memory_space<vmem>>, vector<32x16xf32>
    tpu.vector_store %arg18[%c0_360, %c224_361], %533 {strides = array<i32>} : memref<32x400xf32, #tpu.memory_space<vmem>>, vector<32x16xf32>,
    %c0_362 = arith.constant 0 : index
    %c3_363 = arith.constant 3 : index
    %c0_364 = arith.constant 0 : index
    %535 = vector.load %arg17[%c0_362, %c3_363, %c0_364] : memref<6x20x16xf32, #tpu.memory_space<vmem>>, vector<2x16x16xf32>
    %536 = vector.shape_cast %535 : vector<2x16x16xf32> to vector<32x16xf32>
    %c0_365 = arith.constant 0 : index
    %c240_366 = arith.constant 240 : index
    %537 = vector.load %arg18[%c0_365, %c240_366] : memref<32x400xf32, #tpu.memory_space<vmem>>, vector<32x16xf32>
    tpu.vector_store %arg18[%c0_365, %c240_366], %536 {strides = array<i32>} : memref<32x400xf32, #tpu.memory_space<vmem>>, vector<32x16xf32>,
    %c1_367 = arith.constant 1 : index
    %c3_368 = arith.constant 3 : index
    %c0_369 = arith.constant 0 : index
    %538 = vector.load %arg17[%c1_367, %c3_368, %c0_369] : memref<6x20x16xf32, #tpu.memory_space<vmem>>, vector<2x16x16xf32>
    %539 = vector.shape_cast %538 : vector<2x16x16xf32> to vector<32x16xf32>
    %c0_370 = arith.constant 0 : index
    %c256_371 = arith.constant 256 : index
    %540 = vector.load %arg18[%c0_370, %c256_371] : memref<32x400xf32, #tpu.memory_space<vmem>>, vector<32x16xf32>
    tpu.vector_store %arg18[%c0_370, %c256_371], %539 {strides = array<i32>} : memref<32x400xf32, #tpu.memory_space<vmem>>, vector<32x16xf32>,
    %c2_372 = arith.constant 2 : index
    %c3_373 = arith.constant 3 : index
    %c0_374 = arith.constant 0 : index
    %541 = vector.load %arg17[%c2_372, %c3_373, %c0_374] : memref<6x20x16xf32, #tpu.memory_space<vmem>>, vector<2x16x16xf32>
    %542 = vector.shape_cast %541 : vector<2x16x16xf32> to vector<32x16xf32>
    %c0_375 = arith.constant 0 : index
    %c272_376 = arith.constant 272 : index
    %543 = vector.load %arg18[%c0_375, %c272_376] : memref<32x400xf32, #tpu.memory_space<vmem>>, vector<32x16xf32>
    tpu.vector_store %arg18[%c0_375, %c272_376], %542 {strides = array<i32>} : memref<32x400xf32, #tpu.memory_space<vmem>>, vector<32x16xf32>,
    %c3_377 = arith.constant 3 : index
    %c3_378 = arith.constant 3 : index
    %c0_379 = arith.constant 0 : index
    %544 = vector.load %arg17[%c3_377, %c3_378, %c0_379] : memref<6x20x16xf32, #tpu.memory_space<vmem>>, vector<2x16x16xf32>
    %545 = vector.shape_cast %544 : vector<2x16x16xf32> to vector<32x16xf32>
    %c0_380 = arith.constant 0 : index
    %c288_381 = arith.constant 288 : index
    %546 = vector.load %arg18[%c0_380, %c288_381] : memref<32x400xf32, #tpu.memory_space<vmem>>, vector<32x16xf32>
    tpu.vector_store %arg18[%c0_380, %c288_381], %545 {strides = array<i32>} : memref<32x400xf32, #tpu.memory_space<vmem>>, vector<32x16xf32>,
    %c4_382 = arith.constant 4 : index
    %c3_383 = arith.constant 3 : index
    %c0_384 = arith.constant 0 : index
    %547 = vector.load %arg17[%c4_382, %c3_383, %c0_384] : memref<6x20x16xf32, #tpu.memory_space<vmem>>, vector<2x16x16xf32>
    %548 = vector.shape_cast %547 : vector<2x16x16xf32> to vector<32x16xf32>
    %c0_385 = arith.constant 0 : index
    %c304_386 = arith.constant 304 : index
    %549 = vector.load %arg18[%c0_385, %c304_386] : memref<32x400xf32, #tpu.memory_space<vmem>>, vector<32x16xf32>
    tpu.vector_store %arg18[%c0_385, %c304_386], %548 {strides = array<i32>} : memref<32x400xf32, #tpu.memory_space<vmem>>, vector<32x16xf32>,
    %c0_387 = arith.constant 0 : index
    %c4_388 = arith.constant 4 : index
    %c0_389 = arith.constant 0 : index
    %550 = vector.load %arg17[%c0_387, %c4_388, %c0_389] : memref<6x20x16xf32, #tpu.memory_space<vmem>>, vector<2x16x16xf32>
    %551 = vector.shape_cast %550 : vector<2x16x16xf32> to vector<32x16xf32>
    %c0_390 = arith.constant 0 : index
    %c320_391 = arith.constant 320 : index
    %552 = vector.load %arg18[%c0_390, %c320_391] : memref<32x400xf32, #tpu.memory_space<vmem>>, vector<32x16xf32>
    tpu.vector_store %arg18[%c0_390, %c320_391], %551 {strides = array<i32>} : memref<32x400xf32, #tpu.memory_space<vmem>>, vector<32x16xf32>,
    %c1_392 = arith.constant 1 : index
    %c4_393 = arith.constant 4 : index
    %c0_394 = arith.constant 0 : index
    %553 = vector.load %arg17[%c1_392, %c4_393, %c0_394] : memref<6x20x16xf32, #tpu.memory_space<vmem>>, vector<2x16x16xf32>
    %554 = vector.shape_cast %553 : vector<2x16x16xf32> to vector<32x16xf32>
    %c0_395 = arith.constant 0 : index
    %c336_396 = arith.constant 336 : index
    %555 = vector.load %arg18[%c0_395, %c336_396] : memref<32x400xf32, #tpu.memory_space<vmem>>, vector<32x16xf32>
    tpu.vector_store %arg18[%c0_395, %c336_396], %554 {strides = array<i32>} : memref<32x400xf32, #tpu.memory_space<vmem>>, vector<32x16xf32>,
    %c2_397 = arith.constant 2 : index
    %c4_398 = arith.constant 4 : index
    %c0_399 = arith.constant 0 : index
    %556 = vector.load %arg17[%c2_397, %c4_398, %c0_399] : memref<6x20x16xf32, #tpu.memory_space<vmem>>, vector<2x16x16xf32>
    %557 = vector.shape_cast %556 : vector<2x16x16xf32> to vector<32x16xf32>
    %c0_400 = arith.constant 0 : index
    %c352_401 = arith.constant 352 : index
    %558 = vector.load %arg18[%c0_400, %c352_401] : memref<32x400xf32, #tpu.memory_space<vmem>>, vector<32x16xf32>
    tpu.vector_store %arg18[%c0_400, %c352_401], %557 {strides = array<i32>} : memref<32x400xf32, #tpu.memory_space<vmem>>, vector<32x16xf32>,
    %c3_402 = arith.constant 3 : index
    %c4_403 = arith.constant 4 : index
    %c0_404 = arith.constant 0 : index
    %559 = vector.load %arg17[%c3_402, %c4_403, %c0_404] : memref<6x20x16xf32, #tpu.memory_space<vmem>>, vector<2x16x16xf32>
    %560 = vector.shape_cast %559 : vector<2x16x16xf32> to vector<32x16xf32>
    %c0_405 = arith.constant 0 : index
    %c368_406 = arith.constant 368 : index
    %561 = vector.load %arg18[%c0_405, %c368_406] : memref<32x400xf32, #tpu.memory_space<vmem>>, vector<32x16xf32>
    tpu.vector_store %arg18[%c0_405, %c368_406], %560 {strides = array<i32>} : memref<32x400xf32, #tpu.memory_space<vmem>>, vector<32x16xf32>,
    %c4_407 = arith.constant 4 : index
    %c4_408 = arith.constant 4 : index
    %c0_409 = arith.constant 0 : index
    %562 = vector.load %arg17[%c4_407, %c4_408, %c0_409] : memref<6x20x16xf32, #tpu.memory_space<vmem>>, vector<2x16x16xf32>
    %563 = vector.shape_cast %562 : vector<2x16x16xf32> to vector<32x16xf32>
    %c0_410 = arith.constant 0 : index
    %c384_411 = arith.constant 384 : index
    %564 = vector.load %arg18[%c0_410, %c384_411] : memref<32x400xf32, #tpu.memory_space<vmem>>, vector<32x16xf32>
    tpu.vector_store %arg18[%c0_410, %c384_411], %563 {strides = array<i32>} : memref<32x400xf32, #tpu.memory_space<vmem>>, vector<32x16xf32>,
    %c0_412 = arith.constant 0 : index
    %c0_413 = arith.constant 0 : index
    %565 = vector.load %arg18[%c0_412, %c0_413] : memref<32x400xf32, #tpu.memory_space<vmem>>, vector<32x400xf32>
    %c0_414 = arith.constant 0 : index
    %c0_415 = arith.constant 0 : index
    %566 = vector.load %arg8[%c0_414, %c0_415] : memref<400x16xf32, #tpu.memory_space<vmem>>, vector<400x16xf32>
    %cst_416 = arith.constant dense<0.000000e+00> : vector<32x16xf32>
    %567 = tpu.matmul %565, %566, %cst_416 {dimension_numbers = #tpu.dot_dimension_numbers<[1], [0], [0], [1], [0, 0, 1, 1], [], []>} : vector<32x400xf32>, vector<400x16xf32>, vector<32x16xf32> -> vector<32x16xf32>
    %c0_417 = arith.constant 0 : index
    %c0_418 = arith.constant 0 : index
    %568 = vector.load %arg9[%c0_417, %c0_418] : memref<1x16xf32, #tpu.memory_space<vmem>>, vector<1x16xf32>
    %569 = vector.broadcast %568 : vector<1x16xf32> to vector<32x16xf32>
    %570 = arith.addf %567, %569 : vector<32x16xf32>
    %cst_419 = arith.constant 0.000000e+00 : f32
    %571 = vector.broadcast %cst_419 : f32 to vector<32x16xf32>
    %572 = arith.maximumf %570, %571 : vector<32x16xf32>
    %573 = vector.extract_strided_slice %572 {offsets = [0, 0], sizes = [16, 16], strides = [1, 1]} : vector<32x16xf32> to vector<16x16xf32>
    %574 = vector.extract_strided_slice %572 {offsets = [16, 0], sizes = [16, 16], strides = [1, 1]} : vector<32x16xf32> to vector<16x16xf32>
    %575 = arith.maximumf %573, %574 : vector<16x16xf32>
    %c0_420 = arith.constant 0 : index
    %576 = memref.load %arg10[%c0_420] : memref<3xf32, #tpu.memory_space<smem>>
    %577 = vector.broadcast %576 : f32 to vector<16x16xf32>
    %578 = arith.mulf %575, %577 : vector<16x16xf32>
    %c0_421 = arith.constant 0 : index
    %c0_422 = arith.constant 0 : index
    %c0_423 = arith.constant 0 : index
    %579 = vector.load %arg2[%c0_421, %c0_422, %c0_423] : memref<1x16x16xf32, #tpu.memory_space<vmem>>, vector<1x16x16xf32>
    %580 = vector.shape_cast %579 : vector<1x16x16xf32> to vector<16x16xf32>
    %c1_424 = arith.constant 1 : index
    %581 = memref.load %arg10[%c1_424] : memref<3xf32, #tpu.memory_space<smem>>
    %582 = vector.broadcast %581 : f32 to vector<16x16xf32>
    %583 = arith.mulf %580, %582 : vector<16x16xf32>
    %584 = arith.addf %578, %583 : vector<16x16xf32>
    %c2_425 = arith.constant 2 : index
    %585 = memref.load %arg10[%c2_425] : memref<3xf32, #tpu.memory_space<smem>>
    %586 = vector.broadcast %585 : f32 to vector<16x16xf32>
    %587 = arith.addf %584, %586 : vector<16x16xf32>
    %c0_426 = arith.constant 0 : index
    %c0_427 = arith.constant 0 : index
    %588 = vector.load %arg11[%c0_426, %c0_427] : memref<16x16xf32, #tpu.memory_space<vmem>>, vector<16x16xf32>
    %cst_428 = arith.constant dense<0.000000e+00> : vector<16x16xf32>
    %589 = tpu.matmul %587, %588, %cst_428 {dimension_numbers = #tpu.dot_dimension_numbers<[1], [0], [0], [1], [0, 0, 1, 1], [], []>} : vector<16x16xf32>, vector<16x16xf32>, vector<16x16xf32> -> vector<16x16xf32>
    %c0_429 = arith.constant 0 : index
    %c0_430 = arith.constant 0 : index
    %590 = vector.load %arg12[%c0_429, %c0_430] : memref<1x16xf32, #tpu.memory_space<vmem>>, vector<1x16xf32>
    %591 = vector.broadcast %590 : vector<1x16xf32> to vector<16x16xf32>
    %592 = arith.addf %589, %591 : vector<16x16xf32>
    %cst_431 = arith.constant 0.000000e+00 : f32
    %593 = vector.broadcast %cst_431 : f32 to vector<16x16xf32>
    %594 = arith.maximumf %592, %593 : vector<16x16xf32>
    %c0_432 = arith.constant 0 : index
    %c0_433 = arith.constant 0 : index
    %c0_434 = arith.constant 0 : index
    %595 = vector.load %arg13[%c0_432, %c0_433, %c0_434] : memref<1x16x16xf32, #tpu.memory_space<vmem>>, vector<1x16x16xf32>
    %596 = vector.shape_cast %595 : vector<1x16x16xf32> to vector<16x16xf32>
    %597 = vector.shape_cast %594 : vector<16x16xf32> to vector<1x16x16xf32>
    tpu.vector_store %arg13[%c0_432, %c0_433, %c0_434], %597 {strides = array<i32>} : memref<1x16x16xf32, #tpu.memory_space<vmem>>, vector<1x16x16xf32>,
    return
  }
  func.func @transform_0(%arg0: i32) -> (i32, i32, i32) {
    %c0_i32 = arith.constant 0 : i32
    %c0_i32_0 = arith.constant 0 : i32
    %c0_i32_1 = arith.constant 0 : i32
    return %arg0, %c0_i32, %c0_i32_0 : i32, i32, i32
  }
  func.func @transform_1(%arg0: i32) -> (i32, i32, i32) {
    %c0_i32 = arith.constant 0 : i32
    %c0_i32_0 = arith.constant 0 : i32
    %c0_i32_1 = arith.constant 0 : i32
    return %arg0, %c0_i32, %c0_i32_0 : i32, i32, i32
  }
  func.func @transform_2(%arg0: i32) -> (i32, i32) {
    %c0_i32 = arith.constant 0 : i32
    %c0_i32_0 = arith.constant 0 : i32
    %c0_i32_1 = arith.constant 0 : i32
    return %c0_i32, %c0_i32_0 : i32, i32
  }
  func.func @transform_3(%arg0: i32) -> (i32, i32) {
    %c0_i32 = arith.constant 0 : i32
    %c0_i32_0 = arith.constant 0 : i32
    %c0_i32_1 = arith.constant 0 : i32
    return %c0_i32, %c0_i32_0 : i32, i32
  }
  func.func @transform_4(%arg0: i32) -> (i32, i32) {
    %c0_i32 = arith.constant 0 : i32
    %c0_i32_0 = arith.constant 0 : i32
    %c0_i32_1 = arith.constant 0 : i32
    return %c0_i32, %c0_i32_0 : i32, i32
  }
  func.func @transform_5(%arg0: i32) -> (i32, i32) {
    %c0_i32 = arith.constant 0 : i32
    %c0_i32_0 = arith.constant 0 : i32
    %c0_i32_1 = arith.constant 0 : i32
    return %c0_i32, %c0_i32_0 : i32, i32
  }
  func.func @transform_6(%arg0: i32) -> (i32, i32) {
    %c0_i32 = arith.constant 0 : i32
    %c0_i32_0 = arith.constant 0 : i32
    %c0_i32_1 = arith.constant 0 : i32
    return %c0_i32, %c0_i32_0 : i32, i32
  }
  func.func @transform_7(%arg0: i32) -> (i32, i32) {
    %c0_i32 = arith.constant 0 : i32
    %c0_i32_0 = arith.constant 0 : i32
    %c0_i32_1 = arith.constant 0 : i32
    return %c0_i32, %c0_i32_0 : i32, i32
  }
  func.func @transform_8(%arg0: i32) -> (i32, i32) {
    %c0_i32 = arith.constant 0 : i32
    %c0_i32_0 = arith.constant 0 : i32
    %c0_i32_1 = arith.constant 0 : i32
    return %c0_i32, %c0_i32_0 : i32, i32
  }
  func.func @transform_9(%arg0: i32) -> i32 {
    %c0_i32 = arith.constant 0 : i32
    %c0_i32_0 = arith.constant 0 : i32
    return %c0_i32 : i32
  }
  func.func @transform_10(%arg0: i32) -> (i32, i32) {
    %c0_i32 = arith.constant 0 : i32
    %c0_i32_0 = arith.constant 0 : i32
    %c0_i32_1 = arith.constant 0 : i32
    return %c0_i32, %c0_i32_0 : i32, i32
  }
  func.func @transform_11(%arg0: i32) -> (i32, i32) {
    %c0_i32 = arith.constant 0 : i32
    %c0_i32_0 = arith.constant 0 : i32
    %c0_i32_1 = arith.constant 0 : i32
    return %c0_i32, %c0_i32_0 : i32, i32
  }
  func.func @transform_12(%arg0: i32) -> (i32, i32, i32) {
    %c0_i32 = arith.constant 0 : i32
    %c0_i32_0 = arith.constant 0 : i32
    %c0_i32_1 = arith.constant 0 : i32
    return %arg0, %c0_i32, %c0_i32_0 : i32, i32, i32
  }
}

</mosaic_0001>

<llo_original>
// kernel: wavenet_encoder10_forward.4
$region0: #{wavenet_encoder10_forward.4}
  #allocation0 [shape = 'u32[]', space=smem, size = 0x4, offset = 0x4, fixed_abs, tag = 'smem constant byte address 0x4 - core index']
  #allocation1 [shape = 'u32[72,128]{1,0:T(1,128)}', space=vmem, size = 0x9000, scoped, tag = 'internal scratch']
  #allocation2 [shape = 'f32[2,20,16]{2,1,0:T(8,128)}', space=vmem, size = 0x6000, scoped, tag = 'scratch operand']
  #allocation3 [shape = 'f32[2,16,48]{2,1,0:T(8,128)}', space=vmem, size = 0x4000, scoped, tag = 'scratch operand']
  %s0 = inlined_call_operand.vmem [shape: f32[2,16,16], index: 0, kind: input, shape index: {}]
  %s1 = inlined_call_operand.vmem [shape: f32[16,16], index: 1, kind: input, shape index: {}]
  %s2 = inlined_call_operand.vmem [shape: f32[1,16], index: 2, kind: input, shape index: {}]
  %s3 = inlined_call_operand.vmem [shape: f32[2,48,32], index: 3, kind: input, shape index: {}]
  %s4 = inlined_call_operand.vmem [shape: f32[2,1,32], index: 4, kind: input, shape index: {}]
  %s5 = inlined_call_operand.vmem [shape: f32[2,16,16], index: 5, kind: input, shape index: {}]
  %s6 = inlined_call_operand.vmem [shape: f32[2,1,16], index: 6, kind: input, shape index: {}]
  %s7 = inlined_call_operand.vmem [shape: f32[2,16], index: 7, kind: input, shape index: {}]
  %s8 = inlined_call_operand.vmem [shape: f32[2,16,16], index: 8, kind: output, shape index: {}]
  %s9 = sld [smem:[#allocation0]]
  $region42: #{wavenet_encoder10_forward.4} parent=0
    _
  %s11 = ssub.s32 1, %s9
  %s12 = scalar_select 0, %s11, %s9
  // Predicated region
  $region2: #{wavenet_encoder10_forward.4} parent=0 // pred_check
    _
  $region3: #{wavenet_encoder10_forward.4} parent=0 // pred_check_branch
    %14 = sbr.rel (0) target = $region5
  $region4: #{wavenet_encoder10_forward.4} parent=0 // pred_region
    _
  $region5: #{wavenet_encoder10_forward.4} parent=0 // pred_fallthru
    _
  // Predicated region
  $region6: #{wavenet_encoder10_forward.4} parent=0 // pred_check
    _
  $region7: #{wavenet_encoder10_forward.4} parent=0 // pred_check_branch
    %16 = sbr.rel (0) target = $region9
  $region8: #{wavenet_encoder10_forward.4} parent=0 // pred_region
    _
  $region9: #{wavenet_encoder10_forward.4} parent=0 // pred_fallthru
    _
  // Predicated region
  $region10: #{wavenet_encoder10_forward.4} parent=0 // pred_check
    _
  $region11: #{wavenet_encoder10_forward.4} parent=0 // pred_check_branch
    %18 = sbr.rel (0) target = $region13
  $region12: #{wavenet_encoder10_forward.4} parent=0 // pred_region
    _
  $region13: #{wavenet_encoder10_forward.4} parent=0 // pred_fallthru
    _
  // Predicated region
  $region14: #{wavenet_encoder10_forward.4} parent=0 // pred_check
    _
  $region15: #{wavenet_encoder10_forward.4} parent=0 // pred_check_branch
    %20 = sbr.rel (0) target = $region17
  $region16: #{wavenet_encoder10_forward.4} parent=0 // pred_region
    _
  $region17: #{wavenet_encoder10_forward.4} parent=0 // pred_fallthru
    _
  // Predicated region
  $region18: #{wavenet_encoder10_forward.4} parent=0 // pred_check
    _
  $region19: #{wavenet_encoder10_forward.4} parent=0 // pred_check_branch
    %22 = sbr.rel (0) target = $region21
  $region20: #{wavenet_encoder10_forward.4} parent=0 // pred_region
    _
  $region21: #{wavenet_encoder10_forward.4} parent=0 // pred_fallthru
    _
  // Predicated region
  $region22: #{wavenet_encoder10_forward.4} parent=0 // pred_check
    _
  $region23: #{wavenet_encoder10_forward.4} parent=0 // pred_check_branch
    %24 = sbr.rel (0) target = $region25
  $region24: #{wavenet_encoder10_forward.4} parent=0 // pred_region
    _
  $region25: #{wavenet_encoder10_forward.4} parent=0 // pred_fallthru
    _
  // Predicated region
  $region26: #{wavenet_encoder10_forward.4} parent=0 // pred_check
    _
  $region27: #{wavenet_encoder10_forward.4} parent=0 // pred_check_branch
    %26 = sbr.rel (0) target = $region29
  $region28: #{wavenet_encoder10_forward.4} parent=0 // pred_region
    _
  $region29: #{wavenet_encoder10_forward.4} parent=0 // pred_fallthru
    _
  // Predicated region
  $region30: #{wavenet_encoder10_forward.4} parent=0 // pred_check
    _
  $region31: #{wavenet_encoder10_forward.4} parent=0 // pred_check_branch
    %28 = sbr.rel (0) target = $region33
  $region32: #{wavenet_encoder10_forward.4} parent=0 // pred_region
    _
  $region33: #{wavenet_encoder10_forward.4} parent=0 // pred_fallthru
    _
  %v29 = vld [vmem:[%s0] sm:$0xff]
  %v30 = vld [vmem:[%s0 + $0x8] sm:$0xff]
  %v31 = vld [vmem:[%s0 + $0x10] sm:$0xff]
  %v32 = vld [vmem:[%s0 + $0x18] sm:$0xff]
  %v33 = vld [vmem:[%s1] sm:$0xff]
  %v34 = vld [vmem:[%s1 + $0x8] sm:$0xff]
  %v35 = vld [vmem:[%s2] sm:$0x1]
  %v37 = vperm.slane %v35, 0
  %vm39 = vcmask 130048
  %v41 = vsel %vm39, %v29, 0
  %v44 = vsel %vm39, %v30, 0
  %v47 = vsel %vm39, %v31, 0
  %v50 = vsel %vm39, %v32, 0
  %52 = vmatpush.msra.mxu0 0.0
  %53 = vmatpush.msra.mxu0 0.0
  %54 = vmatpush.msra.mxu0 0.0
  %55 = vmatpush.msra.mxu0 0.0
  %56 = vmatpush.msra.mxu0 0.0
  %57 = vmatpush.msra.mxu0 0.0
  %58 = vmatpush.msra.mxu0 0.0
  %59 = vmatpush.msra.mxu0 0.0
  %60 = vmatpush.msra.mxu0 0.0
  %61 = vmatpush.msra.mxu0 0.0
  %62 = vmatpush.msra.mxu0 0.0
  %63 = vmatpush.msra.mxu0 0.0
  %64 = vmatpush.msra.mxu0 0.0
  %65 = vmatpush.msra.mxu0 0.0
  %66 = vmatpush.msra.mxu0 %v34
  %67 = vmatpush.msra.mxu0 %v33
  %68 = vmatmul.f32.gmra.mxu0 %v41
  %v69 = vpop.f32.mrf.mxu0
  %v70 = vadd.f32 %v37, %v69
  %71 = vmatmul.f32.gmra.mxu0 %v44
  %v72 = vpop.f32.mrf.mxu0
  %v73 = vadd.f32 %v37, %v72
  %74 = vmatmul.f32.gmra.mxu0 %v47
  %v75 = vpop.f32.mrf.mxu0
  %v76 = vadd.f32 %v37, %v75
  %77 = vmatmul.f32.gmra.mxu0 %v50
  %v78 = vpop.f32.mrf.mxu0
  %v79 = vadd.f32 %v37, %v78
  %80 = vdwg.mxu0
  %vm81 = vcmask 123904
  %82 = vst.msk [vmem:[#allocation2] sm:$0x3] %vm81, 0.0
  %83 = vst.msk [vmem:[#allocation2 + $0x18] sm:$0x3] %vm81, 0.0
  %84 = vst.msk [vmem:[#allocation2 + $0x12] sm:$0x3] %vm81, 0.0
  %85 = vst.msk [vmem:[#allocation2 + $0x2a] sm:$0x3] %vm81, 0.0
  %86 = vst.msk [vmem:[#allocation2 + $0x2] sm:$0xff] %vm39, %v70
  %87 = vst.msk [vmem:[#allocation2 + $0xa] sm:$0xff] %vm39, %v73
  %v88 = vld [vmem:[#allocation2 + $0x1] sm:$0xff]
  %v89 = vld [vmem:[#allocation2 + $0x9] sm:$0xff]
  %90 = vst.msk [vmem:[#allocation3] sm:$0xff] %vm39, %v88
  %91 = vst.msk [vmem:[#allocation3 + $0x8] sm:$0xff] %vm39, %v89
  %v92 = vld [vmem:[#allocation2 + $0x2] sm:$0xff]
  %v93 = vld [vmem:[#allocation2 + $0xa] sm:$0xff]
  %96 = vrot.lane.b32.xlu0 %v92, 16
  %v97 = vpop.permute.xlu0 %96
  %98 = vrot.lane.b32.xlu0 %v93, 16
  %v99 = vpop.permute.xlu0 %98
  %vm102 = vcmask 261248
  %103 = vst.msk [vmem:[#allocation3] sm:$0xff] %vm102, %v97
  %104 = vst.msk [vmem:[#allocation3 + $0x8] sm:$0xff] %vm102, %v99
  %v105 = vld [vmem:[#allocation2 + $0x3] sm:$0xff]
  %v106 = vld [vmem:[#allocation2 + $0xb] sm:$0xff]
  %109 = vrot.lane.b32.xlu0 %v105, 32
  %v110 = vpop.permute.xlu0 %109
  %111 = vrot.lane.b32.xlu0 %v106, 32
  %v112 = vpop.permute.xlu0 %111
  %vm115 = vcmask 392448
  %116 = vst.msk [vmem:[#allocation3] sm:$0xff] %vm115, %v110
  %117 = vst.msk [vmem:[#allocation3 + $0x8] sm:$0xff] %vm115, %v112
  %s118 = scalar_lea.vmem [#allocation2], 24
  %119 = vst.msk [vmem:[%s118 + $0x2] sm:$0xff] %vm39, %v76
  %120 = vst.msk [vmem:[%s118 + $0xa] sm:$0xff] %vm39, %v79
  %v121 = vld [vmem:[%s118 + $0x1] sm:$0xff]
  %v122 = vld [vmem:[%s118 + $0x9] sm:$0xff]
  %s123 = scalar_lea.vmem [#allocation3], 16
  %124 = vst.msk [vmem:[%s123] sm:$0xff] %vm39, %v121
  %125 = vst.msk [vmem:[%s123 + $0x8] sm:$0xff] %vm39, %v122
  %v126 = vld [vmem:[%s118 + $0x2] sm:$0xff]
  %v127 = vld [vmem:[%s118 + $0xa] sm:$0xff]
  %130 = vrot.lane.b32.xlu0 %v126, 16
  %v131 = vpop.permute.xlu0 %130
  %132 = vrot.lane.b32.xlu0 %v127, 16
  %v133 = vpop.permute.xlu0 %132
  %136 = vst.msk [vmem:[%s123] sm:$0xff] %vm102, %v131
  %137 = vst.msk [vmem:[%s123 + $0x8] sm:$0xff] %vm102, %v133
  %v138 = vld [vmem:[%s118 + $0x3] sm:$0xff]
  %v139 = vld [vmem:[%s118 + $0xb] sm:$0xff]
  %142 = vrot.lane.b32.xlu0 %v138, 32
  %v143 = vpop.permute.xlu0 %142
  %144 = vrot.lane.b32.xlu0 %v139, 32
  %v145 = vpop.permute.xlu0 %144
  %148 = vst.msk [vmem:[%s123] sm:$0xff] %vm115, %v143
  %149 = vst.msk [vmem:[%s123 + $0x8] sm:$0xff] %vm115, %v145
  %v150 = vld [vmem:[#allocation3] sm:$0xff]
  %v151 = vld [vmem:[#allocation3 + $0x8] sm:$0xff]
  %v152 = vld [vmem:[#allocation3 + $0x10] sm:$0xff]
  %v153 = vld [vmem:[#allocation3 + $0x18] sm:$0xff]
  %v154 = vld [vmem:[%s3] sm:$0xff]
  %v155 = vld [vmem:[%s3 + $0x8] sm:$0xff]
  %v156 = vld [vmem:[%s3 + $0x10] sm:$0xff]
  %v157 = vld [vmem:[%s3 + $0x18] sm:$0xff]
  %v158 = vld [vmem:[%s3 + $0x20] sm:$0xff]
  %v159 = vld [vmem:[%s3 + $0x28] sm:$0xff]
  %v160 = vld [vmem:[%s4] sm:$0x1]
  %v162 = vperm.slane %v160, 0
  %vm164 = vcmask 392192
  %v166 = vsel %vm164, %v150, 0
  %v169 = vsel %vm164, %v151, 0
  %v172 = vsel %vm164, %v152, 0
  %v175 = vsel %vm164, %v153, 0
  %177 = vmatpush.msra.mxu0 0.0
  %178 = vmatpush.msra.mxu0 0.0
  %179 = vmatpush.msra.mxu0 0.0
  %180 = vmatpush.msra.mxu0 0.0
  %181 = vmatpush.msra.mxu0 0.0
  %182 = vmatpush.msra.mxu0 0.0
  %183 = vmatpush.msra.mxu0 0.0
  %184 = vmatpush.msra.mxu0 0.0
  %185 = vmatpush.msra.mxu0 0.0
  %186 = vmatpush.msra.mxu0 0.0
  %187 = vmatpush.msra.mxu0 %v159
  %188 = vmatpush.msra.mxu0 %v158
  %189 = vmatpush.msra.mxu0 %v157
  %190 = vmatpush.msra.mxu0 %v156
  %191 = vmatpush.msra.mxu0 %v155
  %192 = vmatpush.msra.mxu0 %v154
  %193 = vmatmul.f32.gmra.mxu0 %v166
  %v194 = vpop.f32.mrf.mxu0
  %v195 = vadd.f32 %v162, %v194
  %196 = vmatmul.f32.gmra.mxu0 %v169
  %v197 = vpop.f32.mrf.mxu0
  %v198 = vadd.f32 %v162, %v197
  %199 = vmatmul.f32.gmra.mxu0 %v172
  %v200 = vpop.f32.mrf.mxu0
  %v201 = vadd.f32 %v162, %v200
  %202 = vmatmul.f32.gmra.mxu0 %v175
  %v203 = vpop.f32.mrf.mxu0
  %v204 = vadd.f32 %v162, %v203
  %205 = vdwg.mxu0
  %v206 = vtanh.pop %v195
  %v207 = vtanh.pop %v198
  %v208 = vtanh.pop %v201
  %v209 = vtanh.pop %v204
  %v210 = vxor.u32 %v195, 2147483648
  %v211 = vxor.u32 %v198, 2147483648
  %v212 = vxor.u32 %v201, 2147483648
  %v213 = vxor.u32 %v204, 2147483648
  %v214 = vmul.f32 %v210, 1.442695
  %v215 = vpow.pop %v214
  %v216 = vmul.f32 %v211, 1.442695
  %v217 = vpow.pop %v216
  %v218 = vmul.f32 %v212, 1.442695
  %v219 = vpow.pop %v218
  %v220 = vmul.f32 %v213, 1.442695
  %v221 = vpow.pop %v220
  %v222 = vadd.f32 %v215, 1.0
  %v223 = vadd.f32 %v217, 1.0
  %v224 = vadd.f32 %v219, 1.0
  %v225 = vadd.f32 %v221, 1.0
  %v226 = vrcp.pop %v222
  %v227 = vmul.f32 %v222, %v226
  %v228 = vsub.f32 1.0, %v227
  %v229 = vmul.f32 %v226, %v228
  %v230 = vadd.f32 %v226, %v229
  %vm231 = vweird.f32 %v222
  %vm232 = vweird.f32 %v226
  %vm233 = vmor %vm231, %vm232
  %v234 = vsel %vm233, %v226, %v230
  %v235 = vand.u32 2147483647, %v222
  %vm236 = vcmp.eq.f32.partialorder %v235, 8.507059e+37
  %v237 = vand.u32 %v222, 2147483648
  %v238 = vor.u32 1.1754944e-38, %v237
  %v239 = vsel %vm236, %v238, %v234
  %v240 = vmul.f32 1.0, %v239
  %v241 = vrcp.pop %v223
  %v242 = vmul.f32 %v223, %v241
  %v243 = vsub.f32 1.0, %v242
  %v244 = vmul.f32 %v241, %v243
  %v245 = vadd.f32 %v241, %v244
  %vm246 = vweird.f32 %v223
  %vm247 = vweird.f32 %v241
  %vm248 = vmor %vm246, %vm247
  %v249 = vsel %vm248, %v241, %v245
  %v250 = vand.u32 2147483647, %v223
  %vm251 = vcmp.eq.f32.partialorder %v250, 8.507059e+37
  %v252 = vand.u32 %v223, 2147483648
  %v253 = vor.u32 1.1754944e-38, %v252
  %v254 = vsel %vm251, %v253, %v249
  %v255 = vmul.f32 1.0, %v254
  %v256 = vrcp.pop %v224
  %v257 = vmul.f32 %v224, %v256
  %v258 = vsub.f32 1.0, %v257
  %v259 = vmul.f32 %v256, %v258
  %v260 = vadd.f32 %v256, %v259
  %vm261 = vweird.f32 %v224
  %vm262 = vweird.f32 %v256
  %vm263 = vmor %vm261, %vm262
  %v264 = vsel %vm263, %v256, %v260
  %v265 = vand.u32 2147483647, %v224
  %vm266 = vcmp.eq.f32.partialorder %v265, 8.507059e+37
  %v267 = vand.u32 %v224, 2147483648
  %v268 = vor.u32 1.1754944e-38, %v267
  %v269 = vsel %vm266, %v268, %v264
  %v270 = vmul.f32 1.0, %v269
  %v271 = vrcp.pop %v225
  %v272 = vmul.f32 %v225, %v271
  %v273 = vsub.f32 1.0, %v272
  %v274 = vmul.f32 %v271, %v273
  %v275 = vadd.f32 %v271, %v274
  %vm276 = vweird.f32 %v225
  %vm277 = vweird.f32 %v271
  %vm278 = vmor %vm276, %vm277
  %v279 = vsel %vm278, %v271, %v275
  %v280 = vand.u32 2147483647, %v225
  %vm281 = vcmp.eq.f32.partialorder %v280, 8.507059e+37
  %v282 = vand.u32 %v225, 2147483648
  %v283 = vor.u32 1.1754944e-38, %v282
  %v284 = vsel %vm281, %v283, %v279
  %v285 = vmul.f32 1.0, %v284
  %290 = vrot.lane.b32.xlu0 %v240, 112
  %v291 = vpop.permute.xlu0 %290
  %292 = vrot.lane.b32.xlu0 %v255, 112
  %v293 = vpop.permute.xlu0 %292
  %294 = vrot.lane.b32.xlu0 %v270, 112
  %v295 = vpop.permute.xlu0 %294
  %296 = vrot.lane.b32.xlu0 %v285, 112
  %v297 = vpop.permute.xlu0 %296
  %v302 = vmul.f32 %v206, %v291
  %v303 = vmul.f32 %v207, %v293
  %v304 = vmul.f32 %v208, %v295
  %v305 = vmul.f32 %v209, %v297
  %v306 = vld [vmem:[%s5] sm:$0xff]
  %v307 = vld [vmem:[%s5 + $0x8] sm:$0xff]
  %v308 = vld [vmem:[%s6] sm:$0x1]
  %v310 = vperm.slane %v308, 0
  %v313 = vsel %vm39, %v302, 0
  %v316 = vsel %vm39, %v303, 0
  %v319 = vsel %vm39, %v304, 0
  %v322 = vsel %vm39, %v305, 0
  %324 = vmatpush.msra.mxu0 0.0
  %325 = vmatpush.msra.mxu0 0.0
  %326 = vmatpush.msra.mxu0 0.0
  %327 = vmatpush.msra.mxu0 0.0
  %328 = vmatpush.msra.mxu0 0.0
  %329 = vmatpush.msra.mxu0 0.0
  %330 = vmatpush.msra.mxu0 0.0
  %331 = vmatpush.msra.mxu0 0.0
  %332 = vmatpush.msra.mxu0 0.0
  %333 = vmatpush.msra.mxu0 0.0
  %334 = vmatpush.msra.mxu0 0.0
  %335 = vmatpush.msra.mxu0 0.0
  %336 = vmatpush.msra.mxu0 0.0
  %337 = vmatpush.msra.mxu0 0.0
  %338 = vmatpush.msra.mxu0 %v307
  %339 = vmatpush.msra.mxu0 %v306
  %340 = vmatmul.f32.gmra.mxu0 %v313
  %v341 = vpop.f32.mrf.mxu0
  %v342 = vadd.f32 %v310, %v341
  %343 = vmatmul.f32.gmra.mxu0 %v316
  %v344 = vpop.f32.mrf.mxu0
  %v345 = vadd.f32 %v310, %v344
  %346 = vmatmul.f32.gmra.mxu0 %v319
  %v347 = vpop.f32.mrf.mxu0
  %v348 = vadd.f32 %v310, %v347
  %349 = vmatmul.f32.gmra.mxu0 %v322
  %v350 = vpop.f32.mrf.mxu0
  %v351 = vadd.f32 %v310, %v350
  %352 = vdwg.mxu0
  %v353 = vadd.f32 %v70, %v342
  %v354 = vadd.f32 %v73, %v345
  %v355 = vadd.f32 %v76, %v348
  %v356 = vadd.f32 %v79, %v351
  %357 = vst.msk [vmem:[#allocation2 + $0x2] sm:$0xff] %vm39, %v342
  %358 = vst.msk [vmem:[#allocation2 + $0xa] sm:$0xff] %vm39, %v345
  %v359 = vld [vmem:[#allocation2] sm:$0xff]
  %v360 = vld [vmem:[#allocation2 + $0x8] sm:$0xff]
  %361 = vst.msk [vmem:[#allocation3] sm:$0xff] %vm39, %v359
  %362 = vst.msk [vmem:[#allocation3 + $0x8] sm:$0xff] %vm39, %v360
  %v363 = vld [vmem:[#allocation2 + $0x2] sm:$0xff]
  %v364 = vld [vmem:[#allocation2 + $0xa] sm:$0xff]
  %367 = vrot.lane.b32.xlu0 %v363, 16
  %v368 = vpop.permute.xlu0 %367
  %369 = vrot.lane.b32.xlu0 %v364, 16
  %v370 = vpop.permute.xlu0 %369
  %373 = vst.msk [vmem:[#allocation3] sm:$0xff] %vm102, %v368
  %374 = vst.msk [vmem:[#allocation3 + $0x8] sm:$0xff] %vm102, %v370
  %v375 = vld [vmem:[#allocation2 + $0x4] sm:$0xff]
  %v376 = vld [vmem:[#allocation2 + $0xc] sm:$0xff]
  %379 = vrot.lane.b32.xlu0 %v375, 32
  %v380 = vpop.permute.xlu0 %379
  %381 = vrot.lane.b32.xlu0 %v376, 32
  %v382 = vpop.permute.xlu0 %381
  %385 = vst.msk [vmem:[#allocation3] sm:$0xff] %vm115, %v380
  %386 = vst.msk [vmem:[#allocation3 + $0x8] sm:$0xff] %vm115, %v382
  %387 = vst.msk [vmem:[%s118 + $0x2] sm:$0xff] %vm39, %v348
  %388 = vst.msk [vmem:[%s118 + $0xa] sm:$0xff] %vm39, %v351
  %v389 = vld [vmem:[%s118] sm:$0xff]
  %v390 = vld [vmem:[%s118 + $0x8] sm:$0xff]
  %391 = vst.msk [vmem:[%s123] sm:$0xff] %vm39, %v389
  %392 = vst.msk [vmem:[%s123 + $0x8] sm:$0xff] %vm39, %v390
  %v393 = vld [vmem:[%s118 + $0x2] sm:$0xff]
  %v394 = vld [vmem:[%s118 + $0xa] sm:$0xff]
  %397 = vrot.lane.b32.xlu0 %v393, 16
  %v398 = vpop.permute.xlu0 %397
  %399 = vrot.lane.b32.xlu0 %v394, 16
  %v400 = vpop.permute.xlu0 %399
  %403 = vst.msk [vmem:[%s123] sm:$0xff] %vm102, %v398
  %404 = vst.msk [vmem:[%s123 + $0x8] sm:$0xff] %vm102, %v400
  %v405 = vld [vmem:[%s118 + $0x4] sm:$0xff]
  %v406 = vld [vmem:[%s118 + $0xc] sm:$0xff]
  %409 = vrot.lane.b32.xlu0 %v405, 32
  %v410 = vpop.permute.xlu0 %409
  %411 = vrot.lane.b32.xlu0 %v406, 32
  %v412 = vpop.permute.xlu0 %411
  %415 = vst.msk [vmem:[%s123] sm:$0xff] %vm115, %v410
  %416 = vst.msk [vmem:[%s123 + $0x8] sm:$0xff] %vm115, %v412
  %v417 = vld [vmem:[#allocation3] sm:$0xff]
  %v418 = vld [vmem:[#allocation3 + $0x8] sm:$0xff]
  %v419 = vld [vmem:[#allocation3 + $0x10] sm:$0xff]
  %v420 = vld [vmem:[#allocation3 + $0x18] sm:$0xff]
  %s421 = scalar_lea.vmem %s3, 48
  %v422 = vld [vmem:[%s421] sm:$0xff]
  %v423 = vld [vmem:[%s421 + $0x8] sm:$0xff]
  %v424 = vld [vmem:[%s421 + $0x10] sm:$0xff]
  %v425 = vld [vmem:[%s421 + $0x18] sm:$0xff]
  %v426 = vld [vmem:[%s421 + $0x20] sm:$0xff]
  %v427 = vld [vmem:[%s421 + $0x28] sm:$0xff]
  %s428 = scalar_lea.vmem %s4, 1
  %v429 = vld [vmem:[%s428] sm:$0x1]
  %v431 = vperm.slane %v429, 0
  %v434 = vsel %vm164, %v417, 0
  %v437 = vsel %vm164, %v418, 0
  %v440 = vsel %vm164, %v419, 0
  %v443 = vsel %vm164, %v420, 0
  %445 = vmatpush.msra.mxu0 0.0
  %446 = vmatpush.msra.mxu0 0.0
  %447 = vmatpush.msra.mxu0 0.0
  %448 = vmatpush.msra.mxu0 0.0
  %449 = vmatpush.msra.mxu0 0.0
  %450 = vmatpush.msra.mxu0 0.0
  %451 = vmatpush.msra.mxu0 0.0
  %452 = vmatpush.msra.mxu0 0.0
  %453 = vmatpush.msra.mxu0 0.0
  %454 = vmatpush.msra.mxu0 0.0
  %455 = vmatpush.msra.mxu0 %v427
  %456 = vmatpush.msra.mxu0 %v426
  %457 = vmatpush.msra.mxu0 %v425
  %458 = vmatpush.msra.mxu0 %v424
  %459 = vmatpush.msra.mxu0 %v423
  %460 = vmatpush.msra.mxu0 %v422
  %461 = vmatmul.f32.gmra.mxu0 %v434
  %v462 = vpop.f32.mrf.mxu0
  %v463 = vadd.f32 %v431, %v462
  %464 = vmatmul.f32.gmra.mxu0 %v437
  %v465 = vpop.f32.mrf.mxu0
  %v466 = vadd.f32 %v431, %v465
  %467 = vmatmul.f32.gmra.mxu0 %v440
  %v468 = vpop.f32.mrf.mxu0
  %v469 = vadd.f32 %v431, %v468
  %470 = vmatmul.f32.gmra.mxu0 %v443
  %v471 = vpop.f32.mrf.mxu0
  %v472 = vadd.f32 %v431, %v471
  %473 = vdwg.mxu0
  %v474 = vtanh.pop %v463
  %v475 = vtanh.pop %v466
  %v476 = vtanh.pop %v469
  %v477 = vtanh.pop %v472
  %v478 = vxor.u32 %v463, 2147483648
  %v479 = vxor.u32 %v466, 2147483648
  %v480 = vxor.u32 %v469, 2147483648
  %v481 = vxor.u32 %v472, 2147483648
  %v482 = vmul.f32 %v478, 1.442695
  %v483 = vpow.pop %v482
  %v484 = vmul.f32 %v479, 1.442695
  %v485 = vpow.pop %v484
  %v486 = vmul.f32 %v480, 1.442695
  %v487 = vpow.pop %v486
  %v488 = vmul.f32 %v481, 1.442695
  %v489 = vpow.pop %v488
  %v490 = vadd.f32 %v483, 1.0
  %v491 = vadd.f32 %v485, 1.0
  %v492 = vadd.f32 %v487, 1.0
  %v493 = vadd.f32 %v489, 1.0
  %v494 = vrcp.pop %v490
  %v495 = vmul.f32 %v490, %v494
  %v496 = vsub.f32 1.0, %v495
  %v497 = vmul.f32 %v494, %v496
  %v498 = vadd.f32 %v494, %v497
  %vm499 = vweird.f32 %v490
  %vm500 = vweird.f32 %v494
  %vm501 = vmor %vm499, %vm500
  %v502 = vsel %vm501, %v494, %v498
  %v503 = vand.u32 2147483647, %v490
  %vm504 = vcmp.eq.f32.partialorder %v503, 8.507059e+37
  %v505 = vand.u32 %v490, 2147483648
  %v506 = vor.u32 1.1754944e-38, %v505
  %v507 = vsel %vm504, %v506, %v502
  %v508 = vmul.f32 1.0, %v507
  %v509 = vrcp.pop %v491
  %v510 = vmul.f32 %v491, %v509
  %v511 = vsub.f32 1.0, %v510
  %v512 = vmul.f32 %v509, %v511
  %v513 = vadd.f32 %v509, %v512
  %vm514 = vweird.f32 %v491
  %vm515 = vweird.f32 %v509
  %vm516 = vmor %vm514, %vm515
  %v517 = vsel %vm516, %v509, %v513
  %v518 = vand.u32 2147483647, %v491
  %vm519 = vcmp.eq.f32.partialorder %v518, 8.507059e+37
  %v520 = vand.u32 %v491, 2147483648
  %v521 = vor.u32 1.1754944e-38, %v520
  %v522 = vsel %vm519, %v521, %v517
  %v523 = vmul.f32 1.0, %v522
  %v524 = vrcp.pop %v492
  %v525 = vmul.f32 %v492, %v524
  %v526 = vsub.f32 1.0, %v525
  %v527 = vmul.f32 %v524, %v526
  %v528 = vadd.f32 %v524, %v527
  %vm529 = vweird.f32 %v492
  %vm530 = vweird.f32 %v524
  %vm531 = vmor %vm529, %vm530
  %v532 = vsel %vm531, %v524, %v528
  %v533 = vand.u32 2147483647, %v492
  %vm534 = vcmp.eq.f32.partialorder %v533, 8.507059e+37
  %v535 = vand.u32 %v492, 2147483648
  %v536 = vor.u32 1.1754944e-38, %v535
  %v537 = vsel %vm534, %v536, %v532
  %v538 = vmul.f32 1.0, %v537
  %v539 = vrcp.pop %v493
  %v540 = vmul.f32 %v493, %v539
  %v541 = vsub.f32 1.0, %v540
  %v542 = vmul.f32 %v539, %v541
  %v543 = vadd.f32 %v539, %v542
  %vm544 = vweird.f32 %v493
  %vm545 = vweird.f32 %v539
  %vm546 = vmor %vm544, %vm545
  %v547 = vsel %vm546, %v539, %v543
  %v548 = vand.u32 2147483647, %v493
  %vm549 = vcmp.eq.f32.partialorder %v548, 8.507059e+37
  %v550 = vand.u32 %v493, 2147483648
  %v551 = vor.u32 1.1754944e-38, %v550
  %v552 = vsel %vm549, %v551, %v547
  %v553 = vmul.f32 1.0, %v552
  %558 = vrot.lane.b32.xlu0 %v508, 112
  %v559 = vpop.permute.xlu0 %558
  %560 = vrot.lane.b32.xlu0 %v523, 112
  %v561 = vpop.permute.xlu0 %560
  %562 = vrot.lane.b32.xlu0 %v538, 112
  %v563 = vpop.permute.xlu0 %562
  %564 = vrot.lane.b32.xlu0 %v553, 112
  %v565 = vpop.permute.xlu0 %564
  %v570 = vmul.f32 %v474, %v559
  %v571 = vmul.f32 %v475, %v561
  %v572 = vmul.f32 %v476, %v563
  %v573 = vmul.f32 %v477, %v565
  %s574 = scalar_lea.vmem %s5, 16
  %v575 = vld [vmem:[%s574] sm:$0xff]
  %v576 = vld [vmem:[%s574 + $0x8] sm:$0xff]
  %s577 = scalar_lea.vmem %s6, 1
  %v578 = vld [vmem:[%s577] sm:$0x1]
  %v580 = vperm.slane %v578, 0
  %v583 = vsel %vm39, %v570, 0
  %v586 = vsel %vm39, %v571, 0
  %v589 = vsel %vm39, %v572, 0
  %v592 = vsel %vm39, %v573, 0
  %594 = vmatpush.msra.mxu0 0.0
  %595 = vmatpush.msra.mxu0 0.0
  %596 = vmatpush.msra.mxu0 0.0
  %597 = vmatpush.msra.mxu0 0.0
  %598 = vmatpush.msra.mxu0 0.0
  %599 = vmatpush.msra.mxu0 0.0
  %600 = vmatpush.msra.mxu0 0.0
  %601 = vmatpush.msra.mxu0 0.0
  %602 = vmatpush.msra.mxu0 0.0
  %603 = vmatpush.msra.mxu0 0.0
  %604 = vmatpush.msra.mxu0 0.0
  %605 = vmatpush.msra.mxu0 0.0
  %606 = vmatpush.msra.mxu0 0.0
  %607 = vmatpush.msra.mxu0 0.0
  %608 = vmatpush.msra.mxu0 %v576
  %609 = vmatpush.msra.mxu0 %v575
  %610 = vmatmul.f32.gmra.mxu0 %v583
  %v611 = vpop.f32.mrf.mxu0
  %v612 = vadd.f32 %v580, %v611
  %613 = vmatmul.f32.gmra.mxu0 %v586
  %v614 = vpop.f32.mrf.mxu0
  %v615 = vadd.f32 %v580, %v614
  %616 = vmatmul.f32.gmra.mxu0 %v589
  %v617 = vpop.f32.mrf.mxu0
  %v618 = vadd.f32 %v580, %v617
  %619 = vmatmul.f32.gmra.mxu0 %v592
  %v620 = vpop.f32.mrf.mxu0
  %v621 = vadd.f32 %v580, %v620
  %622 = vdwg.mxu0
  %v623 = vadd.f32 %v353, %v612
  %v624 = vadd.f32 %v354, %v615
  %v625 = vadd.f32 %v355, %v618
  %v626 = vadd.f32 %v356, %v621
  %v627 = vld [vmem:[%s7] sm:$0x1]
  %v628 = vperm.slane %v627, 0
  %v629 = vmul.f32 %v623, %v628
  %v630 = vmul.f32 %v624, %v628
  %v631 = vmul.f32 %v625, %v628
  %v632 = vmul.f32 %v626, %v628
  %v633 = vld [vmem:[%s7 + $0x1] sm:$0x1]
  %v634 = vperm.slane %v633, 0
  %v635 = vadd.f32 %v629, %v634
  %v636 = vadd.f32 %v630, %v634
  %v637 = vadd.f32 %v631, %v634
  %v638 = vadd.f32 %v632, %v634
  %v639 = vmax.f32 %v635, 0.0
  %v640 = vmax.f32 %v636, 0.0
  %v641 = vmax.f32 %v637, 0.0
  %v642 = vmax.f32 %v638, 0.0
  %643 = vst.msk [vmem:[%s8] sm:$0xff] %vm39, %v639
  %644 = vst.msk [vmem:[%s8 + $0x8] sm:$0xff] %vm39, %v640
  %645 = vst.msk [vmem:[%s8 + $0x10] sm:$0xff] %vm39, %v641
  %646 = vst.msk [vmem:[%s8 + $0x18] sm:$0xff] %vm39, %v642
  // Predicated region
  $region34: #{wavenet_encoder10_forward.4} parent=0 // pred_check
    _
  $region35: #{wavenet_encoder10_forward.4} parent=0 // pred_check_branch
    %648 = sbr.rel (0) target = $region37
  $region36: #{wavenet_encoder10_forward.4} parent=0 // pred_region
    _
  $region37: #{wavenet_encoder10_forward.4} parent=0 // pred_fallthru
    _
  // Predicated region
  $region38: #{wavenet_encoder10_forward.4} parent=0 // pred_check
    _
  $region39: #{wavenet_encoder10_forward.4} parent=0 // pred_check_branch
    %650 = sbr.rel (0) target = $region41
  $region40: #{wavenet_encoder10_forward.4} parent=0 // pred_region
    _
  $region41: #{wavenet_encoder10_forward.4} parent=0 // pred_fallthru
    _

// kernel: wavenet_encoder10_forward.3
$region0: #{wavenet_encoder10_forward.3}
  #allocation0 [shape = 'u32[]', space=smem, size = 0x4, offset = 0x4, fixed_abs, tag = 'smem constant byte address 0x4 - core index']
  #allocation1 [shape = 'u32[72,128]{1,0:T(1,128)}', space=vmem, size = 0x9000, scoped, tag = 'internal scratch']
  #allocation2 [shape = 'f32[2,20,16]{2,1,0:T(8,128)}', space=vmem, size = 0x6000, scoped, tag = 'scratch operand']
  #allocation3 [shape = 'f32[2,16,48]{2,1,0:T(8,128)}', space=vmem, size = 0x4000, scoped, tag = 'scratch operand']
  %s0 = inlined_call_operand.vmem [shape: f32[2,16,40], index: 0, kind: input, shape index: {}]
  %s1 = inlined_call_operand.vmem [shape: f32[40,16], index: 1, kind: input, shape index: {}]
  %s2 = inlined_call_operand.vmem [shape: f32[1,16], index: 2, kind: input, shape index: {}]
  %s3 = inlined_call_operand.vmem [shape: f32[2,48,32], index: 3, kind: input, shape index: {}]
  %s4 = inlined_call_operand.vmem [shape: f32[2,1,32], index: 4, kind: input, shape index: {}]
  %s5 = inlined_call_operand.vmem [shape: f32[2,16,16], index: 5, kind: input, shape index: {}]
  %s6 = inlined_call_operand.vmem [shape: f32[2,1,16], index: 6, kind: input, shape index: {}]
  %s7 = inlined_call_operand.vmem [shape: f32[2,16], index: 7, kind: input, shape index: {}]
  %s8 = inlined_call_operand.vmem [shape: f32[2,16,16], index: 8, kind: output, shape index: {}]
  %s9 = sld [smem:[#allocation0]]
  $region42: #{wavenet_encoder10_forward.3} parent=0
    _
  %s11 = ssub.s32 1, %s9
  %s12 = scalar_select 0, %s11, %s9
  // Predicated region
  $region2: #{wavenet_encoder10_forward.3} parent=0 // pred_check
    _
  $region3: #{wavenet_encoder10_forward.3} parent=0 // pred_check_branch
    %14 = sbr.rel (0) target = $region5
  $region4: #{wavenet_encoder10_forward.3} parent=0 // pred_region
    _
  $region5: #{wavenet_encoder10_forward.3} parent=0 // pred_fallthru
    _
  // Predicated region
  $region6: #{wavenet_encoder10_forward.3} parent=0 // pred_check
    _
  $region7: #{wavenet_encoder10_forward.3} parent=0 // pred_check_branch
    %16 = sbr.rel (0) target = $region9
  $region8: #{wavenet_encoder10_forward.3} parent=0 // pred_region
    _
  $region9: #{wavenet_encoder10_forward.3} parent=0 // pred_fallthru
    _
  // Predicated region
  $region10: #{wavenet_encoder10_forward.3} parent=0 // pred_check
    _
  $region11: #{wavenet_encoder10_forward.3} parent=0 // pred_check_branch
    %18 = sbr.rel (0) target = $region13
  $region12: #{wavenet_encoder10_forward.3} parent=0 // pred_region
    _
  $region13: #{wavenet_encoder10_forward.3} parent=0 // pred_fallthru
    _
  // Predicated region
  $region14: #{wavenet_encoder10_forward.3} parent=0 // pred_check
    _
  $region15: #{wavenet_encoder10_forward.3} parent=0 // pred_check_branch
    %20 = sbr.rel (0) target = $region17
  $region16: #{wavenet_encoder10_forward.3} parent=0 // pred_region
    _
  $region17: #{wavenet_encoder10_forward.3} parent=0 // pred_fallthru
    _
  // Predicated region
  $region18: #{wavenet_encoder10_forward.3} parent=0 // pred_check
    _
  $region19: #{wavenet_encoder10_forward.3} parent=0 // pred_check_branch
    %22 = sbr.rel (0) target = $region21
  $region20: #{wavenet_encoder10_forward.3} parent=0 // pred_region
    _
  $region21: #{wavenet_encoder10_forward.3} parent=0 // pred_fallthru
    _
  // Predicated region
  $region22: #{wavenet_encoder10_forward.3} parent=0 // pred_check
    _
  $region23: #{wavenet_encoder10_forward.3} parent=0 // pred_check_branch
    %24 = sbr.rel (0) target = $region25
  $region24: #{wavenet_encoder10_forward.3} parent=0 // pred_region
    _
  $region25: #{wavenet_encoder10_forward.3} parent=0 // pred_fallthru
    _
  // Predicated region
  $region26: #{wavenet_encoder10_forward.3} parent=0 // pred_check
    _
  $region27: #{wavenet_encoder10_forward.3} parent=0 // pred_check_branch
    %26 = sbr.rel (0) target = $region29
  $region28: #{wavenet_encoder10_forward.3} parent=0 // pred_region
    _
  $region29: #{wavenet_encoder10_forward.3} parent=0 // pred_fallthru
    _
  // Predicated region
  $region30: #{wavenet_encoder10_forward.3} parent=0 // pred_check
    _
  $region31: #{wavenet_encoder10_forward.3} parent=0 // pred_check_branch
    %28 = sbr.rel (0) target = $region33
  $region32: #{wavenet_encoder10_forward.3} parent=0 // pred_region
    _
  $region33: #{wavenet_encoder10_forward.3} parent=0 // pred_fallthru
    _
  %v29 = vld [vmem:[%s0] sm:$0xff]
  %v30 = vld [vmem:[%s0 + $0x8] sm:$0xff]
  %v31 = vld [vmem:[%s0 + $0x10] sm:$0xff]
  %v32 = vld [vmem:[%s0 + $0x18] sm:$0xff]
  %v33 = vld [vmem:[%s1] sm:$0xff]
  %v34 = vld [vmem:[%s1 + $0x8] sm:$0xff]
  %v35 = vld [vmem:[%s1 + $0x10] sm:$0xff]
  %v36 = vld [vmem:[%s1 + $0x18] sm:$0xff]
  %v37 = vld [vmem:[%s1 + $0x20] sm:$0xff]
  %v38 = vld [vmem:[%s2] sm:$0x1]
  %v40 = vperm.slane %v38, 0
  %vm42 = vcmask 326656
  %v44 = vsel %vm42, %v29, 0
  %v47 = vsel %vm42, %v30, 0
  %v50 = vsel %vm42, %v31, 0
  %v53 = vsel %vm42, %v32, 0
  %55 = vmatpush.msra.mxu0 0.0
  %56 = vmatpush.msra.mxu0 0.0
  %57 = vmatpush.msra.mxu0 0.0
  %58 = vmatpush.msra.mxu0 0.0
  %59 = vmatpush.msra.mxu0 0.0
  %60 = vmatpush.msra.mxu0 0.0
  %61 = vmatpush.msra.mxu0 0.0
  %62 = vmatpush.msra.mxu0 0.0
  %63 = vmatpush.msra.mxu0 0.0
  %64 = vmatpush.msra.mxu0 0.0
  %65 = vmatpush.msra.mxu0 0.0
  %66 = vmatpush.msra.mxu0 %v37
  %67 = vmatpush.msra.mxu0 %v36
  %68 = vmatpush.msra.mxu0 %v35
  %69 = vmatpush.msra.mxu0 %v34
  %70 = vmatpush.msra.mxu0 %v33
  %71 = vmatmul.f32.gmra.mxu0 %v44
  %v72 = vpop.f32.mrf.mxu0
  %v73 = vadd.f32 %v40, %v72
  %74 = vmatmul.f32.gmra.mxu0 %v47
  %v75 = vpop.f32.mrf.mxu0
  %v76 = vadd.f32 %v40, %v75
  %77 = vmatmul.f32.gmra.mxu0 %v50
  %v78 = vpop.f32.mrf.mxu0
  %v79 = vadd.f32 %v40, %v78
  %80 = vmatmul.f32.gmra.mxu0 %v53
  %v81 = vpop.f32.mrf.mxu0
  %v82 = vadd.f32 %v40, %v81
  %83 = vdwg.mxu0
  %vm84 = vcmask 123904
  %85 = vst.msk [vmem:[#allocation2] sm:$0x3] %vm84, 0.0
  %86 = vst.msk [vmem:[#allocation2 + $0x18] sm:$0x3] %vm84, 0.0
  %87 = vst.msk [vmem:[#allocation2 + $0x12] sm:$0x3] %vm84, 0.0
  %88 = vst.msk [vmem:[#allocation2 + $0x2a] sm:$0x3] %vm84, 0.0
  %vm89 = vcmask 130048
  %90 = vst.msk [vmem:[#allocation2 + $0x2] sm:$0xff] %vm89, %v73
  %91 = vst.msk [vmem:[#allocation2 + $0xa] sm:$0xff] %vm89, %v76
  %v92 = vld [vmem:[#allocation2 + $0x1] sm:$0xff]
  %v93 = vld [vmem:[#allocation2 + $0x9] sm:$0xff]
  %94 = vst.msk [vmem:[#allocation3] sm:$0xff] %vm89, %v92
  %95 = vst.msk [vmem:[#allocation3 + $0x8] sm:$0xff] %vm89, %v93
  %v96 = vld [vmem:[#allocation2 + $0x2] sm:$0xff]
  %v97 = vld [vmem:[#allocation2 + $0xa] sm:$0xff]
  %100 = vrot.lane.b32.xlu0 %v96, 16
  %v101 = vpop.permute.xlu0 %100
  %102 = vrot.lane.b32.xlu0 %v97, 16
  %v103 = vpop.permute.xlu0 %102
  %vm106 = vcmask 261248
  %107 = vst.msk [vmem:[#allocation3] sm:$0xff] %vm106, %v101
  %108 = vst.msk [vmem:[#allocation3 + $0x8] sm:$0xff] %vm106, %v103
  %v109 = vld [vmem:[#allocation2 + $0x3] sm:$0xff]
  %v110 = vld [vmem:[#allocation2 + $0xb] sm:$0xff]
  %113 = vrot.lane.b32.xlu0 %v109, 32
  %v114 = vpop.permute.xlu0 %113
  %115 = vrot.lane.b32.xlu0 %v110, 32
  %v116 = vpop.permute.xlu0 %115
  %vm119 = vcmask 392448
  %120 = vst.msk [vmem:[#allocation3] sm:$0xff] %vm119, %v114
  %121 = vst.msk [vmem:[#allocation3 + $0x8] sm:$0xff] %vm119, %v116
  %s122 = scalar_lea.vmem [#allocation2], 24
  %123 = vst.msk [vmem:[%s122 + $0x2] sm:$0xff] %vm89, %v79
  %124 = vst.msk [vmem:[%s122 + $0xa] sm:$0xff] %vm89, %v82
  %v125 = vld [vmem:[%s122 + $0x1] sm:$0xff]
  %v126 = vld [vmem:[%s122 + $0x9] sm:$0xff]
  %s127 = scalar_lea.vmem [#allocation3], 16
  %128 = vst.msk [vmem:[%s127] sm:$0xff] %vm89, %v125
  %129 = vst.msk [vmem:[%s127 + $0x8] sm:$0xff] %vm89, %v126
  %v130 = vld [vmem:[%s122 + $0x2] sm:$0xff]
  %v131 = vld [vmem:[%s122 + $0xa] sm:$0xff]
  %134 = vrot.lane.b32.xlu0 %v130, 16
  %v135 = vpop.permute.xlu0 %134
  %136 = vrot.lane.b32.xlu0 %v131, 16
  %v137 = vpop.permute.xlu0 %136
  %140 = vst.msk [vmem:[%s127] sm:$0xff] %vm106, %v135
  %141 = vst.msk [vmem:[%s127 + $0x8] sm:$0xff] %vm106, %v137
  %v142 = vld [vmem:[%s122 + $0x3] sm:$0xff]
  %v143 = vld [vmem:[%s122 + $0xb] sm:$0xff]
  %146 = vrot.lane.b32.xlu0 %v142, 32
  %v147 = vpop.permute.xlu0 %146
  %148 = vrot.lane.b32.xlu0 %v143, 32
  %v149 = vpop.permute.xlu0 %148
  %152 = vst.msk [vmem:[%s127] sm:$0xff] %vm119, %v147
  %153 = vst.msk [vmem:[%s127 + $0x8] sm:$0xff] %vm119, %v149
  %v154 = vld [vmem:[#allocation3] sm:$0xff]
  %v155 = vld [vmem:[#allocation3 + $0x8] sm:$0xff]
  %v156 = vld [vmem:[#allocation3 + $0x10] sm:$0xff]
  %v157 = vld [vmem:[#allocation3 + $0x18] sm:$0xff]
  %v158 = vld [vmem:[%s3] sm:$0xff]
  %v159 = vld [vmem:[%s3 + $0x8] sm:$0xff]
  %v160 = vld [vmem:[%s3 + $0x10] sm:$0xff]
  %v161 = vld [vmem:[%s3 + $0x18] sm:$0xff]
  %v162 = vld [vmem:[%s3 + $0x20] sm:$0xff]
  %v163 = vld [vmem:[%s3 + $0x28] sm:$0xff]
  %v164 = vld [vmem:[%s4] sm:$0x1]
  %v166 = vperm.slane %v164, 0
  %vm168 = vcmask 392192
  %v170 = vsel %vm168, %v154, 0
  %v173 = vsel %vm168, %v155, 0
  %v176 = vsel %vm168, %v156, 0
  %v179 = vsel %vm168, %v157, 0
  %181 = vmatpush.msra.mxu0 0.0
  %182 = vmatpush.msra.mxu0 0.0
  %183 = vmatpush.msra.mxu0 0.0
  %184 = vmatpush.msra.mxu0 0.0
  %185 = vmatpush.msra.mxu0 0.0
  %186 = vmatpush.msra.mxu0 0.0
  %187 = vmatpush.msra.mxu0 0.0
  %188 = vmatpush.msra.mxu0 0.0
  %189 = vmatpush.msra.mxu0 0.0
  %190 = vmatpush.msra.mxu0 0.0
  %191 = vmatpush.msra.mxu0 %v163
  %192 = vmatpush.msra.mxu0 %v162
  %193 = vmatpush.msra.mxu0 %v161
  %194 = vmatpush.msra.mxu0 %v160
  %195 = vmatpush.msra.mxu0 %v159
  %196 = vmatpush.msra.mxu0 %v158
  %197 = vmatmul.f32.gmra.mxu0 %v170
  %v198 = vpop.f32.mrf.mxu0
  %v199 = vadd.f32 %v166, %v198
  %200 = vmatmul.f32.gmra.mxu0 %v173
  %v201 = vpop.f32.mrf.mxu0
  %v202 = vadd.f32 %v166, %v201
  %203 = vmatmul.f32.gmra.mxu0 %v176
  %v204 = vpop.f32.mrf.mxu0
  %v205 = vadd.f32 %v166, %v204
  %206 = vmatmul.f32.gmra.mxu0 %v179
  %v207 = vpop.f32.mrf.mxu0
  %v208 = vadd.f32 %v166, %v207
  %209 = vdwg.mxu0
  %v210 = vtanh.pop %v199
  %v211 = vtanh.pop %v202
  %v212 = vtanh.pop %v205
  %v213 = vtanh.pop %v208
  %v214 = vxor.u32 %v199, 2147483648
  %v215 = vxor.u32 %v202, 2147483648
  %v216 = vxor.u32 %v205, 2147483648
  %v217 = vxor.u32 %v208, 2147483648
  %v218 = vmul.f32 %v214, 1.442695
  %v219 = vpow.pop %v218
  %v220 = vmul.f32 %v215, 1.442695
  %v221 = vpow.pop %v220
  %v222 = vmul.f32 %v216, 1.442695
  %v223 = vpow.pop %v222
  %v224 = vmul.f32 %v217, 1.442695
  %v225 = vpow.pop %v224
  %v226 = vadd.f32 %v219, 1.0
  %v227 = vadd.f32 %v221, 1.0
  %v228 = vadd.f32 %v223, 1.0
  %v229 = vadd.f32 %v225, 1.0
  %v230 = vrcp.pop %v226
  %v231 = vmul.f32 %v226, %v230
  %v232 = vsub.f32 1.0, %v231
  %v233 = vmul.f32 %v230, %v232
  %v234 = vadd.f32 %v230, %v233
  %vm235 = vweird.f32 %v226
  %vm236 = vweird.f32 %v230
  %vm237 = vmor %vm235, %vm236
  %v238 = vsel %vm237, %v230, %v234
  %v239 = vand.u32 2147483647, %v226
  %vm240 = vcmp.eq.f32.partialorder %v239, 8.507059e+37
  %v241 = vand.u32 %v226, 2147483648
  %v242 = vor.u32 1.1754944e-38, %v241
  %v243 = vsel %vm240, %v242, %v238
  %v244 = vmul.f32 1.0, %v243
  %v245 = vrcp.pop %v227
  %v246 = vmul.f32 %v227, %v245
  %v247 = vsub.f32 1.0, %v246
  %v248 = vmul.f32 %v245, %v247
  %v249 = vadd.f32 %v245, %v248
  %vm250 = vweird.f32 %v227
  %vm251 = vweird.f32 %v245
  %vm252 = vmor %vm250, %vm251
  %v253 = vsel %vm252, %v245, %v249
  %v254 = vand.u32 2147483647, %v227
  %vm255 = vcmp.eq.f32.partialorder %v254, 8.507059e+37
  %v256 = vand.u32 %v227, 2147483648
  %v257 = vor.u32 1.1754944e-38, %v256
  %v258 = vsel %vm255, %v257, %v253
  %v259 = vmul.f32 1.0, %v258
  %v260 = vrcp.pop %v228
  %v261 = vmul.f32 %v228, %v260
  %v262 = vsub.f32 1.0, %v261
  %v263 = vmul.f32 %v260, %v262
  %v264 = vadd.f32 %v260, %v263
  %vm265 = vweird.f32 %v228
  %vm266 = vweird.f32 %v260
  %vm267 = vmor %vm265, %vm266
  %v268 = vsel %vm267, %v260, %v264
  %v269 = vand.u32 2147483647, %v228
  %vm270 = vcmp.eq.f32.partialorder %v269, 8.507059e+37
  %v271 = vand.u32 %v228, 2147483648
  %v272 = vor.u32 1.1754944e-38, %v271
  %v273 = vsel %vm270, %v272, %v268
  %v274 = vmul.f32 1.0, %v273
  %v275 = vrcp.pop %v229
  %v276 = vmul.f32 %v229, %v275
  %v277 = vsub.f32 1.0, %v276
  %v278 = vmul.f32 %v275, %v277
  %v279 = vadd.f32 %v275, %v278
  %vm280 = vweird.f32 %v229
  %vm281 = vweird.f32 %v275
  %vm282 = vmor %vm280, %vm281
  %v283 = vsel %vm282, %v275, %v279
  %v284 = vand.u32 2147483647, %v229
  %vm285 = vcmp.eq.f32.partialorder %v284, 8.507059e+37
  %v286 = vand.u32 %v229, 2147483648
  %v287 = vor.u32 1.1754944e-38, %v286
  %v288 = vsel %vm285, %v287, %v283
  %v289 = vmul.f32 1.0, %v288
  %294 = vrot.lane.b32.xlu0 %v244, 112
  %v295 = vpop.permute.xlu0 %294
  %296 = vrot.lane.b32.xlu0 %v259, 112
  %v297 = vpop.permute.xlu0 %296
  %298 = vrot.lane.b32.xlu0 %v274, 112
  %v299 = vpop.permute.xlu0 %298
  %300 = vrot.lane.b32.xlu0 %v289, 112
  %v301 = vpop.permute.xlu0 %300
  %v306 = vmul.f32 %v210, %v295
  %v307 = vmul.f32 %v211, %v297
  %v308 = vmul.f32 %v212, %v299
  %v309 = vmul.f32 %v213, %v301
  %v310 = vld [vmem:[%s5] sm:$0xff]
  %v311 = vld [vmem:[%s5 + $0x8] sm:$0xff]
  %v312 = vld [vmem:[%s6] sm:$0x1]
  %v314 = vperm.slane %v312, 0
  %v317 = vsel %vm89, %v306, 0
  %v320 = vsel %vm89, %v307, 0
  %v323 = vsel %vm89, %v308, 0
  %v326 = vsel %vm89, %v309, 0
  %328 = vmatpush.msra.mxu0 0.0
  %329 = vmatpush.msra.mxu0 0.0
  %330 = vmatpush.msra.mxu0 0.0
  %331 = vmatpush.msra.mxu0 0.0
  %332 = vmatpush.msra.mxu0 0.0
  %333 = vmatpush.msra.mxu0 0.0
  %334 = vmatpush.msra.mxu0 0.0
  %335 = vmatpush.msra.mxu0 0.0
  %336 = vmatpush.msra.mxu0 0.0
  %337 = vmatpush.msra.mxu0 0.0
  %338 = vmatpush.msra.mxu0 0.0
  %339 = vmatpush.msra.mxu0 0.0
  %340 = vmatpush.msra.mxu0 0.0
  %341 = vmatpush.msra.mxu0 0.0
  %342 = vmatpush.msra.mxu0 %v311
  %343 = vmatpush.msra.mxu0 %v310
  %344 = vmatmul.f32.gmra.mxu0 %v317
  %v345 = vpop.f32.mrf.mxu0
  %v346 = vadd.f32 %v314, %v345
  %347 = vmatmul.f32.gmra.mxu0 %v320
  %v348 = vpop.f32.mrf.mxu0
  %v349 = vadd.f32 %v314, %v348
  %350 = vmatmul.f32.gmra.mxu0 %v323
  %v351 = vpop.f32.mrf.mxu0
  %v352 = vadd.f32 %v314, %v351
  %353 = vmatmul.f32.gmra.mxu0 %v326
  %v354 = vpop.f32.mrf.mxu0
  %v355 = vadd.f32 %v314, %v354
  %356 = vdwg.mxu0
  %v357 = vadd.f32 %v73, %v346
  %v358 = vadd.f32 %v76, %v349
  %v359 = vadd.f32 %v79, %v352
  %v360 = vadd.f32 %v82, %v355
  %361 = vst.msk [vmem:[#allocation2 + $0x2] sm:$0xff] %vm89, %v346
  %362 = vst.msk [vmem:[#allocation2 + $0xa] sm:$0xff] %vm89, %v349
  %v363 = vld [vmem:[#allocation2] sm:$0xff]
  %v364 = vld [vmem:[#allocation2 + $0x8] sm:$0xff]
  %365 = vst.msk [vmem:[#allocation3] sm:$0xff] %vm89, %v363
  %366 = vst.msk [vmem:[#allocation3 + $0x8] sm:$0xff] %vm89, %v364
  %v367 = vld [vmem:[#allocation2 + $0x2] sm:$0xff]
  %v368 = vld [vmem:[#allocation2 + $0xa] sm:$0xff]
  %371 = vrot.lane.b32.xlu0 %v367, 16
  %v372 = vpop.permute.xlu0 %371
  %373 = vrot.lane.b32.xlu0 %v368, 16
  %v374 = vpop.permute.xlu0 %373
  %377 = vst.msk [vmem:[#allocation3] sm:$0xff] %vm106, %v372
  %378 = vst.msk [vmem:[#allocation3 + $0x8] sm:$0xff] %vm106, %v374
  %v379 = vld [vmem:[#allocation2 + $0x4] sm:$0xff]
  %v380 = vld [vmem:[#allocation2 + $0xc] sm:$0xff]
  %383 = vrot.lane.b32.xlu0 %v379, 32
  %v384 = vpop.permute.xlu0 %383
  %385 = vrot.lane.b32.xlu0 %v380, 32
  %v386 = vpop.permute.xlu0 %385
  %389 = vst.msk [vmem:[#allocation3] sm:$0xff] %vm119, %v384
  %390 = vst.msk [vmem:[#allocation3 + $0x8] sm:$0xff] %vm119, %v386
  %391 = vst.msk [vmem:[%s122 + $0x2] sm:$0xff] %vm89, %v352
  %392 = vst.msk [vmem:[%s122 + $0xa] sm:$0xff] %vm89, %v355
  %v393 = vld [vmem:[%s122] sm:$0xff]
  %v394 = vld [vmem:[%s122 + $0x8] sm:$0xff]
  %395 = vst.msk [vmem:[%s127] sm:$0xff] %vm89, %v393
  %396 = vst.msk [vmem:[%s127 + $0x8] sm:$0xff] %vm89, %v394
  %v397 = vld [vmem:[%s122 + $0x2] sm:$0xff]
  %v398 = vld [vmem:[%s122 + $0xa] sm:$0xff]
  %401 = vrot.lane.b32.xlu0 %v397, 16
  %v402 = vpop.permute.xlu0 %401
  %403 = vrot.lane.b32.xlu0 %v398, 16
  %v404 = vpop.permute.xlu0 %403
  %407 = vst.msk [vmem:[%s127] sm:$0xff] %vm106, %v402
  %408 = vst.msk [vmem:[%s127 + $0x8] sm:$0xff] %vm106, %v404
  %v409 = vld [vmem:[%s122 + $0x4] sm:$0xff]
  %v410 = vld [vmem:[%s122 + $0xc] sm:$0xff]
  %413 = vrot.lane.b32.xlu0 %v409, 32
  %v414 = vpop.permute.xlu0 %413
  %415 = vrot.lane.b32.xlu0 %v410, 32
  %v416 = vpop.permute.xlu0 %415
  %419 = vst.msk [vmem:[%s127] sm:$0xff] %vm119, %v414
  %420 = vst.msk [vmem:[%s127 + $0x8] sm:$0xff] %vm119, %v416
  %v421 = vld [vmem:[#allocation3] sm:$0xff]
  %v422 = vld [vmem:[#allocation3 + $0x8] sm:$0xff]
  %v423 = vld [vmem:[#allocation3 + $0x10] sm:$0xff]
  %v424 = vld [vmem:[#allocation3 + $0x18] sm:$0xff]
  %s425 = scalar_lea.vmem %s3, 48
  %v426 = vld [vmem:[%s425] sm:$0xff]
  %v427 = vld [vmem:[%s425 + $0x8] sm:$0xff]
  %v428 = vld [vmem:[%s425 + $0x10] sm:$0xff]
  %v429 = vld [vmem:[%s425 + $0x18] sm:$0xff]
  %v430 = vld [vmem:[%s425 + $0x20] sm:$0xff]
  %v431 = vld [vmem:[%s425 + $0x28] sm:$0xff]
  %s432 = scalar_lea.vmem %s4, 1
  %v433 = vld [vmem:[%s432] sm:$0x1]
  %v435 = vperm.slane %v433, 0
  %v438 = vsel %vm168, %v421, 0
  %v441 = vsel %vm168, %v422, 0
  %v444 = vsel %vm168, %v423, 0
  %v447 = vsel %vm168, %v424, 0
  %449 = vmatpush.msra.mxu0 0.0
  %450 = vmatpush.msra.mxu0 0.0
  %451 = vmatpush.msra.mxu0 0.0
  %452 = vmatpush.msra.mxu0 0.0
  %453 = vmatpush.msra.mxu0 0.0
  %454 = vmatpush.msra.mxu0 0.0
  %455 = vmatpush.msra.mxu0 0.0
  %456 = vmatpush.msra.mxu0 0.0
  %457 = vmatpush.msra.mxu0 0.0
  %458 = vmatpush.msra.mxu0 0.0
  %459 = vmatpush.msra.mxu0 %v431
  %460 = vmatpush.msra.mxu0 %v430
  %461 = vmatpush.msra.mxu0 %v429
  %462 = vmatpush.msra.mxu0 %v428
  %463 = vmatpush.msra.mxu0 %v427
  %464 = vmatpush.msra.mxu0 %v426
  %465 = vmatmul.f32.gmra.mxu0 %v438
  %v466 = vpop.f32.mrf.mxu0
  %v467 = vadd.f32 %v435, %v466
  %468 = vmatmul.f32.gmra.mxu0 %v441
  %v469 = vpop.f32.mrf.mxu0
  %v470 = vadd.f32 %v435, %v469
  %471 = vmatmul.f32.gmra.mxu0 %v444
  %v472 = vpop.f32.mrf.mxu0
  %v473 = vadd.f32 %v435, %v472
  %474 = vmatmul.f32.gmra.mxu0 %v447
  %v475 = vpop.f32.mrf.mxu0
  %v476 = vadd.f32 %v435, %v475
  %477 = vdwg.mxu0
  %v478 = vtanh.pop %v467
  %v479 = vtanh.pop %v470
  %v480 = vtanh.pop %v473
  %v481 = vtanh.pop %v476
  %v482 = vxor.u32 %v467, 2147483648
  %v483 = vxor.u32 %v470, 2147483648
  %v484 = vxor.u32 %v473, 2147483648
  %v485 = vxor.u32 %v476, 2147483648
  %v486 = vmul.f32 %v482, 1.442695
  %v487 = vpow.pop %v486
  %v488 = vmul.f32 %v483, 1.442695
  %v489 = vpow.pop %v488
  %v490 = vmul.f32 %v484, 1.442695
  %v491 = vpow.pop %v490
  %v492 = vmul.f32 %v485, 1.442695
  %v493 = vpow.pop %v492
  %v494 = vadd.f32 %v487, 1.0
  %v495 = vadd.f32 %v489, 1.0
  %v496 = vadd.f32 %v491, 1.0
  %v497 = vadd.f32 %v493, 1.0
  %v498 = vrcp.pop %v494
  %v499 = vmul.f32 %v494, %v498
  %v500 = vsub.f32 1.0, %v499
  %v501 = vmul.f32 %v498, %v500
  %v502 = vadd.f32 %v498, %v501
  %vm503 = vweird.f32 %v494
  %vm504 = vweird.f32 %v498
  %vm505 = vmor %vm503, %vm504
  %v506 = vsel %vm505, %v498, %v502
  %v507 = vand.u32 2147483647, %v494
  %vm508 = vcmp.eq.f32.partialorder %v507, 8.507059e+37
  %v509 = vand.u32 %v494, 2147483648
  %v510 = vor.u32 1.1754944e-38, %v509
  %v511 = vsel %vm508, %v510, %v506
  %v512 = vmul.f32 1.0, %v511
  %v513 = vrcp.pop %v495
  %v514 = vmul.f32 %v495, %v513
  %v515 = vsub.f32 1.0, %v514
  %v516 = vmul.f32 %v513, %v515
  %v517 = vadd.f32 %v513, %v516
  %vm518 = vweird.f32 %v495
  %vm519 = vweird.f32 %v513
  %vm520 = vmor %vm518, %vm519
  %v521 = vsel %vm520, %v513, %v517
  %v522 = vand.u32 2147483647, %v495
  %vm523 = vcmp.eq.f32.partialorder %v522, 8.507059e+37
  %v524 = vand.u32 %v495, 2147483648
  %v525 = vor.u32 1.1754944e-38, %v524
  %v526 = vsel %vm523, %v525, %v521
  %v527 = vmul.f32 1.0, %v526
  %v528 = vrcp.pop %v496
  %v529 = vmul.f32 %v496, %v528
  %v530 = vsub.f32 1.0, %v529
  %v531 = vmul.f32 %v528, %v530
  %v532 = vadd.f32 %v528, %v531
  %vm533 = vweird.f32 %v496
  %vm534 = vweird.f32 %v528
  %vm535 = vmor %vm533, %vm534
  %v536 = vsel %vm535, %v528, %v532
  %v537 = vand.u32 2147483647, %v496
  %vm538 = vcmp.eq.f32.partialorder %v537, 8.507059e+37
  %v539 = vand.u32 %v496, 2147483648
  %v540 = vor.u32 1.1754944e-38, %v539
  %v541 = vsel %vm538, %v540, %v536
  %v542 = vmul.f32 1.0, %v541
  %v543 = vrcp.pop %v497
  %v544 = vmul.f32 %v497, %v543
  %v545 = vsub.f32 1.0, %v544
  %v546 = vmul.f32 %v543, %v545
  %v547 = vadd.f32 %v543, %v546
  %vm548 = vweird.f32 %v497
  %vm549 = vweird.f32 %v543
  %vm550 = vmor %vm548, %vm549
  %v551 = vsel %vm550, %v543, %v547
  %v552 = vand.u32 2147483647, %v497
  %vm553 = vcmp.eq.f32.partialorder %v552, 8.507059e+37
  %v554 = vand.u32 %v497, 2147483648
  %v555 = vor.u32 1.1754944e-38, %v554
  %v556 = vsel %vm553, %v555, %v551
  %v557 = vmul.f32 1.0, %v556
  %562 = vrot.lane.b32.xlu0 %v512, 112
  %v563 = vpop.permute.xlu0 %562
  %564 = vrot.lane.b32.xlu0 %v527, 112
  %v565 = vpop.permute.xlu0 %564
  %566 = vrot.lane.b32.xlu0 %v542, 112
  %v567 = vpop.permute.xlu0 %566
  %568 = vrot.lane.b32.xlu0 %v557, 112
  %v569 = vpop.permute.xlu0 %568
  %v574 = vmul.f32 %v478, %v563
  %v575 = vmul.f32 %v479, %v565
  %v576 = vmul.f32 %v480, %v567
  %v577 = vmul.f32 %v481, %v569
  %s578 = scalar_lea.vmem %s5, 16
  %v579 = vld [vmem:[%s578] sm:$0xff]
  %v580 = vld [vmem:[%s578 + $0x8] sm:$0xff]
  %s581 = scalar_lea.vmem %s6, 1
  %v582 = vld [vmem:[%s581] sm:$0x1]
  %v584 = vperm.slane %v582, 0
  %v587 = vsel %vm89, %v574, 0
  %v590 = vsel %vm89, %v575, 0
  %v593 = vsel %vm89, %v576, 0
  %v596 = vsel %vm89, %v577, 0
  %598 = vmatpush.msra.mxu0 0.0
  %599 = vmatpush.msra.mxu0 0.0
  %600 = vmatpush.msra.mxu0 0.0
  %601 = vmatpush.msra.mxu0 0.0
  %602 = vmatpush.msra.mxu0 0.0
  %603 = vmatpush.msra.mxu0 0.0
  %604 = vmatpush.msra.mxu0 0.0
  %605 = vmatpush.msra.mxu0 0.0
  %606 = vmatpush.msra.mxu0 0.0
  %607 = vmatpush.msra.mxu0 0.0
  %608 = vmatpush.msra.mxu0 0.0
  %609 = vmatpush.msra.mxu0 0.0
  %610 = vmatpush.msra.mxu0 0.0
  %611 = vmatpush.msra.mxu0 0.0
  %612 = vmatpush.msra.mxu0 %v580
  %613 = vmatpush.msra.mxu0 %v579
  %614 = vmatmul.f32.gmra.mxu0 %v587
  %v615 = vpop.f32.mrf.mxu0
  %v616 = vadd.f32 %v584, %v615
  %617 = vmatmul.f32.gmra.mxu0 %v590
  %v618 = vpop.f32.mrf.mxu0
  %v619 = vadd.f32 %v584, %v618
  %620 = vmatmul.f32.gmra.mxu0 %v593
  %v621 = vpop.f32.mrf.mxu0
  %v622 = vadd.f32 %v584, %v621
  %623 = vmatmul.f32.gmra.mxu0 %v596
  %v624 = vpop.f32.mrf.mxu0
  %v625 = vadd.f32 %v584, %v624
  %626 = vdwg.mxu0
  %v627 = vadd.f32 %v357, %v616
  %v628 = vadd.f32 %v358, %v619
  %v629 = vadd.f32 %v359, %v622
  %v630 = vadd.f32 %v360, %v625
  %v631 = vld [vmem:[%s7] sm:$0x1]
  %v632 = vperm.slane %v631, 0
  %v633 = vmul.f32 %v627, %v632
  %v634 = vmul.f32 %v628, %v632
  %v635 = vmul.f32 %v629, %v632
  %v636 = vmul.f32 %v630, %v632
  %v637 = vld [vmem:[%s7 + $0x1] sm:$0x1]
  %v638 = vperm.slane %v637, 0
  %v639 = vadd.f32 %v633, %v638
  %v640 = vadd.f32 %v634, %v638
  %v641 = vadd.f32 %v635, %v638
  %v642 = vadd.f32 %v636, %v638
  %v643 = vmax.f32 %v639, 0.0
  %v644 = vmax.f32 %v640, 0.0
  %v645 = vmax.f32 %v641, 0.0
  %v646 = vmax.f32 %v642, 0.0
  %647 = vst.msk [vmem:[%s8] sm:$0xff] %vm89, %v643
  %648 = vst.msk [vmem:[%s8 + $0x8] sm:$0xff] %vm89, %v644
  %649 = vst.msk [vmem:[%s8 + $0x10] sm:$0xff] %vm89, %v645
  %650 = vst.msk [vmem:[%s8 + $0x18] sm:$0xff] %vm89, %v646
  // Predicated region
  $region34: #{wavenet_encoder10_forward.3} parent=0 // pred_check
    _
  $region35: #{wavenet_encoder10_forward.3} parent=0 // pred_check_branch
    %652 = sbr.rel (0) target = $region37
  $region36: #{wavenet_encoder10_forward.3} parent=0 // pred_region
    _
  $region37: #{wavenet_encoder10_forward.3} parent=0 // pred_fallthru
    _
  // Predicated region
  $region38: #{wavenet_encoder10_forward.3} parent=0 // pred_check
    _
  $region39: #{wavenet_encoder10_forward.3} parent=0 // pred_check_branch
    %654 = sbr.rel (0) target = $region41
  $region40: #{wavenet_encoder10_forward.3} parent=0 // pred_region
    _
  $region41: #{wavenet_encoder10_forward.3} parent=0 // pred_fallthru
    _

// kernel: wavenet_encoder10_forward.5
$region0: #{wavenet_encoder10_forward.5}
  #allocation0 [shape = 'u32[]', space=smem, size = 0x4, offset = 0x4, fixed_abs, tag = 'smem constant byte address 0x4 - core index']
  #allocation1 [shape = 'u32[72,128]{1,0:T(1,128)}', space=vmem, size = 0x9000, scoped, tag = 'internal scratch']
  #allocation2 [shape = 'f32[20,44]{1,0:T(8,128)}', space=vmem, size = 0x3000, scoped, tag = 'scratch operand']
  #allocation3 [shape = 'f32[12,20,16]{2,1,0:T(8,128)}', space=vmem, size = 0x24000, scoped, tag = 'scratch operand']
  #allocation4 [shape = 'f32[128,400]{1,0:T(8,128)}', space=vmem, size = 0x40000, scoped, tag = 'scratch operand']
  #allocation5 [shape = 'f32[6,20,16]{2,1,0:T(8,128)}', space=vmem, size = 0x12000, scoped, tag = 'scratch operand']
  #allocation6 [shape = 'f32[32,400]{1,0:T(8,128)}', space=vmem, size = 0x10000, scoped, tag = 'scratch operand']
  %s0 = inlined_call_operand.vmem [shape: f32[2,16,40], index: 0, kind: input, shape index: {}]
  %s1 = inlined_call_operand.vmem [shape: f32[2,16,16], index: 1, kind: input, shape index: {}]
  %s2 = inlined_call_operand.vmem [shape: f32[5,5], index: 2, kind: input, shape index: {}]
  %s3 = inlined_call_operand.vmem [shape: f32[1,16], index: 3, kind: input, shape index: {}]
  %s4 = inlined_call_operand.vmem [shape: f32[1,16], index: 4, kind: input, shape index: {}]
  %s5 = inlined_call_operand.vmem [shape: f32[400,16], index: 5, kind: input, shape index: {}]
  %s6 = inlined_call_operand.vmem [shape: f32[1,16], index: 6, kind: input, shape index: {}]
  %s7 = inlined_call_operand.vmem [shape: f32[400,16], index: 7, kind: input, shape index: {}]
  %s8 = inlined_call_operand.vmem [shape: f32[1,16], index: 8, kind: input, shape index: {}]
  %s9 = inlined_call_operand.vmem [shape: f32[3], index: 9, kind: input, shape index: {}]
  %s10 = inlined_call_operand.vmem [shape: f32[16,16], index: 10, kind: input, shape index: {}]
  %s11 = inlined_call_operand.vmem [shape: f32[1,16], index: 11, kind: input, shape index: {}]
  %s12 = inlined_call_operand.hbm [shape: f32[2,16,16], index: 12, kind: output, shape index: {}]
  %s13 = sld [smem:[#allocation0]]
  $region89: #{wavenet_encoder10_forward.5} parent=0
    _
  %s15 = ssub.s32 1, %s13
  %s16 = scalar_select 0, %s15, %s13
  $region1: #{wavenet_encoder10_forward.5} parent=0
    #allocation7 [shape = 'u8[4096]{0}', space=smem, size = 0x1000, scoped, tag = 'input window, operand 2, single buffered']
    #allocation8 [shape = 's32[2]{0}', space=sflag, size = 0x8, scoped, tag = 'scoped memory for wavenet_encoder10_forward.5']
    #allocation9 [shape = 's32[2]{0}', space=sflag, size = 0x8, scoped, tag = 'scoped memory for wavenet_encoder10_forward.5']
    #allocation10 [shape = 'u8[512]{0}', space=smem, size = 0x200, scoped, tag = 'input window, operand 9, single buffered']
    #allocation11 [shape = 's32[1]{0}', space=sflag, size = 0x4, scoped, tag = 'scoped memory for wavenet_encoder10_forward.5']
    #allocation12 [shape = 'u8[16384]{0}', space=vmem, size = 0x4000, scoped, tag = 'output window, operand 0']
    %17 = vsyncpa [#allocation9], 0
    %18 = vsyncpa [#allocation11], 0
    %19 = vsyncpa [#allocation8], 0
    %s20 = scalar_lea.sflag [#allocation8], 1
    %21 = vsyncpa %s20, 0
    loop: start=0, step=1, limit=4
    $region2: #{wavenet_encoder10_forward.5} parent=1 // loop_pre_header
      _
    $region3: #{wavenet_encoder10_forward.5} parent=1 // loop_header
      %s23 = sphi 0, %s27
      %p24 = scmp.ge.s32.totalorder %s23, 4
      %s33 = sphi 0, %s35
      %s36 = sphi 0, %s33
      %s37 = sphi 0, %s36
      %s53 = sphi 0, %s37
      %s59 = sphi 0, %s61
      %s62 = sphi 0, %s59
      %s63 = sphi 0, %s62
      %s79 = sphi 0, %s63
      %s83 = sphi 0, %s83
      %s85 = sphi 0, %s83
      %s86 = sphi 0, %s85
      %s100 = sphi 0, %s86
      %s104 = sphi 0, %s104
      %s106 = sphi 0, %s104
      %s107 = sphi 0, %s106
      %s121 = sphi 0, %s107
      %s125 = sphi 0, %s125
      %s127 = sphi 0, %s125
      %s128 = sphi 0, %s127
      %s142 = sphi 0, %s128
      %s146 = sphi 0, %s146
      %s148 = sphi 0, %s146
      %s149 = sphi 0, %s148
      %s163 = sphi 0, %s149
      %s167 = sphi 0, %s167
      %s169 = sphi 0, %s167
      %s170 = sphi 0, %s169
      %s184 = sphi 0, %s170
      %s188 = sphi 0, %s188
      %s190 = sphi 0, %s188
      %s191 = sphi 0, %s190
      %s205 = sphi 0, %s191
      %s209 = sphi 0, %s209
      %s211 = sphi 0, %s209
      %s212 = sphi 0, %s211
      %s226 = sphi 0, %s212
      %s230 = sphi 0, %s230
      %s232 = sphi 0, %s230
      %s233 = sphi 0, %s232
      %s247 = sphi 0, %s233
      %s251 = sphi 0, %s251
      %s253 = sphi 0, %s251
      %s254 = sphi 0, %s253
      %s268 = sphi 0, %s254
      %s272 = sphi 0, %s272
      %s274 = sphi 0, %s272
      %s275 = sphi 0, %s274
      %s289 = sphi 0, %s275
      %s295 = sphi 0, %s297
      %s298 = sphi 0, %s295
      %s299 = sphi 0, %s298
      %s315 = sphi 0, %s299
    $region4: #{wavenet_encoder10_forward.5} parent=1 // loop_header_branch
      %26 = sbr.rel (%p24) target = $region8
    $region5: #{wavenet_encoder10_forward.5} parent=1 // loop_body
      %s28 = ssub.s32 %s23, 1
      %s29 = ssub.s32 %s23, 2
      %s30 = sadd.s32 %s23, 1
      %s31 = ssub.s32 %s23, %s30
      %p32 = scmp.eq.s32.totalorder %s31, 0
      %s34 = sadd.s32 %s33, 1
      %s35 = scalar_select %p32, %s33, %s34
      %p38 = pneg %p32
      %p39 = scmp.eq.s32.totalorder %s23, 1
      %p40 = por %p38, %p39
      %p41 = scmp.ne.s32.totalorder %s33, %s36
      %p42 = scmp.eq.s32.totalorder %s23, 0
      %p43 = por %p41, %p42
      %p44 = scmp.ne.s32.totalorder %s33, %s36
      %p45 = scmp.eq.s32.totalorder %s28, 1
      %p46 = por %p44, %p45
      %p47 = scmp.ne.s32.totalorder %s36, %s37
      %p48 = scmp.eq.s32.totalorder %s28, 0
      %p49 = por %p47, %p48
      %p50 = scmp.ne.s32.totalorder %s36, %s37
      %p51 = scmp.eq.s32.totalorder %s29, 1
      %p52 = por %p50, %p51
      %p54 = scmp.ne.s32.totalorder %s37, %s53
      %p55 = scmp.eq.s32.totalorder %s29, 0
      %p56 = por %p54, %p55
      %s57 = ssub.s32 %s23, %s30
      %p58 = scmp.eq.s32.totalorder %s57, 0
      %s60 = sadd.s32 %s59, 1
      %s61 = scalar_select %p58, %s59, %s60
      %p64 = pneg %p58
      %p65 = scmp.eq.s32.totalorder %s23, 1
      %p66 = por %p64, %p65
      %p67 = scmp.ne.s32.totalorder %s59, %s62
      %p68 = scmp.eq.s32.totalorder %s23, 0
      %p69 = por %p67, %p68
      %p70 = scmp.ne.s32.totalorder %s59, %s62
      %p71 = scmp.eq.s32.totalorder %s28, 1
      %p72 = por %p70, %p71
      %p73 = scmp.ne.s32.totalorder %s62, %s63
      %p74 = scmp.eq.s32.totalorder %s28, 0
      %p75 = por %p73, %p74
      %p76 = scmp.ne.s32.totalorder %s62, %s63
      %p77 = scmp.eq.s32.totalorder %s29, 1
      %p78 = por %p76, %p77
      %p80 = scmp.ne.s32.totalorder %s63, %s79
      %p81 = scmp.eq.s32.totalorder %s29, 0
      %p82 = por %p80, %p81
      %s84 = sadd.s32 %s83, 1
      %p87 = scmp.eq.s32.totalorder %s23, 1
      %p88 = scmp.ne.s32.totalorder %s83, %s85
      %p89 = scmp.eq.s32.totalorder %s23, 0
      %p90 = por %p88, %p89
      %p91 = scmp.ne.s32.totalorder %s83, %s85
      %p92 = scmp.eq.s32.totalorder %s28, 1
      %p93 = por %p91, %p92
      %p94 = scmp.ne.s32.totalorder %s85, %s86
      %p95 = scmp.eq.s32.totalorder %s28, 0
      %p96 = por %p94, %p95
      %p97 = scmp.ne.s32.totalorder %s85, %s86
      %p98 = scmp.eq.s32.totalorder %s29, 1
      %p99 = por %p97, %p98
      %p101 = scmp.ne.s32.totalorder %s86, %s100
      %p102 = scmp.eq.s32.totalorder %s29, 0
      %p103 = por %p101, %p102
      %s105 = sadd.s32 %s104, 1
      %p108 = scmp.eq.s32.totalorder %s23, 1
      %p109 = scmp.ne.s32.totalorder %s104, %s106
      %p110 = scmp.eq.s32.totalorder %s23, 0
      %p111 = por %p109, %p110
      %p112 = scmp.ne.s32.totalorder %s104, %s106
      %p113 = scmp.eq.s32.totalorder %s28, 1
      %p114 = por %p112, %p113
      %p115 = scmp.ne.s32.totalorder %s106, %s107
      %p116 = scmp.eq.s32.totalorder %s28, 0
      %p117 = por %p115, %p116
      %p118 = scmp.ne.s32.totalorder %s106, %s107
      %p119 = scmp.eq.s32.totalorder %s29, 1
      %p120 = por %p118, %p119
      %p122 = scmp.ne.s32.totalorder %s107, %s121
      %p123 = scmp.eq.s32.totalorder %s29, 0
      %p124 = por %p122, %p123
      %s126 = sadd.s32 %s125, 1
      %p129 = scmp.eq.s32.totalorder %s23, 1
      %p130 = scmp.ne.s32.totalorder %s125, %s127
      %p131 = scmp.eq.s32.totalorder %s23, 0
      %p132 = por %p130, %p131
      %p133 = scmp.ne.s32.totalorder %s125, %s127
      %p134 = scmp.eq.s32.totalorder %s28, 1
      %p135 = por %p133, %p134
      %p136 = scmp.ne.s32.totalorder %s127, %s128
      %p137 = scmp.eq.s32.totalorder %s28, 0
      %p138 = por %p136, %p137
      %p139 = scmp.ne.s32.totalorder %s127, %s128
      %p140 = scmp.eq.s32.totalorder %s29, 1
      %p141 = por %p139, %p140
      %p143 = scmp.ne.s32.totalorder %s128, %s142
      %p144 = scmp.eq.s32.totalorder %s29, 0
      %p145 = por %p143, %p144
      %s147 = sadd.s32 %s146, 1
      %p150 = scmp.eq.s32.totalorder %s23, 1
      %p151 = scmp.ne.s32.totalorder %s146, %s148
      %p152 = scmp.eq.s32.totalorder %s23, 0
      %p153 = por %p151, %p152
      %p154 = scmp.ne.s32.totalorder %s146, %s148
      %p155 = scmp.eq.s32.totalorder %s28, 1
      %p156 = por %p154, %p155
      %p157 = scmp.ne.s32.totalorder %s148, %s149
      %p158 = scmp.eq.s32.totalorder %s28, 0
      %p159 = por %p157, %p158
      %p160 = scmp.ne.s32.totalorder %s148, %s149
      %p161 = scmp.eq.s32.totalorder %s29, 1
      %p162 = por %p160, %p161
      %p164 = scmp.ne.s32.totalorder %s149, %s163
      %p165 = scmp.eq.s32.totalorder %s29, 0
      %p166 = por %p164, %p165
      %s168 = sadd.s32 %s167, 1
      %p171 = scmp.eq.s32.totalorder %s23, 1
      %p172 = scmp.ne.s32.totalorder %s167, %s169
      %p173 = scmp.eq.s32.totalorder %s23, 0
      %p174 = por %p172, %p173
      %p175 = scmp.ne.s32.totalorder %s167, %s169
      %p176 = scmp.eq.s32.totalorder %s28, 1
      %p177 = por %p175, %p176
      %p178 = scmp.ne.s32.totalorder %s169, %s170
      %p179 = scmp.eq.s32.totalorder %s28, 0
      %p180 = por %p178, %p179
      %p181 = scmp.ne.s32.totalorder %s169, %s170
      %p182 = scmp.eq.s32.totalorder %s29, 1
      %p183 = por %p181, %p182
      %p185 = scmp.ne.s32.totalorder %s170, %s184
      %p186 = scmp.eq.s32.totalorder %s29, 0
      %p187 = por %p185, %p186
      %s189 = sadd.s32 %s188, 1
      %p192 = scmp.eq.s32.totalorder %s23, 1
      %p193 = scmp.ne.s32.totalorder %s188, %s190
      %p194 = scmp.eq.s32.totalorder %s23, 0
      %p195 = por %p193, %p194
      %p196 = scmp.ne.s32.totalorder %s188, %s190
      %p197 = scmp.eq.s32.totalorder %s28, 1
      %p198 = por %p196, %p197
      %p199 = scmp.ne.s32.totalorder %s190, %s191
      %p200 = scmp.eq.s32.totalorder %s28, 0
      %p201 = por %p199, %p200
      %p202 = scmp.ne.s32.totalorder %s190, %s191
      %p203 = scmp.eq.s32.totalorder %s29, 1
      %p204 = por %p202, %p203
      %p206 = scmp.ne.s32.totalorder %s191, %s205
      %p207 = scmp.eq.s32.totalorder %s29, 0
      %p208 = por %p206, %p207
      %s210 = sadd.s32 %s209, 1
      %p213 = scmp.eq.s32.totalorder %s23, 1
      %p214 = scmp.ne.s32.totalorder %s209, %s211
      %p215 = scmp.eq.s32.totalorder %s23, 0
      %p216 = por %p214, %p215
      %p217 = scmp.ne.s32.totalorder %s209, %s211
      %p218 = scmp.eq.s32.totalorder %s28, 1
      %p219 = por %p217, %p218
      %p220 = scmp.ne.s32.totalorder %s211, %s212
      %p221 = scmp.eq.s32.totalorder %s28, 0
      %p222 = por %p220, %p221
      %p223 = scmp.ne.s32.totalorder %s211, %s212
      %p224 = scmp.eq.s32.totalorder %s29, 1
      %p225 = por %p223, %p224
      %p227 = scmp.ne.s32.totalorder %s212, %s226
      %p228 = scmp.eq.s32.totalorder %s29, 0
      %p229 = por %p227, %p228
      %s231 = sadd.s32 %s230, 1
      %p234 = scmp.eq.s32.totalorder %s23, 1
      %p235 = scmp.ne.s32.totalorder %s230, %s232
      %p236 = scmp.eq.s32.totalorder %s23, 0
      %p237 = por %p235, %p236
      %p238 = scmp.ne.s32.totalorder %s230, %s232
      %p239 = scmp.eq.s32.totalorder %s28, 1
      %p240 = por %p238, %p239
      %p241 = scmp.ne.s32.totalorder %s232, %s233
      %p242 = scmp.eq.s32.totalorder %s28, 0
      %p243 = por %p241, %p242
      %p244 = scmp.ne.s32.totalorder %s232, %s233
      %p245 = scmp.eq.s32.totalorder %s29, 1
      %p246 = por %p244, %p245
      %p248 = scmp.ne.s32.totalorder %s233, %s247
      %p249 = scmp.eq.s32.totalorder %s29, 0
      %p250 = por %p248, %p249
      %s252 = sadd.s32 %s251, 1
      %p255 = scmp.eq.s32.totalorder %s23, 1
      %p256 = scmp.ne.s32.totalorder %s251, %s253
      %p257 = scmp.eq.s32.totalorder %s23, 0
      %p258 = por %p256, %p257
      %p259 = scmp.ne.s32.totalorder %s251, %s253
      %p260 = scmp.eq.s32.totalorder %s28, 1
      %p261 = por %p259, %p260
      %p262 = scmp.ne.s32.totalorder %s253, %s254
      %p263 = scmp.eq.s32.totalorder %s28, 0
      %p264 = por %p262, %p263
      %p265 = scmp.ne.s32.totalorder %s253, %s254
      %p266 = scmp.eq.s32.totalorder %s29, 1
      %p267 = por %p265, %p266
      %p269 = scmp.ne.s32.totalorder %s254, %s268
      %p270 = scmp.eq.s32.totalorder %s29, 0
      %p271 = por %p269, %p270
      %s273 = sadd.s32 %s272, 1
      %p276 = scmp.eq.s32.totalorder %s23, 1
      %p277 = scmp.ne.s32.totalorder %s272, %s274
      %p278 = scmp.eq.s32.totalorder %s23, 0
      %p279 = por %p277, %p278
      %p280 = scmp.ne.s32.totalorder %s272, %s274
      %p281 = scmp.eq.s32.totalorder %s28, 1
      %p282 = por %p280, %p281
      %p283 = scmp.ne.s32.totalorder %s274, %s275
      %p284 = scmp.eq.s32.totalorder %s28, 0
      %p285 = por %p283, %p284
      %p286 = scmp.ne.s32.totalorder %s274, %s275
      %p287 = scmp.eq.s32.totalorder %s29, 1
      %p288 = por %p286, %p287
      %p290 = scmp.ne.s32.totalorder %s275, %s289
      %p291 = scmp.eq.s32.totalorder %s29, 0
      %p292 = por %p290, %p291
      %s293 = ssub.s32 %s23, %s30
      %p294 = scmp.eq.s32.totalorder %s293, 0
      %s296 = sadd.s32 %s295, 1
      %s297 = scalar_select %p294, %s295, %s296
      %p300 = pneg %p294
      %p301 = scmp.eq.s32.totalorder %s23, 1
      %p302 = por %p300, %p301
      %p303 = scmp.ne.s32.totalorder %s295, %s298
      %p304 = scmp.eq.s32.totalorder %s23, 0
      %p305 = por %p303, %p304
      %p306 = scmp.ne.s32.totalorder %s295, %s298
      %p307 = scmp.eq.s32.totalorder %s28, 1
      %p308 = por %p306, %p307
      %p309 = scmp.ne.s32.totalorder %s298, %s299
      %p310 = scmp.eq.s32.totalorder %s28, 0
      %p311 = por %p309, %p310
      %p312 = scmp.ne.s32.totalorder %s298, %s299
      %p313 = scmp.eq.s32.totalorder %s29, 1
      %p314 = por %p312, %p313
      %p316 = scmp.ne.s32.totalorder %s299, %s315
      %p317 = scmp.eq.s32.totalorder %s29, 0
      %p318 = por %p316, %p317
      %p319 = scmp.le.s32.totalorder 1, %s23
      %p320 = scmp.lt.s32.totalorder %s23, 3
      %p321 = pnand %p319, %p320
      %p322 = pneg %p321
      // Predicated region
      $region9: #{wavenet_encoder10_forward.5} parent=5 // pred_check
        _
      $region10: #{wavenet_encoder10_forward.5} parent=5 // pred_check_branch
        %324 = sbr.rel (%p321) target = $region12
      $region11: #{wavenet_encoder10_forward.5} parent=5 // pred_region
        %s325 = ssub.s32 %s23, 1
        // Predicated region
        $region13: #{wavenet_encoder10_forward.5} parent=11 // pred_check
          %p326 = pneg %p96
        $region14: #{wavenet_encoder10_forward.5} parent=11 // pred_check_branch
          %328 = sbr.rel (%p326) target = $region16
        $region15: #{wavenet_encoder10_forward.5} parent=11 // pred_region
          %330 = vsyncadd [#allocation9], 0
          %s332 = sshll.u32 %s2, 4
          %s333 = int_to_ptr.vmem [resolvable:$true] %s332
          %335 = dma.vmem_to_smem %s333, 128, [#allocation7], [#allocation9]
        $region16: #{wavenet_encoder10_forward.5} parent=11 // pred_fallthru
          _
        // Predicated region
        $region17: #{wavenet_encoder10_forward.5} parent=11 // pred_check
          %p336 = pneg %p117
        $region18: #{wavenet_encoder10_forward.5} parent=11 // pred_check_branch
          %338 = sbr.rel (%p336) target = $region20
        $region19: #{wavenet_encoder10_forward.5} parent=11 // pred_region
          _
        $region20: #{wavenet_encoder10_forward.5} parent=11 // pred_fallthru
          _
        // Predicated region
        $region21: #{wavenet_encoder10_forward.5} parent=11 // pred_check
          %p339 = pneg %p138
        $region22: #{wavenet_encoder10_forward.5} parent=11 // pred_check_branch
          %341 = sbr.rel (%p339) target = $region24
        $region23: #{wavenet_encoder10_forward.5} parent=11 // pred_region
          _
        $region24: #{wavenet_encoder10_forward.5} parent=11 // pred_fallthru
          _
        // Predicated region
        $region25: #{wavenet_encoder10_forward.5} parent=11 // pred_check
          %p342 = pneg %p159
        $region26: #{wavenet_encoder10_forward.5} parent=11 // pred_check_branch
          %344 = sbr.rel (%p342) target = $region28
        $region27: #{wavenet_encoder10_forward.5} parent=11 // pred_region
          _
        $region28: #{wavenet_encoder10_forward.5} parent=11 // pred_fallthru
          _
        // Predicated region
        $region29: #{wavenet_encoder10_forward.5} parent=11 // pred_check
          %p345 = pneg %p180
        $region30: #{wavenet_encoder10_forward.5} parent=11 // pred_check_branch
          %347 = sbr.rel (%p345) target = $region32
        $region31: #{wavenet_encoder10_forward.5} parent=11 // pred_region
          _
        $region32: #{wavenet_encoder10_forward.5} parent=11 // pred_fallthru
          _
        // Predicated region
        $region33: #{wavenet_encoder10_forward.5} parent=11 // pred_check
          %p348 = pneg %p201
        $region34: #{wavenet_encoder10_forward.5} parent=11 // pred_check_branch
          %350 = sbr.rel (%p348) target = $region36
        $region35: #{wavenet_encoder10_forward.5} parent=11 // pred_region
          _
        $region36: #{wavenet_encoder10_forward.5} parent=11 // pred_fallthru
          _
        // Predicated region
        $region37: #{wavenet_encoder10_forward.5} parent=11 // pred_check
          %p351 = pneg %p222
        $region38: #{wavenet_encoder10_forward.5} parent=11 // pred_check_branch
          %353 = sbr.rel (%p351) target = $region40
        $region39: #{wavenet_encoder10_forward.5} parent=11 // pred_region
          _
        $region40: #{wavenet_encoder10_forward.5} parent=11 // pred_fallthru
          _
        // Predicated region
        $region41: #{wavenet_encoder10_forward.5} parent=11 // pred_check
          %p354 = pneg %p243
        $region42: #{wavenet_encoder10_forward.5} parent=11 // pred_check_branch
          %356 = sbr.rel (%p354) target = $region44
        $region43: #{wavenet_encoder10_forward.5} parent=11 // pred_region
          %358 = vsyncadd [#allocation11], 0
          %s360 = sshll.u32 %s9, 4
          %s361 = int_to_ptr.vmem [resolvable:$true] %s360
          %363 = dma.vmem_to_smem %s361, 16, [#allocation10], [#allocation11]
        $region44: #{wavenet_encoder10_forward.5} parent=11 // pred_fallthru
          _
        // Predicated region
        $region45: #{wavenet_encoder10_forward.5} parent=11 // pred_check
          %p364 = pneg %p264
        $region46: #{wavenet_encoder10_forward.5} parent=11 // pred_check_branch
          %366 = sbr.rel (%p364) target = $region48
        $region47: #{wavenet_encoder10_forward.5} parent=11 // pred_region
          _
        $region48: #{wavenet_encoder10_forward.5} parent=11 // pred_fallthru
          _
        // Predicated region
        $region49: #{wavenet_encoder10_forward.5} parent=11 // pred_check
          %p367 = pneg %p285
        $region50: #{wavenet_encoder10_forward.5} parent=11 // pred_check_branch
          %369 = sbr.rel (%p367) target = $region52
        $region51: #{wavenet_encoder10_forward.5} parent=11 // pred_region
          _
        $region52: #{wavenet_encoder10_forward.5} parent=11 // pred_fallthru
          _
      $region12: #{wavenet_encoder10_forward.5} parent=5 // pred_fallthru
        _
      %p370 = scmp.lt.s32.totalorder %s23, 2
      // Predicated region
      $region53: #{wavenet_encoder10_forward.5} parent=5 // pred_check
        %p371 = pneg %p370
      $region54: #{wavenet_encoder10_forward.5} parent=5 // pred_check_branch
        %373 = sbr.rel (%p371) target = $region56
      $region55: #{wavenet_encoder10_forward.5} parent=5 // pred_region
        // Predicated region
        $region57: #{wavenet_encoder10_forward.5} parent=55 // pred_check
          %p374 = pneg %p43
        $region58: #{wavenet_encoder10_forward.5} parent=55 // pred_check_branch
          %376 = sbr.rel (%p374) target = $region60
        $region59: #{wavenet_encoder10_forward.5} parent=55 // pred_region
          %p377 = scmp.lt.s32.totalorder %s23, 1
          %s378 = scalar_select %p377, %s23, 1
          %s379 = smul.addr %s378, 2
          %s380 = smul.addr %s379, 8
          %s381 = scalar_lea.vmem %s0, %s380
        $region60: #{wavenet_encoder10_forward.5} parent=55 // pred_fallthru
          _
        // Predicated region
        $region61: #{wavenet_encoder10_forward.5} parent=55 // pred_check
          %p382 = pneg %p69
        $region62: #{wavenet_encoder10_forward.5} parent=55 // pred_check_branch
          %384 = sbr.rel (%p382) target = $region64
        $region63: #{wavenet_encoder10_forward.5} parent=55 // pred_region
          %p385 = scmp.lt.s32.totalorder %s23, 1
          %s386 = scalar_select %p385, %s23, 1
          %s387 = smul.addr %s386, 2
          %s388 = smul.addr %s387, 8
          %s389 = scalar_lea.vmem %s1, %s388
        $region64: #{wavenet_encoder10_forward.5} parent=55 // pred_fallthru
          _
      $region56: #{wavenet_encoder10_forward.5} parent=5 // pred_fallthru
        _
      %p390 = scmp.le.s32.totalorder 1, %s23
      %p391 = scmp.lt.s32.totalorder %s23, 3
      %p392 = pnand %p390, %p391
      %p393 = pneg %p392
      // Predicated region
      $region65: #{wavenet_encoder10_forward.5} parent=5 // pred_check
        _
      $region66: #{wavenet_encoder10_forward.5} parent=5 // pred_check_branch
        %395 = sbr.rel (%p392) target = $region68
      $region67: #{wavenet_encoder10_forward.5} parent=5 // pred_region
        %s396 = ssub.s32 %s23, 1
        // Predicated region
        $region69: #{wavenet_encoder10_forward.5} parent=67 // pred_check
          %p397 = pneg %p96
        $region70: #{wavenet_encoder10_forward.5} parent=67 // pred_check_branch
          %399 = sbr.rel (%p397) target = $region72
        $region71: #{wavenet_encoder10_forward.5} parent=67 // pred_region
          %401 = dma.done [#allocation9], 128
        $region72: #{wavenet_encoder10_forward.5} parent=67 // pred_fallthru
          _
        // Predicated region
        $region73: #{wavenet_encoder10_forward.5} parent=67 // pred_check
          %p402 = pneg %p243
        $region74: #{wavenet_encoder10_forward.5} parent=67 // pred_check_branch
          %404 = sbr.rel (%p402) target = $region76
        $region75: #{wavenet_encoder10_forward.5} parent=67 // pred_region
          %406 = dma.done [#allocation11], 16
        $region76: #{wavenet_encoder10_forward.5} parent=67 // pred_fallthru
          _
        %407 = sfence
        %p408 = scmp.lt.s32.totalorder %s28, 1
        %s409 = scalar_select %p408, %s28, 1
        %s410 = smul.addr %s409, 2
        %s411 = smul.addr %s410, 8
        %s412 = scalar_lea.vmem %s0, %s411
        %p413 = pneg %p49
        %p414 = pneg %p46
        %p415 = scmp.lt.s32.totalorder %s28, 1
        %s416 = scalar_select %p415, %s28, 1
        %s417 = smul.addr %s416, 2
        %s418 = smul.addr %s417, 8
        %s419 = scalar_lea.vmem %s1, %s418
        %p420 = pneg %p75
        %p421 = pneg %p72
        %p422 = pneg %p96
        %p423 = pneg %p93
        %p424 = pneg %p117
        %p425 = pneg %p114
        %p426 = pneg %p138
        %p427 = pneg %p135
        %p428 = pneg %p159
        %p429 = pneg %p156
        %p430 = pneg %p180
        %p431 = pneg %p177
        %p432 = pneg %p201
        %p433 = pneg %p198
        %p434 = pneg %p222
        %p435 = pneg %p219
        %p436 = pneg %p243
        %p437 = pneg %p240
        %p438 = pneg %p264
        %p439 = pneg %p261
        %p440 = pneg %p285
        %p441 = pneg %p282
        %p442 = pneg %p311
        %p443 = pneg %p308
        %s444 = sand.u32 %s298, 1
        %s445 = scalar_lea.sflag [#allocation8], %s444
        %s446 = sand.u32 %s298, 1
        %s447 = smul.addr %s446, 16
        %s448 = scalar_lea.vmem [#allocation12], %s447
        %p449 = scmp.lt.s32.totalorder %s28, 1
        %s450 = scalar_select %p449, %s28, 1
        %s451 = smul.addr %s450, 2
        %s452 = smul.addr %s451, 8
        %s453 = scalar_lea.vmem %s0, %s452
        %p454 = scmp.lt.s32.totalorder %s28, 1
        %s455 = scalar_select %p454, %s28, 1
        %s456 = smul.addr %s455, 2
        %s457 = smul.addr %s456, 8
        %s458 = scalar_lea.vmem %s1, %s457
        %vm459 = vcmask 353280
        %460 = vst.msk [vmem:[#allocation2] sm:$0x3] %vm459, 0.0
        %461 = vst.msk [vmem:[#allocation2 + $0x12] sm:$0x3] %vm459, 0.0
        %vm462 = vcmask 15360
        %463 = vst.msk [vmem:[#allocation2] sm:$0xff] %vm462, 0.0
        %464 = vst.msk [vmem:[#allocation2 + $0x8] sm:$0xff] %vm462, 0.0
        %vm465 = vcmask 11264
        %466 = vst.msk [vmem:[#allocation2 + $0x10] sm:$0xf] %vm465, 0.0
        %vm467 = vcmask 359760
        %468 = vst.msk [vmem:[#allocation2] sm:$0xff] %vm467, 0.0
        %469 = vst.msk [vmem:[#allocation2 + $0x8] sm:$0xff] %vm467, 0.0
        %vm470 = vcmask 355664
        %471 = vst.msk [vmem:[#allocation2 + $0x10] sm:$0xf] %vm470, 0.0
        %vm472 = vcmask 130048
        %473 = vst.msk [vmem:[#allocation3] sm:$0xff] %vm472, 0.0
        %474 = vst.msk [vmem:[#allocation3 + $0x8] sm:$0xff] %vm472, 0.0
        %vm475 = vcmask 125952
        %476 = vst.msk [vmem:[#allocation3 + $0x10] sm:$0xf] %vm475, 0.0
        %477 = vst.msk [vmem:[#allocation3 + $0x18] sm:$0xff] %vm472, 0.0
        %478 = vst.msk [vmem:[#allocation3 + $0x20] sm:$0xff] %vm472, 0.0
        %479 = vst.msk [vmem:[#allocation3 + $0x28] sm:$0xf] %vm475, 0.0
        %s480 = scalar_lea.vmem [#allocation3], 240
        %481 = vst.msk [vmem:[%s480] sm:$0xff] %vm472, 0.0
        %482 = vst.msk [vmem:[%s480 + $0x8] sm:$0xff] %vm472, 0.0
        %483 = vst.msk [vmem:[%s480 + $0x10] sm:$0xf] %vm475, 0.0
        %484 = vst.msk [vmem:[%s480 + $0x18] sm:$0xff] %vm472, 0.0
        %485 = vst.msk [vmem:[%s480 + $0x20] sm:$0xff] %vm472, 0.0
        %486 = vst.msk [vmem:[%s480 + $0x28] sm:$0xf] %vm475, 0.0
        %vm487 = vcmask 123904
        %488 = vst.msk [vmem:[#allocation3] sm:$0x3] %vm487, 0.0
        %489 = vst.msk [vmem:[#allocation3 + $0x18] sm:$0x3] %vm487, 0.0
        %490 = vst.msk [vmem:[#allocation3 + $0x30] sm:$0x3] %vm487, 0.0
        %491 = vst.msk [vmem:[#allocation3 + $0x48] sm:$0x3] %vm487, 0.0
        %492 = vst.msk [vmem:[#allocation3 + $0x60] sm:$0x3] %vm487, 0.0
        %493 = vst.msk [vmem:[#allocation3 + $0x78] sm:$0x3] %vm487, 0.0
        %494 = vst.msk [vmem:[#allocation3 + $0x90] sm:$0x3] %vm487, 0.0
        %495 = vst.msk [vmem:[#allocation3 + $0xa8] sm:$0x3] %vm487, 0.0
        %496 = vst.msk [vmem:[#allocation3 + $0xc0] sm:$0x3] %vm487, 0.0
        %497 = vst.msk [vmem:[#allocation3 + $0xd8] sm:$0x3] %vm487, 0.0
        %498 = vst.msk [vmem:[#allocation3 + $0xf0] sm:$0x3] %vm487, 0.0
        %499 = vst.msk [vmem:[#allocation3 + $0x108] sm:$0x3] %vm487, 0.0
        %500 = vst.msk [vmem:[#allocation3 + $0x12] sm:$0x3] %vm487, 0.0
        %501 = vst.msk [vmem:[#allocation3 + $0x2a] sm:$0x3] %vm487, 0.0
        %502 = vst.msk [vmem:[#allocation3 + $0x42] sm:$0x3] %vm487, 0.0
        %503 = vst.msk [vmem:[#allocation3 + $0x5a] sm:$0x3] %vm487, 0.0
        %504 = vst.msk [vmem:[#allocation3 + $0x72] sm:$0x3] %vm487, 0.0
        %505 = vst.msk [vmem:[#allocation3 + $0x8a] sm:$0x3] %vm487, 0.0
        %506 = vst.msk [vmem:[#allocation3 + $0xa2] sm:$0x3] %vm487, 0.0
        %507 = vst.msk [vmem:[#allocation3 + $0xba] sm:$0x3] %vm487, 0.0
        %508 = vst.msk [vmem:[#allocation3 + $0xd2] sm:$0x3] %vm487, 0.0
        %509 = vst.msk [vmem:[#allocation3 + $0xea] sm:$0x3] %vm487, 0.0
        %510 = vst.msk [vmem:[#allocation3 + $0x102] sm:$0x3] %vm487, 0.0
        %511 = vst.msk [vmem:[#allocation3 + $0x11a] sm:$0x3] %vm487, 0.0
        %512 = vst.msk [vmem:[#allocation5] sm:$0xff] %vm472, 0.0
        %513 = vst.msk [vmem:[#allocation5 + $0x8] sm:$0xff] %vm472, 0.0
        %514 = vst.msk [vmem:[#allocation5 + $0x10] sm:$0xf] %vm475, 0.0
        %515 = vst.msk [vmem:[#allocation5 + $0x18] sm:$0xff] %vm472, 0.0
        %516 = vst.msk [vmem:[#allocation5 + $0x20] sm:$0xff] %vm472, 0.0
        %517 = vst.msk [vmem:[#allocation5 + $0x28] sm:$0xf] %vm475, 0.0
        %s518 = scalar_lea.vmem [#allocation5], 96
        %519 = vst.msk [vmem:[%s518] sm:$0xff] %vm472, 0.0
        %520 = vst.msk [vmem:[%s518 + $0x8] sm:$0xff] %vm472, 0.0
        %521 = vst.msk [vmem:[%s518 + $0x10] sm:$0xf] %vm475, 0.0
        %522 = vst.msk [vmem:[%s518 + $0x18] sm:$0xff] %vm472, 0.0
        %523 = vst.msk [vmem:[%s518 + $0x20] sm:$0xff] %vm472, 0.0
        %524 = vst.msk [vmem:[%s518 + $0x28] sm:$0xf] %vm475, 0.0
        %525 = vst.msk [vmem:[#allocation5] sm:$0x3] %vm487, 0.0
        %526 = vst.msk [vmem:[#allocation5 + $0x18] sm:$0x3] %vm487, 0.0
        %527 = vst.msk [vmem:[#allocation5 + $0x30] sm:$0x3] %vm487, 0.0
        %528 = vst.msk [vmem:[#allocation5 + $0x48] sm:$0x3] %vm487, 0.0
        %529 = vst.msk [vmem:[#allocation5 + $0x60] sm:$0x3] %vm487, 0.0
        %530 = vst.msk [vmem:[#allocation5 + $0x78] sm:$0x3] %vm487, 0.0
        %531 = vst.msk [vmem:[#allocation5 + $0x12] sm:$0x3] %vm487, 0.0
        %532 = vst.msk [vmem:[#allocation5 + $0x2a] sm:$0x3] %vm487, 0.0
        %533 = vst.msk [vmem:[#allocation5 + $0x42] sm:$0x3] %vm487, 0.0
        %534 = vst.msk [vmem:[#allocation5 + $0x5a] sm:$0x3] %vm487, 0.0
        %535 = vst.msk [vmem:[#allocation5 + $0x72] sm:$0x3] %vm487, 0.0
        %536 = vst.msk [vmem:[#allocation5 + $0x8a] sm:$0x3] %vm487, 0.0
        %v537 = vld [vmem:[%s453] sm:$0xff]
        %v538 = vld [vmem:[%s453 + $0x8] sm:$0xff]
        %541 = vrot.lane.b32.xlu0 %v537, 2
        %v542 = vpop.permute.xlu0 %541
        %543 = vrot.lane.b32.xlu0 %v538, 2
        %v544 = vpop.permute.xlu0 %543
        %vm547 = vcmask 343056
        %548 = vst.msk [vmem:[#allocation2 + $0x2] sm:$0xff] %vm547, %v542
        %549 = vst.msk [vmem:[#allocation2 + $0xa] sm:$0xff] %vm547, %v544
        %v550 = vld [vmem:[#allocation2] sm:$0xff]
        %v551 = vld [vmem:[#allocation2 + $0x8] sm:$0xff]
        %s552 = sld [smem:[#allocation7]]
        %v553 = vstv %s552
        %v554 = vmul.f32 %v550, %v553
        %v555 = vmul.f32 %v551, %v553
        %s556 = sld [smem:[#allocation7 + $0x1]]
        %v557 = vstv %s556
        %v558 = vmul.f32 %v550, %v557
        %v559 = vmul.f32 %v551, %v557
        %562 = vrot.lane.b32.xlu0 %v558, 127
        %v563 = vpop.permute.xlu0 %562
        %564 = vrot.lane.b32.xlu0 %v559, 127
        %v565 = vpop.permute.xlu0 %564
        %v568 = vadd.f32 %v554, %v563
        %v569 = vadd.f32 %v555, %v565
        %s570 = sld [smem:[#allocation7 + $0x2]]
        %v571 = vstv %s570
        %v572 = vmul.f32 %v550, %v571
        %v573 = vmul.f32 %v551, %v571
        %576 = vrot.lane.b32.xlu0 %v572, 126
        %v577 = vpop.permute.xlu0 %576
        %578 = vrot.lane.b32.xlu0 %v573, 126
        %v579 = vpop.permute.xlu0 %578
        %v582 = vadd.f32 %v568, %v577
        %v583 = vadd.f32 %v569, %v579
        %s584 = sld [smem:[#allocation7 + $0x3]]
        %v585 = vstv %s584
        %v586 = vmul.f32 %v550, %v585
        %v587 = vmul.f32 %v551, %v585
        %590 = vrot.lane.b32.xlu0 %v586, 125
        %v591 = vpop.permute.xlu0 %590
        %592 = vrot.lane.b32.xlu0 %v587, 125
        %v593 = vpop.permute.xlu0 %592
        %v596 = vadd.f32 %v582, %v591
        %v597 = vadd.f32 %v583, %v593
        %s598 = sld [smem:[#allocation7 + $0x4]]
        %v599 = vstv %s598
        %v600 = vmul.f32 %v550, %v599
        %v601 = vmul.f32 %v551, %v599
        %604 = vrot.lane.b32.xlu0 %v600, 124
        %v605 = vpop.permute.xlu0 %604
        %606 = vrot.lane.b32.xlu0 %v601, 124
        %v607 = vpop.permute.xlu0 %606
        %v610 = vadd.f32 %v596, %v605
        %v611 = vadd.f32 %v597, %v607
        %v612 = vld [vmem:[#allocation2 + $0x1] sm:$0xff]
        %v613 = vld [vmem:[#allocation2 + $0x9] sm:$0xff]
        %s614 = sld [smem:[#allocation7 + $0x80]]
        %v615 = vstv %s614
        %v616 = vmul.f32 %v612, %v615
        %v617 = vmul.f32 %v613, %v615
        %v618 = vadd.f32 %v610, %v616
        %v619 = vadd.f32 %v611, %v617
        %s620 = sld [smem:[#allocation7 + $0x81]]
        %v621 = vstv %s620
        %v622 = vmul.f32 %v612, %v621
        %v623 = vmul.f32 %v613, %v621
        %626 = vrot.lane.b32.xlu0 %v622, 127
        %v627 = vpop.permute.xlu0 %626
        %628 = vrot.lane.b32.xlu0 %v623, 127
        %v629 = vpop.permute.xlu0 %628
        %v632 = vadd.f32 %v618, %v627
        %v633 = vadd.f32 %v619, %v629
        %s634 = sld [smem:[#allocation7 + $0x82]]
        %v635 = vstv %s634
        %v636 = vmul.f32 %v612, %v635
        %v637 = vmul.f32 %v613, %v635
        %640 = vrot.lane.b32.xlu0 %v636, 126
        %v641 = vpop.permute.xlu0 %640
        %642 = vrot.lane.b32.xlu0 %v637, 126
        %v643 = vpop.permute.xlu0 %642
        %v646 = vadd.f32 %v632, %v641
        %v647 = vadd.f32 %v633, %v643
        %s648 = sld [smem:[#allocation7 + $0x83]]
        %v649 = vstv %s648
        %v650 = vmul.f32 %v612, %v649
        %v651 = vmul.f32 %v613, %v649
        %654 = vrot.lane.b32.xlu0 %v650, 125
        %v655 = vpop.permute.xlu0 %654
        %656 = vrot.lane.b32.xlu0 %v651, 125
        %v657 = vpop.permute.xlu0 %656
        %v660 = vadd.f32 %v646, %v655
        %v661 = vadd.f32 %v647, %v657
        %s662 = sld [smem:[#allocation7 + $0x84]]
        %v663 = vstv %s662
        %v664 = vmul.f32 %v612, %v663
        %v665 = vmul.f32 %v613, %v663
        %668 = vrot.lane.b32.xlu0 %v664, 124
        %v669 = vpop.permute.xlu0 %668
        %670 = vrot.lane.b32.xlu0 %v665, 124
        %v671 = vpop.permute.xlu0 %670
        %v674 = vadd.f32 %v660, %v669
        %v675 = vadd.f32 %v661, %v671
        %v676 = vld [vmem:[#allocation2 + $0x2] sm:$0xff]
        %v677 = vld [vmem:[#allocation2 + $0xa] sm:$0xff]
        %s678 = sld [smem:[#allocation7 + $0x100]]
        %v679 = vstv %s678
        %v680 = vmul.f32 %v676, %v679
        %v681 = vmul.f32 %v677, %v679
        %v682 = vadd.f32 %v674, %v680
        %v683 = vadd.f32 %v675, %v681
        %s684 = sld [smem:[#allocation7 + $0x101]]
        %v685 = vstv %s684
        %v686 = vmul.f32 %v676, %v685
        %v687 = vmul.f32 %v677, %v685
        %690 = vrot.lane.b32.xlu0 %v686, 127
        %v691 = vpop.permute.xlu0 %690
        %692 = vrot.lane.b32.xlu0 %v687, 127
        %v693 = vpop.permute.xlu0 %692
        %v696 = vadd.f32 %v682, %v691
        %v697 = vadd.f32 %v683, %v693
        %s698 = sld [smem:[#allocation7 + $0x102]]
        %v699 = vstv %s698
        %v700 = vmul.f32 %v676, %v699
        %v701 = vmul.f32 %v677, %v699
        %704 = vrot.lane.b32.xlu0 %v700, 126
        %v705 = vpop.permute.xlu0 %704
        %706 = vrot.lane.b32.xlu0 %v701, 126
        %v707 = vpop.permute.xlu0 %706
        %v710 = vadd.f32 %v696, %v705
        %v711 = vadd.f32 %v697, %v707
        %s712 = sld [smem:[#allocation7 + $0x103]]
        %v713 = vstv %s712
        %v714 = vmul.f32 %v676, %v713
        %v715 = vmul.f32 %v677, %v713
        %718 = vrot.lane.b32.xlu0 %v714, 125
        %v719 = vpop.permute.xlu0 %718
        %720 = vrot.lane.b32.xlu0 %v715, 125
        %v721 = vpop.permute.xlu0 %720
        %v724 = vadd.f32 %v710, %v719
        %v725 = vadd.f32 %v711, %v721
        %s726 = sld [smem:[#allocation7 + $0x104]]
        %v727 = vstv %s726
        %v728 = vmul.f32 %v676, %v727
        %v729 = vmul.f32 %v677, %v727
        %732 = vrot.lane.b32.xlu0 %v728, 124
        %v733 = vpop.permute.xlu0 %732
        %734 = vrot.lane.b32.xlu0 %v729, 124
        %v735 = vpop.permute.xlu0 %734
        %v738 = vadd.f32 %v724, %v733
        %v739 = vadd.f32 %v725, %v735
        %v740 = vld [vmem:[#allocation2 + $0x3] sm:$0xff]
        %v741 = vld [vmem:[#allocation2 + $0xb] sm:$0xff]
        %s742 = sld [smem:[#allocation7 + $0x180]]
        %v743 = vstv %s742
        %v744 = vmul.f32 %v740, %v743
        %v745 = vmul.f32 %v741, %v743
        %v746 = vadd.f32 %v738, %v744
        %v747 = vadd.f32 %v739, %v745
        %s748 = sld [smem:[#allocation7 + $0x181]]
        %v749 = vstv %s748
        %v750 = vmul.f32 %v740, %v749
        %v751 = vmul.f32 %v741, %v749
        %754 = vrot.lane.b32.xlu0 %v750, 127
        %v755 = vpop.permute.xlu0 %754
        %756 = vrot.lane.b32.xlu0 %v751, 127
        %v757 = vpop.permute.xlu0 %756
        %v760 = vadd.f32 %v746, %v755
        %v761 = vadd.f32 %v747, %v757
        %s762 = sld [smem:[#allocation7 + $0x182]]
        %v763 = vstv %s762
        %v764 = vmul.f32 %v740, %v763
        %v765 = vmul.f32 %v741, %v763
        %768 = vrot.lane.b32.xlu0 %v764, 126
        %v769 = vpop.permute.xlu0 %768
        %770 = vrot.lane.b32.xlu0 %v765, 126
        %v771 = vpop.permute.xlu0 %770
        %v774 = vadd.f32 %v760, %v769
        %v775 = vadd.f32 %v761, %v771
        %s776 = sld [smem:[#allocation7 + $0x183]]
        %v777 = vstv %s776
        %v778 = vmul.f32 %v740, %v777
        %v779 = vmul.f32 %v741, %v777
        %782 = vrot.lane.b32.xlu0 %v778, 125
        %v783 = vpop.permute.xlu0 %782
        %784 = vrot.lane.b32.xlu0 %v779, 125
        %v785 = vpop.permute.xlu0 %784
        %v788 = vadd.f32 %v774, %v783
        %v789 = vadd.f32 %v775, %v785
        %s790 = sld [smem:[#allocation7 + $0x184]]
        %v791 = vstv %s790
        %v792 = vmul.f32 %v740, %v791
        %v793 = vmul.f32 %v741, %v791
        %796 = vrot.lane.b32.xlu0 %v792, 124
        %v797 = vpop.permute.xlu0 %796
        %798 = vrot.lane.b32.xlu0 %v793, 124
        %v799 = vpop.permute.xlu0 %798
        %v802 = vadd.f32 %v788, %v797
        %v803 = vadd.f32 %v789, %v799
        %v804 = vld [vmem:[#allocation2 + $0x4] sm:$0xff]
        %v805 = vld [vmem:[#allocation2 + $0xc] sm:$0xff]
        %s806 = sld [smem:[#allocation7 + $0x200]]
        %v807 = vstv %s806
        %v808 = vmul.f32 %v804, %v807
        %v809 = vmul.f32 %v805, %v807
        %v810 = vadd.f32 %v802, %v808
        %v811 = vadd.f32 %v803, %v809
        %s812 = sld [smem:[#allocation7 + $0x201]]
        %v813 = vstv %s812
        %v814 = vmul.f32 %v804, %v813
        %v815 = vmul.f32 %v805, %v813
        %818 = vrot.lane.b32.xlu0 %v814, 127
        %v819 = vpop.permute.xlu0 %818
        %820 = vrot.lane.b32.xlu0 %v815, 127
        %v821 = vpop.permute.xlu0 %820
        %v824 = vadd.f32 %v810, %v819
        %v825 = vadd.f32 %v811, %v821
        %s826 = sld [smem:[#allocation7 + $0x202]]
        %v827 = vstv %s826
        %v828 = vmul.f32 %v804, %v827
        %v829 = vmul.f32 %v805, %v827
        %832 = vrot.lane.b32.xlu0 %v828, 126
        %v833 = vpop.permute.xlu0 %832
        %834 = vrot.lane.b32.xlu0 %v829, 126
        %v835 = vpop.permute.xlu0 %834
        %v838 = vadd.f32 %v824, %v833
        %v839 = vadd.f32 %v825, %v835
        %s840 = sld [smem:[#allocation7 + $0x203]]
        %v841 = vstv %s840
        %v842 = vmul.f32 %v804, %v841
        %v843 = vmul.f32 %v805, %v841
        %846 = vrot.lane.b32.xlu0 %v842, 125
        %v847 = vpop.permute.xlu0 %846
        %848 = vrot.lane.b32.xlu0 %v843, 125
        %v849 = vpop.permute.xlu0 %848
        %v852 = vadd.f32 %v838, %v847
        %v853 = vadd.f32 %v839, %v849
        %s854 = sld [smem:[#allocation7 + $0x204]]
        %v855 = vstv %s854
        %v856 = vmul.f32 %v804, %v855
        %v857 = vmul.f32 %v805, %v855
        %860 = vrot.lane.b32.xlu0 %v856, 124
        %v861 = vpop.permute.xlu0 %860
        %862 = vrot.lane.b32.xlu0 %v857, 124
        %v863 = vpop.permute.xlu0 %862
        %v866 = vadd.f32 %v852, %v861
        %v867 = vadd.f32 %v853, %v863
        %v868 = vld [vmem:[%s3] sm:$0x1]
        %v869 = vld [vmem:[%s4] sm:$0x1]
        %vm870 = vcmp.ge.f32.partialorder %v868, 0.0
        %873 = vrot.lane.b32.xlu0 %v866, 127
        %v874 = vpop.permute.xlu0 %873
        %875 = vrot.lane.b32.xlu0 %v867, 127
        %v876 = vpop.permute.xlu0 %875
        %v879 = vmax.f32 %v866, %v874
        %v880 = vmax.f32 %v867, %v876
        %v881 = vmin.f32 %v866, %v874
        %v882 = vmin.f32 %v867, %v876
        %883 = vrot.lane.b32.xlu0 %v866, 126
        %v884 = vpop.permute.xlu0 %883
        %885 = vrot.lane.b32.xlu0 %v867, 126
        %v886 = vpop.permute.xlu0 %885
        %v889 = vmax.f32 %v879, %v884
        %v890 = vmax.f32 %v880, %v886
        %v891 = vmin.f32 %v881, %v884
        %v892 = vmin.f32 %v882, %v886
        %893 = vrot.lane.b32.xlu0 %v866, 125
        %v894 = vpop.permute.xlu0 %893
        %895 = vrot.lane.b32.xlu0 %v867, 125
        %v896 = vpop.permute.xlu0 %895
        %v899 = vmax.f32 %v889, %v894
        %v900 = vmax.f32 %v890, %v896
        %v901 = vmin.f32 %v891, %v894
        %v902 = vmin.f32 %v892, %v896
        %903 = vrot.lane.b32.xlu0 %v866, 124
        %v904 = vpop.permute.xlu0 %903
        %905 = vrot.lane.b32.xlu0 %v867, 124
        %v906 = vpop.permute.xlu0 %905
        %v909 = vmax.f32 %v899, %v904
        %v910 = vmax.f32 %v900, %v906
        %v911 = vmin.f32 %v901, %v904
        %v912 = vmin.f32 %v902, %v906
        %914 = vset.pattern.permute.xlu0 0
        %915 = vperm.xlu0 %914, %v909
        %v916 = vpop.permute.xlu0 %915
        %919 = vset.pattern.permute.xlu0 0
        %920 = vperm.xlu0 %919, %v910
        %v921 = vpop.permute.xlu0 %920
        %v924 = vperm.slane %v868, 0
        %v926 = vmul.f32 %v916, %v924
        %v927 = vmul.f32 %v921, %v924
        %929 = vset.pattern.permute.xlu0 0
        %930 = vperm.xlu0 %929, %v911
        %v931 = vpop.permute.xlu0 %930
        %934 = vset.pattern.permute.xlu0 0
        %935 = vperm.xlu0 %934, %v912
        %v936 = vpop.permute.xlu0 %935
        %v938 = vmul.f32 %v931, %v924
        %v939 = vmul.f32 %v936, %v924
        %v940 = vsel %vm870, 1, 0
        %v941 = vperm.slane %v940, 0
        %vm942 = vcmp.eq.s32.totalorder %v941, 1
        %v943 = vsel %vm942, %v926, %v938
        %v944 = vsel %vm942, %v927, %v939
        %v946 = vperm.slane %v869, 0
        %v948 = vadd.f32 %v943, %v946
        %v949 = vadd.f32 %v944, %v946
        %v950 = vmax.f32 %v948, 0.0
        %v951 = vmax.f32 %v949, 0.0
        %s952 = scalar_lea.vmem [#allocation3], 48
        %953 = vst.msk [vmem:[%s952 + $0x2] sm:$0xff] %vm472, %v950
        %954 = vst.msk [vmem:[%s952 + $0xa] sm:$0xff] %vm472, %v951
        %955 = vset.pattern.permute.xlu0 5
        %956 = vperm.xlu0 %955, %v909
        %v957 = vpop.permute.xlu0 %956
        %959 = vset.pattern.permute.xlu0 5
        %960 = vperm.xlu0 %959, %v910
        %v961 = vpop.permute.xlu0 %960
        %v963 = vmul.f32 %v957, %v924
        %v964 = vmul.f32 %v961, %v924
        %965 = vset.pattern.permute.xlu0 5
        %966 = vperm.xlu0 %965, %v911
        %v967 = vpop.permute.xlu0 %966
        %969 = vset.pattern.permute.xlu0 5
        %970 = vperm.xlu0 %969, %v912
        %v971 = vpop.permute.xlu0 %970
        %v973 = vmul.f32 %v967, %v924
        %v974 = vmul.f32 %v971, %v924
        %v975 = vsel %vm942, %v963, %v973
        %v976 = vsel %vm942, %v964, %v974
        %v977 = vadd.f32 %v975, %v946
        %v978 = vadd.f32 %v976, %v946
        %v979 = vmax.f32 %v977, 0.0
        %v980 = vmax.f32 %v978, 0.0
        %s981 = scalar_lea.vmem [#allocation3], 72
        %982 = vst.msk [vmem:[%s981 + $0x2] sm:$0xff] %vm472, %v979
        %983 = vst.msk [vmem:[%s981 + $0xa] sm:$0xff] %vm472, %v980
        %984 = vset.pattern.permute.xlu0 10
        %985 = vperm.xlu0 %984, %v909
        %v986 = vpop.permute.xlu0 %985
        %988 = vset.pattern.permute.xlu0 10
        %989 = vperm.xlu0 %988, %v910
        %v990 = vpop.permute.xlu0 %989
        %v992 = vmul.f32 %v986, %v924
        %v993 = vmul.f32 %v990, %v924
        %994 = vset.pattern.permute.xlu0 10
        %995 = vperm.xlu0 %994, %v911
        %v996 = vpop.permute.xlu0 %995
        %998 = vset.pattern.permute.xlu0 10
        %999 = vperm.xlu0 %998, %v912
        %v1000 = vpop.permute.xlu0 %999
        %v1002 = vmul.f32 %v996, %v924
        %v1003 = vmul.f32 %v1000, %v924
        %v1004 = vsel %vm942, %v992, %v1002
        %v1005 = vsel %vm942, %v993, %v1003
        %v1006 = vadd.f32 %v1004, %v946
        %v1007 = vadd.f32 %v1005, %v946
        %v1008 = vmax.f32 %v1006, 0.0
        %v1009 = vmax.f32 %v1007, 0.0
        %s1010 = scalar_lea.vmem [#allocation3], 96
        %1011 = vst.msk [vmem:[%s1010 + $0x2] sm:$0xff] %vm472, %v1008
        %1012 = vst.msk [vmem:[%s1010 + $0xa] sm:$0xff] %vm472, %v1009
        %1013 = vset.pattern.permute.xlu0 15
        %1014 = vperm.xlu0 %1013, %v909
        %v1015 = vpop.permute.xlu0 %1014
        %1017 = vset.pattern.permute.xlu0 15
        %1018 = vperm.xlu0 %1017, %v910
        %v1019 = vpop.permute.xlu0 %1018
        %v1021 = vmul.f32 %v1015, %v924
        %v1022 = vmul.f32 %v1019, %v924
        %1023 = vset.pattern.permute.xlu0 15
        %1024 = vperm.xlu0 %1023, %v911
        %v1025 = vpop.permute.xlu0 %1024
        %1027 = vset.pattern.permute.xlu0 15
        %1028 = vperm.xlu0 %1027, %v912
        %v1029 = vpop.permute.xlu0 %1028
        %v1031 = vmul.f32 %v1025, %v924
        %v1032 = vmul.f32 %v1029, %v924
        %v1033 = vsel %vm942, %v1021, %v1031
        %v1034 = vsel %vm942, %v1022, %v1032
        %v1035 = vadd.f32 %v1033, %v946
        %v1036 = vadd.f32 %v1034, %v946
        %v1037 = vmax.f32 %v1035, 0.0
        %v1038 = vmax.f32 %v1036, 0.0
        %s1039 = scalar_lea.vmem [#allocation3], 120
        %1040 = vst.msk [vmem:[%s1039 + $0x2] sm:$0xff] %vm472, %v1037
        %1041 = vst.msk [vmem:[%s1039 + $0xa] sm:$0xff] %vm472, %v1038
        %1042 = vset.pattern.permute.xlu0 20
        %1043 = vperm.xlu0 %1042, %v909
        %v1044 = vpop.permute.xlu0 %1043
        %1046 = vset.pattern.permute.xlu0 20
        %1047 = vperm.xlu0 %1046, %v910
        %v1048 = vpop.permute.xlu0 %1047
        %v1050 = vmul.f32 %v1044, %v924
        %v1051 = vmul.f32 %v1048, %v924
        %1052 = vset.pattern.permute.xlu0 20
        %1053 = vperm.xlu0 %1052, %v911
        %v1054 = vpop.permute.xlu0 %1053
        %1056 = vset.pattern.permute.xlu0 20
        %1057 = vperm.xlu0 %1056, %v912
        %v1058 = vpop.permute.xlu0 %1057
        %v1060 = vmul.f32 %v1054, %v924
        %v1061 = vmul.f32 %v1058, %v924
        %v1062 = vsel %vm942, %v1050, %v1060
        %v1063 = vsel %vm942, %v1051, %v1061
        %v1064 = vadd.f32 %v1062, %v946
        %v1065 = vadd.f32 %v1063, %v946
        %v1066 = vmax.f32 %v1064, 0.0
        %v1067 = vmax.f32 %v1065, 0.0
        %s1068 = scalar_lea.vmem [#allocation3], 144
        %1069 = vst.msk [vmem:[%s1068 + $0x2] sm:$0xff] %vm472, %v1066
        %1070 = vst.msk [vmem:[%s1068 + $0xa] sm:$0xff] %vm472, %v1067
        %1071 = vset.pattern.permute.xlu0 25
        %1072 = vperm.xlu0 %1071, %v909
        %v1073 = vpop.permute.xlu0 %1072
        %1075 = vset.pattern.permute.xlu0 25
        %1076 = vperm.xlu0 %1075, %v910
        %v1077 = vpop.permute.xlu0 %1076
        %v1079 = vmul.f32 %v1073, %v924
        %v1080 = vmul.f32 %v1077, %v924
        %1081 = vset.pattern.permute.xlu0 25
        %1082 = vperm.xlu0 %1081, %v911
        %v1083 = vpop.permute.xlu0 %1082
        %1085 = vset.pattern.permute.xlu0 25
        %1086 = vperm.xlu0 %1085, %v912
        %v1087 = vpop.permute.xlu0 %1086
        %v1089 = vmul.f32 %v1083, %v924
        %v1090 = vmul.f32 %v1087, %v924
        %v1091 = vsel %vm942, %v1079, %v1089
        %v1092 = vsel %vm942, %v1080, %v1090
        %v1093 = vadd.f32 %v1091, %v946
        %v1094 = vadd.f32 %v1092, %v946
        %v1095 = vmax.f32 %v1093, 0.0
        %v1096 = vmax.f32 %v1094, 0.0
        %s1097 = scalar_lea.vmem [#allocation3], 168
        %1098 = vst.msk [vmem:[%s1097 + $0x2] sm:$0xff] %vm472, %v1095
        %1099 = vst.msk [vmem:[%s1097 + $0xa] sm:$0xff] %vm472, %v1096
        %1100 = vset.pattern.permute.xlu0 30
        %1101 = vperm.xlu0 %1100, %v909
        %v1102 = vpop.permute.xlu0 %1101
        %1104 = vset.pattern.permute.xlu0 30
        %1105 = vperm.xlu0 %1104, %v910
        %v1106 = vpop.permute.xlu0 %1105
        %v1108 = vmul.f32 %v1102, %v924
        %v1109 = vmul.f32 %v1106, %v924
        %1110 = vset.pattern.permute.xlu0 30
        %1111 = vperm.xlu0 %1110, %v911
        %v1112 = vpop.permute.xlu0 %1111
        %1114 = vset.pattern.permute.xlu0 30
        %1115 = vperm.xlu0 %1114, %v912
        %v1116 = vpop.permute.xlu0 %1115
        %v1118 = vmul.f32 %v1112, %v924
        %v1119 = vmul.f32 %v1116, %v924
        %v1120 = vsel %vm942, %v1108, %v1118
        %v1121 = vsel %vm942, %v1109, %v1119
        %v1122 = vadd.f32 %v1120, %v946
        %v1123 = vadd.f32 %v1121, %v946
        %v1124 = vmax.f32 %v1122, 0.0
        %v1125 = vmax.f32 %v1123, 0.0
        %s1126 = scalar_lea.vmem [#allocation3], 192
        %1127 = vst.msk [vmem:[%s1126 + $0x2] sm:$0xff] %vm472, %v1124
        %1128 = vst.msk [vmem:[%s1126 + $0xa] sm:$0xff] %vm472, %v1125
        %1129 = vset.pattern.permute.xlu0 35
        %1130 = vperm.xlu0 %1129, %v909
        %v1131 = vpop.permute.xlu0 %1130
        %1133 = vset.pattern.permute.xlu0 35
        %1134 = vperm.xlu0 %1133, %v910
        %v1135 = vpop.permute.xlu0 %1134
        %v1137 = vmul.f32 %v1131, %v924
        %v1138 = vmul.f32 %v1135, %v924
        %1139 = vset.pattern.permute.xlu0 35
        %1140 = vperm.xlu0 %1139, %v911
        %v1141 = vpop.permute.xlu0 %1140
        %1143 = vset.pattern.permute.xlu0 35
        %1144 = vperm.xlu0 %1143, %v912
        %v1145 = vpop.permute.xlu0 %1144
        %v1147 = vmul.f32 %v1141, %v924
        %v1148 = vmul.f32 %v1145, %v924
        %v1149 = vsel %vm942, %v1137, %v1147
        %v1150 = vsel %vm942, %v1138, %v1148
        %v1151 = vadd.f32 %v1149, %v946
        %v1152 = vadd.f32 %v1150, %v946
        %v1153 = vmax.f32 %v1151, 0.0
        %v1154 = vmax.f32 %v1152, 0.0
        %s1155 = scalar_lea.vmem [#allocation3], 216
        %1156 = vst.msk [vmem:[%s1155 + $0x2] sm:$0xff] %vm472, %v1153
        %1157 = vst.msk [vmem:[%s1155 + $0xa] sm:$0xff] %vm472, %v1154
        %v1158 = vld [vmem:[#allocation3] sm:$0xff]
        %v1159 = vld [vmem:[#allocation3 + $0x8] sm:$0xff]
        %v1160 = vld [vmem:[#allocation3 + $0x18] sm:$0xff]
        %v1161 = vld [vmem:[#allocation3 + $0x20] sm:$0xff]
        %v1162 = vld [vmem:[#allocation3 + $0x30] sm:$0xff]
        %v1163 = vld [vmem:[#allocation3 + $0x38] sm:$0xff]
        %v1164 = vld [vmem:[#allocation3 + $0x48] sm:$0xff]
        %v1165 = vld [vmem:[#allocation3 + $0x50] sm:$0xff]
        %v1166 = vld [vmem:[#allocation3 + $0x60] sm:$0xff]
        %v1167 = vld [vmem:[#allocation3 + $0x68] sm:$0xff]
        %v1168 = vld [vmem:[#allocation3 + $0x78] sm:$0xff]
        %v1169 = vld [vmem:[#allocation3 + $0x80] sm:$0xff]
        %v1170 = vld [vmem:[#allocation3 + $0x90] sm:$0xff]
        %v1171 = vld [vmem:[#allocation3 + $0x98] sm:$0xff]
        %v1172 = vld [vmem:[#allocation3 + $0xa8] sm:$0xff]
        %v1173 = vld [vmem:[#allocation3 + $0xb0] sm:$0xff]
        %1174 = vst.msk [vmem:[#allocation4] sm:$0xff] %vm472, %v1158
        %1175 = vst.msk [vmem:[#allocation4 + $0x20] sm:$0xff] %vm472, %v1159
        %1176 = vst.msk [vmem:[#allocation4 + $0x40] sm:$0xff] %vm472, %v1160
        %1177 = vst.msk [vmem:[#allocation4 + $0x60] sm:$0xff] %vm472, %v1161
        %1178 = vst.msk [vmem:[#allocation4 + $0x80] sm:$0xff] %vm472, %v1162
        %1179 = vst.msk [vmem:[#allocation4 + $0xa0] sm:$0xff] %vm472, %v1163
        %1180 = vst.msk [vmem:[#allocation4 + $0xc0] sm:$0xff] %vm472, %v1164
        %1181 = vst.msk [vmem:[#allocation4 + $0xe0] sm:$0xff] %vm472, %v1165
        %1182 = vst.msk [vmem:[#allocation4 + $0x100] sm:$0xff] %vm472, %v1166
        %1183 = vst.msk [vmem:[#allocation4 + $0x120] sm:$0xff] %vm472, %v1167
        %1184 = vst.msk [vmem:[#allocation4 + $0x140] sm:$0xff] %vm472, %v1168
        %1185 = vst.msk [vmem:[#allocation4 + $0x160] sm:$0xff] %vm472, %v1169
        %1186 = vst.msk [vmem:[#allocation4 + $0x180] sm:$0xff] %vm472, %v1170
        %1187 = vst.msk [vmem:[#allocation4 + $0x1a0] sm:$0xff] %vm472, %v1171
        %1188 = vst.msk [vmem:[#allocation4 + $0x1c0] sm:$0xff] %vm472, %v1172
        %1189 = vst.msk [vmem:[#allocation4 + $0x1e0] sm:$0xff] %vm472, %v1173
        %s1190 = scalar_lea.vmem [#allocation3], 24
        %v1191 = vld [vmem:[%s1190] sm:$0xff]
        %v1192 = vld [vmem:[%s1190 + $0x8] sm:$0xff]
        %v1193 = vld [vmem:[%s1190 + $0x18] sm:$0xff]
        %v1194 = vld [vmem:[%s1190 + $0x20] sm:$0xff]
        %v1195 = vld [vmem:[%s1190 + $0x30] sm:$0xff]
        %v1196 = vld [vmem:[%s1190 + $0x38] sm:$0xff]
        %v1197 = vld [vmem:[%s1190 + $0x48] sm:$0xff]
        %v1198 = vld [vmem:[%s1190 + $0x50] sm:$0xff]
        %v1199 = vld [vmem:[%s1190 + $0x60] sm:$0xff]
        %v1200 = vld [vmem:[%s1190 + $0x68] sm:$0xff]
        %v1201 = vld [vmem:[%s1190 + $0x78] sm:$0xff]
        %v1202 = vld [vmem:[%s1190 + $0x80] sm:$0xff]
        %v1203 = vld [vmem:[%s1190 + $0x90] sm:$0xff]
        %v1204 = vld [vmem:[%s1190 + $0x98] sm:$0xff]
        %v1205 = vld [vmem:[%s1190 + $0xa8] sm:$0xff]
        %v1206 = vld [vmem:[%s1190 + $0xb0] sm:$0xff]
        %1223 = vrot.lane.b32.xlu0 %v1191, 16
        %v1224 = vpop.permute.xlu0 %1223
        %1225 = vrot.lane.b32.xlu0 %v1192, 16
        %v1226 = vpop.permute.xlu0 %1225
        %1227 = vrot.lane.b32.xlu0 %v1193, 16
        %v1228 = vpop.permute.xlu0 %1227
        %1229 = vrot.lane.b32.xlu0 %v1194, 16
        %v1230 = vpop.permute.xlu0 %1229
        %1231 = vrot.lane.b32.xlu0 %v1195, 16
        %v1232 = vpop.permute.xlu0 %1231
        %1233 = vrot.lane.b32.xlu0 %v1196, 16
        %v1234 = vpop.permute.xlu0 %1233
        %1235 = vrot.lane.b32.xlu0 %v1197, 16
        %v1236 = vpop.permute.xlu0 %1235
        %1237 = vrot.lane.b32.xlu0 %v1198, 16
        %v1238 = vpop.permute.xlu0 %1237
        %1239 = vrot.lane.b32.xlu0 %v1199, 16
        %v1240 = vpop.permute.xlu0 %1239
        %1241 = vrot.lane.b32.xlu0 %v1200, 16
        %v1242 = vpop.permute.xlu0 %1241
        %1243 = vrot.lane.b32.xlu0 %v1201, 16
        %v1244 = vpop.permute.xlu0 %1243
        %1245 = vrot.lane.b32.xlu0 %v1202, 16
        %v1246 = vpop.permute.xlu0 %1245
        %1247 = vrot.lane.b32.xlu0 %v1203, 16
        %v1248 = vpop.permute.xlu0 %1247
        %1249 = vrot.lane.b32.xlu0 %v1204, 16
        %v1250 = vpop.permute.xlu0 %1249
        %1251 = vrot.lane.b32.xlu0 %v1205, 16
        %v1252 = vpop.permute.xlu0 %1251
        %1253 = vrot.lane.b32.xlu0 %v1206, 16
        %v1254 = vpop.permute.xlu0 %1253
        %vm1271 = vcmask 261248
        %1272 = vst.msk [vmem:[#allocation4] sm:$0xff] %vm1271, %v1224
        %1273 = vst.msk [vmem:[#allocation4 + $0x20] sm:$0xff] %vm1271, %v1226
        %1274 = vst.msk [vmem:[#allocation4 + $0x40] sm:$0xff] %vm1271, %v1228
        %1275 = vst.msk [vmem:[#allocation4 + $0x60] sm:$0xff] %vm1271, %v1230
        %1276 = vst.msk [vmem:[#allocation4 + $0x80] sm:$0xff] %vm1271, %v1232
        %1277 = vst.msk [vmem:[#allocation4 + $0xa0] sm:$0xff] %vm1271, %v1234
        %1278 = vst.msk [vmem:[#allocation4 + $0xc0] sm:$0xff] %vm1271, %v1236
        %1279 = vst.msk [vmem:[#allocation4 + $0xe0] sm:$0xff] %vm1271, %v1238
        %1280 = vst.msk [vmem:[#allocation4 + $0x100] sm:$0xff] %vm1271, %v1240
        %1281 = vst.msk [vmem:[#allocation4 + $0x120] sm:$0xff] %vm1271, %v1242
        %1282 = vst.msk [vmem:[#allocation4 + $0x140] sm:$0xff] %vm1271, %v1244
        %1283 = vst.msk [vmem:[#allocation4 + $0x160] sm:$0xff] %vm1271, %v1246
        %1284 = vst.msk [vmem:[#allocation4 + $0x180] sm:$0xff] %vm1271, %v1248
        %1285 = vst.msk [vmem:[#allocation4 + $0x1a0] sm:$0xff] %vm1271, %v1250
        %1286 = vst.msk [vmem:[#allocation4 + $0x1c0] sm:$0xff] %vm1271, %v1252
        %1287 = vst.msk [vmem:[#allocation4 + $0x1e0] sm:$0xff] %vm1271, %v1254
        %v1288 = vld [vmem:[%s952] sm:$0xff]
        %v1289 = vld [vmem:[%s952 + $0x8] sm:$0xff]
        %v1290 = vld [vmem:[%s952 + $0x18] sm:$0xff]
        %v1291 = vld [vmem:[%s952 + $0x20] sm:$0xff]
        %v1292 = vld [vmem:[%s952 + $0x30] sm:$0xff]
        %v1293 = vld [vmem:[%s952 + $0x38] sm:$0xff]
        %v1294 = vld [vmem:[%s952 + $0x48] sm:$0xff]
        %v1295 = vld [vmem:[%s952 + $0x50] sm:$0xff]
        %v1296 = vld [vmem:[%s952 + $0x60] sm:$0xff]
        %v1297 = vld [vmem:[%s952 + $0x68] sm:$0xff]
        %v1298 = vld [vmem:[%s952 + $0x78] sm:$0xff]
        %v1299 = vld [vmem:[%s952 + $0x80] sm:$0xff]
        %v1300 = vld [vmem:[%s952 + $0x90] sm:$0xff]
        %v1301 = vld [vmem:[%s952 + $0x98] sm:$0xff]
        %v1302 = vld [vmem:[%s952 + $0xa8] sm:$0xff]
        %v1303 = vld [vmem:[%s952 + $0xb0] sm:$0xff]
        %1320 = vrot.lane.b32.xlu0 %v1288, 32
        %v1321 = vpop.permute.xlu0 %1320
        %1322 = vrot.lane.b32.xlu0 %v1289, 32
        %v1323 = vpop.permute.xlu0 %1322
        %1324 = vrot.lane.b32.xlu0 %v1290, 32
        %v1325 = vpop.permute.xlu0 %1324
        %1326 = vrot.lane.b32.xlu0 %v1291, 32
        %v1327 = vpop.permute.xlu0 %1326
        %1328 = vrot.lane.b32.xlu0 %v1292, 32
        %v1329 = vpop.permute.xlu0 %1328
        %1330 = vrot.lane.b32.xlu0 %v1293, 32
        %v1331 = vpop.permute.xlu0 %1330
        %1332 = vrot.lane.b32.xlu0 %v1294, 32
        %v1333 = vpop.permute.xlu0 %1332
        %1334 = vrot.lane.b32.xlu0 %v1295, 32
        %v1335 = vpop.permute.xlu0 %1334
        %1336 = vrot.lane.b32.xlu0 %v1296, 32
        %v1337 = vpop.permute.xlu0 %1336
        %1338 = vrot.lane.b32.xlu0 %v1297, 32
        %v1339 = vpop.permute.xlu0 %1338
        %1340 = vrot.lane.b32.xlu0 %v1298, 32
        %v1341 = vpop.permute.xlu0 %1340
        %1342 = vrot.lane.b32.xlu0 %v1299, 32
        %v1343 = vpop.permute.xlu0 %1342
        %1344 = vrot.lane.b32.xlu0 %v1300, 32
        %v1345 = vpop.permute.xlu0 %1344
        %1346 = vrot.lane.b32.xlu0 %v1301, 32
        %v1347 = vpop.permute.xlu0 %1346
        %1348 = vrot.lane.b32.xlu0 %v1302, 32
        %v1349 = vpop.permute.xlu0 %1348
        %1350 = vrot.lane.b32.xlu0 %v1303, 32
        %v1351 = vpop.permute.xlu0 %1350
        %vm1368 = vcmask 392448
        %1369 = vst.msk [vmem:[#allocation4] sm:$0xff] %vm1368, %v1321
        %1370 = vst.msk [vmem:[#allocation4 + $0x20] sm:$0xff] %vm1368, %v1323
        %1371 = vst.msk [vmem:[#allocation4 + $0x40] sm:$0xff] %vm1368, %v1325
        %1372 = vst.msk [vmem:[#allocation4 + $0x60] sm:$0xff] %vm1368, %v1327
        %1373 = vst.msk [vmem:[#allocation4 + $0x80] sm:$0xff] %vm1368, %v1329
        %1374 = vst.msk [vmem:[#allocation4 + $0xa0] sm:$0xff] %vm1368, %v1331
        %1375 = vst.msk [vmem:[#allocation4 + $0xc0] sm:$0xff] %vm1368, %v1333
        %1376 = vst.msk [vmem:[#allocation4 + $0xe0] sm:$0xff] %vm1368, %v1335
        %1377 = vst.msk [vmem:[#allocation4 + $0x100] sm:$0xff] %vm1368, %v1337
        %1378 = vst.msk [vmem:[#allocation4 + $0x120] sm:$0xff] %vm1368, %v1339
        %1379 = vst.msk [vmem:[#allocation4 + $0x140] sm:$0xff] %vm1368, %v1341
        %1380 = vst.msk [vmem:[#allocation4 + $0x160] sm:$0xff] %vm1368, %v1343
        %1381 = vst.msk [vmem:[#allocation4 + $0x180] sm:$0xff] %vm1368, %v1345
        %1382 = vst.msk [vmem:[#allocation4 + $0x1a0] sm:$0xff] %vm1368, %v1347
        %1383 = vst.msk [vmem:[#allocation4 + $0x1c0] sm:$0xff] %vm1368, %v1349
        %1384 = vst.msk [vmem:[#allocation4 + $0x1e0] sm:$0xff] %vm1368, %v1351
        %v1385 = vld [vmem:[%s981] sm:$0xff]
        %v1386 = vld [vmem:[%s981 + $0x8] sm:$0xff]
        %v1387 = vld [vmem:[%s981 + $0x18] sm:$0xff]
        %v1388 = vld [vmem:[%s981 + $0x20] sm:$0xff]
        %v1389 = vld [vmem:[%s981 + $0x30] sm:$0xff]
        %v1390 = vld [vmem:[%s981 + $0x38] sm:$0xff]
        %v1391 = vld [vmem:[%s981 + $0x48] sm:$0xff]
        %v1392 = vld [vmem:[%s981 + $0x50] sm:$0xff]
        %v1393 = vld [vmem:[%s981 + $0x60] sm:$0xff]
        %v1394 = vld [vmem:[%s981 + $0x68] sm:$0xff]
        %v1395 = vld [vmem:[%s981 + $0x78] sm:$0xff]
        %v1396 = vld [vmem:[%s981 + $0x80] sm:$0xff]
        %v1397 = vld [vmem:[%s981 + $0x90] sm:$0xff]
        %v1398 = vld [vmem:[%s981 + $0x98] sm:$0xff]
        %v1399 = vld [vmem:[%s981 + $0xa8] sm:$0xff]
        %v1400 = vld [vmem:[%s981 + $0xb0] sm:$0xff]
        %1417 = vrot.lane.b32.xlu0 %v1385, 48
        %v1418 = vpop.permute.xlu0 %1417
        %1419 = vrot.lane.b32.xlu0 %v1386, 48
        %v1420 = vpop.permute.xlu0 %1419
        %1421 = vrot.lane.b32.xlu0 %v1387, 48
        %v1422 = vpop.permute.xlu0 %1421
        %1423 = vrot.lane.b32.xlu0 %v1388, 48
        %v1424 = vpop.permute.xlu0 %1423
        %1425 = vrot.lane.b32.xlu0 %v1389, 48
        %v1426 = vpop.permute.xlu0 %1425
        %1427 = vrot.lane.b32.xlu0 %v1390, 48
        %v1428 = vpop.permute.xlu0 %1427
        %1429 = vrot.lane.b32.xlu0 %v1391, 48
        %v1430 = vpop.permute.xlu0 %1429
        %1431 = vrot.lane.b32.xlu0 %v1392, 48
        %v1432 = vpop.permute.xlu0 %1431
        %1433 = vrot.lane.b32.xlu0 %v1393, 48
        %v1434 = vpop.permute.xlu0 %1433
        %1435 = vrot.lane.b32.xlu0 %v1394, 48
        %v1436 = vpop.permute.xlu0 %1435
        %1437 = vrot.lane.b32.xlu0 %v1395, 48
        %v1438 = vpop.permute.xlu0 %1437
        %1439 = vrot.lane.b32.xlu0 %v1396, 48
        %v1440 = vpop.permute.xlu0 %1439
        %1441 = vrot.lane.b32.xlu0 %v1397, 48
        %v1442 = vpop.permute.xlu0 %1441
        %1443 = vrot.lane.b32.xlu0 %v1398, 48
        %v1444 = vpop.permute.xlu0 %1443
        %1445 = vrot.lane.b32.xlu0 %v1399, 48
        %v1446 = vpop.permute.xlu0 %1445
        %1447 = vrot.lane.b32.xlu0 %v1400, 48
        %v1448 = vpop.permute.xlu0 %1447
        %vm1465 = vcmask 523648
        %1466 = vst.msk [vmem:[#allocation4] sm:$0xff] %vm1465, %v1418
        %1467 = vst.msk [vmem:[#allocation4 + $0x20] sm:$0xff] %vm1465, %v1420
        %1468 = vst.msk [vmem:[#allocation4 + $0x40] sm:$0xff] %vm1465, %v1422
        %1469 = vst.msk [vmem:[#allocation4 + $0x60] sm:$0xff] %vm1465, %v1424
        %1470 = vst.msk [vmem:[#allocation4 + $0x80] sm:$0xff] %vm1465, %v1426
        %1471 = vst.msk [vmem:[#allocation4 + $0xa0] sm:$0xff] %vm1465, %v1428
        %1472 = vst.msk [vmem:[#allocation4 + $0xc0] sm:$0xff] %vm1465, %v1430
        %1473 = vst.msk [vmem:[#allocation4 + $0xe0] sm:$0xff] %vm1465, %v1432
        %1474 = vst.msk [vmem:[#allocation4 + $0x100] sm:$0xff] %vm1465, %v1434
        %1475 = vst.msk [vmem:[#allocation4 + $0x120] sm:$0xff] %vm1465, %v1436
        %1476 = vst.msk [vmem:[#allocation4 + $0x140] sm:$0xff] %vm1465, %v1438
        %1477 = vst.msk [vmem:[#allocation4 + $0x160] sm:$0xff] %vm1465, %v1440
        %1478 = vst.msk [vmem:[#allocation4 + $0x180] sm:$0xff] %vm1465, %v1442
        %1479 = vst.msk [vmem:[#allocation4 + $0x1a0] sm:$0xff] %vm1465, %v1444
        %1480 = vst.msk [vmem:[#allocation4 + $0x1c0] sm:$0xff] %vm1465, %v1446
        %1481 = vst.msk [vmem:[#allocation4 + $0x1e0] sm:$0xff] %vm1465, %v1448
        %v1482 = vld [vmem:[%s1010] sm:$0xff]
        %v1483 = vld [vmem:[%s1010 + $0x8] sm:$0xff]
        %v1484 = vld [vmem:[%s1010 + $0x18] sm:$0xff]
        %v1485 = vld [vmem:[%s1010 + $0x20] sm:$0xff]
        %v1486 = vld [vmem:[%s1010 + $0x30] sm:$0xff]
        %v1487 = vld [vmem:[%s1010 + $0x38] sm:$0xff]
        %v1488 = vld [vmem:[%s1010 + $0x48] sm:$0xff]
        %v1489 = vld [vmem:[%s1010 + $0x50] sm:$0xff]
        %v1490 = vld [vmem:[%s1010 + $0x60] sm:$0xff]
        %v1491 = vld [vmem:[%s1010 + $0x68] sm:$0xff]
        %v1492 = vld [vmem:[%s1010 + $0x78] sm:$0xff]
        %v1493 = vld [vmem:[%s1010 + $0x80] sm:$0xff]
        %v1494 = vld [vmem:[%s1010 + $0x90] sm:$0xff]
        %v1495 = vld [vmem:[%s1010 + $0x98] sm:$0xff]
        %v1496 = vld [vmem:[%s1010 + $0xa8] sm:$0xff]
        %v1497 = vld [vmem:[%s1010 + $0xb0] sm:$0xff]
        %1514 = vrot.lane.b32.xlu0 %v1482, 64
        %v1515 = vpop.permute.xlu0 %1514
        %1516 = vrot.lane.b32.xlu0 %v1483, 64
        %v1517 = vpop.permute.xlu0 %1516
        %1518 = vrot.lane.b32.xlu0 %v1484, 64
        %v1519 = vpop.permute.xlu0 %1518
        %1520 = vrot.lane.b32.xlu0 %v1485, 64
        %v1521 = vpop.permute.xlu0 %1520
        %1522 = vrot.lane.b32.xlu0 %v1486, 64
        %v1523 = vpop.permute.xlu0 %1522
        %1524 = vrot.lane.b32.xlu0 %v1487, 64
        %v1525 = vpop.permute.xlu0 %1524
        %1526 = vrot.lane.b32.xlu0 %v1488, 64
        %v1527 = vpop.permute.xlu0 %1526
        %1528 = vrot.lane.b32.xlu0 %v1489, 64
        %v1529 = vpop.permute.xlu0 %1528
        %1530 = vrot.lane.b32.xlu0 %v1490, 64
        %v1531 = vpop.permute.xlu0 %1530
        %1532 = vrot.lane.b32.xlu0 %v1491, 64
        %v1533 = vpop.permute.xlu0 %1532
        %1534 = vrot.lane.b32.xlu0 %v1492, 64
        %v1535 = vpop.permute.xlu0 %1534
        %1536 = vrot.lane.b32.xlu0 %v1493, 64
        %v1537 = vpop.permute.xlu0 %1536
        %1538 = vrot.lane.b32.xlu0 %v1494, 64
        %v1539 = vpop.permute.xlu0 %1538
        %1540 = vrot.lane.b32.xlu0 %v1495, 64
        %v1541 = vpop.permute.xlu0 %1540
        %1542 = vrot.lane.b32.xlu0 %v1496, 64
        %v1543 = vpop.permute.xlu0 %1542
        %1544 = vrot.lane.b32.xlu0 %v1497, 64
        %v1545 = vpop.permute.xlu0 %1544
        %vm1562 = vcmask 654848
        %1563 = vst.msk [vmem:[#allocation4] sm:$0xff] %vm1562, %v1515
        %1564 = vst.msk [vmem:[#allocation4 + $0x20] sm:$0xff] %vm1562, %v1517
        %1565 = vst.msk [vmem:[#allocation4 + $0x40] sm:$0xff] %vm1562, %v1519
        %1566 = vst.msk [vmem:[#allocation4 + $0x60] sm:$0xff] %vm1562, %v1521
        %1567 = vst.msk [vmem:[#allocation4 + $0x80] sm:$0xff] %vm1562, %v1523
        %1568 = vst.msk [vmem:[#allocation4 + $0xa0] sm:$0xff] %vm1562, %v1525
        %1569 = vst.msk [vmem:[#allocation4 + $0xc0] sm:$0xff] %vm1562, %v1527
        %1570 = vst.msk [vmem:[#allocation4 + $0xe0] sm:$0xff] %vm1562, %v1529
        %1571 = vst.msk [vmem:[#allocation4 + $0x100] sm:$0xff] %vm1562, %v1531
        %1572 = vst.msk [vmem:[#allocation4 + $0x120] sm:$0xff] %vm1562, %v1533
        %1573 = vst.msk [vmem:[#allocation4 + $0x140] sm:$0xff] %vm1562, %v1535
        %1574 = vst.msk [vmem:[#allocation4 + $0x160] sm:$0xff] %vm1562, %v1537
        %1575 = vst.msk [vmem:[#allocation4 + $0x180] sm:$0xff] %vm1562, %v1539
        %1576 = vst.msk [vmem:[#allocation4 + $0x1a0] sm:$0xff] %vm1562, %v1541
        %1577 = vst.msk [vmem:[#allocation4 + $0x1c0] sm:$0xff] %vm1562, %v1543
        %1578 = vst.msk [vmem:[#allocation4 + $0x1e0] sm:$0xff] %vm1562, %v1545
        %v1579 = vld [vmem:[#allocation3 + $0x1] sm:$0xff]
        %v1580 = vld [vmem:[#allocation3 + $0x9] sm:$0xff]
        %v1581 = vld [vmem:[#allocation3 + $0x19] sm:$0xff]
        %v1582 = vld [vmem:[#allocation3 + $0x21] sm:$0xff]
        %v1583 = vld [vmem:[#allocation3 + $0x31] sm:$0xff]
        %v1584 = vld [vmem:[#allocation3 + $0x39] sm:$0xff]
        %v1585 = vld [vmem:[#allocation3 + $0x49] sm:$0xff]
        %v1586 = vld [vmem:[#allocation3 + $0x51] sm:$0xff]
        %v1587 = vld [vmem:[#allocation3 + $0x61] sm:$0xff]
        %v1588 = vld [vmem:[#allocation3 + $0x69] sm:$0xff]
        %v1589 = vld [vmem:[#allocation3 + $0x79] sm:$0xff]
        %v1590 = vld [vmem:[#allocation3 + $0x81] sm:$0xff]
        %v1591 = vld [vmem:[#allocation3 + $0x91] sm:$0xff]
        %v1592 = vld [vmem:[#allocation3 + $0x99] sm:$0xff]
        %v1593 = vld [vmem:[#allocation3 + $0xa9] sm:$0xff]
        %v1594 = vld [vmem:[#allocation3 + $0xb1] sm:$0xff]
        %1611 = vrot.lane.b32.xlu0 %v1579, 80
        %v1612 = vpop.permute.xlu0 %1611
        %1613 = vrot.lane.b32.xlu0 %v1580, 80
        %v1614 = vpop.permute.xlu0 %1613
        %1615 = vrot.lane.b32.xlu0 %v1581, 80
        %v1616 = vpop.permute.xlu0 %1615
        %1617 = vrot.lane.b32.xlu0 %v1582, 80
        %v1618 = vpop.permute.xlu0 %1617
        %1619 = vrot.lane.b32.xlu0 %v1583, 80
        %v1620 = vpop.permute.xlu0 %1619
        %1621 = vrot.lane.b32.xlu0 %v1584, 80
        %v1622 = vpop.permute.xlu0 %1621
        %1623 = vrot.lane.b32.xlu0 %v1585, 80
        %v1624 = vpop.permute.xlu0 %1623
        %1625 = vrot.lane.b32.xlu0 %v1586, 80
        %v1626 = vpop.permute.xlu0 %1625
        %1627 = vrot.lane.b32.xlu0 %v1587, 80
        %v1628 = vpop.permute.xlu0 %1627
        %1629 = vrot.lane.b32.xlu0 %v1588, 80
        %v1630 = vpop.permute.xlu0 %1629
        %1631 = vrot.lane.b32.xlu0 %v1589, 80
        %v1632 = vpop.permute.xlu0 %1631
        %1633 = vrot.lane.b32.xlu0 %v1590, 80
        %v1634 = vpop.permute.xlu0 %1633
        %1635 = vrot.lane.b32.xlu0 %v1591, 80
        %v1636 = vpop.permute.xlu0 %1635
        %1637 = vrot.lane.b32.xlu0 %v1592, 80
        %v1638 = vpop.permute.xlu0 %1637
        %1639 = vrot.lane.b32.xlu0 %v1593, 80
        %v1640 = vpop.permute.xlu0 %1639
        %1641 = vrot.lane.b32.xlu0 %v1594, 80
        %v1642 = vpop.permute.xlu0 %1641
        %vm1659 = vcmask 786048
        %1660 = vst.msk [vmem:[#allocation4] sm:$0xff] %vm1659, %v1612
        %1661 = vst.msk [vmem:[#allocation4 + $0x20] sm:$0xff] %vm1659, %v1614
        %1662 = vst.msk [vmem:[#allocation4 + $0x40] sm:$0xff] %vm1659, %v1616
        %1663 = vst.msk [vmem:[#allocation4 + $0x60] sm:$0xff] %vm1659, %v1618
        %1664 = vst.msk [vmem:[#allocation4 + $0x80] sm:$0xff] %vm1659, %v1620
        %1665 = vst.msk [vmem:[#allocation4 + $0xa0] sm:$0xff] %vm1659, %v1622
        %1666 = vst.msk [vmem:[#allocation4 + $0xc0] sm:$0xff] %vm1659, %v1624
        %1667 = vst.msk [vmem:[#allocation4 + $0xe0] sm:$0xff] %vm1659, %v1626
        %1668 = vst.msk [vmem:[#allocation4 + $0x100] sm:$0xff] %vm1659, %v1628
        %1669 = vst.msk [vmem:[#allocation4 + $0x120] sm:$0xff] %vm1659, %v1630
        %1670 = vst.msk [vmem:[#allocation4 + $0x140] sm:$0xff] %vm1659, %v1632
        %1671 = vst.msk [vmem:[#allocation4 + $0x160] sm:$0xff] %vm1659, %v1634
        %1672 = vst.msk [vmem:[#allocation4 + $0x180] sm:$0xff] %vm1659, %v1636
        %1673 = vst.msk [vmem:[#allocation4 + $0x1a0] sm:$0xff] %vm1659, %v1638
        %1674 = vst.msk [vmem:[#allocation4 + $0x1c0] sm:$0xff] %vm1659, %v1640
        %1675 = vst.msk [vmem:[#allocation4 + $0x1e0] sm:$0xff] %vm1659, %v1642
        %v1676 = vld [vmem:[%s1190 + $0x1] sm:$0xff]
        %v1677 = vld [vmem:[%s1190 + $0x9] sm:$0xff]
        %v1678 = vld [vmem:[%s1190 + $0x19] sm:$0xff]
        %v1679 = vld [vmem:[%s1190 + $0x21] sm:$0xff]
        %v1680 = vld [vmem:[%s1190 + $0x31] sm:$0xff]
        %v1681 = vld [vmem:[%s1190 + $0x39] sm:$0xff]
        %v1682 = vld [vmem:[%s1190 + $0x49] sm:$0xff]
        %v1683 = vld [vmem:[%s1190 + $0x51] sm:$0xff]
        %v1684 = vld [vmem:[%s1190 + $0x61] sm:$0xff]
        %v1685 = vld [vmem:[%s1190 + $0x69] sm:$0xff]
        %v1686 = vld [vmem:[%s1190 + $0x79] sm:$0xff]
        %v1687 = vld [vmem:[%s1190 + $0x81] sm:$0xff]
        %v1688 = vld [vmem:[%s1190 + $0x91] sm:$0xff]
        %v1689 = vld [vmem:[%s1190 + $0x99] sm:$0xff]
        %v1690 = vld [vmem:[%s1190 + $0xa9] sm:$0xff]
        %v1691 = vld [vmem:[%s1190 + $0xb1] sm:$0xff]
        %1708 = vrot.lane.b32.xlu0 %v1676, 96
        %v1709 = vpop.permute.xlu0 %1708
        %1710 = vrot.lane.b32.xlu0 %v1677, 96
        %v1711 = vpop.permute.xlu0 %1710
        %1712 = vrot.lane.b32.xlu0 %v1678, 96
        %v1713 = vpop.permute.xlu0 %1712
        %1714 = vrot.lane.b32.xlu0 %v1679, 96
        %v1715 = vpop.permute.xlu0 %1714
        %1716 = vrot.lane.b32.xlu0 %v1680, 96
        %v1717 = vpop.permute.xlu0 %1716
        %1718 = vrot.lane.b32.xlu0 %v1681, 96
        %v1719 = vpop.permute.xlu0 %1718
        %1720 = vrot.lane.b32.xlu0 %v1682, 96
        %v1721 = vpop.permute.xlu0 %1720
        %1722 = vrot.lane.b32.xlu0 %v1683, 96
        %v1723 = vpop.permute.xlu0 %1722
        %1724 = vrot.lane.b32.xlu0 %v1684, 96
        %v1725 = vpop.permute.xlu0 %1724
        %1726 = vrot.lane.b32.xlu0 %v1685, 96
        %v1727 = vpop.permute.xlu0 %1726
        %1728 = vrot.lane.b32.xlu0 %v1686, 96
        %v1729 = vpop.permute.xlu0 %1728
        %1730 = vrot.lane.b32.xlu0 %v1687, 96
        %v1731 = vpop.permute.xlu0 %1730
        %1732 = vrot.lane.b32.xlu0 %v1688, 96
        %v1733 = vpop.permute.xlu0 %1732
        %1734 = vrot.lane.b32.xlu0 %v1689, 96
        %v1735 = vpop.permute.xlu0 %1734
        %1736 = vrot.lane.b32.xlu0 %v1690, 96
        %v1737 = vpop.permute.xlu0 %1736
        %1738 = vrot.lane.b32.xlu0 %v1691, 96
        %v1739 = vpop.permute.xlu0 %1738
        %vm1756 = vcmask 917248
        %1757 = vst.msk [vmem:[#allocation4] sm:$0xff] %vm1756, %v1709
        %1758 = vst.msk [vmem:[#allocation4 + $0x20] sm:$0xff] %vm1756, %v1711
        %1759 = vst.msk [vmem:[#allocation4 + $0x40] sm:$0xff] %vm1756, %v1713
        %1760 = vst.msk [vmem:[#allocation4 + $0x60] sm:$0xff] %vm1756, %v1715
        %1761 = vst.msk [vmem:[#allocation4 + $0x80] sm:$0xff] %vm1756, %v1717
        %1762 = vst.msk [vmem:[#allocation4 + $0xa0] sm:$0xff] %vm1756, %v1719
        %1763 = vst.msk [vmem:[#allocation4 + $0xc0] sm:$0xff] %vm1756, %v1721
        %1764 = vst.msk [vmem:[#allocation4 + $0xe0] sm:$0xff] %vm1756, %v1723
        %1765 = vst.msk [vmem:[#allocation4 + $0x100] sm:$0xff] %vm1756, %v1725
        %1766 = vst.msk [vmem:[#allocation4 + $0x120] sm:$0xff] %vm1756, %v1727
        %1767 = vst.msk [vmem:[#allocation4 + $0x140] sm:$0xff] %vm1756, %v1729
        %1768 = vst.msk [vmem:[#allocation4 + $0x160] sm:$0xff] %vm1756, %v1731
        %1769 = vst.msk [vmem:[#allocation4 + $0x180] sm:$0xff] %vm1756, %v1733
        %1770 = vst.msk [vmem:[#allocation4 + $0x1a0] sm:$0xff] %vm1756, %v1735
        %1771 = vst.msk [vmem:[#allocation4 + $0x1c0] sm:$0xff] %vm1756, %v1737
        %1772 = vst.msk [vmem:[#allocation4 + $0x1e0] sm:$0xff] %vm1756, %v1739
        %v1773 = vld [vmem:[%s952 + $0x1] sm:$0xff]
        %v1774 = vld [vmem:[%s952 + $0x9] sm:$0xff]
        %v1775 = vld [vmem:[%s952 + $0x19] sm:$0xff]
        %v1776 = vld [vmem:[%s952 + $0x21] sm:$0xff]
        %v1777 = vld [vmem:[%s952 + $0x31] sm:$0xff]
        %v1778 = vld [vmem:[%s952 + $0x39] sm:$0xff]
        %v1779 = vld [vmem:[%s952 + $0x49] sm:$0xff]
        %v1780 = vld [vmem:[%s952 + $0x51] sm:$0xff]
        %v1781 = vld [vmem:[%s952 + $0x61] sm:$0xff]
        %v1782 = vld [vmem:[%s952 + $0x69] sm:$0xff]
        %v1783 = vld [vmem:[%s952 + $0x79] sm:$0xff]
        %v1784 = vld [vmem:[%s952 + $0x81] sm:$0xff]
        %v1785 = vld [vmem:[%s952 + $0x91] sm:$0xff]
        %v1786 = vld [vmem:[%s952 + $0x99] sm:$0xff]
        %v1787 = vld [vmem:[%s952 + $0xa9] sm:$0xff]
        %v1788 = vld [vmem:[%s952 + $0xb1] sm:$0xff]
        %1805 = vrot.lane.b32.xlu0 %v1773, 112
        %v1806 = vpop.permute.xlu0 %1805
        %1807 = vrot.lane.b32.xlu0 %v1774, 112
        %v1808 = vpop.permute.xlu0 %1807
        %1809 = vrot.lane.b32.xlu0 %v1775, 112
        %v1810 = vpop.permute.xlu0 %1809
        %1811 = vrot.lane.b32.xlu0 %v1776, 112
        %v1812 = vpop.permute.xlu0 %1811
        %1813 = vrot.lane.b32.xlu0 %v1777, 112
        %v1814 = vpop.permute.xlu0 %1813
        %1815 = vrot.lane.b32.xlu0 %v1778, 112
        %v1816 = vpop.permute.xlu0 %1815
        %1817 = vrot.lane.b32.xlu0 %v1779, 112
        %v1818 = vpop.permute.xlu0 %1817
        %1819 = vrot.lane.b32.xlu0 %v1780, 112
        %v1820 = vpop.permute.xlu0 %1819
        %1821 = vrot.lane.b32.xlu0 %v1781, 112
        %v1822 = vpop.permute.xlu0 %1821
        %1823 = vrot.lane.b32.xlu0 %v1782, 112
        %v1824 = vpop.permute.xlu0 %1823
        %1825 = vrot.lane.b32.xlu0 %v1783, 112
        %v1826 = vpop.permute.xlu0 %1825
        %1827 = vrot.lane.b32.xlu0 %v1784, 112
        %v1828 = vpop.permute.xlu0 %1827
        %1829 = vrot.lane.b32.xlu0 %v1785, 112
        %v1830 = vpop.permute.xlu0 %1829
        %1831 = vrot.lane.b32.xlu0 %v1786, 112
        %v1832 = vpop.permute.xlu0 %1831
        %1833 = vrot.lane.b32.xlu0 %v1787, 112
        %v1834 = vpop.permute.xlu0 %1833
        %1835 = vrot.lane.b32.xlu0 %v1788, 112
        %v1836 = vpop.permute.xlu0 %1835
        %vm1853 = vcmask 1048448
        %1854 = vst.msk [vmem:[#allocation4] sm:$0xff] %vm1853, %v1806
        %1855 = vst.msk [vmem:[#allocation4 + $0x20] sm:$0xff] %vm1853, %v1808
        %1856 = vst.msk [vmem:[#allocation4 + $0x40] sm:$0xff] %vm1853, %v1810
        %1857 = vst.msk [vmem:[#allocation4 + $0x60] sm:$0xff] %vm1853, %v1812
        %1858 = vst.msk [vmem:[#allocation4 + $0x80] sm:$0xff] %vm1853, %v1814
        %1859 = vst.msk [vmem:[#allocation4 + $0xa0] sm:$0xff] %vm1853, %v1816
        %1860 = vst.msk [vmem:[#allocation4 + $0xc0] sm:$0xff] %vm1853, %v1818
        %1861 = vst.msk [vmem:[#allocation4 + $0xe0] sm:$0xff] %vm1853, %v1820
        %1862 = vst.msk [vmem:[#allocation4 + $0x100] sm:$0xff] %vm1853, %v1822
        %1863 = vst.msk [vmem:[#allocation4 + $0x120] sm:$0xff] %vm1853, %v1824
        %1864 = vst.msk [vmem:[#allocation4 + $0x140] sm:$0xff] %vm1853, %v1826
        %1865 = vst.msk [vmem:[#allocation4 + $0x160] sm:$0xff] %vm1853, %v1828
        %1866 = vst.msk [vmem:[#allocation4 + $0x180] sm:$0xff] %vm1853, %v1830
        %1867 = vst.msk [vmem:[#allocation4 + $0x1a0] sm:$0xff] %vm1853, %v1832
        %1868 = vst.msk [vmem:[#allocation4 + $0x1c0] sm:$0xff] %vm1853, %v1834
        %1869 = vst.msk [vmem:[#allocation4 + $0x1e0] sm:$0xff] %vm1853, %v1836
        %v1870 = vld [vmem:[%s981 + $0x1] sm:$0xff]
        %v1871 = vld [vmem:[%s981 + $0x9] sm:$0xff]
        %v1872 = vld [vmem:[%s981 + $0x19] sm:$0xff]
        %v1873 = vld [vmem:[%s981 + $0x21] sm:$0xff]
        %v1874 = vld [vmem:[%s981 + $0x31] sm:$0xff]
        %v1875 = vld [vmem:[%s981 + $0x39] sm:$0xff]
        %v1876 = vld [vmem:[%s981 + $0x49] sm:$0xff]
        %v1877 = vld [vmem:[%s981 + $0x51] sm:$0xff]
        %v1878 = vld [vmem:[%s981 + $0x61] sm:$0xff]
        %v1879 = vld [vmem:[%s981 + $0x69] sm:$0xff]
        %v1880 = vld [vmem:[%s981 + $0x79] sm:$0xff]
        %v1881 = vld [vmem:[%s981 + $0x81] sm:$0xff]
        %v1882 = vld [vmem:[%s981 + $0x91] sm:$0xff]
        %v1883 = vld [vmem:[%s981 + $0x99] sm:$0xff]
        %v1884 = vld [vmem:[%s981 + $0xa9] sm:$0xff]
        %v1885 = vld [vmem:[%s981 + $0xb1] sm:$0xff]
        %1886 = vst.msk [vmem:[#allocation4 + $0x8] sm:$0xff] %vm472, %v1870
        %1887 = vst.msk [vmem:[#allocation4 + $0x28] sm:$0xff] %vm472, %v1871
        %1888 = vst.msk [vmem:[#allocation4 + $0x48] sm:$0xff] %vm472, %v1872
        %1889 = vst.msk [vmem:[#allocation4 + $0x68] sm:$0xff] %vm472, %v1873
        %1890 = vst.msk [vmem:[#allocation4 + $0x88] sm:$0xff] %vm472, %v1874
        %1891 = vst.msk [vmem:[#allocation4 + $0xa8] sm:$0xff] %vm472, %v1875
        %1892 = vst.msk [vmem:[#allocation4 + $0xc8] sm:$0xff] %vm472, %v1876
        %1893 = vst.msk [vmem:[#allocation4 + $0xe8] sm:$0xff] %vm472, %v1877
        %1894 = vst.msk [vmem:[#allocation4 + $0x108] sm:$0xff] %vm472, %v1878
        %1895 = vst.msk [vmem:[#allocation4 + $0x128] sm:$0xff] %vm472, %v1879
        %1896 = vst.msk [vmem:[#allocation4 + $0x148] sm:$0xff] %vm472, %v1880
        %1897 = vst.msk [vmem:[#allocation4 + $0x168] sm:$0xff] %vm472, %v1881
        %1898 = vst.msk [vmem:[#allocation4 + $0x188] sm:$0xff] %vm472, %v1882
        %1899 = vst.msk [vmem:[#allocation4 + $0x1a8] sm:$0xff] %vm472, %v1883
        %1900 = vst.msk [vmem:[#allocation4 + $0x1c8] sm:$0xff] %vm472, %v1884
        %1901 = vst.msk [vmem:[#allocation4 + $0x1e8] sm:$0xff] %vm472, %v1885
        %v1902 = vld [vmem:[%s1010 + $0x1] sm:$0xff]
        %v1903 = vld [vmem:[%s1010 + $0x9] sm:$0xff]
        %v1904 = vld [vmem:[%s1010 + $0x19] sm:$0xff]
        %v1905 = vld [vmem:[%s1010 + $0x21] sm:$0xff]
        %v1906 = vld [vmem:[%s1010 + $0x31] sm:$0xff]
        %v1907 = vld [vmem:[%s1010 + $0x39] sm:$0xff]
        %v1908 = vld [vmem:[%s1010 + $0x49] sm:$0xff]
        %v1909 = vld [vmem:[%s1010 + $0x51] sm:$0xff]
        %v1910 = vld [vmem:[%s1010 + $0x61] sm:$0xff]
        %v1911 = vld [vmem:[%s1010 + $0x69] sm:$0xff]
        %v1912 = vld [vmem:[%s1010 + $0x79] sm:$0xff]
        %v1913 = vld [vmem:[%s1010 + $0x81] sm:$0xff]
        %v1914 = vld [vmem:[%s1010 + $0x91] sm:$0xff]
        %v1915 = vld [vmem:[%s1010 + $0x99] sm:$0xff]
        %v1916 = vld [vmem:[%s1010 + $0xa9] sm:$0xff]
        %v1917 = vld [vmem:[%s1010 + $0xb1] sm:$0xff]
        %1934 = vrot.lane.b32.xlu0 %v1902, 16
        %v1935 = vpop.permute.xlu0 %1934
        %1936 = vrot.lane.b32.xlu0 %v1903, 16
        %v1937 = vpop.permute.xlu0 %1936
        %1938 = vrot.lane.b32.xlu0 %v1904, 16
        %v1939 = vpop.permute.xlu0 %1938
        %1940 = vrot.lane.b32.xlu0 %v1905, 16
        %v1941 = vpop.permute.xlu0 %1940
        %1942 = vrot.lane.b32.xlu0 %v1906, 16
        %v1943 = vpop.permute.xlu0 %1942
        %1944 = vrot.lane.b32.xlu0 %v1907, 16
        %v1945 = vpop.permute.xlu0 %1944
        %1946 = vrot.lane.b32.xlu0 %v1908, 16
        %v1947 = vpop.permute.xlu0 %1946
        %1948 = vrot.lane.b32.xlu0 %v1909, 16
        %v1949 = vpop.permute.xlu0 %1948
        %1950 = vrot.lane.b32.xlu0 %v1910, 16
        %v1951 = vpop.permute.xlu0 %1950
        %1952 = vrot.lane.b32.xlu0 %v1911, 16
        %v1953 = vpop.permute.xlu0 %1952
        %1954 = vrot.lane.b32.xlu0 %v1912, 16
        %v1955 = vpop.permute.xlu0 %1954
        %1956 = vrot.lane.b32.xlu0 %v1913, 16
        %v1957 = vpop.permute.xlu0 %1956
        %1958 = vrot.lane.b32.xlu0 %v1914, 16
        %v1959 = vpop.permute.xlu0 %1958
        %1960 = vrot.lane.b32.xlu0 %v1915, 16
        %v1961 = vpop.permute.xlu0 %1960
        %1962 = vrot.lane.b32.xlu0 %v1916, 16
        %v1963 = vpop.permute.xlu0 %1962
        %1964 = vrot.lane.b32.xlu0 %v1917, 16
        %v1965 = vpop.permute.xlu0 %1964
        %1982 = vst.msk [vmem:[#allocation4 + $0x8] sm:$0xff] %vm1271, %v1935
        %1983 = vst.msk [vmem:[#allocation4 + $0x28] sm:$0xff] %vm1271, %v1937
        %1984 = vst.msk [vmem:[#allocation4 + $0x48] sm:$0xff] %vm1271, %v1939
        %1985 = vst.msk [vmem:[#allocation4 + $0x68] sm:$0xff] %vm1271, %v1941
        %1986 = vst.msk [vmem:[#allocation4 + $0x88] sm:$0xff] %vm1271, %v1943
        %1987 = vst.msk [vmem:[#allocation4 + $0xa8] sm:$0xff] %vm1271, %v1945
        %1988 = vst.msk [vmem:[#allocation4 + $0xc8] sm:$0xff] %vm1271, %v1947
        %1989 = vst.msk [vmem:[#allocation4 + $0xe8] sm:$0xff] %vm1271, %v1949
        %1990 = vst.msk [vmem:[#allocation4 + $0x108] sm:$0xff] %vm1271, %v1951
        %1991 = vst.msk [vmem:[#allocation4 + $0x128] sm:$0xff] %vm1271, %v1953
        %1992 = vst.msk [vmem:[#allocation4 + $0x148] sm:$0xff] %vm1271, %v1955
        %1993 = vst.msk [vmem:[#allocation4 + $0x168] sm:$0xff] %vm1271, %v1957
        %1994 = vst.msk [vmem:[#allocation4 + $0x188] sm:$0xff] %vm1271, %v1959
        %1995 = vst.msk [vmem:[#allocation4 + $0x1a8] sm:$0xff] %vm1271, %v1961
        %1996 = vst.msk [vmem:[#allocation4 + $0x1c8] sm:$0xff] %vm1271, %v1963
        %1997 = vst.msk [vmem:[#allocation4 + $0x1e8] sm:$0xff] %vm1271, %v1965
        %v1998 = vld [vmem:[#allocation3 + $0x2] sm:$0xff]
        %v1999 = vld [vmem:[#allocation3 + $0xa] sm:$0xff]
        %v2000 = vld [vmem:[#allocation3 + $0x1a] sm:$0xff]
        %v2001 = vld [vmem:[#allocation3 + $0x22] sm:$0xff]
        %v2002 = vld [vmem:[#allocation3 + $0x32] sm:$0xff]
        %v2003 = vld [vmem:[#allocation3 + $0x3a] sm:$0xff]
        %v2004 = vld [vmem:[#allocation3 + $0x4a] sm:$0xff]
        %v2005 = vld [vmem:[#allocation3 + $0x52] sm:$0xff]
        %v2006 = vld [vmem:[#allocation3 + $0x62] sm:$0xff]
        %v2007 = vld [vmem:[#allocation3 + $0x6a] sm:$0xff]
        %v2008 = vld [vmem:[#allocation3 + $0x7a] sm:$0xff]
        %v2009 = vld [vmem:[#allocation3 + $0x82] sm:$0xff]
        %v2010 = vld [vmem:[#allocation3 + $0x92] sm:$0xff]
        %v2011 = vld [vmem:[#allocation3 + $0x9a] sm:$0xff]
        %v2012 = vld [vmem:[#allocation3 + $0xaa] sm:$0xff]
        %v2013 = vld [vmem:[#allocation3 + $0xb2] sm:$0xff]
        %2030 = vrot.lane.b32.xlu0 %v1998, 32
        %v2031 = vpop.permute.xlu0 %2030
        %2032 = vrot.lane.b32.xlu0 %v1999, 32
        %v2033 = vpop.permute.xlu0 %2032
        %2034 = vrot.lane.b32.xlu0 %v2000, 32
        %v2035 = vpop.permute.xlu0 %2034
        %2036 = vrot.lane.b32.xlu0 %v2001, 32
        %v2037 = vpop.permute.xlu0 %2036
        %2038 = vrot.lane.b32.xlu0 %v2002, 32
        %v2039 = vpop.permute.xlu0 %2038
        %2040 = vrot.lane.b32.xlu0 %v2003, 32
        %v2041 = vpop.permute.xlu0 %2040
        %2042 = vrot.lane.b32.xlu0 %v2004, 32
        %v2043 = vpop.permute.xlu0 %2042
        %2044 = vrot.lane.b32.xlu0 %v2005, 32
        %v2045 = vpop.permute.xlu0 %2044
        %2046 = vrot.lane.b32.xlu0 %v2006, 32
        %v2047 = vpop.permute.xlu0 %2046
        %2048 = vrot.lane.b32.xlu0 %v2007, 32
        %v2049 = vpop.permute.xlu0 %2048
        %2050 = vrot.lane.b32.xlu0 %v2008, 32
        %v2051 = vpop.permute.xlu0 %2050
        %2052 = vrot.lane.b32.xlu0 %v2009, 32
        %v2053 = vpop.permute.xlu0 %2052
        %2054 = vrot.lane.b32.xlu0 %v2010, 32
        %v2055 = vpop.permute.xlu0 %2054
        %2056 = vrot.lane.b32.xlu0 %v2011, 32
        %v2057 = vpop.permute.xlu0 %2056
        %2058 = vrot.lane.b32.xlu0 %v2012, 32
        %v2059 = vpop.permute.xlu0 %2058
        %2060 = vrot.lane.b32.xlu0 %v2013, 32
        %v2061 = vpop.permute.xlu0 %2060
        %2078 = vst.msk [vmem:[#allocation4 + $0x8] sm:$0xff] %vm1368, %v2031
        %2079 = vst.msk [vmem:[#allocation4 + $0x28] sm:$0xff] %vm1368, %v2033
        %2080 = vst.msk [vmem:[#allocation4 + $0x48] sm:$0xff] %vm1368, %v2035
        %2081 = vst.msk [vmem:[#allocation4 + $0x68] sm:$0xff] %vm1368, %v2037
        %2082 = vst.msk [vmem:[#allocation4 + $0x88] sm:$0xff] %vm1368, %v2039
        %2083 = vst.msk [vmem:[#allocation4 + $0xa8] sm:$0xff] %vm1368, %v2041
        %2084 = vst.msk [vmem:[#allocation4 + $0xc8] sm:$0xff] %vm1368, %v2043
        %2085 = vst.msk [vmem:[#allocation4 + $0xe8] sm:$0xff] %vm1368, %v2045
        %2086 = vst.msk [vmem:[#allocation4 + $0x108] sm:$0xff] %vm1368, %v2047
        %2087 = vst.msk [vmem:[#allocation4 + $0x128] sm:$0xff] %vm1368, %v2049
        %2088 = vst.msk [vmem:[#allocation4 + $0x148] sm:$0xff] %vm1368, %v2051
        %2089 = vst.msk [vmem:[#allocation4 + $0x168] sm:$0xff] %vm1368, %v2053
        %2090 = vst.msk [vmem:[#allocation4 + $0x188] sm:$0xff] %vm1368, %v2055
        %2091 = vst.msk [vmem:[#allocation4 + $0x1a8] sm:$0xff] %vm1368, %v2057
        %2092 = vst.msk [vmem:[#allocation4 + $0x1c8] sm:$0xff] %vm1368, %v2059
        %2093 = vst.msk [vmem:[#allocation4 + $0x1e8] sm:$0xff] %vm1368, %v2061
        %v2094 = vld [vmem:[%s1190 + $0x2] sm:$0xff]
        %v2095 = vld [vmem:[%s1190 + $0xa] sm:$0xff]
        %v2096 = vld [vmem:[%s1190 + $0x1a] sm:$0xff]
        %v2097 = vld [vmem:[%s1190 + $0x22] sm:$0xff]
        %v2098 = vld [vmem:[%s1190 + $0x32] sm:$0xff]
        %v2099 = vld [vmem:[%s1190 + $0x3a] sm:$0xff]
        %v2100 = vld [vmem:[%s1190 + $0x4a] sm:$0xff]
        %v2101 = vld [vmem:[%s1190 + $0x52] sm:$0xff]
        %v2102 = vld [vmem:[%s1190 + $0x62] sm:$0xff]
        %v2103 = vld [vmem:[%s1190 + $0x6a] sm:$0xff]
        %v2104 = vld [vmem:[%s1190 + $0x7a] sm:$0xff]
        %v2105 = vld [vmem:[%s1190 + $0x82] sm:$0xff]
        %v2106 = vld [vmem:[%s1190 + $0x92] sm:$0xff]
        %v2107 = vld [vmem:[%s1190 + $0x9a] sm:$0xff]
        %v2108 = vld [vmem:[%s1190 + $0xaa] sm:$0xff]
        %v2109 = vld [vmem:[%s1190 + $0xb2] sm:$0xff]
        %2126 = vrot.lane.b32.xlu0 %v2094, 48
        %v2127 = vpop.permute.xlu0 %2126
        %2128 = vrot.lane.b32.xlu0 %v2095, 48
        %v2129 = vpop.permute.xlu0 %2128
        %2130 = vrot.lane.b32.xlu0 %v2096, 48
        %v2131 = vpop.permute.xlu0 %2130
        %2132 = vrot.lane.b32.xlu0 %v2097, 48
        %v2133 = vpop.permute.xlu0 %2132
        %2134 = vrot.lane.b32.xlu0 %v2098, 48
        %v2135 = vpop.permute.xlu0 %2134
        %2136 = vrot.lane.b32.xlu0 %v2099, 48
        %v2137 = vpop.permute.xlu0 %2136
        %2138 = vrot.lane.b32.xlu0 %v2100, 48
        %v2139 = vpop.permute.xlu0 %2138
        %2140 = vrot.lane.b32.xlu0 %v2101, 48
        %v2141 = vpop.permute.xlu0 %2140
        %2142 = vrot.lane.b32.xlu0 %v2102, 48
        %v2143 = vpop.permute.xlu0 %2142
        %2144 = vrot.lane.b32.xlu0 %v2103, 48
        %v2145 = vpop.permute.xlu0 %2144
        %2146 = vrot.lane.b32.xlu0 %v2104, 48
        %v2147 = vpop.permute.xlu0 %2146
        %2148 = vrot.lane.b32.xlu0 %v2105, 48
        %v2149 = vpop.permute.xlu0 %2148
        %2150 = vrot.lane.b32.xlu0 %v2106, 48
        %v2151 = vpop.permute.xlu0 %2150
        %2152 = vrot.lane.b32.xlu0 %v2107, 48
        %v2153 = vpop.permute.xlu0 %2152
        %2154 = vrot.lane.b32.xlu0 %v2108, 48
        %v2155 = vpop.permute.xlu0 %2154
        %2156 = vrot.lane.b32.xlu0 %v2109, 48
        %v2157 = vpop.permute.xlu0 %2156
        %2174 = vst.msk [vmem:[#allocation4 + $0x8] sm:$0xff] %vm1465, %v2127
        %2175 = vst.msk [vmem:[#allocation4 + $0x28] sm:$0xff] %vm1465, %v2129
        %2176 = vst.msk [vmem:[#allocation4 + $0x48] sm:$0xff] %vm1465, %v2131
        %2177 = vst.msk [vmem:[#allocation4 + $0x68] sm:$0xff] %vm1465, %v2133
        %2178 = vst.msk [vmem:[#allocation4 + $0x88] sm:$0xff] %vm1465, %v2135
        %2179 = vst.msk [vmem:[#allocation4 + $0xa8] sm:$0xff] %vm1465, %v2137
        %2180 = vst.msk [vmem:[#allocation4 + $0xc8] sm:$0xff] %vm1465, %v2139
        %2181 = vst.msk [vmem:[#allocation4 + $0xe8] sm:$0xff] %vm1465, %v2141
        %2182 = vst.msk [vmem:[#allocation4 + $0x108] sm:$0xff] %vm1465, %v2143
        %2183 = vst.msk [vmem:[#allocation4 + $0x128] sm:$0xff] %vm1465, %v2145
        %2184 = vst.msk [vmem:[#allocation4 + $0x148] sm:$0xff] %vm1465, %v2147
        %2185 = vst.msk [vmem:[#allocation4 + $0x168] sm:$0xff] %vm1465, %v2149
        %2186 = vst.msk [vmem:[#allocation4 + $0x188] sm:$0xff] %vm1465, %v2151
        %2187 = vst.msk [vmem:[#allocation4 + $0x1a8] sm:$0xff] %vm1465, %v2153
        %2188 = vst.msk [vmem:[#allocation4 + $0x1c8] sm:$0xff] %vm1465, %v2155
        %2189 = vst.msk [vmem:[#allocation4 + $0x1e8] sm:$0xff] %vm1465, %v2157
        %v2190 = vld [vmem:[%s952 + $0x2] sm:$0xff]
        %v2191 = vld [vmem:[%s952 + $0xa] sm:$0xff]
        %v2192 = vld [vmem:[%s952 + $0x1a] sm:$0xff]
        %v2193 = vld [vmem:[%s952 + $0x22] sm:$0xff]
        %v2194 = vld [vmem:[%s952 + $0x32] sm:$0xff]
        %v2195 = vld [vmem:[%s952 + $0x3a] sm:$0xff]
        %v2196 = vld [vmem:[%s952 + $0x4a] sm:$0xff]
        %v2197 = vld [vmem:[%s952 + $0x52] sm:$0xff]
        %v2198 = vld [vmem:[%s952 + $0x62] sm:$0xff]
        %v2199 = vld [vmem:[%s952 + $0x6a] sm:$0xff]
        %v2200 = vld [vmem:[%s952 + $0x7a] sm:$0xff]
        %v2201 = vld [vmem:[%s952 + $0x82] sm:$0xff]
        %v2202 = vld [vmem:[%s952 + $0x92] sm:$0xff]
        %v2203 = vld [vmem:[%s952 + $0x9a] sm:$0xff]
        %v2204 = vld [vmem:[%s952 + $0xaa] sm:$0xff]
        %v2205 = vld [vmem:[%s952 + $0xb2] sm:$0xff]
        %2222 = vrot.lane.b32.xlu0 %v2190, 64
        %v2223 = vpop.permute.xlu0 %2222
        %2224 = vrot.lane.b32.xlu0 %v2191, 64
        %v2225 = vpop.permute.xlu0 %2224
        %2226 = vrot.lane.b32.xlu0 %v2192, 64
        %v2227 = vpop.permute.xlu0 %2226
        %2228 = vrot.lane.b32.xlu0 %v2193, 64
        %v2229 = vpop.permute.xlu0 %2228
        %2230 = vrot.lane.b32.xlu0 %v2194, 64
        %v2231 = vpop.permute.xlu0 %2230
        %2232 = vrot.lane.b32.xlu0 %v2195, 64
        %v2233 = vpop.permute.xlu0 %2232
        %2234 = vrot.lane.b32.xlu0 %v2196, 64
        %v2235 = vpop.permute.xlu0 %2234
        %2236 = vrot.lane.b32.xlu0 %v2197, 64
        %v2237 = vpop.permute.xlu0 %2236
        %2238 = vrot.lane.b32.xlu0 %v2198, 64
        %v2239 = vpop.permute.xlu0 %2238
        %2240 = vrot.lane.b32.xlu0 %v2199, 64
        %v2241 = vpop.permute.xlu0 %2240
        %2242 = vrot.lane.b32.xlu0 %v2200, 64
        %v2243 = vpop.permute.xlu0 %2242
        %2244 = vrot.lane.b32.xlu0 %v2201, 64
        %v2245 = vpop.permute.xlu0 %2244
        %2246 = vrot.lane.b32.xlu0 %v2202, 64
        %v2247 = vpop.permute.xlu0 %2246
        %2248 = vrot.lane.b32.xlu0 %v2203, 64
        %v2249 = vpop.permute.xlu0 %2248
        %2250 = vrot.lane.b32.xlu0 %v2204, 64
        %v2251 = vpop.permute.xlu0 %2250
        %2252 = vrot.lane.b32.xlu0 %v2205, 64
        %v2253 = vpop.permute.xlu0 %2252
        %2270 = vst.msk [vmem:[#allocation4 + $0x8] sm:$0xff] %vm1562, %v2223
        %2271 = vst.msk [vmem:[#allocation4 + $0x28] sm:$0xff] %vm1562, %v2225
        %2272 = vst.msk [vmem:[#allocation4 + $0x48] sm:$0xff] %vm1562, %v2227
        %2273 = vst.msk [vmem:[#allocation4 + $0x68] sm:$0xff] %vm1562, %v2229
        %2274 = vst.msk [vmem:[#allocation4 + $0x88] sm:$0xff] %vm1562, %v2231
        %2275 = vst.msk [vmem:[#allocation4 + $0xa8] sm:$0xff] %vm1562, %v2233
        %2276 = vst.msk [vmem:[#allocation4 + $0xc8] sm:$0xff] %vm1562, %v2235
        %2277 = vst.msk [vmem:[#allocation4 + $0xe8] sm:$0xff] %vm1562, %v2237
        %2278 = vst.msk [vmem:[#allocation4 + $0x108] sm:$0xff] %vm1562, %v2239
        %2279 = vst.msk [vmem:[#allocation4 + $0x128] sm:$0xff] %vm1562, %v2241
        %2280 = vst.msk [vmem:[#allocation4 + $0x148] sm:$0xff] %vm1562, %v2243
        %2281 = vst.msk [vmem:[#allocation4 + $0x168] sm:$0xff] %vm1562, %v2245
        %2282 = vst.msk [vmem:[#allocation4 + $0x188] sm:$0xff] %vm1562, %v2247
        %2283 = vst.msk [vmem:[#allocation4 + $0x1a8] sm:$0xff] %vm1562, %v2249
        %2284 = vst.msk [vmem:[#allocation4 + $0x1c8] sm:$0xff] %vm1562, %v2251
        %2285 = vst.msk [vmem:[#allocation4 + $0x1e8] sm:$0xff] %vm1562, %v2253
        %v2286 = vld [vmem:[%s981 + $0x2] sm:$0xff]
        %v2287 = vld [vmem:[%s981 + $0xa] sm:$0xff]
        %v2288 = vld [vmem:[%s981 + $0x1a] sm:$0xff]
        %v2289 = vld [vmem:[%s981 + $0x22] sm:$0xff]
        %v2290 = vld [vmem:[%s981 + $0x32] sm:$0xff]
        %v2291 = vld [vmem:[%s981 + $0x3a] sm:$0xff]
        %v2292 = vld [vmem:[%s981 + $0x4a] sm:$0xff]
        %v2293 = vld [vmem:[%s981 + $0x52] sm:$0xff]
        %v2294 = vld [vmem:[%s981 + $0x62] sm:$0xff]
        %v2295 = vld [vmem:[%s981 + $0x6a] sm:$0xff]
        %v2296 = vld [vmem:[%s981 + $0x7a] sm:$0xff]
        %v2297 = vld [vmem:[%s981 + $0x82] sm:$0xff]
        %v2298 = vld [vmem:[%s981 + $0x92] sm:$0xff]
        %v2299 = vld [vmem:[%s981 + $0x9a] sm:$0xff]
        %v2300 = vld [vmem:[%s981 + $0xaa] sm:$0xff]
        %v2301 = vld [vmem:[%s981 + $0xb2] sm:$0xff]
        %2318 = vrot.lane.b32.xlu0 %v2286, 80
        %v2319 = vpop.permute.xlu0 %2318
        %2320 = vrot.lane.b32.xlu0 %v2287, 80
        %v2321 = vpop.permute.xlu0 %2320
        %2322 = vrot.lane.b32.xlu0 %v2288, 80
        %v2323 = vpop.permute.xlu0 %2322
        %2324 = vrot.lane.b32.xlu0 %v2289, 80
        %v2325 = vpop.permute.xlu0 %2324
        %2326 = vrot.lane.b32.xlu0 %v2290, 80
        %v2327 = vpop.permute.xlu0 %2326
        %2328 = vrot.lane.b32.xlu0 %v2291, 80
        %v2329 = vpop.permute.xlu0 %2328
        %2330 = vrot.lane.b32.xlu0 %v2292, 80
        %v2331 = vpop.permute.xlu0 %2330
        %2332 = vrot.lane.b32.xlu0 %v2293, 80
        %v2333 = vpop.permute.xlu0 %2332
        %2334 = vrot.lane.b32.xlu0 %v2294, 80
        %v2335 = vpop.permute.xlu0 %2334
        %2336 = vrot.lane.b32.xlu0 %v2295, 80
        %v2337 = vpop.permute.xlu0 %2336
        %2338 = vrot.lane.b32.xlu0 %v2296, 80
        %v2339 = vpop.permute.xlu0 %2338
        %2340 = vrot.lane.b32.xlu0 %v2297, 80
        %v2341 = vpop.permute.xlu0 %2340
        %2342 = vrot.lane.b32.xlu0 %v2298, 80
        %v2343 = vpop.permute.xlu0 %2342
        %2344 = vrot.lane.b32.xlu0 %v2299, 80
        %v2345 = vpop.permute.xlu0 %2344
        %2346 = vrot.lane.b32.xlu0 %v2300, 80
        %v2347 = vpop.permute.xlu0 %2346
        %2348 = vrot.lane.b32.xlu0 %v2301, 80
        %v2349 = vpop.permute.xlu0 %2348
        %2366 = vst.msk [vmem:[#allocation4 + $0x8] sm:$0xff] %vm1659, %v2319
        %2367 = vst.msk [vmem:[#allocation4 + $0x28] sm:$0xff] %vm1659, %v2321
        %2368 = vst.msk [vmem:[#allocation4 + $0x48] sm:$0xff] %vm1659, %v2323
        %2369 = vst.msk [vmem:[#allocation4 + $0x68] sm:$0xff] %vm1659, %v2325
        %2370 = vst.msk [vmem:[#allocation4 + $0x88] sm:$0xff] %vm1659, %v2327
        %2371 = vst.msk [vmem:[#allocation4 + $0xa8] sm:$0xff] %vm1659, %v2329
        %2372 = vst.msk [vmem:[#allocation4 + $0xc8] sm:$0xff] %vm1659, %v2331
        %2373 = vst.msk [vmem:[#allocation4 + $0xe8] sm:$0xff] %vm1659, %v2333
        %2374 = vst.msk [vmem:[#allocation4 + $0x108] sm:$0xff] %vm1659, %v2335
        %2375 = vst.msk [vmem:[#allocation4 + $0x128] sm:$0xff] %vm1659, %v2337
        %2376 = vst.msk [vmem:[#allocation4 + $0x148] sm:$0xff] %vm1659, %v2339
        %2377 = vst.msk [vmem:[#allocation4 + $0x168] sm:$0xff] %vm1659, %v2341
        %2378 = vst.msk [vmem:[#allocation4 + $0x188] sm:$0xff] %vm1659, %v2343
        %2379 = vst.msk [vmem:[#allocation4 + $0x1a8] sm:$0xff] %vm1659, %v2345
        %2380 = vst.msk [vmem:[#allocation4 + $0x1c8] sm:$0xff] %vm1659, %v2347
        %2381 = vst.msk [vmem:[#allocation4 + $0x1e8] sm:$0xff] %vm1659, %v2349
        %v2382 = vld [vmem:[%s1010 + $0x2] sm:$0xff]
        %v2383 = vld [vmem:[%s1010 + $0xa] sm:$0xff]
        %v2384 = vld [vmem:[%s1010 + $0x1a] sm:$0xff]
        %v2385 = vld [vmem:[%s1010 + $0x22] sm:$0xff]
        %v2386 = vld [vmem:[%s1010 + $0x32] sm:$0xff]
        %v2387 = vld [vmem:[%s1010 + $0x3a] sm:$0xff]
        %v2388 = vld [vmem:[%s1010 + $0x4a] sm:$0xff]
        %v2389 = vld [vmem:[%s1010 + $0x52] sm:$0xff]
        %v2390 = vld [vmem:[%s1010 + $0x62] sm:$0xff]
        %v2391 = vld [vmem:[%s1010 + $0x6a] sm:$0xff]
        %v2392 = vld [vmem:[%s1010 + $0x7a] sm:$0xff]
        %v2393 = vld [vmem:[%s1010 + $0x82] sm:$0xff]
        %v2394 = vld [vmem:[%s1010 + $0x92] sm:$0xff]
        %v2395 = vld [vmem:[%s1010 + $0x9a] sm:$0xff]
        %v2396 = vld [vmem:[%s1010 + $0xaa] sm:$0xff]
        %v2397 = vld [vmem:[%s1010 + $0xb2] sm:$0xff]
        %2414 = vrot.lane.b32.xlu0 %v2382, 96
        %v2415 = vpop.permute.xlu0 %2414
        %2416 = vrot.lane.b32.xlu0 %v2383, 96
        %v2417 = vpop.permute.xlu0 %2416
        %2418 = vrot.lane.b32.xlu0 %v2384, 96
        %v2419 = vpop.permute.xlu0 %2418
        %2420 = vrot.lane.b32.xlu0 %v2385, 96
        %v2421 = vpop.permute.xlu0 %2420
        %2422 = vrot.lane.b32.xlu0 %v2386, 96
        %v2423 = vpop.permute.xlu0 %2422
        %2424 = vrot.lane.b32.xlu0 %v2387, 96
        %v2425 = vpop.permute.xlu0 %2424
        %2426 = vrot.lane.b32.xlu0 %v2388, 96
        %v2427 = vpop.permute.xlu0 %2426
        %2428 = vrot.lane.b32.xlu0 %v2389, 96
        %v2429 = vpop.permute.xlu0 %2428
        %2430 = vrot.lane.b32.xlu0 %v2390, 96
        %v2431 = vpop.permute.xlu0 %2430
        %2432 = vrot.lane.b32.xlu0 %v2391, 96
        %v2433 = vpop.permute.xlu0 %2432
        %2434 = vrot.lane.b32.xlu0 %v2392, 96
        %v2435 = vpop.permute.xlu0 %2434
        %2436 = vrot.lane.b32.xlu0 %v2393, 96
        %v2437 = vpop.permute.xlu0 %2436
        %2438 = vrot.lane.b32.xlu0 %v2394, 96
        %v2439 = vpop.permute.xlu0 %2438
        %2440 = vrot.lane.b32.xlu0 %v2395, 96
        %v2441 = vpop.permute.xlu0 %2440
        %2442 = vrot.lane.b32.xlu0 %v2396, 96
        %v2443 = vpop.permute.xlu0 %2442
        %2444 = vrot.lane.b32.xlu0 %v2397, 96
        %v2445 = vpop.permute.xlu0 %2444
        %2462 = vst.msk [vmem:[#allocation4 + $0x8] sm:$0xff] %vm1756, %v2415
        %2463 = vst.msk [vmem:[#allocation4 + $0x28] sm:$0xff] %vm1756, %v2417
        %2464 = vst.msk [vmem:[#allocation4 + $0x48] sm:$0xff] %vm1756, %v2419
        %2465 = vst.msk [vmem:[#allocation4 + $0x68] sm:$0xff] %vm1756, %v2421
        %2466 = vst.msk [vmem:[#allocation4 + $0x88] sm:$0xff] %vm1756, %v2423
        %2467 = vst.msk [vmem:[#allocation4 + $0xa8] sm:$0xff] %vm1756, %v2425
        %2468 = vst.msk [vmem:[#allocation4 + $0xc8] sm:$0xff] %vm1756, %v2427
        %2469 = vst.msk [vmem:[#allocation4 + $0xe8] sm:$0xff] %vm1756, %v2429
        %2470 = vst.msk [vmem:[#allocation4 + $0x108] sm:$0xff] %vm1756, %v2431
        %2471 = vst.msk [vmem:[#allocation4 + $0x128] sm:$0xff] %vm1756, %v2433
        %2472 = vst.msk [vmem:[#allocation4 + $0x148] sm:$0xff] %vm1756, %v2435
        %2473 = vst.msk [vmem:[#allocation4 + $0x168] sm:$0xff] %vm1756, %v2437
        %2474 = vst.msk [vmem:[#allocation4 + $0x188] sm:$0xff] %vm1756, %v2439
        %2475 = vst.msk [vmem:[#allocation4 + $0x1a8] sm:$0xff] %vm1756, %v2441
        %2476 = vst.msk [vmem:[#allocation4 + $0x1c8] sm:$0xff] %vm1756, %v2443
        %2477 = vst.msk [vmem:[#allocation4 + $0x1e8] sm:$0xff] %vm1756, %v2445
        %v2478 = vld [vmem:[#allocation3 + $0x3] sm:$0xff]
        %v2479 = vld [vmem:[#allocation3 + $0xb] sm:$0xff]
        %v2480 = vld [vmem:[#allocation3 + $0x1b] sm:$0xff]
        %v2481 = vld [vmem:[#allocation3 + $0x23] sm:$0xff]
        %v2482 = vld [vmem:[#allocation3 + $0x33] sm:$0xff]
        %v2483 = vld [vmem:[#allocation3 + $0x3b] sm:$0xff]
        %v2484 = vld [vmem:[#allocation3 + $0x4b] sm:$0xff]
        %v2485 = vld [vmem:[#allocation3 + $0x53] sm:$0xff]
        %v2486 = vld [vmem:[#allocation3 + $0x63] sm:$0xff]
        %v2487 = vld [vmem:[#allocation3 + $0x6b] sm:$0xff]
        %v2488 = vld [vmem:[#allocation3 + $0x7b] sm:$0xff]
        %v2489 = vld [vmem:[#allocation3 + $0x83] sm:$0xff]
        %v2490 = vld [vmem:[#allocation3 + $0x93] sm:$0xff]
        %v2491 = vld [vmem:[#allocation3 + $0x9b] sm:$0xff]
        %v2492 = vld [vmem:[#allocation3 + $0xab] sm:$0xff]
        %v2493 = vld [vmem:[#allocation3 + $0xb3] sm:$0xff]
        %2510 = vrot.lane.b32.xlu0 %v2478, 112
        %v2511 = vpop.permute.xlu0 %2510
        %2512 = vrot.lane.b32.xlu0 %v2479, 112
        %v2513 = vpop.permute.xlu0 %2512
        %2514 = vrot.lane.b32.xlu0 %v2480, 112
        %v2515 = vpop.permute.xlu0 %2514
        %2516 = vrot.lane.b32.xlu0 %v2481, 112
        %v2517 = vpop.permute.xlu0 %2516
        %2518 = vrot.lane.b32.xlu0 %v2482, 112
        %v2519 = vpop.permute.xlu0 %2518
        %2520 = vrot.lane.b32.xlu0 %v2483, 112
        %v2521 = vpop.permute.xlu0 %2520
        %2522 = vrot.lane.b32.xlu0 %v2484, 112
        %v2523 = vpop.permute.xlu0 %2522
        %2524 = vrot.lane.b32.xlu0 %v2485, 112
        %v2525 = vpop.permute.xlu0 %2524
        %2526 = vrot.lane.b32.xlu0 %v2486, 112
        %v2527 = vpop.permute.xlu0 %2526
        %2528 = vrot.lane.b32.xlu0 %v2487, 112
        %v2529 = vpop.permute.xlu0 %2528
        %2530 = vrot.lane.b32.xlu0 %v2488, 112
        %v2531 = vpop.permute.xlu0 %2530
        %2532 = vrot.lane.b32.xlu0 %v2489, 112
        %v2533 = vpop.permute.xlu0 %2532
        %2534 = vrot.lane.b32.xlu0 %v2490, 112
        %v2535 = vpop.permute.xlu0 %2534
        %2536 = vrot.lane.b32.xlu0 %v2491, 112
        %v2537 = vpop.permute.xlu0 %2536
        %2538 = vrot.lane.b32.xlu0 %v2492, 112
        %v2539 = vpop.permute.xlu0 %2538
        %2540 = vrot.lane.b32.xlu0 %v2493, 112
        %v2541 = vpop.permute.xlu0 %2540
        %2558 = vst.msk [vmem:[#allocation4 + $0x8] sm:$0xff] %vm1853, %v2511
        %2559 = vst.msk [vmem:[#allocation4 + $0x28] sm:$0xff] %vm1853, %v2513
        %2560 = vst.msk [vmem:[#allocation4 + $0x48] sm:$0xff] %vm1853, %v2515
        %2561 = vst.msk [vmem:[#allocation4 + $0x68] sm:$0xff] %vm1853, %v2517
        %2562 = vst.msk [vmem:[#allocation4 + $0x88] sm:$0xff] %vm1853, %v2519
        %2563 = vst.msk [vmem:[#allocation4 + $0xa8] sm:$0xff] %vm1853, %v2521
        %2564 = vst.msk [vmem:[#allocation4 + $0xc8] sm:$0xff] %vm1853, %v2523
        %2565 = vst.msk [vmem:[#allocation4 + $0xe8] sm:$0xff] %vm1853, %v2525
        %2566 = vst.msk [vmem:[#allocation4 + $0x108] sm:$0xff] %vm1853, %v2527
        %2567 = vst.msk [vmem:[#allocation4 + $0x128] sm:$0xff] %vm1853, %v2529
        %2568 = vst.msk [vmem:[#allocation4 + $0x148] sm:$0xff] %vm1853, %v2531
        %2569 = vst.msk [vmem:[#allocation4 + $0x168] sm:$0xff] %vm1853, %v2533
        %2570 = vst.msk [vmem:[#allocation4 + $0x188] sm:$0xff] %vm1853, %v2535
        %2571 = vst.msk [vmem:[#allocation4 + $0x1a8] sm:$0xff] %vm1853, %v2537
        %2572 = vst.msk [vmem:[#allocation4 + $0x1c8] sm:$0xff] %vm1853, %v2539
        %2573 = vst.msk [vmem:[#allocation4 + $0x1e8] sm:$0xff] %vm1853, %v2541
        %v2574 = vld [vmem:[%s1190 + $0x3] sm:$0xff]
        %v2575 = vld [vmem:[%s1190 + $0xb] sm:$0xff]
        %v2576 = vld [vmem:[%s1190 + $0x1b] sm:$0xff]
        %v2577 = vld [vmem:[%s1190 + $0x23] sm:$0xff]
        %v2578 = vld [vmem:[%s1190 + $0x33] sm:$0xff]
        %v2579 = vld [vmem:[%s1190 + $0x3b] sm:$0xff]
        %v2580 = vld [vmem:[%s1190 + $0x4b] sm:$0xff]
        %v2581 = vld [vmem:[%s1190 + $0x53] sm:$0xff]
        %v2582 = vld [vmem:[%s1190 + $0x63] sm:$0xff]
        %v2583 = vld [vmem:[%s1190 + $0x6b] sm:$0xff]
        %v2584 = vld [vmem:[%s1190 + $0x7b] sm:$0xff]
        %v2585 = vld [vmem:[%s1190 + $0x83] sm:$0xff]
        %v2586 = vld [vmem:[%s1190 + $0x93] sm:$0xff]
        %v2587 = vld [vmem:[%s1190 + $0x9b] sm:$0xff]
        %v2588 = vld [vmem:[%s1190 + $0xab] sm:$0xff]
        %v2589 = vld [vmem:[%s1190 + $0xb3] sm:$0xff]
        %2590 = vst.msk [vmem:[#allocation4 + $0x10] sm:$0xff] %vm472, %v2574
        %2591 = vst.msk [vmem:[#allocation4 + $0x30] sm:$0xff] %vm472, %v2575
        %2592 = vst.msk [vmem:[#allocation4 + $0x50] sm:$0xff] %vm472, %v2576
        %2593 = vst.msk [vmem:[#allocation4 + $0x70] sm:$0xff] %vm472, %v2577
        %2594 = vst.msk [vmem:[#allocation4 + $0x90] sm:$0xff] %vm472, %v2578
        %2595 = vst.msk [vmem:[#allocation4 + $0xb0] sm:$0xff] %vm472, %v2579
        %2596 = vst.msk [vmem:[#allocation4 + $0xd0] sm:$0xff] %vm472, %v2580
        %2597 = vst.msk [vmem:[#allocation4 + $0xf0] sm:$0xff] %vm472, %v2581
        %2598 = vst.msk [vmem:[#allocation4 + $0x110] sm:$0xff] %vm472, %v2582
        %2599 = vst.msk [vmem:[#allocation4 + $0x130] sm:$0xff] %vm472, %v2583
        %2600 = vst.msk [vmem:[#allocation4 + $0x150] sm:$0xff] %vm472, %v2584
        %2601 = vst.msk [vmem:[#allocation4 + $0x170] sm:$0xff] %vm472, %v2585
        %2602 = vst.msk [vmem:[#allocation4 + $0x190] sm:$0xff] %vm472, %v2586
        %2603 = vst.msk [vmem:[#allocation4 + $0x1b0] sm:$0xff] %vm472, %v2587
        %2604 = vst.msk [vmem:[#allocation4 + $0x1d0] sm:$0xff] %vm472, %v2588
        %2605 = vst.msk [vmem:[#allocation4 + $0x1f0] sm:$0xff] %vm472, %v2589
        %v2606 = vld [vmem:[%s952 + $0x3] sm:$0xff]
        %v2607 = vld [vmem:[%s952 + $0xb] sm:$0xff]
        %v2608 = vld [vmem:[%s952 + $0x1b] sm:$0xff]
        %v2609 = vld [vmem:[%s952 + $0x23] sm:$0xff]
        %v2610 = vld [vmem:[%s952 + $0x33] sm:$0xff]
        %v2611 = vld [vmem:[%s952 + $0x3b] sm:$0xff]
        %v2612 = vld [vmem:[%s952 + $0x4b] sm:$0xff]
        %v2613 = vld [vmem:[%s952 + $0x53] sm:$0xff]
        %v2614 = vld [vmem:[%s952 + $0x63] sm:$0xff]
        %v2615 = vld [vmem:[%s952 + $0x6b] sm:$0xff]
        %v2616 = vld [vmem:[%s952 + $0x7b] sm:$0xff]
        %v2617 = vld [vmem:[%s952 + $0x83] sm:$0xff]
        %v2618 = vld [vmem:[%s952 + $0x93] sm:$0xff]
        %v2619 = vld [vmem:[%s952 + $0x9b] sm:$0xff]
        %v2620 = vld [vmem:[%s952 + $0xab] sm:$0xff]
        %v2621 = vld [vmem:[%s952 + $0xb3] sm:$0xff]
        %2638 = vrot.lane.b32.xlu0 %v2606, 16
        %v2639 = vpop.permute.xlu0 %2638
        %2640 = vrot.lane.b32.xlu0 %v2607, 16
        %v2641 = vpop.permute.xlu0 %2640
        %2642 = vrot.lane.b32.xlu0 %v2608, 16
        %v2643 = vpop.permute.xlu0 %2642
        %2644 = vrot.lane.b32.xlu0 %v2609, 16
        %v2645 = vpop.permute.xlu0 %2644
        %2646 = vrot.lane.b32.xlu0 %v2610, 16
        %v2647 = vpop.permute.xlu0 %2646
        %2648 = vrot.lane.b32.xlu0 %v2611, 16
        %v2649 = vpop.permute.xlu0 %2648
        %2650 = vrot.lane.b32.xlu0 %v2612, 16
        %v2651 = vpop.permute.xlu0 %2650
        %2652 = vrot.lane.b32.xlu0 %v2613, 16
        %v2653 = vpop.permute.xlu0 %2652
        %2654 = vrot.lane.b32.xlu0 %v2614, 16
        %v2655 = vpop.permute.xlu0 %2654
        %2656 = vrot.lane.b32.xlu0 %v2615, 16
        %v2657 = vpop.permute.xlu0 %2656
        %2658 = vrot.lane.b32.xlu0 %v2616, 16
        %v2659 = vpop.permute.xlu0 %2658
        %2660 = vrot.lane.b32.xlu0 %v2617, 16
        %v2661 = vpop.permute.xlu0 %2660
        %2662 = vrot.lane.b32.xlu0 %v2618, 16
        %v2663 = vpop.permute.xlu0 %2662
        %2664 = vrot.lane.b32.xlu0 %v2619, 16
        %v2665 = vpop.permute.xlu0 %2664
        %2666 = vrot.lane.b32.xlu0 %v2620, 16
        %v2667 = vpop.permute.xlu0 %2666
        %2668 = vrot.lane.b32.xlu0 %v2621, 16
        %v2669 = vpop.permute.xlu0 %2668
        %2686 = vst.msk [vmem:[#allocation4 + $0x10] sm:$0xff] %vm1271, %v2639
        %2687 = vst.msk [vmem:[#allocation4 + $0x30] sm:$0xff] %vm1271, %v2641
        %2688 = vst.msk [vmem:[#allocation4 + $0x50] sm:$0xff] %vm1271, %v2643
        %2689 = vst.msk [vmem:[#allocation4 + $0x70] sm:$0xff] %vm1271, %v2645
        %2690 = vst.msk [vmem:[#allocation4 + $0x90] sm:$0xff] %vm1271, %v2647
        %2691 = vst.msk [vmem:[#allocation4 + $0xb0] sm:$0xff] %vm1271, %v2649
        %2692 = vst.msk [vmem:[#allocation4 + $0xd0] sm:$0xff] %vm1271, %v2651
        %2693 = vst.msk [vmem:[#allocation4 + $0xf0] sm:$0xff] %vm1271, %v2653
        %2694 = vst.msk [vmem:[#allocation4 + $0x110] sm:$0xff] %vm1271, %v2655
        %2695 = vst.msk [vmem:[#allocation4 + $0x130] sm:$0xff] %vm1271, %v2657
        %2696 = vst.msk [vmem:[#allocation4 + $0x150] sm:$0xff] %vm1271, %v2659
        %2697 = vst.msk [vmem:[#allocation4 + $0x170] sm:$0xff] %vm1271, %v2661
        %2698 = vst.msk [vmem:[#allocation4 + $0x190] sm:$0xff] %vm1271, %v2663
        %2699 = vst.msk [vmem:[#allocation4 + $0x1b0] sm:$0xff] %vm1271, %v2665
        %2700 = vst.msk [vmem:[#allocation4 + $0x1d0] sm:$0xff] %vm1271, %v2667
        %2701 = vst.msk [vmem:[#allocation4 + $0x1f0] sm:$0xff] %vm1271, %v2669
        %v2702 = vld [vmem:[%s981 + $0x3] sm:$0xff]
        %v2703 = vld [vmem:[%s981 + $0xb] sm:$0xff]
        %v2704 = vld [vmem:[%s981 + $0x1b] sm:$0xff]
        %v2705 = vld [vmem:[%s981 + $0x23] sm:$0xff]
        %v2706 = vld [vmem:[%s981 + $0x33] sm:$0xff]
        %v2707 = vld [vmem:[%s981 + $0x3b] sm:$0xff]
        %v2708 = vld [vmem:[%s981 + $0x4b] sm:$0xff]
        %v2709 = vld [vmem:[%s981 + $0x53] sm:$0xff]
        %v2710 = vld [vmem:[%s981 + $0x63] sm:$0xff]
        %v2711 = vld [vmem:[%s981 + $0x6b] sm:$0xff]
        %v2712 = vld [vmem:[%s981 + $0x7b] sm:$0xff]
        %v2713 = vld [vmem:[%s981 + $0x83] sm:$0xff]
        %v2714 = vld [vmem:[%s981 + $0x93] sm:$0xff]
        %v2715 = vld [vmem:[%s981 + $0x9b] sm:$0xff]
        %v2716 = vld [vmem:[%s981 + $0xab] sm:$0xff]
        %v2717 = vld [vmem:[%s981 + $0xb3] sm:$0xff]
        %2734 = vrot.lane.b32.xlu0 %v2702, 32
        %v2735 = vpop.permute.xlu0 %2734
        %2736 = vrot.lane.b32.xlu0 %v2703, 32
        %v2737 = vpop.permute.xlu0 %2736
        %2738 = vrot.lane.b32.xlu0 %v2704, 32
        %v2739 = vpop.permute.xlu0 %2738
        %2740 = vrot.lane.b32.xlu0 %v2705, 32
        %v2741 = vpop.permute.xlu0 %2740
        %2742 = vrot.lane.b32.xlu0 %v2706, 32
        %v2743 = vpop.permute.xlu0 %2742
        %2744 = vrot.lane.b32.xlu0 %v2707, 32
        %v2745 = vpop.permute.xlu0 %2744
        %2746 = vrot.lane.b32.xlu0 %v2708, 32
        %v2747 = vpop.permute.xlu0 %2746
        %2748 = vrot.lane.b32.xlu0 %v2709, 32
        %v2749 = vpop.permute.xlu0 %2748
        %2750 = vrot.lane.b32.xlu0 %v2710, 32
        %v2751 = vpop.permute.xlu0 %2750
        %2752 = vrot.lane.b32.xlu0 %v2711, 32
        %v2753 = vpop.permute.xlu0 %2752
        %2754 = vrot.lane.b32.xlu0 %v2712, 32
        %v2755 = vpop.permute.xlu0 %2754
        %2756 = vrot.lane.b32.xlu0 %v2713, 32
        %v2757 = vpop.permute.xlu0 %2756
        %2758 = vrot.lane.b32.xlu0 %v2714, 32
        %v2759 = vpop.permute.xlu0 %2758
        %2760 = vrot.lane.b32.xlu0 %v2715, 32
        %v2761 = vpop.permute.xlu0 %2760
        %2762 = vrot.lane.b32.xlu0 %v2716, 32
        %v2763 = vpop.permute.xlu0 %2762
        %2764 = vrot.lane.b32.xlu0 %v2717, 32
        %v2765 = vpop.permute.xlu0 %2764
        %2782 = vst.msk [vmem:[#allocation4 + $0x10] sm:$0xff] %vm1368, %v2735
        %2783 = vst.msk [vmem:[#allocation4 + $0x30] sm:$0xff] %vm1368, %v2737
        %2784 = vst.msk [vmem:[#allocation4 + $0x50] sm:$0xff] %vm1368, %v2739
        %2785 = vst.msk [vmem:[#allocation4 + $0x70] sm:$0xff] %vm1368, %v2741
        %2786 = vst.msk [vmem:[#allocation4 + $0x90] sm:$0xff] %vm1368, %v2743
        %2787 = vst.msk [vmem:[#allocation4 + $0xb0] sm:$0xff] %vm1368, %v2745
        %2788 = vst.msk [vmem:[#allocation4 + $0xd0] sm:$0xff] %vm1368, %v2747
        %2789 = vst.msk [vmem:[#allocation4 + $0xf0] sm:$0xff] %vm1368, %v2749
        %2790 = vst.msk [vmem:[#allocation4 + $0x110] sm:$0xff] %vm1368, %v2751
        %2791 = vst.msk [vmem:[#allocation4 + $0x130] sm:$0xff] %vm1368, %v2753
        %2792 = vst.msk [vmem:[#allocation4 + $0x150] sm:$0xff] %vm1368, %v2755
        %2793 = vst.msk [vmem:[#allocation4 + $0x170] sm:$0xff] %vm1368, %v2757
        %2794 = vst.msk [vmem:[#allocation4 + $0x190] sm:$0xff] %vm1368, %v2759
        %2795 = vst.msk [vmem:[#allocation4 + $0x1b0] sm:$0xff] %vm1368, %v2761
        %2796 = vst.msk [vmem:[#allocation4 + $0x1d0] sm:$0xff] %vm1368, %v2763
        %2797 = vst.msk [vmem:[#allocation4 + $0x1f0] sm:$0xff] %vm1368, %v2765
        %v2798 = vld [vmem:[%s1010 + $0x3] sm:$0xff]
        %v2799 = vld [vmem:[%s1010 + $0xb] sm:$0xff]
        %v2800 = vld [vmem:[%s1010 + $0x1b] sm:$0xff]
        %v2801 = vld [vmem:[%s1010 + $0x23] sm:$0xff]
        %v2802 = vld [vmem:[%s1010 + $0x33] sm:$0xff]
        %v2803 = vld [vmem:[%s1010 + $0x3b] sm:$0xff]
        %v2804 = vld [vmem:[%s1010 + $0x4b] sm:$0xff]
        %v2805 = vld [vmem:[%s1010 + $0x53] sm:$0xff]
        %v2806 = vld [vmem:[%s1010 + $0x63] sm:$0xff]
        %v2807 = vld [vmem:[%s1010 + $0x6b] sm:$0xff]
        %v2808 = vld [vmem:[%s1010 + $0x7b] sm:$0xff]
        %v2809 = vld [vmem:[%s1010 + $0x83] sm:$0xff]
        %v2810 = vld [vmem:[%s1010 + $0x93] sm:$0xff]
        %v2811 = vld [vmem:[%s1010 + $0x9b] sm:$0xff]
        %v2812 = vld [vmem:[%s1010 + $0xab] sm:$0xff]
        %v2813 = vld [vmem:[%s1010 + $0xb3] sm:$0xff]
        %2830 = vrot.lane.b32.xlu0 %v2798, 48
        %v2831 = vpop.permute.xlu0 %2830
        %2832 = vrot.lane.b32.xlu0 %v2799, 48
        %v2833 = vpop.permute.xlu0 %2832
        %2834 = vrot.lane.b32.xlu0 %v2800, 48
        %v2835 = vpop.permute.xlu0 %2834
        %2836 = vrot.lane.b32.xlu0 %v2801, 48
        %v2837 = vpop.permute.xlu0 %2836
        %2838 = vrot.lane.b32.xlu0 %v2802, 48
        %v2839 = vpop.permute.xlu0 %2838
        %2840 = vrot.lane.b32.xlu0 %v2803, 48
        %v2841 = vpop.permute.xlu0 %2840
        %2842 = vrot.lane.b32.xlu0 %v2804, 48
        %v2843 = vpop.permute.xlu0 %2842
        %2844 = vrot.lane.b32.xlu0 %v2805, 48
        %v2845 = vpop.permute.xlu0 %2844
        %2846 = vrot.lane.b32.xlu0 %v2806, 48
        %v2847 = vpop.permute.xlu0 %2846
        %2848 = vrot.lane.b32.xlu0 %v2807, 48
        %v2849 = vpop.permute.xlu0 %2848
        %2850 = vrot.lane.b32.xlu0 %v2808, 48
        %v2851 = vpop.permute.xlu0 %2850
        %2852 = vrot.lane.b32.xlu0 %v2809, 48
        %v2853 = vpop.permute.xlu0 %2852
        %2854 = vrot.lane.b32.xlu0 %v2810, 48
        %v2855 = vpop.permute.xlu0 %2854
        %2856 = vrot.lane.b32.xlu0 %v2811, 48
        %v2857 = vpop.permute.xlu0 %2856
        %2858 = vrot.lane.b32.xlu0 %v2812, 48
        %v2859 = vpop.permute.xlu0 %2858
        %2860 = vrot.lane.b32.xlu0 %v2813, 48
        %v2861 = vpop.permute.xlu0 %2860
        %2878 = vst.msk [vmem:[#allocation4 + $0x10] sm:$0xff] %vm1465, %v2831
        %2879 = vst.msk [vmem:[#allocation4 + $0x30] sm:$0xff] %vm1465, %v2833
        %2880 = vst.msk [vmem:[#allocation4 + $0x50] sm:$0xff] %vm1465, %v2835
        %2881 = vst.msk [vmem:[#allocation4 + $0x70] sm:$0xff] %vm1465, %v2837
        %2882 = vst.msk [vmem:[#allocation4 + $0x90] sm:$0xff] %vm1465, %v2839
        %2883 = vst.msk [vmem:[#allocation4 + $0xb0] sm:$0xff] %vm1465, %v2841
        %2884 = vst.msk [vmem:[#allocation4 + $0xd0] sm:$0xff] %vm1465, %v2843
        %2885 = vst.msk [vmem:[#allocation4 + $0xf0] sm:$0xff] %vm1465, %v2845
        %2886 = vst.msk [vmem:[#allocation4 + $0x110] sm:$0xff] %vm1465, %v2847
        %2887 = vst.msk [vmem:[#allocation4 + $0x130] sm:$0xff] %vm1465, %v2849
        %2888 = vst.msk [vmem:[#allocation4 + $0x150] sm:$0xff] %vm1465, %v2851
        %2889 = vst.msk [vmem:[#allocation4 + $0x170] sm:$0xff] %vm1465, %v2853
        %2890 = vst.msk [vmem:[#allocation4 + $0x190] sm:$0xff] %vm1465, %v2855
        %2891 = vst.msk [vmem:[#allocation4 + $0x1b0] sm:$0xff] %vm1465, %v2857
        %2892 = vst.msk [vmem:[#allocation4 + $0x1d0] sm:$0xff] %vm1465, %v2859
        %2893 = vst.msk [vmem:[#allocation4 + $0x1f0] sm:$0xff] %vm1465, %v2861
        %v2894 = vld [vmem:[#allocation3 + $0x4] sm:$0xff]
        %v2895 = vld [vmem:[#allocation3 + $0xc] sm:$0xff]
        %v2896 = vld [vmem:[#allocation3 + $0x1c] sm:$0xff]
        %v2897 = vld [vmem:[#allocation3 + $0x24] sm:$0xff]
        %v2898 = vld [vmem:[#allocation3 + $0x34] sm:$0xff]
        %v2899 = vld [vmem:[#allocation3 + $0x3c] sm:$0xff]
        %v2900 = vld [vmem:[#allocation3 + $0x4c] sm:$0xff]
        %v2901 = vld [vmem:[#allocation3 + $0x54] sm:$0xff]
        %v2902 = vld [vmem:[#allocation3 + $0x64] sm:$0xff]
        %v2903 = vld [vmem:[#allocation3 + $0x6c] sm:$0xff]
        %v2904 = vld [vmem:[#allocation3 + $0x7c] sm:$0xff]
        %v2905 = vld [vmem:[#allocation3 + $0x84] sm:$0xff]
        %v2906 = vld [vmem:[#allocation3 + $0x94] sm:$0xff]
        %v2907 = vld [vmem:[#allocation3 + $0x9c] sm:$0xff]
        %v2908 = vld [vmem:[#allocation3 + $0xac] sm:$0xff]
        %v2909 = vld [vmem:[#allocation3 + $0xb4] sm:$0xff]
        %2926 = vrot.lane.b32.xlu0 %v2894, 64
        %v2927 = vpop.permute.xlu0 %2926
        %2928 = vrot.lane.b32.xlu0 %v2895, 64
        %v2929 = vpop.permute.xlu0 %2928
        %2930 = vrot.lane.b32.xlu0 %v2896, 64
        %v2931 = vpop.permute.xlu0 %2930
        %2932 = vrot.lane.b32.xlu0 %v2897, 64
        %v2933 = vpop.permute.xlu0 %2932
        %2934 = vrot.lane.b32.xlu0 %v2898, 64
        %v2935 = vpop.permute.xlu0 %2934
        %2936 = vrot.lane.b32.xlu0 %v2899, 64
        %v2937 = vpop.permute.xlu0 %2936
        %2938 = vrot.lane.b32.xlu0 %v2900, 64
        %v2939 = vpop.permute.xlu0 %2938
        %2940 = vrot.lane.b32.xlu0 %v2901, 64
        %v2941 = vpop.permute.xlu0 %2940
        %2942 = vrot.lane.b32.xlu0 %v2902, 64
        %v2943 = vpop.permute.xlu0 %2942
        %2944 = vrot.lane.b32.xlu0 %v2903, 64
        %v2945 = vpop.permute.xlu0 %2944
        %2946 = vrot.lane.b32.xlu0 %v2904, 64
        %v2947 = vpop.permute.xlu0 %2946
        %2948 = vrot.lane.b32.xlu0 %v2905, 64
        %v2949 = vpop.permute.xlu0 %2948
        %2950 = vrot.lane.b32.xlu0 %v2906, 64
        %v2951 = vpop.permute.xlu0 %2950
        %2952 = vrot.lane.b32.xlu0 %v2907, 64
        %v2953 = vpop.permute.xlu0 %2952
        %2954 = vrot.lane.b32.xlu0 %v2908, 64
        %v2955 = vpop.permute.xlu0 %2954
        %2956 = vrot.lane.b32.xlu0 %v2909, 64
        %v2957 = vpop.permute.xlu0 %2956
        %2974 = vst.msk [vmem:[#allocation4 + $0x10] sm:$0xff] %vm1562, %v2927
        %2975 = vst.msk [vmem:[#allocation4 + $0x30] sm:$0xff] %vm1562, %v2929
        %2976 = vst.msk [vmem:[#allocation4 + $0x50] sm:$0xff] %vm1562, %v2931
        %2977 = vst.msk [vmem:[#allocation4 + $0x70] sm:$0xff] %vm1562, %v2933
        %2978 = vst.msk [vmem:[#allocation4 + $0x90] sm:$0xff] %vm1562, %v2935
        %2979 = vst.msk [vmem:[#allocation4 + $0xb0] sm:$0xff] %vm1562, %v2937
        %2980 = vst.msk [vmem:[#allocation4 + $0xd0] sm:$0xff] %vm1562, %v2939
        %2981 = vst.msk [vmem:[#allocation4 + $0xf0] sm:$0xff] %vm1562, %v2941
        %2982 = vst.msk [vmem:[#allocation4 + $0x110] sm:$0xff] %vm1562, %v2943
        %2983 = vst.msk [vmem:[#allocation4 + $0x130] sm:$0xff] %vm1562, %v2945
        %2984 = vst.msk [vmem:[#allocation4 + $0x150] sm:$0xff] %vm1562, %v2947
        %2985 = vst.msk [vmem:[#allocation4 + $0x170] sm:$0xff] %vm1562, %v2949
        %2986 = vst.msk [vmem:[#allocation4 + $0x190] sm:$0xff] %vm1562, %v2951
        %2987 = vst.msk [vmem:[#allocation4 + $0x1b0] sm:$0xff] %vm1562, %v2953
        %2988 = vst.msk [vmem:[#allocation4 + $0x1d0] sm:$0xff] %vm1562, %v2955
        %2989 = vst.msk [vmem:[#allocation4 + $0x1f0] sm:$0xff] %vm1562, %v2957
        %v2990 = vld [vmem:[%s1190 + $0x4] sm:$0xff]
        %v2991 = vld [vmem:[%s1190 + $0xc] sm:$0xff]
        %v2992 = vld [vmem:[%s1190 + $0x1c] sm:$0xff]
        %v2993 = vld [vmem:[%s1190 + $0x24] sm:$0xff]
        %v2994 = vld [vmem:[%s1190 + $0x34] sm:$0xff]
        %v2995 = vld [vmem:[%s1190 + $0x3c] sm:$0xff]
        %v2996 = vld [vmem:[%s1190 + $0x4c] sm:$0xff]
        %v2997 = vld [vmem:[%s1190 + $0x54] sm:$0xff]
        %v2998 = vld [vmem:[%s1190 + $0x64] sm:$0xff]
        %v2999 = vld [vmem:[%s1190 + $0x6c] sm:$0xff]
        %v3000 = vld [vmem:[%s1190 + $0x7c] sm:$0xff]
        %v3001 = vld [vmem:[%s1190 + $0x84] sm:$0xff]
        %v3002 = vld [vmem:[%s1190 + $0x94] sm:$0xff]
        %v3003 = vld [vmem:[%s1190 + $0x9c] sm:$0xff]
        %v3004 = vld [vmem:[%s1190 + $0xac] sm:$0xff]
        %v3005 = vld [vmem:[%s1190 + $0xb4] sm:$0xff]
        %3022 = vrot.lane.b32.xlu0 %v2990, 80
        %v3023 = vpop.permute.xlu0 %3022
        %3024 = vrot.lane.b32.xlu0 %v2991, 80
        %v3025 = vpop.permute.xlu0 %3024
        %3026 = vrot.lane.b32.xlu0 %v2992, 80
        %v3027 = vpop.permute.xlu0 %3026
        %3028 = vrot.lane.b32.xlu0 %v2993, 80
        %v3029 = vpop.permute.xlu0 %3028
        %3030 = vrot.lane.b32.xlu0 %v2994, 80
        %v3031 = vpop.permute.xlu0 %3030
        %3032 = vrot.lane.b32.xlu0 %v2995, 80
        %v3033 = vpop.permute.xlu0 %3032
        %3034 = vrot.lane.b32.xlu0 %v2996, 80
        %v3035 = vpop.permute.xlu0 %3034
        %3036 = vrot.lane.b32.xlu0 %v2997, 80
        %v3037 = vpop.permute.xlu0 %3036
        %3038 = vrot.lane.b32.xlu0 %v2998, 80
        %v3039 = vpop.permute.xlu0 %3038
        %3040 = vrot.lane.b32.xlu0 %v2999, 80
        %v3041 = vpop.permute.xlu0 %3040
        %3042 = vrot.lane.b32.xlu0 %v3000, 80
        %v3043 = vpop.permute.xlu0 %3042
        %3044 = vrot.lane.b32.xlu0 %v3001, 80
        %v3045 = vpop.permute.xlu0 %3044
        %3046 = vrot.lane.b32.xlu0 %v3002, 80
        %v3047 = vpop.permute.xlu0 %3046
        %3048 = vrot.lane.b32.xlu0 %v3003, 80
        %v3049 = vpop.permute.xlu0 %3048
        %3050 = vrot.lane.b32.xlu0 %v3004, 80
        %v3051 = vpop.permute.xlu0 %3050
        %3052 = vrot.lane.b32.xlu0 %v3005, 80
        %v3053 = vpop.permute.xlu0 %3052
        %3070 = vst.msk [vmem:[#allocation4 + $0x10] sm:$0xff] %vm1659, %v3023
        %3071 = vst.msk [vmem:[#allocation4 + $0x30] sm:$0xff] %vm1659, %v3025
        %3072 = vst.msk [vmem:[#allocation4 + $0x50] sm:$0xff] %vm1659, %v3027
        %3073 = vst.msk [vmem:[#allocation4 + $0x70] sm:$0xff] %vm1659, %v3029
        %3074 = vst.msk [vmem:[#allocation4 + $0x90] sm:$0xff] %vm1659, %v3031
        %3075 = vst.msk [vmem:[#allocation4 + $0xb0] sm:$0xff] %vm1659, %v3033
        %3076 = vst.msk [vmem:[#allocation4 + $0xd0] sm:$0xff] %vm1659, %v3035
        %3077 = vst.msk [vmem:[#allocation4 + $0xf0] sm:$0xff] %vm1659, %v3037
        %3078 = vst.msk [vmem:[#allocation4 + $0x110] sm:$0xff] %vm1659, %v3039
        %3079 = vst.msk [vmem:[#allocation4 + $0x130] sm:$0xff] %vm1659, %v3041
        %3080 = vst.msk [vmem:[#allocation4 + $0x150] sm:$0xff] %vm1659, %v3043
        %3081 = vst.msk [vmem:[#allocation4 + $0x170] sm:$0xff] %vm1659, %v3045
        %3082 = vst.msk [vmem:[#allocation4 + $0x190] sm:$0xff] %vm1659, %v3047
        %3083 = vst.msk [vmem:[#allocation4 + $0x1b0] sm:$0xff] %vm1659, %v3049
        %3084 = vst.msk [vmem:[#allocation4 + $0x1d0] sm:$0xff] %vm1659, %v3051
        %3085 = vst.msk [vmem:[#allocation4 + $0x1f0] sm:$0xff] %vm1659, %v3053
        %v3086 = vld [vmem:[%s952 + $0x4] sm:$0xff]
        %v3087 = vld [vmem:[%s952 + $0xc] sm:$0xff]
        %v3088 = vld [vmem:[%s952 + $0x1c] sm:$0xff]
        %v3089 = vld [vmem:[%s952 + $0x24] sm:$0xff]
        %v3090 = vld [vmem:[%s952 + $0x34] sm:$0xff]
        %v3091 = vld [vmem:[%s952 + $0x3c] sm:$0xff]
        %v3092 = vld [vmem:[%s952 + $0x4c] sm:$0xff]
        %v3093 = vld [vmem:[%s952 + $0x54] sm:$0xff]
        %v3094 = vld [vmem:[%s952 + $0x64] sm:$0xff]
        %v3095 = vld [vmem:[%s952 + $0x6c] sm:$0xff]
        %v3096 = vld [vmem:[%s952 + $0x7c] sm:$0xff]
        %v3097 = vld [vmem:[%s952 + $0x84] sm:$0xff]
        %v3098 = vld [vmem:[%s952 + $0x94] sm:$0xff]
        %v3099 = vld [vmem:[%s952 + $0x9c] sm:$0xff]
        %v3100 = vld [vmem:[%s952 + $0xac] sm:$0xff]
        %v3101 = vld [vmem:[%s952 + $0xb4] sm:$0xff]
        %3118 = vrot.lane.b32.xlu0 %v3086, 96
        %v3119 = vpop.permute.xlu0 %3118
        %3120 = vrot.lane.b32.xlu0 %v3087, 96
        %v3121 = vpop.permute.xlu0 %3120
        %3122 = vrot.lane.b32.xlu0 %v3088, 96
        %v3123 = vpop.permute.xlu0 %3122
        %3124 = vrot.lane.b32.xlu0 %v3089, 96
        %v3125 = vpop.permute.xlu0 %3124
        %3126 = vrot.lane.b32.xlu0 %v3090, 96
        %v3127 = vpop.permute.xlu0 %3126
        %3128 = vrot.lane.b32.xlu0 %v3091, 96
        %v3129 = vpop.permute.xlu0 %3128
        %3130 = vrot.lane.b32.xlu0 %v3092, 96
        %v3131 = vpop.permute.xlu0 %3130
        %3132 = vrot.lane.b32.xlu0 %v3093, 96
        %v3133 = vpop.permute.xlu0 %3132
        %3134 = vrot.lane.b32.xlu0 %v3094, 96
        %v3135 = vpop.permute.xlu0 %3134
        %3136 = vrot.lane.b32.xlu0 %v3095, 96
        %v3137 = vpop.permute.xlu0 %3136
        %3138 = vrot.lane.b32.xlu0 %v3096, 96
        %v3139 = vpop.permute.xlu0 %3138
        %3140 = vrot.lane.b32.xlu0 %v3097, 96
        %v3141 = vpop.permute.xlu0 %3140
        %3142 = vrot.lane.b32.xlu0 %v3098, 96
        %v3143 = vpop.permute.xlu0 %3142
        %3144 = vrot.lane.b32.xlu0 %v3099, 96
        %v3145 = vpop.permute.xlu0 %3144
        %3146 = vrot.lane.b32.xlu0 %v3100, 96
        %v3147 = vpop.permute.xlu0 %3146
        %3148 = vrot.lane.b32.xlu0 %v3101, 96
        %v3149 = vpop.permute.xlu0 %3148
        %3166 = vst.msk [vmem:[#allocation4 + $0x10] sm:$0xff] %vm1756, %v3119
        %3167 = vst.msk [vmem:[#allocation4 + $0x30] sm:$0xff] %vm1756, %v3121
        %3168 = vst.msk [vmem:[#allocation4 + $0x50] sm:$0xff] %vm1756, %v3123
        %3169 = vst.msk [vmem:[#allocation4 + $0x70] sm:$0xff] %vm1756, %v3125
        %3170 = vst.msk [vmem:[#allocation4 + $0x90] sm:$0xff] %vm1756, %v3127
        %3171 = vst.msk [vmem:[#allocation4 + $0xb0] sm:$0xff] %vm1756, %v3129
        %3172 = vst.msk [vmem:[#allocation4 + $0xd0] sm:$0xff] %vm1756, %v3131
        %3173 = vst.msk [vmem:[#allocation4 + $0xf0] sm:$0xff] %vm1756, %v3133
        %3174 = vst.msk [vmem:[#allocation4 + $0x110] sm:$0xff] %vm1756, %v3135
        %3175 = vst.msk [vmem:[#allocation4 + $0x130] sm:$0xff] %vm1756, %v3137
        %3176 = vst.msk [vmem:[#allocation4 + $0x150] sm:$0xff] %vm1756, %v3139
        %3177 = vst.msk [vmem:[#allocation4 + $0x170] sm:$0xff] %vm1756, %v3141
        %3178 = vst.msk [vmem:[#allocation4 + $0x190] sm:$0xff] %vm1756, %v3143
        %3179 = vst.msk [vmem:[#allocation4 + $0x1b0] sm:$0xff] %vm1756, %v3145
        %3180 = vst.msk [vmem:[#allocation4 + $0x1d0] sm:$0xff] %vm1756, %v3147
        %3181 = vst.msk [vmem:[#allocation4 + $0x1f0] sm:$0xff] %vm1756, %v3149
        %v3182 = vld [vmem:[%s981 + $0x4] sm:$0xff]
        %v3183 = vld [vmem:[%s981 + $0xc] sm:$0xff]
        %v3184 = vld [vmem:[%s981 + $0x1c] sm:$0xff]
        %v3185 = vld [vmem:[%s981 + $0x24] sm:$0xff]
        %v3186 = vld [vmem:[%s981 + $0x34] sm:$0xff]
        %v3187 = vld [vmem:[%s981 + $0x3c] sm:$0xff]
        %v3188 = vld [vmem:[%s981 + $0x4c] sm:$0xff]
        %v3189 = vld [vmem:[%s981 + $0x54] sm:$0xff]
        %v3190 = vld [vmem:[%s981 + $0x64] sm:$0xff]
        %v3191 = vld [vmem:[%s981 + $0x6c] sm:$0xff]
        %v3192 = vld [vmem:[%s981 + $0x7c] sm:$0xff]
        %v3193 = vld [vmem:[%s981 + $0x84] sm:$0xff]
        %v3194 = vld [vmem:[%s981 + $0x94] sm:$0xff]
        %v3195 = vld [vmem:[%s981 + $0x9c] sm:$0xff]
        %v3196 = vld [vmem:[%s981 + $0xac] sm:$0xff]
        %v3197 = vld [vmem:[%s981 + $0xb4] sm:$0xff]
        %3214 = vrot.lane.b32.xlu0 %v3182, 112
        %v3215 = vpop.permute.xlu0 %3214
        %3216 = vrot.lane.b32.xlu0 %v3183, 112
        %v3217 = vpop.permute.xlu0 %3216
        %3218 = vrot.lane.b32.xlu0 %v3184, 112
        %v3219 = vpop.permute.xlu0 %3218
        %3220 = vrot.lane.b32.xlu0 %v3185, 112
        %v3221 = vpop.permute.xlu0 %3220
        %3222 = vrot.lane.b32.xlu0 %v3186, 112
        %v3223 = vpop.permute.xlu0 %3222
        %3224 = vrot.lane.b32.xlu0 %v3187, 112
        %v3225 = vpop.permute.xlu0 %3224
        %3226 = vrot.lane.b32.xlu0 %v3188, 112
        %v3227 = vpop.permute.xlu0 %3226
        %3228 = vrot.lane.b32.xlu0 %v3189, 112
        %v3229 = vpop.permute.xlu0 %3228
        %3230 = vrot.lane.b32.xlu0 %v3190, 112
        %v3231 = vpop.permute.xlu0 %3230
        %3232 = vrot.lane.b32.xlu0 %v3191, 112
        %v3233 = vpop.permute.xlu0 %3232
        %3234 = vrot.lane.b32.xlu0 %v3192, 112
        %v3235 = vpop.permute.xlu0 %3234
        %3236 = vrot.lane.b32.xlu0 %v3193, 112
        %v3237 = vpop.permute.xlu0 %3236
        %3238 = vrot.lane.b32.xlu0 %v3194, 112
        %v3239 = vpop.permute.xlu0 %3238
        %3240 = vrot.lane.b32.xlu0 %v3195, 112
        %v3241 = vpop.permute.xlu0 %3240
        %3242 = vrot.lane.b32.xlu0 %v3196, 112
        %v3243 = vpop.permute.xlu0 %3242
        %3244 = vrot.lane.b32.xlu0 %v3197, 112
        %v3245 = vpop.permute.xlu0 %3244
        %3262 = vst.msk [vmem:[#allocation4 + $0x10] sm:$0xff] %vm1853, %v3215
        %3263 = vst.msk [vmem:[#allocation4 + $0x30] sm:$0xff] %vm1853, %v3217
        %3264 = vst.msk [vmem:[#allocation4 + $0x50] sm:$0xff] %vm1853, %v3219
        %3265 = vst.msk [vmem:[#allocation4 + $0x70] sm:$0xff] %vm1853, %v3221
        %3266 = vst.msk [vmem:[#allocation4 + $0x90] sm:$0xff] %vm1853, %v3223
        %3267 = vst.msk [vmem:[#allocation4 + $0xb0] sm:$0xff] %vm1853, %v3225
        %3268 = vst.msk [vmem:[#allocation4 + $0xd0] sm:$0xff] %vm1853, %v3227
        %3269 = vst.msk [vmem:[#allocation4 + $0xf0] sm:$0xff] %vm1853, %v3229
        %3270 = vst.msk [vmem:[#allocation4 + $0x110] sm:$0xff] %vm1853, %v3231
        %3271 = vst.msk [vmem:[#allocation4 + $0x130] sm:$0xff] %vm1853, %v3233
        %3272 = vst.msk [vmem:[#allocation4 + $0x150] sm:$0xff] %vm1853, %v3235
        %3273 = vst.msk [vmem:[#allocation4 + $0x170] sm:$0xff] %vm1853, %v3237
        %3274 = vst.msk [vmem:[#allocation4 + $0x190] sm:$0xff] %vm1853, %v3239
        %3275 = vst.msk [vmem:[#allocation4 + $0x1b0] sm:$0xff] %vm1853, %v3241
        %3276 = vst.msk [vmem:[#allocation4 + $0x1d0] sm:$0xff] %vm1853, %v3243
        %3277 = vst.msk [vmem:[#allocation4 + $0x1f0] sm:$0xff] %vm1853, %v3245
        %v3278 = vld [vmem:[%s1010 + $0x4] sm:$0xff]
        %v3279 = vld [vmem:[%s1010 + $0xc] sm:$0xff]
        %v3280 = vld [vmem:[%s1010 + $0x1c] sm:$0xff]
        %v3281 = vld [vmem:[%s1010 + $0x24] sm:$0xff]
        %v3282 = vld [vmem:[%s1010 + $0x34] sm:$0xff]
        %v3283 = vld [vmem:[%s1010 + $0x3c] sm:$0xff]
        %v3284 = vld [vmem:[%s1010 + $0x4c] sm:$0xff]
        %v3285 = vld [vmem:[%s1010 + $0x54] sm:$0xff]
        %v3286 = vld [vmem:[%s1010 + $0x64] sm:$0xff]
        %v3287 = vld [vmem:[%s1010 + $0x6c] sm:$0xff]
        %v3288 = vld [vmem:[%s1010 + $0x7c] sm:$0xff]
        %v3289 = vld [vmem:[%s1010 + $0x84] sm:$0xff]
        %v3290 = vld [vmem:[%s1010 + $0x94] sm:$0xff]
        %v3291 = vld [vmem:[%s1010 + $0x9c] sm:$0xff]
        %v3292 = vld [vmem:[%s1010 + $0xac] sm:$0xff]
        %v3293 = vld [vmem:[%s1010 + $0xb4] sm:$0xff]
        %3294 = vst.msk [vmem:[#allocation4 + $0x18] sm:$0xff] %vm472, %v3278
        %3295 = vst.msk [vmem:[#allocation4 + $0x38] sm:$0xff] %vm472, %v3279
        %3296 = vst.msk [vmem:[#allocation4 + $0x58] sm:$0xff] %vm472, %v3280
        %3297 = vst.msk [vmem:[#allocation4 + $0x78] sm:$0xff] %vm472, %v3281
        %3298 = vst.msk [vmem:[#allocation4 + $0x98] sm:$0xff] %vm472, %v3282
        %3299 = vst.msk [vmem:[#allocation4 + $0xb8] sm:$0xff] %vm472, %v3283
        %3300 = vst.msk [vmem:[#allocation4 + $0xd8] sm:$0xff] %vm472, %v3284
        %3301 = vst.msk [vmem:[#allocation4 + $0xf8] sm:$0xff] %vm472, %v3285
        %3302 = vst.msk [vmem:[#allocation4 + $0x118] sm:$0xff] %vm472, %v3286
        %3303 = vst.msk [vmem:[#allocation4 + $0x138] sm:$0xff] %vm472, %v3287
        %3304 = vst.msk [vmem:[#allocation4 + $0x158] sm:$0xff] %vm472, %v3288
        %3305 = vst.msk [vmem:[#allocation4 + $0x178] sm:$0xff] %vm472, %v3289
        %3306 = vst.msk [vmem:[#allocation4 + $0x198] sm:$0xff] %vm472, %v3290
        %3307 = vst.msk [vmem:[#allocation4 + $0x1b8] sm:$0xff] %vm472, %v3291
        %3308 = vst.msk [vmem:[#allocation4 + $0x1d8] sm:$0xff] %vm472, %v3292
        %3309 = vst.msk [vmem:[#allocation4 + $0x1f8] sm:$0xff] %vm472, %v3293
        %v3310 = vld [vmem:[#allocation4] sm:$0xff]
        %v3311 = vld [vmem:[#allocation4 + $0x8] sm:$0xff]
        %v3312 = vld [vmem:[#allocation4 + $0x10] sm:$0xff]
        %v3313 = vld [vmem:[#allocation4 + $0x18] sm:$0xff]
        %v3314 = vld [vmem:[#allocation4 + $0x20] sm:$0xff]
        %v3315 = vld [vmem:[#allocation4 + $0x28] sm:$0xff]
        %v3316 = vld [vmem:[#allocation4 + $0x30] sm:$0xff]
        %v3317 = vld [vmem:[#allocation4 + $0x38] sm:$0xff]
        %v3318 = vld [vmem:[#allocation4 + $0x40] sm:$0xff]
        %v3319 = vld [vmem:[#allocation4 + $0x48] sm:$0xff]
        %v3320 = vld [vmem:[#allocation4 + $0x50] sm:$0xff]
        %v3321 = vld [vmem:[#allocation4 + $0x58] sm:$0xff]
        %v3322 = vld [vmem:[#allocation4 + $0x60] sm:$0xff]
        %v3323 = vld [vmem:[#allocation4 + $0x68] sm:$0xff]
        %v3324 = vld [vmem:[#allocation4 + $0x70] sm:$0xff]
        %v3325 = vld [vmem:[#allocation4 + $0x78] sm:$0xff]
        %v3326 = vld [vmem:[#allocation4 + $0x80] sm:$0xff]
        %v3327 = vld [vmem:[#allocation4 + $0x88] sm:$0xff]
        %v3328 = vld [vmem:[#allocation4 + $0x90] sm:$0xff]
        %v3329 = vld [vmem:[#allocation4 + $0x98] sm:$0xff]
        %v3330 = vld [vmem:[#allocation4 + $0xa0] sm:$0xff]
        %v3331 = vld [vmem:[#allocation4 + $0xa8] sm:$0xff]
        %v3332 = vld [vmem:[#allocation4 + $0xb0] sm:$0xff]
        %v3333 = vld [vmem:[#allocation4 + $0xb8] sm:$0xff]
        %v3334 = vld [vmem:[#allocation4 + $0xc0] sm:$0xff]
        %v3335 = vld [vmem:[#allocation4 + $0xc8] sm:$0xff]
        %v3336 = vld [vmem:[#allocation4 + $0xd0] sm:$0xff]
        %v3337 = vld [vmem:[#allocation4 + $0xd8] sm:$0xff]
        %v3338 = vld [vmem:[#allocation4 + $0xe0] sm:$0xff]
        %v3339 = vld [vmem:[#allocation4 + $0xe8] sm:$0xff]
        %v3340 = vld [vmem:[#allocation4 + $0xf0] sm:$0xff]
        %v3341 = vld [vmem:[#allocation4 + $0xf8] sm:$0xff]
        %v3342 = vld [vmem:[#allocation4 + $0x100] sm:$0xff]
        %v3343 = vld [vmem:[#allocation4 + $0x108] sm:$0xff]
        %v3344 = vld [vmem:[#allocation4 + $0x110] sm:$0xff]
        %v3345 = vld [vmem:[#allocation4 + $0x118] sm:$0xff]
        %v3346 = vld [vmem:[#allocation4 + $0x120] sm:$0xff]
        %v3347 = vld [vmem:[#allocation4 + $0x128] sm:$0xff]
        %v3348 = vld [vmem:[#allocation4 + $0x130] sm:$0xff]
        %v3349 = vld [vmem:[#allocation4 + $0x138] sm:$0xff]
        %v3350 = vld [vmem:[#allocation4 + $0x140] sm:$0xff]
        %v3351 = vld [vmem:[#allocation4 + $0x148] sm:$0xff]
        %v3352 = vld [vmem:[#allocation4 + $0x150] sm:$0xff]
        %v3353 = vld [vmem:[#allocation4 + $0x158] sm:$0xff]
        %v3354 = vld [vmem:[#allocation4 + $0x160] sm:$0xff]
        %v3355 = vld [vmem:[#allocation4 + $0x168] sm:$0xff]
        %v3356 = vld [vmem:[#allocation4 + $0x170] sm:$0xff]
        %v3357 = vld [vmem:[#allocation4 + $0x178] sm:$0xff]
        %v3358 = vld [vmem:[#allocation4 + $0x180] sm:$0xff]
        %v3359 = vld [vmem:[#allocation4 + $0x188] sm:$0xff]
        %v3360 = vld [vmem:[#allocation4 + $0x190] sm:$0xff]
        %v3361 = vld [vmem:[#allocation4 + $0x198] sm:$0xff]
        %v3362 = vld [vmem:[#allocation4 + $0x1a0] sm:$0xff]
        %v3363 = vld [vmem:[#allocation4 + $0x1a8] sm:$0xff]
        %v3364 = vld [vmem:[#allocation4 + $0x1b0] sm:$0xff]
        %v3365 = vld [vmem:[#allocation4 + $0x1b8] sm:$0xff]
        %v3366 = vld [vmem:[#allocation4 + $0x1c0] sm:$0xff]
        %v3367 = vld [vmem:[#allocation4 + $0x1c8] sm:$0xff]
        %v3368 = vld [vmem:[#allocation4 + $0x1d0] sm:$0xff]
        %v3369 = vld [vmem:[#allocation4 + $0x1d8] sm:$0xff]
        %v3370 = vld [vmem:[#allocation4 + $0x1e0] sm:$0xff]
        %v3371 = vld [vmem:[#allocation4 + $0x1e8] sm:$0xff]
        %v3372 = vld [vmem:[#allocation4 + $0x1f0] sm:$0xff]
        %v3373 = vld [vmem:[#allocation4 + $0x1f8] sm:$0xff]
        %v3374 = vld [vmem:[%s5] sm:$0xff]
        %v3375 = vld [vmem:[%s5 + $0x8] sm:$0xff]
        %v3376 = vld [vmem:[%s5 + $0x10] sm:$0xff]
        %v3377 = vld [vmem:[%s5 + $0x18] sm:$0xff]
        %v3378 = vld [vmem:[%s5 + $0x20] sm:$0xff]
        %v3379 = vld [vmem:[%s5 + $0x28] sm:$0xff]
        %v3380 = vld [vmem:[%s5 + $0x30] sm:$0xff]
        %v3381 = vld [vmem:[%s5 + $0x38] sm:$0xff]
        %v3382 = vld [vmem:[%s5 + $0x40] sm:$0xff]
        %v3383 = vld [vmem:[%s5 + $0x48] sm:$0xff]
        %v3384 = vld [vmem:[%s5 + $0x50] sm:$0xff]
        %v3385 = vld [vmem:[%s5 + $0x58] sm:$0xff]
        %v3386 = vld [vmem:[%s5 + $0x60] sm:$0xff]
        %v3387 = vld [vmem:[%s5 + $0x68] sm:$0xff]
        %v3388 = vld [vmem:[%s5 + $0x70] sm:$0xff]
        %v3389 = vld [vmem:[%s5 + $0x78] sm:$0xff]
        %v3390 = vld [vmem:[%s5 + $0x80] sm:$0xff]
        %v3391 = vld [vmem:[%s5 + $0x88] sm:$0xff]
        %v3392 = vld [vmem:[%s5 + $0x90] sm:$0xff]
        %v3393 = vld [vmem:[%s5 + $0x98] sm:$0xff]
        %v3394 = vld [vmem:[%s5 + $0xa0] sm:$0xff]
        %v3395 = vld [vmem:[%s5 + $0xa8] sm:$0xff]
        %v3396 = vld [vmem:[%s5 + $0xb0] sm:$0xff]
        %v3397 = vld [vmem:[%s5 + $0xb8] sm:$0xff]
        %v3398 = vld [vmem:[%s5 + $0xc0] sm:$0xff]
        %v3399 = vld [vmem:[%s5 + $0xc8] sm:$0xff]
        %v3400 = vld [vmem:[%s5 + $0xd0] sm:$0xff]
        %v3401 = vld [vmem:[%s5 + $0xd8] sm:$0xff]
        %v3402 = vld [vmem:[%s5 + $0xe0] sm:$0xff]
        %v3403 = vld [vmem:[%s5 + $0xe8] sm:$0xff]
        %v3404 = vld [vmem:[%s5 + $0xf0] sm:$0xff]
        %v3405 = vld [vmem:[%s5 + $0xf8] sm:$0xff]
        %v3406 = vld [vmem:[%s5 + $0x100] sm:$0xff]
        %v3407 = vld [vmem:[%s5 + $0x108] sm:$0xff]
        %v3408 = vld [vmem:[%s5 + $0x110] sm:$0xff]
        %v3409 = vld [vmem:[%s5 + $0x118] sm:$0xff]
        %v3410 = vld [vmem:[%s5 + $0x120] sm:$0xff]
        %v3411 = vld [vmem:[%s5 + $0x128] sm:$0xff]
        %v3412 = vld [vmem:[%s5 + $0x130] sm:$0xff]
        %v3413 = vld [vmem:[%s5 + $0x138] sm:$0xff]
        %v3414 = vld [vmem:[%s5 + $0x140] sm:$0xff]
        %v3415 = vld [vmem:[%s5 + $0x148] sm:$0xff]
        %v3416 = vld [vmem:[%s5 + $0x150] sm:$0xff]
        %v3417 = vld [vmem:[%s5 + $0x158] sm:$0xff]
        %v3418 = vld [vmem:[%s5 + $0x160] sm:$0xff]
        %v3419 = vld [vmem:[%s5 + $0x168] sm:$0xff]
        %v3420 = vld [vmem:[%s5 + $0x170] sm:$0xff]
        %v3421 = vld [vmem:[%s5 + $0x178] sm:$0xff]
        %v3422 = vld [vmem:[%s5 + $0x180] sm:$0xff]
        %v3423 = vld [vmem:[%s5 + $0x188] sm:$0xff]
        %v3424 = vld [vmem:[%s6] sm:$0x1]
        %v3426 = vperm.slane %v3424, 0
        %v3429 = vsel %vm472, %v3313, 0
        %v3432 = vsel %vm472, %v3317, 0
        %v3435 = vsel %vm472, %v3321, 0
        %v3438 = vsel %vm472, %v3325, 0
        %v3441 = vsel %vm472, %v3329, 0
        %v3444 = vsel %vm472, %v3333, 0
        %v3447 = vsel %vm472, %v3337, 0
        %v3450 = vsel %vm472, %v3341, 0
        %v3453 = vsel %vm472, %v3345, 0
        %v3456 = vsel %vm472, %v3349, 0
        %v3459 = vsel %vm472, %v3353, 0
        %v3462 = vsel %vm472, %v3357, 0
        %v3465 = vsel %vm472, %v3361, 0
        %v3468 = vsel %vm472, %v3365, 0
        %v3471 = vsel %vm472, %v3369, 0
        %v3474 = vsel %vm472, %v3373, 0
        %3476 = vmatpush.msra.mxu0 %v3389
        %3477 = vmatpush.msra.mxu0 %v3388
        %3478 = vmatpush.msra.mxu0 %v3387
        %3479 = vmatpush.msra.mxu0 %v3386
        %3480 = vmatpush.msra.mxu0 %v3385
        %3481 = vmatpush.msra.mxu0 %v3384
        %3482 = vmatpush.msra.mxu0 %v3383
        %3483 = vmatpush.msra.mxu0 %v3382
        %3484 = vmatpush.msra.mxu0 %v3381
        %3485 = vmatpush.msra.mxu0 %v3380
        %3486 = vmatpush.msra.mxu0 %v3379
        %3487 = vmatpush.msra.mxu0 %v3378
        %3488 = vmatpush.msra.mxu0 %v3377
        %3489 = vmatpush.msra.mxu0 %v3376
        %3490 = vmatpush.msra.mxu0 %v3375
        %3491 = vmatpush.msra.mxu0 %v3374
        %3492 = vmatmul.f32.gmra.mxu0 %v3310
        %v3493 = vpop.f32.mrf.mxu0
        %v3494 = vadd.f32 %v3426, %v3493
        %3495 = vmatmul.f32.gmra.mxu0 %v3314
        %v3496 = vpop.f32.mrf.mxu0
        %v3497 = vadd.f32 %v3426, %v3496
        %3498 = vmatmul.f32.gmra.mxu0 %v3318
        %v3499 = vpop.f32.mrf.mxu0
        %v3500 = vadd.f32 %v3426, %v3499
        %3501 = vmatmul.f32.gmra.mxu0 %v3322
        %v3502 = vpop.f32.mrf.mxu0
        %v3503 = vadd.f32 %v3426, %v3502
        %3504 = vmatmul.f32.gmra.mxu0 %v3326
        %v3505 = vpop.f32.mrf.mxu0
        %v3506 = vadd.f32 %v3426, %v3505
        %3507 = vmatmul.f32.gmra.mxu0 %v3330
        %v3508 = vpop.f32.mrf.mxu0
        %v3509 = vadd.f32 %v3426, %v3508
        %3510 = vmatmul.f32.gmra.mxu0 %v3334
        %v3511 = vpop.f32.mrf.mxu0
        %v3512 = vadd.f32 %v3426, %v3511
        %3513 = vmatmul.f32.gmra.mxu0 %v3338
        %v3514 = vpop.f32.mrf.mxu0
        %v3515 = vadd.f32 %v3426, %v3514
        %3516 = vmatmul.f32.gmra.mxu0 %v3342
        %v3517 = vpop.f32.mrf.mxu0
        %v3518 = vadd.f32 %v3426, %v3517
        %3519 = vmatmul.f32.gmra.mxu0 %v3346
        %v3520 = vpop.f32.mrf.mxu0
        %v3521 = vadd.f32 %v3426, %v3520
        %3522 = vmatmul.f32.gmra.mxu0 %v3350
        %v3523 = vpop.f32.mrf.mxu0
        %v3524 = vadd.f32 %v3426, %v3523
        %3525 = vmatmul.f32.gmra.mxu0 %v3354
        %v3526 = vpop.f32.mrf.mxu0
        %v3527 = vadd.f32 %v3426, %v3526
        %3528 = vmatmul.f32.gmra.mxu0 %v3358
        %v3529 = vpop.f32.mrf.mxu0
        %v3530 = vadd.f32 %v3426, %v3529
        %3531 = vmatmul.f32.gmra.mxu0 %v3362
        %v3532 = vpop.f32.mrf.mxu0
        %v3533 = vadd.f32 %v3426, %v3532
        %3534 = vmatmul.f32.gmra.mxu0 %v3366
        %v3535 = vpop.f32.mrf.mxu0
        %v3536 = vadd.f32 %v3426, %v3535
        %3537 = vmatmul.f32.gmra.mxu0 %v3370
        %v3538 = vpop.f32.mrf.mxu0
        %v3539 = vadd.f32 %v3426, %v3538
        %3540 = vdwg.mxu0
        %3541 = vmatpush.msra.mxu0 %v3405
        %3542 = vmatpush.msra.mxu0 %v3404
        %3543 = vmatpush.msra.mxu0 %v3403
        %3544 = vmatpush.msra.mxu0 %v3402
        %3545 = vmatpush.msra.mxu0 %v3401
        %3546 = vmatpush.msra.mxu0 %v3400
        %3547 = vmatpush.msra.mxu0 %v3399
        %3548 = vmatpush.msra.mxu0 %v3398
        %3549 = vmatpush.msra.mxu0 %v3397
        %3550 = vmatpush.msra.mxu0 %v3396
        %3551 = vmatpush.msra.mxu0 %v3395
        %3552 = vmatpush.msra.mxu0 %v3394
        %3553 = vmatpush.msra.mxu0 %v3393
        %3554 = vmatpush.msra.mxu0 %v3392
        %3555 = vmatpush.msra.mxu0 %v3391
        %3556 = vmatpush.msra.mxu0 %v3390
        %3557 = vmatmul.f32.gmra.mxu0 %v3311
        %v3558 = vpop.f32.mrf.mxu0
        %v3559 = vadd.f32 %v3494, %v3558
        %3560 = vmatmul.f32.gmra.mxu0 %v3315
        %v3561 = vpop.f32.mrf.mxu0
        %v3562 = vadd.f32 %v3497, %v3561
        %3563 = vmatmul.f32.gmra.mxu0 %v3319
        %v3564 = vpop.f32.mrf.mxu0
        %v3565 = vadd.f32 %v3500, %v3564
        %3566 = vmatmul.f32.gmra.mxu0 %v3323
        %v3567 = vpop.f32.mrf.mxu0
        %v3568 = vadd.f32 %v3503, %v3567
        %3569 = vmatmul.f32.gmra.mxu0 %v3327
        %v3570 = vpop.f32.mrf.mxu0
        %v3571 = vadd.f32 %v3506, %v3570
        %3572 = vmatmul.f32.gmra.mxu0 %v3331
        %v3573 = vpop.f32.mrf.mxu0
        %v3574 = vadd.f32 %v3509, %v3573
        %3575 = vmatmul.f32.gmra.mxu0 %v3335
        %v3576 = vpop.f32.mrf.mxu0
        %v3577 = vadd.f32 %v3512, %v3576
        %3578 = vmatmul.f32.gmra.mxu0 %v3339
        %v3579 = vpop.f32.mrf.mxu0
        %v3580 = vadd.f32 %v3515, %v3579
        %3581 = vmatmul.f32.gmra.mxu0 %v3343
        %v3582 = vpop.f32.mrf.mxu0
        %v3583 = vadd.f32 %v3518, %v3582
        %3584 = vmatmul.f32.gmra.mxu0 %v3347
        %v3585 = vpop.f32.mrf.mxu0
        %v3586 = vadd.f32 %v3521, %v3585
        %3587 = vmatmul.f32.gmra.mxu0 %v3351
        %v3588 = vpop.f32.mrf.mxu0
        %v3589 = vadd.f32 %v3524, %v3588
        %3590 = vmatmul.f32.gmra.mxu0 %v3355
        %v3591 = vpop.f32.mrf.mxu0
        %v3592 = vadd.f32 %v3527, %v3591
        %3593 = vmatmul.f32.gmra.mxu0 %v3359
        %v3594 = vpop.f32.mrf.mxu0
        %v3595 = vadd.f32 %v3530, %v3594
        %3596 = vmatmul.f32.gmra.mxu0 %v3363
        %v3597 = vpop.f32.mrf.mxu0
        %v3598 = vadd.f32 %v3533, %v3597
        %3599 = vmatmul.f32.gmra.mxu0 %v3367
        %v3600 = vpop.f32.mrf.mxu0
        %v3601 = vadd.f32 %v3536, %v3600
        %3602 = vmatmul.f32.gmra.mxu0 %v3371
        %v3603 = vpop.f32.mrf.mxu0
        %v3604 = vadd.f32 %v3539, %v3603
        %3605 = vdwg.mxu0
        %3606 = vmatpush.msra.mxu0 %v3421
        %3607 = vmatpush.msra.mxu0 %v3420
        %3608 = vmatpush.msra.mxu0 %v3419
        %3609 = vmatpush.msra.mxu0 %v3418
        %3610 = vmatpush.msra.mxu0 %v3417
        %3611 = vmatpush.msra.mxu0 %v3416
        %3612 = vmatpush.msra.mxu0 %v3415
        %3613 = vmatpush.msra.mxu0 %v3414
        %3614 = vmatpush.msra.mxu0 %v3413
        %3615 = vmatpush.msra.mxu0 %v3412
        %3616 = vmatpush.msra.mxu0 %v3411
        %3617 = vmatpush.msra.mxu0 %v3410
        %3618 = vmatpush.msra.mxu0 %v3409
        %3619 = vmatpush.msra.mxu0 %v3408
        %3620 = vmatpush.msra.mxu0 %v3407
        %3621 = vmatpush.msra.mxu0 %v3406
        %3622 = vmatmul.f32.gmra.mxu0 %v3312
        %v3623 = vpop.f32.mrf.mxu0
        %v3624 = vadd.f32 %v3559, %v3623
        %3625 = vmatmul.f32.gmra.mxu0 %v3316
        %v3626 = vpop.f32.mrf.mxu0
        %v3627 = vadd.f32 %v3562, %v3626
        %3628 = vmatmul.f32.gmra.mxu0 %v3320
        %v3629 = vpop.f32.mrf.mxu0
        %v3630 = vadd.f32 %v3565, %v3629
        %3631 = vmatmul.f32.gmra.mxu0 %v3324
        %v3632 = vpop.f32.mrf.mxu0
        %v3633 = vadd.f32 %v3568, %v3632
        %3634 = vmatmul.f32.gmra.mxu0 %v3328
        %v3635 = vpop.f32.mrf.mxu0
        %v3636 = vadd.f32 %v3571, %v3635
        %3637 = vmatmul.f32.gmra.mxu0 %v3332
        %v3638 = vpop.f32.mrf.mxu0
        %v3639 = vadd.f32 %v3574, %v3638
        %3640 = vmatmul.f32.gmra.mxu0 %v3336
        %v3641 = vpop.f32.mrf.mxu0
        %v3642 = vadd.f32 %v3577, %v3641
        %3643 = vmatmul.f32.gmra.mxu0 %v3340
        %v3644 = vpop.f32.mrf.mxu0
        %v3645 = vadd.f32 %v3580, %v3644
        %3646 = vmatmul.f32.gmra.mxu0 %v3344
        %v3647 = vpop.f32.mrf.mxu0
        %v3648 = vadd.f32 %v3583, %v3647
        %3649 = vmatmul.f32.gmra.mxu0 %v3348
        %v3650 = vpop.f32.mrf.mxu0
        %v3651 = vadd.f32 %v3586, %v3650
        %3652 = vmatmul.f32.gmra.mxu0 %v3352
        %v3653 = vpop.f32.mrf.mxu0
        %v3654 = vadd.f32 %v3589, %v3653
        %3655 = vmatmul.f32.gmra.mxu0 %v3356
        %v3656 = vpop.f32.mrf.mxu0
        %v3657 = vadd.f32 %v3592, %v3656
        %3658 = vmatmul.f32.gmra.mxu0 %v3360
        %v3659 = vpop.f32.mrf.mxu0
        %v3660 = vadd.f32 %v3595, %v3659
        %3661 = vmatmul.f32.gmra.mxu0 %v3364
        %v3662 = vpop.f32.mrf.mxu0
        %v3663 = vadd.f32 %v3598, %v3662
        %3664 = vmatmul.f32.gmra.mxu0 %v3368
        %v3665 = vpop.f32.mrf.mxu0
        %v3666 = vadd.f32 %v3601, %v3665
        %3667 = vmatmul.f32.gmra.mxu0 %v3372
        %v3668 = vpop.f32.mrf.mxu0
        %v3669 = vadd.f32 %v3604, %v3668
        %3670 = vdwg.mxu0
        %3671 = vmatpush.msra.mxu0 0.0
        %3672 = vmatpush.msra.mxu0 0.0
        %3673 = vmatpush.msra.mxu0 0.0
        %3674 = vmatpush.msra.mxu0 0.0
        %3675 = vmatpush.msra.mxu0 0.0
        %3676 = vmatpush.msra.mxu0 0.0
        %3677 = vmatpush.msra.mxu0 0.0
        %3678 = vmatpush.msra.mxu0 0.0
        %3679 = vmatpush.msra.mxu0 0.0
        %3680 = vmatpush.msra.mxu0 0.0
        %3681 = vmatpush.msra.mxu0 0.0
        %3682 = vmatpush.msra.mxu0 0.0
        %3683 = vmatpush.msra.mxu0 0.0
        %3684 = vmatpush.msra.mxu0 0.0
        %3685 = vmatpush.msra.mxu0 %v3423
        %3686 = vmatpush.msra.mxu0 %v3422
        %3687 = vmatmul.f32.gmra.mxu0 %v3429
        %v3688 = vpop.f32.mrf.mxu0
        %v3689 = vadd.f32 %v3624, %v3688
        %3690 = vmatmul.f32.gmra.mxu0 %v3432
        %v3691 = vpop.f32.mrf.mxu0
        %v3692 = vadd.f32 %v3627, %v3691
        %3693 = vmatmul.f32.gmra.mxu0 %v3435
        %v3694 = vpop.f32.mrf.mxu0
        %v3695 = vadd.f32 %v3630, %v3694
        %3696 = vmatmul.f32.gmra.mxu0 %v3438
        %v3697 = vpop.f32.mrf.mxu0
        %v3698 = vadd.f32 %v3633, %v3697
        %3699 = vmatmul.f32.gmra.mxu0 %v3441
        %v3700 = vpop.f32.mrf.mxu0
        %v3701 = vadd.f32 %v3636, %v3700
        %3702 = vmatmul.f32.gmra.mxu0 %v3444
        %v3703 = vpop.f32.mrf.mxu0
        %v3704 = vadd.f32 %v3639, %v3703
        %3705 = vmatmul.f32.gmra.mxu0 %v3447
        %v3706 = vpop.f32.mrf.mxu0
        %v3707 = vadd.f32 %v3642, %v3706
        %3708 = vmatmul.f32.gmra.mxu0 %v3450
        %v3709 = vpop.f32.mrf.mxu0
        %v3710 = vadd.f32 %v3645, %v3709
        %3711 = vmatmul.f32.gmra.mxu0 %v3453
        %v3712 = vpop.f32.mrf.mxu0
        %v3713 = vadd.f32 %v3648, %v3712
        %3714 = vmatmul.f32.gmra.mxu0 %v3456
        %v3715 = vpop.f32.mrf.mxu0
        %v3716 = vadd.f32 %v3651, %v3715
        %3717 = vmatmul.f32.gmra.mxu0 %v3459
        %v3718 = vpop.f32.mrf.mxu0
        %v3719 = vadd.f32 %v3654, %v3718
        %3720 = vmatmul.f32.gmra.mxu0 %v3462
        %v3721 = vpop.f32.mrf.mxu0
        %v3722 = vadd.f32 %v3657, %v3721
        %3723 = vmatmul.f32.gmra.mxu0 %v3465
        %v3724 = vpop.f32.mrf.mxu0
        %v3725 = vadd.f32 %v3660, %v3724
        %3726 = vmatmul.f32.gmra.mxu0 %v3468
        %v3727 = vpop.f32.mrf.mxu0
        %v3728 = vadd.f32 %v3663, %v3727
        %3729 = vmatmul.f32.gmra.mxu0 %v3471
        %v3730 = vpop.f32.mrf.mxu0
        %v3731 = vadd.f32 %v3666, %v3730
        %3732 = vmatmul.f32.gmra.mxu0 %v3474
        %v3733 = vpop.f32.mrf.mxu0
        %v3734 = vadd.f32 %v3669, %v3733
        %3735 = vdwg.mxu0
        %v3736 = vmax.f32 %v3689, 0.0
        %v3737 = vmax.f32 %v3692, 0.0
        %v3738 = vmax.f32 %v3695, 0.0
        %v3739 = vmax.f32 %v3698, 0.0
        %v3740 = vmax.f32 %v3701, 0.0
        %v3741 = vmax.f32 %v3704, 0.0
        %v3742 = vmax.f32 %v3707, 0.0
        %v3743 = vmax.f32 %v3710, 0.0
        %v3744 = vmax.f32 %v3713, 0.0
        %v3745 = vmax.f32 %v3716, 0.0
        %v3746 = vmax.f32 %v3719, 0.0
        %v3747 = vmax.f32 %v3722, 0.0
        %v3748 = vmax.f32 %v3725, 0.0
        %v3749 = vmax.f32 %v3728, 0.0
        %v3750 = vmax.f32 %v3731, 0.0
        %v3751 = vmax.f32 %v3734, 0.0
        %v3752 = vmax.f32 %v3736, %v3738
        %v3753 = vmax.f32 %v3737, %v3739
        %v3754 = vmax.f32 %v3752, %v3740
        %v3755 = vmax.f32 %v3753, %v3741
        %v3756 = vmax.f32 %v3754, %v3742
        %v3757 = vmax.f32 %v3755, %v3743
        %s3758 = scalar_lea.vmem [#allocation5], 48
        %3759 = vst.msk [vmem:[%s3758 + $0x2] sm:$0xff] %vm472, %v3756
        %3760 = vst.msk [vmem:[%s3758 + $0xa] sm:$0xff] %vm472, %v3757
        %v3761 = vmax.f32 %v3744, %v3746
        %v3762 = vmax.f32 %v3745, %v3747
        %v3763 = vmax.f32 %v3761, %v3748
        %v3764 = vmax.f32 %v3762, %v3749
        %v3765 = vmax.f32 %v3763, %v3750
        %v3766 = vmax.f32 %v3764, %v3751
        %s3767 = scalar_lea.vmem [#allocation5], 72
        %3768 = vst.msk [vmem:[%s3767 + $0x2] sm:$0xff] %vm472, %v3765
        %3769 = vst.msk [vmem:[%s3767 + $0xa] sm:$0xff] %vm472, %v3766
        %v3770 = vld [vmem:[#allocation5] sm:$0xff]
        %v3771 = vld [vmem:[#allocation5 + $0x8] sm:$0xff]
        %v3772 = vld [vmem:[#allocation5 + $0x18] sm:$0xff]
        %v3773 = vld [vmem:[#allocation5 + $0x20] sm:$0xff]
        %3774 = vst.msk [vmem:[#allocation6] sm:$0xff] %vm472, %v3770
        %3775 = vst.msk [vmem:[#allocation6 + $0x20] sm:$0xff] %vm472, %v3771
        %3776 = vst.msk [vmem:[#allocation6 + $0x40] sm:$0xff] %vm472, %v3772
        %3777 = vst.msk [vmem:[#allocation6 + $0x60] sm:$0xff] %vm472, %v3773
        %s3778 = scalar_lea.vmem [#allocation5], 24
        %v3779 = vld [vmem:[%s3778] sm:$0xff]
        %v3780 = vld [vmem:[%s3778 + $0x8] sm:$0xff]
        %v3781 = vld [vmem:[%s3778 + $0x18] sm:$0xff]
        %v3782 = vld [vmem:[%s3778 + $0x20] sm:$0xff]
        %3787 = vrot.lane.b32.xlu0 %v3779, 16
        %v3788 = vpop.permute.xlu0 %3787
        %3789 = vrot.lane.b32.xlu0 %v3780, 16
        %v3790 = vpop.permute.xlu0 %3789
        %3791 = vrot.lane.b32.xlu0 %v3781, 16
        %v3792 = vpop.permute.xlu0 %3791
        %3793 = vrot.lane.b32.xlu0 %v3782, 16
        %v3794 = vpop.permute.xlu0 %3793
        %3799 = vst.msk [vmem:[#allocation6] sm:$0xff] %vm1271, %v3788
        %3800 = vst.msk [vmem:[#allocation6 + $0x20] sm:$0xff] %vm1271, %v3790
        %3801 = vst.msk [vmem:[#allocation6 + $0x40] sm:$0xff] %vm1271, %v3792
        %3802 = vst.msk [vmem:[#allocation6 + $0x60] sm:$0xff] %vm1271, %v3794
        %v3803 = vld [vmem:[%s3758] sm:$0xff]
        %v3804 = vld [vmem:[%s3758 + $0x8] sm:$0xff]
        %v3805 = vld [vmem:[%s3758 + $0x18] sm:$0xff]
        %v3806 = vld [vmem:[%s3758 + $0x20] sm:$0xff]
        %3811 = vrot.lane.b32.xlu0 %v3803, 32
        %v3812 = vpop.permute.xlu0 %3811
        %3813 = vrot.lane.b32.xlu0 %v3804, 32
        %v3814 = vpop.permute.xlu0 %3813
        %3815 = vrot.lane.b32.xlu0 %v3805, 32
        %v3816 = vpop.permute.xlu0 %3815
        %3817 = vrot.lane.b32.xlu0 %v3806, 32
        %v3818 = vpop.permute.xlu0 %3817
        %3823 = vst.msk [vmem:[#allocation6] sm:$0xff] %vm1368, %v3812
        %3824 = vst.msk [vmem:[#allocation6 + $0x20] sm:$0xff] %vm1368, %v3814
        %3825 = vst.msk [vmem:[#allocation6 + $0x40] sm:$0xff] %vm1368, %v3816
        %3826 = vst.msk [vmem:[#allocation6 + $0x60] sm:$0xff] %vm1368, %v3818
        %v3827 = vld [vmem:[%s3767] sm:$0xff]
        %v3828 = vld [vmem:[%s3767 + $0x8] sm:$0xff]
        %v3829 = vld [vmem:[%s3767 + $0x18] sm:$0xff]
        %v3830 = vld [vmem:[%s3767 + $0x20] sm:$0xff]
        %3835 = vrot.lane.b32.xlu0 %v3827, 48
        %v3836 = vpop.permute.xlu0 %3835
        %3837 = vrot.lane.b32.xlu0 %v3828, 48
        %v3838 = vpop.permute.xlu0 %3837
        %3839 = vrot.lane.b32.xlu0 %v3829, 48
        %v3840 = vpop.permute.xlu0 %3839
        %3841 = vrot.lane.b32.xlu0 %v3830, 48
        %v3842 = vpop.permute.xlu0 %3841
        %3847 = vst.msk [vmem:[#allocation6] sm:$0xff] %vm1465, %v3836
        %3848 = vst.msk [vmem:[#allocation6 + $0x20] sm:$0xff] %vm1465, %v3838
        %3849 = vst.msk [vmem:[#allocation6 + $0x40] sm:$0xff] %vm1465, %v3840
        %3850 = vst.msk [vmem:[#allocation6 + $0x60] sm:$0xff] %vm1465, %v3842
        %v3851 = vld [vmem:[%s518] sm:$0xff]
        %v3852 = vld [vmem:[%s518 + $0x8] sm:$0xff]
        %v3853 = vld [vmem:[%s518 + $0x18] sm:$0xff]
        %v3854 = vld [vmem:[%s518 + $0x20] sm:$0xff]
        %3859 = vrot.lane.b32.xlu0 %v3851, 64
        %v3860 = vpop.permute.xlu0 %3859
        %3861 = vrot.lane.b32.xlu0 %v3852, 64
        %v3862 = vpop.permute.xlu0 %3861
        %3863 = vrot.lane.b32.xlu0 %v3853, 64
        %v3864 = vpop.permute.xlu0 %3863
        %3865 = vrot.lane.b32.xlu0 %v3854, 64
        %v3866 = vpop.permute.xlu0 %3865
        %3871 = vst.msk [vmem:[#allocation6] sm:$0xff] %vm1562, %v3860
        %3872 = vst.msk [vmem:[#allocation6 + $0x20] sm:$0xff] %vm1562, %v3862
        %3873 = vst.msk [vmem:[#allocation6 + $0x40] sm:$0xff] %vm1562, %v3864
        %3874 = vst.msk [vmem:[#allocation6 + $0x60] sm:$0xff] %vm1562, %v3866
        %v3875 = vld [vmem:[#allocation5 + $0x1] sm:$0xff]
        %v3876 = vld [vmem:[#allocation5 + $0x9] sm:$0xff]
        %v3877 = vld [vmem:[#allocation5 + $0x19] sm:$0xff]
        %v3878 = vld [vmem:[#allocation5 + $0x21] sm:$0xff]
        %3883 = vrot.lane.b32.xlu0 %v3875, 80
        %v3884 = vpop.permute.xlu0 %3883
        %3885 = vrot.lane.b32.xlu0 %v3876, 80
        %v3886 = vpop.permute.xlu0 %3885
        %3887 = vrot.lane.b32.xlu0 %v3877, 80
        %v3888 = vpop.permute.xlu0 %3887
        %3889 = vrot.lane.b32.xlu0 %v3878, 80
        %v3890 = vpop.permute.xlu0 %3889
        %3895 = vst.msk [vmem:[#allocation6] sm:$0xff] %vm1659, %v3884
        %3896 = vst.msk [vmem:[#allocation6 + $0x20] sm:$0xff] %vm1659, %v3886
        %3897 = vst.msk [vmem:[#allocation6 + $0x40] sm:$0xff] %vm1659, %v3888
        %3898 = vst.msk [vmem:[#allocation6 + $0x60] sm:$0xff] %vm1659, %v3890
        %v3899 = vld [vmem:[%s3778 + $0x1] sm:$0xff]
        %v3900 = vld [vmem:[%s3778 + $0x9] sm:$0xff]
        %v3901 = vld [vmem:[%s3778 + $0x19] sm:$0xff]
        %v3902 = vld [vmem:[%s3778 + $0x21] sm:$0xff]
        %3907 = vrot.lane.b32.xlu0 %v3899, 96
        %v3908 = vpop.permute.xlu0 %3907
        %3909 = vrot.lane.b32.xlu0 %v3900, 96
        %v3910 = vpop.permute.xlu0 %3909
        %3911 = vrot.lane.b32.xlu0 %v3901, 96
        %v3912 = vpop.permute.xlu0 %3911
        %3913 = vrot.lane.b32.xlu0 %v3902, 96
        %v3914 = vpop.permute.xlu0 %3913
        %3919 = vst.msk [vmem:[#allocation6] sm:$0xff] %vm1756, %v3908
        %3920 = vst.msk [vmem:[#allocation6 + $0x20] sm:$0xff] %vm1756, %v3910
        %3921 = vst.msk [vmem:[#allocation6 + $0x40] sm:$0xff] %vm1756, %v3912
        %3922 = vst.msk [vmem:[#allocation6 + $0x60] sm:$0xff] %vm1756, %v3914
        %v3923 = vld [vmem:[%s3758 + $0x1] sm:$0xff]
        %v3924 = vld [vmem:[%s3758 + $0x9] sm:$0xff]
        %v3925 = vld [vmem:[%s3758 + $0x19] sm:$0xff]
        %v3926 = vld [vmem:[%s3758 + $0x21] sm:$0xff]
        %3931 = vrot.lane.b32.xlu0 %v3923, 112
        %v3932 = vpop.permute.xlu0 %3931
        %3933 = vrot.lane.b32.xlu0 %v3924, 112
        %v3934 = vpop.permute.xlu0 %3933
        %3935 = vrot.lane.b32.xlu0 %v3925, 112
        %v3936 = vpop.permute.xlu0 %3935
        %3937 = vrot.lane.b32.xlu0 %v3926, 112
        %v3938 = vpop.permute.xlu0 %3937
        %3943 = vst.msk [vmem:[#allocation6] sm:$0xff] %vm1853, %v3932
        %3944 = vst.msk [vmem:[#allocation6 + $0x20] sm:$0xff] %vm1853, %v3934
        %3945 = vst.msk [vmem:[#allocation6 + $0x40] sm:$0xff] %vm1853, %v3936
        %3946 = vst.msk [vmem:[#allocation6 + $0x60] sm:$0xff] %vm1853, %v3938
        %v3947 = vld [vmem:[%s3767 + $0x1] sm:$0xff]
        %v3948 = vld [vmem:[%s3767 + $0x9] sm:$0xff]
        %v3949 = vld [vmem:[%s3767 + $0x19] sm:$0xff]
        %v3950 = vld [vmem:[%s3767 + $0x21] sm:$0xff]
        %3951 = vst.msk [vmem:[#allocation6 + $0x8] sm:$0xff] %vm472, %v3947
        %3952 = vst.msk [vmem:[#allocation6 + $0x28] sm:$0xff] %vm472, %v3948
        %3953 = vst.msk [vmem:[#allocation6 + $0x48] sm:$0xff] %vm472, %v3949
        %3954 = vst.msk [vmem:[#allocation6 + $0x68] sm:$0xff] %vm472, %v3950
        %v3955 = vld [vmem:[%s518 + $0x1] sm:$0xff]
        %v3956 = vld [vmem:[%s518 + $0x9] sm:$0xff]
        %v3957 = vld [vmem:[%s518 + $0x19] sm:$0xff]
        %v3958 = vld [vmem:[%s518 + $0x21] sm:$0xff]
        %3963 = vrot.lane.b32.xlu0 %v3955, 16
        %v3964 = vpop.permute.xlu0 %3963
        %3965 = vrot.lane.b32.xlu0 %v3956, 16
        %v3966 = vpop.permute.xlu0 %3965
        %3967 = vrot.lane.b32.xlu0 %v3957, 16
        %v3968 = vpop.permute.xlu0 %3967
        %3969 = vrot.lane.b32.xlu0 %v3958, 16
        %v3970 = vpop.permute.xlu0 %3969
        %3975 = vst.msk [vmem:[#allocation6 + $0x8] sm:$0xff] %vm1271, %v3964
        %3976 = vst.msk [vmem:[#allocation6 + $0x28] sm:$0xff] %vm1271, %v3966
        %3977 = vst.msk [vmem:[#allocation6 + $0x48] sm:$0xff] %vm1271, %v3968
        %3978 = vst.msk [vmem:[#allocation6 + $0x68] sm:$0xff] %vm1271, %v3970
        %v3979 = vld [vmem:[#allocation5 + $0x2] sm:$0xff]
        %v3980 = vld [vmem:[#allocation5 + $0xa] sm:$0xff]
        %v3981 = vld [vmem:[#allocation5 + $0x1a] sm:$0xff]
        %v3982 = vld [vmem:[#allocation5 + $0x22] sm:$0xff]
        %3987 = vrot.lane.b32.xlu0 %v3979, 32
        %v3988 = vpop.permute.xlu0 %3987
        %3989 = vrot.lane.b32.xlu0 %v3980, 32
        %v3990 = vpop.permute.xlu0 %3989
        %3991 = vrot.lane.b32.xlu0 %v3981, 32
        %v3992 = vpop.permute.xlu0 %3991
        %3993 = vrot.lane.b32.xlu0 %v3982, 32
        %v3994 = vpop.permute.xlu0 %3993
        %3999 = vst.msk [vmem:[#allocation6 + $0x8] sm:$0xff] %vm1368, %v3988
        %4000 = vst.msk [vmem:[#allocation6 + $0x28] sm:$0xff] %vm1368, %v3990
        %4001 = vst.msk [vmem:[#allocation6 + $0x48] sm:$0xff] %vm1368, %v3992
        %4002 = vst.msk [vmem:[#allocation6 + $0x68] sm:$0xff] %vm1368, %v3994
        %v4003 = vld [vmem:[%s3778 + $0x2] sm:$0xff]
        %v4004 = vld [vmem:[%s3778 + $0xa] sm:$0xff]
        %v4005 = vld [vmem:[%s3778 + $0x1a] sm:$0xff]
        %v4006 = vld [vmem:[%s3778 + $0x22] sm:$0xff]
        %4011 = vrot.lane.b32.xlu0 %v4003, 48
        %v4012 = vpop.permute.xlu0 %4011
        %4013 = vrot.lane.b32.xlu0 %v4004, 48
        %v4014 = vpop.permute.xlu0 %4013
        %4015 = vrot.lane.b32.xlu0 %v4005, 48
        %v4016 = vpop.permute.xlu0 %4015
        %4017 = vrot.lane.b32.xlu0 %v4006, 48
        %v4018 = vpop.permute.xlu0 %4017
        %4023 = vst.msk [vmem:[#allocation6 + $0x8] sm:$0xff] %vm1465, %v4012
        %4024 = vst.msk [vmem:[#allocation6 + $0x28] sm:$0xff] %vm1465, %v4014
        %4025 = vst.msk [vmem:[#allocation6 + $0x48] sm:$0xff] %vm1465, %v4016
        %4026 = vst.msk [vmem:[#allocation6 + $0x68] sm:$0xff] %vm1465, %v4018
        %v4027 = vld [vmem:[%s3758 + $0x2] sm:$0xff]
        %v4028 = vld [vmem:[%s3758 + $0xa] sm:$0xff]
        %v4029 = vld [vmem:[%s3758 + $0x1a] sm:$0xff]
        %v4030 = vld [vmem:[%s3758 + $0x22] sm:$0xff]
        %4035 = vrot.lane.b32.xlu0 %v4027, 64
        %v4036 = vpop.permute.xlu0 %4035
        %4037 = vrot.lane.b32.xlu0 %v4028, 64
        %v4038 = vpop.permute.xlu0 %4037
        %4039 = vrot.lane.b32.xlu0 %v4029, 64
        %v4040 = vpop.permute.xlu0 %4039
        %4041 = vrot.lane.b32.xlu0 %v4030, 64
        %v4042 = vpop.permute.xlu0 %4041
        %4047 = vst.msk [vmem:[#allocation6 + $0x8] sm:$0xff] %vm1562, %v4036
        %4048 = vst.msk [vmem:[#allocation6 + $0x28] sm:$0xff] %vm1562, %v4038
        %4049 = vst.msk [vmem:[#allocation6 + $0x48] sm:$0xff] %vm1562, %v4040
        %4050 = vst.msk [vmem:[#allocation6 + $0x68] sm:$0xff] %vm1562, %v4042
        %v4051 = vld [vmem:[%s3767 + $0x2] sm:$0xff]
        %v4052 = vld [vmem:[%s3767 + $0xa] sm:$0xff]
        %v4053 = vld [vmem:[%s3767 + $0x1a] sm:$0xff]
        %v4054 = vld [vmem:[%s3767 + $0x22] sm:$0xff]
        %4059 = vrot.lane.b32.xlu0 %v4051, 80
        %v4060 = vpop.permute.xlu0 %4059
        %4061 = vrot.lane.b32.xlu0 %v4052, 80
        %v4062 = vpop.permute.xlu0 %4061
        %4063 = vrot.lane.b32.xlu0 %v4053, 80
        %v4064 = vpop.permute.xlu0 %4063
        %4065 = vrot.lane.b32.xlu0 %v4054, 80
        %v4066 = vpop.permute.xlu0 %4065
        %4071 = vst.msk [vmem:[#allocation6 + $0x8] sm:$0xff] %vm1659, %v4060
        %4072 = vst.msk [vmem:[#allocation6 + $0x28] sm:$0xff] %vm1659, %v4062
        %4073 = vst.msk [vmem:[#allocation6 + $0x48] sm:$0xff] %vm1659, %v4064
        %4074 = vst.msk [vmem:[#allocation6 + $0x68] sm:$0xff] %vm1659, %v4066
        %v4075 = vld [vmem:[%s518 + $0x2] sm:$0xff]
        %v4076 = vld [vmem:[%s518 + $0xa] sm:$0xff]
        %v4077 = vld [vmem:[%s518 + $0x1a] sm:$0xff]
        %v4078 = vld [vmem:[%s518 + $0x22] sm:$0xff]
        %4083 = vrot.lane.b32.xlu0 %v4075, 96
        %v4084 = vpop.permute.xlu0 %4083
        %4085 = vrot.lane.b32.xlu0 %v4076, 96
        %v4086 = vpop.permute.xlu0 %4085
        %4087 = vrot.lane.b32.xlu0 %v4077, 96
        %v4088 = vpop.permute.xlu0 %4087
        %4089 = vrot.lane.b32.xlu0 %v4078, 96
        %v4090 = vpop.permute.xlu0 %4089
        %4095 = vst.msk [vmem:[#allocation6 + $0x8] sm:$0xff] %vm1756, %v4084
        %4096 = vst.msk [vmem:[#allocation6 + $0x28] sm:$0xff] %vm1756, %v4086
        %4097 = vst.msk [vmem:[#allocation6 + $0x48] sm:$0xff] %vm1756, %v4088
        %4098 = vst.msk [vmem:[#allocation6 + $0x68] sm:$0xff] %vm1756, %v4090
        %v4099 = vld [vmem:[#allocation5 + $0x3] sm:$0xff]
        %v4100 = vld [vmem:[#allocation5 + $0xb] sm:$0xff]
        %v4101 = vld [vmem:[#allocation5 + $0x1b] sm:$0xff]
        %v4102 = vld [vmem:[#allocation5 + $0x23] sm:$0xff]
        %4107 = vrot.lane.b32.xlu0 %v4099, 112
        %v4108 = vpop.permute.xlu0 %4107
        %4109 = vrot.lane.b32.xlu0 %v4100, 112
        %v4110 = vpop.permute.xlu0 %4109
        %4111 = vrot.lane.b32.xlu0 %v4101, 112
        %v4112 = vpop.permute.xlu0 %4111
        %4113 = vrot.lane.b32.xlu0 %v4102, 112
        %v4114 = vpop.permute.xlu0 %4113
        %4119 = vst.msk [vmem:[#allocation6 + $0x8] sm:$0xff] %vm1853, %v4108
        %4120 = vst.msk [vmem:[#allocation6 + $0x28] sm:$0xff] %vm1853, %v4110
        %4121 = vst.msk [vmem:[#allocation6 + $0x48] sm:$0xff] %vm1853, %v4112
        %4122 = vst.msk [vmem:[#allocation6 + $0x68] sm:$0xff] %vm1853, %v4114
        %v4123 = vld [vmem:[%s3778 + $0x3] sm:$0xff]
        %v4124 = vld [vmem:[%s3778 + $0xb] sm:$0xff]
        %v4125 = vld [vmem:[%s3778 + $0x1b] sm:$0xff]
        %v4126 = vld [vmem:[%s3778 + $0x23] sm:$0xff]
        %4127 = vst.msk [vmem:[#allocation6 + $0x10] sm:$0xff] %vm472, %v4123
        %4128 = vst.msk [vmem:[#allocation6 + $0x30] sm:$0xff] %vm472, %v4124
        %4129 = vst.msk [vmem:[#allocation6 + $0x50] sm:$0xff] %vm472, %v4125
        %4130 = vst.msk [vmem:[#allocation6 + $0x70] sm:$0xff] %vm472, %v4126
        %v4131 = vld [vmem:[%s3758 + $0x3] sm:$0xff]
        %v4132 = vld [vmem:[%s3758 + $0xb] sm:$0xff]
        %v4133 = vld [vmem:[%s3758 + $0x1b] sm:$0xff]
        %v4134 = vld [vmem:[%s3758 + $0x23] sm:$0xff]
        %4139 = vrot.lane.b32.xlu0 %v4131, 16
        %v4140 = vpop.permute.xlu0 %4139
        %4141 = vrot.lane.b32.xlu0 %v4132, 16
        %v4142 = vpop.permute.xlu0 %4141
        %4143 = vrot.lane.b32.xlu0 %v4133, 16
        %v4144 = vpop.permute.xlu0 %4143
        %4145 = vrot.lane.b32.xlu0 %v4134, 16
        %v4146 = vpop.permute.xlu0 %4145
        %4151 = vst.msk [vmem:[#allocation6 + $0x10] sm:$0xff] %vm1271, %v4140
        %4152 = vst.msk [vmem:[#allocation6 + $0x30] sm:$0xff] %vm1271, %v4142
        %4153 = vst.msk [vmem:[#allocation6 + $0x50] sm:$0xff] %vm1271, %v4144
        %4154 = vst.msk [vmem:[#allocation6 + $0x70] sm:$0xff] %vm1271, %v4146
        %v4155 = vld [vmem:[%s3767 + $0x3] sm:$0xff]
        %v4156 = vld [vmem:[%s3767 + $0xb] sm:$0xff]
        %v4157 = vld [vmem:[%s3767 + $0x1b] sm:$0xff]
        %v4158 = vld [vmem:[%s3767 + $0x23] sm:$0xff]
        %4163 = vrot.lane.b32.xlu0 %v4155, 32
        %v4164 = vpop.permute.xlu0 %4163
        %4165 = vrot.lane.b32.xlu0 %v4156, 32
        %v4166 = vpop.permute.xlu0 %4165
        %4167 = vrot.lane.b32.xlu0 %v4157, 32
        %v4168 = vpop.permute.xlu0 %4167
        %4169 = vrot.lane.b32.xlu0 %v4158, 32
        %v4170 = vpop.permute.xlu0 %4169
        %4175 = vst.msk [vmem:[#allocation6 + $0x10] sm:$0xff] %vm1368, %v4164
        %4176 = vst.msk [vmem:[#allocation6 + $0x30] sm:$0xff] %vm1368, %v4166
        %4177 = vst.msk [vmem:[#allocation6 + $0x50] sm:$0xff] %vm1368, %v4168
        %4178 = vst.msk [vmem:[#allocation6 + $0x70] sm:$0xff] %vm1368, %v4170
        %v4179 = vld [vmem:[%s518 + $0x3] sm:$0xff]
        %v4180 = vld [vmem:[%s518 + $0xb] sm:$0xff]
        %v4181 = vld [vmem:[%s518 + $0x1b] sm:$0xff]
        %v4182 = vld [vmem:[%s518 + $0x23] sm:$0xff]
        %4187 = vrot.lane.b32.xlu0 %v4179, 48
        %v4188 = vpop.permute.xlu0 %4187
        %4189 = vrot.lane.b32.xlu0 %v4180, 48
        %v4190 = vpop.permute.xlu0 %4189
        %4191 = vrot.lane.b32.xlu0 %v4181, 48
        %v4192 = vpop.permute.xlu0 %4191
        %4193 = vrot.lane.b32.xlu0 %v4182, 48
        %v4194 = vpop.permute.xlu0 %4193
        %4199 = vst.msk [vmem:[#allocation6 + $0x10] sm:$0xff] %vm1465, %v4188
        %4200 = vst.msk [vmem:[#allocation6 + $0x30] sm:$0xff] %vm1465, %v4190
        %4201 = vst.msk [vmem:[#allocation6 + $0x50] sm:$0xff] %vm1465, %v4192
        %4202 = vst.msk [vmem:[#allocation6 + $0x70] sm:$0xff] %vm1465, %v4194
        %v4203 = vld [vmem:[#allocation5 + $0x4] sm:$0xff]
        %v4204 = vld [vmem:[#allocation5 + $0xc] sm:$0xff]
        %v4205 = vld [vmem:[#allocation5 + $0x1c] sm:$0xff]
        %v4206 = vld [vmem:[#allocation5 + $0x24] sm:$0xff]
        %4211 = vrot.lane.b32.xlu0 %v4203, 64
        %v4212 = vpop.permute.xlu0 %4211
        %4213 = vrot.lane.b32.xlu0 %v4204, 64
        %v4214 = vpop.permute.xlu0 %4213
        %4215 = vrot.lane.b32.xlu0 %v4205, 64
        %v4216 = vpop.permute.xlu0 %4215
        %4217 = vrot.lane.b32.xlu0 %v4206, 64
        %v4218 = vpop.permute.xlu0 %4217
        %4223 = vst.msk [vmem:[#allocation6 + $0x10] sm:$0xff] %vm1562, %v4212
        %4224 = vst.msk [vmem:[#allocation6 + $0x30] sm:$0xff] %vm1562, %v4214
        %4225 = vst.msk [vmem:[#allocation6 + $0x50] sm:$0xff] %vm1562, %v4216
        %4226 = vst.msk [vmem:[#allocation6 + $0x70] sm:$0xff] %vm1562, %v4218
        %v4227 = vld [vmem:[%s3778 + $0x4] sm:$0xff]
        %v4228 = vld [vmem:[%s3778 + $0xc] sm:$0xff]
        %v4229 = vld [vmem:[%s3778 + $0x1c] sm:$0xff]
        %v4230 = vld [vmem:[%s3778 + $0x24] sm:$0xff]
        %4235 = vrot.lane.b32.xlu0 %v4227, 80
        %v4236 = vpop.permute.xlu0 %4235
        %4237 = vrot.lane.b32.xlu0 %v4228, 80
        %v4238 = vpop.permute.xlu0 %4237
        %4239 = vrot.lane.b32.xlu0 %v4229, 80
        %v4240 = vpop.permute.xlu0 %4239
        %4241 = vrot.lane.b32.xlu0 %v4230, 80
        %v4242 = vpop.permute.xlu0 %4241
        %4247 = vst.msk [vmem:[#allocation6 + $0x10] sm:$0xff] %vm1659, %v4236
        %4248 = vst.msk [vmem:[#allocation6 + $0x30] sm:$0xff] %vm1659, %v4238
        %4249 = vst.msk [vmem:[#allocation6 + $0x50] sm:$0xff] %vm1659, %v4240
        %4250 = vst.msk [vmem:[#allocation6 + $0x70] sm:$0xff] %vm1659, %v4242
        %v4251 = vld [vmem:[%s3758 + $0x4] sm:$0xff]
        %v4252 = vld [vmem:[%s3758 + $0xc] sm:$0xff]
        %v4253 = vld [vmem:[%s3758 + $0x1c] sm:$0xff]
        %v4254 = vld [vmem:[%s3758 + $0x24] sm:$0xff]
        %4259 = vrot.lane.b32.xlu0 %v4251, 96
        %v4260 = vpop.permute.xlu0 %4259
        %4261 = vrot.lane.b32.xlu0 %v4252, 96
        %v4262 = vpop.permute.xlu0 %4261
        %4263 = vrot.lane.b32.xlu0 %v4253, 96
        %v4264 = vpop.permute.xlu0 %4263
        %4265 = vrot.lane.b32.xlu0 %v4254, 96
        %v4266 = vpop.permute.xlu0 %4265
        %4271 = vst.msk [vmem:[#allocation6 + $0x10] sm:$0xff] %vm1756, %v4260
        %4272 = vst.msk [vmem:[#allocation6 + $0x30] sm:$0xff] %vm1756, %v4262
        %4273 = vst.msk [vmem:[#allocation6 + $0x50] sm:$0xff] %vm1756, %v4264
        %4274 = vst.msk [vmem:[#allocation6 + $0x70] sm:$0xff] %vm1756, %v4266
        %v4275 = vld [vmem:[%s3767 + $0x4] sm:$0xff]
        %v4276 = vld [vmem:[%s3767 + $0xc] sm:$0xff]
        %v4277 = vld [vmem:[%s3767 + $0x1c] sm:$0xff]
        %v4278 = vld [vmem:[%s3767 + $0x24] sm:$0xff]
        %4283 = vrot.lane.b32.xlu0 %v4275, 112
        %v4284 = vpop.permute.xlu0 %4283
        %4285 = vrot.lane.b32.xlu0 %v4276, 112
        %v4286 = vpop.permute.xlu0 %4285
        %4287 = vrot.lane.b32.xlu0 %v4277, 112
        %v4288 = vpop.permute.xlu0 %4287
        %4289 = vrot.lane.b32.xlu0 %v4278, 112
        %v4290 = vpop.permute.xlu0 %4289
        %4295 = vst.msk [vmem:[#allocation6 + $0x10] sm:$0xff] %vm1853, %v4284
        %4296 = vst.msk [vmem:[#allocation6 + $0x30] sm:$0xff] %vm1853, %v4286
        %4297 = vst.msk [vmem:[#allocation6 + $0x50] sm:$0xff] %vm1853, %v4288
        %4298 = vst.msk [vmem:[#allocation6 + $0x70] sm:$0xff] %vm1853, %v4290
        %v4299 = vld [vmem:[%s518 + $0x4] sm:$0xff]
        %v4300 = vld [vmem:[%s518 + $0xc] sm:$0xff]
        %v4301 = vld [vmem:[%s518 + $0x1c] sm:$0xff]
        %v4302 = vld [vmem:[%s518 + $0x24] sm:$0xff]
        %4303 = vst.msk [vmem:[#allocation6 + $0x18] sm:$0xff] %vm472, %v4299
        %4304 = vst.msk [vmem:[#allocation6 + $0x38] sm:$0xff] %vm472, %v4300
        %4305 = vst.msk [vmem:[#allocation6 + $0x58] sm:$0xff] %vm472, %v4301
        %4306 = vst.msk [vmem:[#allocation6 + $0x78] sm:$0xff] %vm472, %v4302
        %v4307 = vld [vmem:[#allocation6] sm:$0xff]
        %v4308 = vld [vmem:[#allocation6 + $0x8] sm:$0xff]
        %v4309 = vld [vmem:[#allocation6 + $0x10] sm:$0xff]
        %v4310 = vld [vmem:[#allocation6 + $0x18] sm:$0xff]
        %v4311 = vld [vmem:[#allocation6 + $0x20] sm:$0xff]
        %v4312 = vld [vmem:[#allocation6 + $0x28] sm:$0xff]
        %v4313 = vld [vmem:[#allocation6 + $0x30] sm:$0xff]
        %v4314 = vld [vmem:[#allocation6 + $0x38] sm:$0xff]
        %v4315 = vld [vmem:[#allocation6 + $0x40] sm:$0xff]
        %v4316 = vld [vmem:[#allocation6 + $0x48] sm:$0xff]
        %v4317 = vld [vmem:[#allocation6 + $0x50] sm:$0xff]
        %v4318 = vld [vmem:[#allocation6 + $0x58] sm:$0xff]
        %v4319 = vld [vmem:[#allocation6 + $0x60] sm:$0xff]
        %v4320 = vld [vmem:[#allocation6 + $0x68] sm:$0xff]
        %v4321 = vld [vmem:[#allocation6 + $0x70] sm:$0xff]
        %v4322 = vld [vmem:[#allocation6 + $0x78] sm:$0xff]
        %v4323 = vld [vmem:[%s7] sm:$0xff]
        %v4324 = vld [vmem:[%s7 + $0x8] sm:$0xff]
        %v4325 = vld [vmem:[%s7 + $0x10] sm:$0xff]
        %v4326 = vld [vmem:[%s7 + $0x18] sm:$0xff]
        %v4327 = vld [vmem:[%s7 + $0x20] sm:$0xff]
        %v4328 = vld [vmem:[%s7 + $0x28] sm:$0xff]
        %v4329 = vld [vmem:[%s7 + $0x30] sm:$0xff]
        %v4330 = vld [vmem:[%s7 + $0x38] sm:$0xff]
        %v4331 = vld [vmem:[%s7 + $0x40] sm:$0xff]
        %v4332 = vld [vmem:[%s7 + $0x48] sm:$0xff]
        %v4333 = vld [vmem:[%s7 + $0x50] sm:$0xff]
        %v4334 = vld [vmem:[%s7 + $0x58] sm:$0xff]
        %v4335 = vld [vmem:[%s7 + $0x60] sm:$0xff]
        %v4336 = vld [vmem:[%s7 + $0x68] sm:$0xff]
        %v4337 = vld [vmem:[%s7 + $0x70] sm:$0xff]
        %v4338 = vld [vmem:[%s7 + $0x78] sm:$0xff]
        %v4339 = vld [vmem:[%s7 + $0x80] sm:$0xff]
        %v4340 = vld [vmem:[%s7 + $0x88] sm:$0xff]
        %v4341 = vld [vmem:[%s7 + $0x90] sm:$0xff]
        %v4342 = vld [vmem:[%s7 + $0x98] sm:$0xff]
        %v4343 = vld [vmem:[%s7 + $0xa0] sm:$0xff]
        %v4344 = vld [vmem:[%s7 + $0xa8] sm:$0xff]
        %v4345 = vld [vmem:[%s7 + $0xb0] sm:$0xff]
        %v4346 = vld [vmem:[%s7 + $0xb8] sm:$0xff]
        %v4347 = vld [vmem:[%s7 + $0xc0] sm:$0xff]
        %v4348 = vld [vmem:[%s7 + $0xc8] sm:$0xff]
        %v4349 = vld [vmem:[%s7 + $0xd0] sm:$0xff]
        %v4350 = vld [vmem:[%s7 + $0xd8] sm:$0xff]
        %v4351 = vld [vmem:[%s7 + $0xe0] sm:$0xff]
        %v4352 = vld [vmem:[%s7 + $0xe8] sm:$0xff]
        %v4353 = vld [vmem:[%s7 + $0xf0] sm:$0xff]
        %v4354 = vld [vmem:[%s7 + $0xf8] sm:$0xff]
        %v4355 = vld [vmem:[%s7 + $0x100] sm:$0xff]
        %v4356 = vld [vmem:[%s7 + $0x108] sm:$0xff]
        %v4357 = vld [vmem:[%s7 + $0x110] sm:$0xff]
        %v4358 = vld [vmem:[%s7 + $0x118] sm:$0xff]
        %v4359 = vld [vmem:[%s7 + $0x120] sm:$0xff]
        %v4360 = vld [vmem:[%s7 + $0x128] sm:$0xff]
        %v4361 = vld [vmem:[%s7 + $0x130] sm:$0xff]
        %v4362 = vld [vmem:[%s7 + $0x138] sm:$0xff]
        %v4363 = vld [vmem:[%s7 + $0x140] sm:$0xff]
        %v4364 = vld [vmem:[%s7 + $0x148] sm:$0xff]
        %v4365 = vld [vmem:[%s7 + $0x150] sm:$0xff]
        %v4366 = vld [vmem:[%s7 + $0x158] sm:$0xff]
        %v4367 = vld [vmem:[%s7 + $0x160] sm:$0xff]
        %v4368 = vld [vmem:[%s7 + $0x168] sm:$0xff]
        %v4369 = vld [vmem:[%s7 + $0x170] sm:$0xff]
        %v4370 = vld [vmem:[%s7 + $0x178] sm:$0xff]
        %v4371 = vld [vmem:[%s7 + $0x180] sm:$0xff]
        %v4372 = vld [vmem:[%s7 + $0x188] sm:$0xff]
        %v4373 = vld [vmem:[%s8] sm:$0x1]
        %v4375 = vperm.slane %v4373, 0
        %v4378 = vsel %vm472, %v4310, 0
        %v4381 = vsel %vm472, %v4314, 0
        %v4384 = vsel %vm472, %v4318, 0
        %v4387 = vsel %vm472, %v4322, 0
        %4389 = vmatpush.msra.mxu0 %v4338
        %4390 = vmatpush.msra.mxu0 %v4337
        %4391 = vmatpush.msra.mxu0 %v4336
        %4392 = vmatpush.msra.mxu0 %v4335
        %4393 = vmatpush.msra.mxu0 %v4334
        %4394 = vmatpush.msra.mxu0 %v4333
        %4395 = vmatpush.msra.mxu0 %v4332
        %4396 = vmatpush.msra.mxu0 %v4331
        %4397 = vmatpush.msra.mxu0 %v4330
        %4398 = vmatpush.msra.mxu0 %v4329
        %4399 = vmatpush.msra.mxu0 %v4328
        %4400 = vmatpush.msra.mxu0 %v4327
        %4401 = vmatpush.msra.mxu0 %v4326
        %4402 = vmatpush.msra.mxu0 %v4325
        %4403 = vmatpush.msra.mxu0 %v4324
        %4404 = vmatpush.msra.mxu0 %v4323
        %4405 = vmatmul.f32.gmra.mxu0 %v4307
        %v4406 = vpop.f32.mrf.mxu0
        %v4407 = vadd.f32 %v4375, %v4406
        %4408 = vmatmul.f32.gmra.mxu0 %v4311
        %v4409 = vpop.f32.mrf.mxu0
        %v4410 = vadd.f32 %v4375, %v4409
        %4411 = vmatmul.f32.gmra.mxu0 %v4315
        %v4412 = vpop.f32.mrf.mxu0
        %v4413 = vadd.f32 %v4375, %v4412
        %4414 = vmatmul.f32.gmra.mxu0 %v4319
        %v4415 = vpop.f32.mrf.mxu0
        %v4416 = vadd.f32 %v4375, %v4415
        %4417 = vdwg.mxu0
        %4418 = vmatpush.msra.mxu0 %v4354
        %4419 = vmatpush.msra.mxu0 %v4353
        %4420 = vmatpush.msra.mxu0 %v4352
        %4421 = vmatpush.msra.mxu0 %v4351
        %4422 = vmatpush.msra.mxu0 %v4350
        %4423 = vmatpush.msra.mxu0 %v4349
        %4424 = vmatpush.msra.mxu0 %v4348
        %4425 = vmatpush.msra.mxu0 %v4347
        %4426 = vmatpush.msra.mxu0 %v4346
        %4427 = vmatpush.msra.mxu0 %v4345
        %4428 = vmatpush.msra.mxu0 %v4344
        %4429 = vmatpush.msra.mxu0 %v4343
        %4430 = vmatpush.msra.mxu0 %v4342
        %4431 = vmatpush.msra.mxu0 %v4341
        %4432 = vmatpush.msra.mxu0 %v4340
        %4433 = vmatpush.msra.mxu0 %v4339
        %4434 = vmatmul.f32.gmra.mxu0 %v4308
        %v4435 = vpop.f32.mrf.mxu0
        %v4436 = vadd.f32 %v4407, %v4435
        %4437 = vmatmul.f32.gmra.mxu0 %v4312
        %v4438 = vpop.f32.mrf.mxu0
        %v4439 = vadd.f32 %v4410, %v4438
        %4440 = vmatmul.f32.gmra.mxu0 %v4316
        %v4441 = vpop.f32.mrf.mxu0
        %v4442 = vadd.f32 %v4413, %v4441
        %4443 = vmatmul.f32.gmra.mxu0 %v4320
        %v4444 = vpop.f32.mrf.mxu0
        %v4445 = vadd.f32 %v4416, %v4444
        %4446 = vdwg.mxu0
        %4447 = vmatpush.msra.mxu0 %v4370
        %4448 = vmatpush.msra.mxu0 %v4369
        %4449 = vmatpush.msra.mxu0 %v4368
        %4450 = vmatpush.msra.mxu0 %v4367
        %4451 = vmatpush.msra.mxu0 %v4366
        %4452 = vmatpush.msra.mxu0 %v4365
        %4453 = vmatpush.msra.mxu0 %v4364
        %4454 = vmatpush.msra.mxu0 %v4363
        %4455 = vmatpush.msra.mxu0 %v4362
        %4456 = vmatpush.msra.mxu0 %v4361
        %4457 = vmatpush.msra.mxu0 %v4360
        %4458 = vmatpush.msra.mxu0 %v4359
        %4459 = vmatpush.msra.mxu0 %v4358
        %4460 = vmatpush.msra.mxu0 %v4357
        %4461 = vmatpush.msra.mxu0 %v4356
        %4462 = vmatpush.msra.mxu0 %v4355
        %4463 = vmatmul.f32.gmra.mxu0 %v4309
        %v4464 = vpop.f32.mrf.mxu0
        %v4465 = vadd.f32 %v4436, %v4464
        %4466 = vmatmul.f32.gmra.mxu0 %v4313
        %v4467 = vpop.f32.mrf.mxu0
        %v4468 = vadd.f32 %v4439, %v4467
        %4469 = vmatmul.f32.gmra.mxu0 %v4317
        %v4470 = vpop.f32.mrf.mxu0
        %v4471 = vadd.f32 %v4442, %v4470
        %4472 = vmatmul.f32.gmra.mxu0 %v4321
        %v4473 = vpop.f32.mrf.mxu0
        %v4474 = vadd.f32 %v4445, %v4473
        %4475 = vdwg.mxu0
        %4476 = vmatpush.msra.mxu0 0.0
        %4477 = vmatpush.msra.mxu0 0.0
        %4478 = vmatpush.msra.mxu0 0.0
        %4479 = vmatpush.msra.mxu0 0.0
        %4480 = vmatpush.msra.mxu0 0.0
        %4481 = vmatpush.msra.mxu0 0.0
        %4482 = vmatpush.msra.mxu0 0.0
        %4483 = vmatpush.msra.mxu0 0.0
        %4484 = vmatpush.msra.mxu0 0.0
        %4485 = vmatpush.msra.mxu0 0.0
        %4486 = vmatpush.msra.mxu0 0.0
        %4487 = vmatpush.msra.mxu0 0.0
        %4488 = vmatpush.msra.mxu0 0.0
        %4489 = vmatpush.msra.mxu0 0.0
        %4490 = vmatpush.msra.mxu0 %v4372
        %4491 = vmatpush.msra.mxu0 %v4371
        %4492 = vmatmul.f32.gmra.mxu0 %v4378
        %v4493 = vpop.f32.mrf.mxu0
        %v4494 = vadd.f32 %v4465, %v4493
        %4495 = vmatmul.f32.gmra.mxu0 %v4381
        %v4496 = vpop.f32.mrf.mxu0
        %v4497 = vadd.f32 %v4468, %v4496
        %4498 = vmatmul.f32.gmra.mxu0 %v4384
        %v4499 = vpop.f32.mrf.mxu0
        %v4500 = vadd.f32 %v4471, %v4499
        %4501 = vmatmul.f32.gmra.mxu0 %v4387
        %v4502 = vpop.f32.mrf.mxu0
        %v4503 = vadd.f32 %v4474, %v4502
        %4504 = vdwg.mxu0
        %v4505 = vmax.f32 %v4494, 0.0
        %v4506 = vmax.f32 %v4497, 0.0
        %v4507 = vmax.f32 %v4500, 0.0
        %v4508 = vmax.f32 %v4503, 0.0
        %v4509 = vmax.f32 %v4505, %v4507
        %v4510 = vmax.f32 %v4506, %v4508
        %s4511 = sld [smem:[#allocation10]]
        %v4512 = vstv %s4511
        %v4513 = vmul.f32 %v4509, %v4512
        %v4514 = vmul.f32 %v4510, %v4512
        %v4515 = vld [vmem:[%s458] sm:$0xff]
        %v4516 = vld [vmem:[%s458 + $0x8] sm:$0xff]
        %s4517 = sld [smem:[#allocation10 + $0x1]]
        %v4518 = vstv %s4517
        %v4519 = vmul.f32 %v4515, %v4518
        %v4520 = vmul.f32 %v4516, %v4518
        %v4521 = vadd.f32 %v4513, %v4519
        %v4522 = vadd.f32 %v4514, %v4520
        %s4523 = sld [smem:[#allocation10 + $0x2]]
        %v4524 = vstv %s4523
        %v4525 = vadd.f32 %v4521, %v4524
        %v4526 = vadd.f32 %v4522, %v4524
        %v4527 = vld [vmem:[%s10] sm:$0xff]
        %v4528 = vld [vmem:[%s10 + $0x8] sm:$0xff]
        %v4529 = vld [vmem:[%s11] sm:$0x1]
        %v4531 = vperm.slane %v4529, 0
        %v4534 = vsel %vm472, %v4525, 0
        %v4537 = vsel %vm472, %v4526, 0
        %4539 = vmatpush.msra.mxu0 0.0
        %4540 = vmatpush.msra.mxu0 0.0
        %4541 = vmatpush.msra.mxu0 0.0
        %4542 = vmatpush.msra.mxu0 0.0
        %4543 = vmatpush.msra.mxu0 0.0
        %4544 = vmatpush.msra.mxu0 0.0
        %4545 = vmatpush.msra.mxu0 0.0
        %4546 = vmatpush.msra.mxu0 0.0
        %4547 = vmatpush.msra.mxu0 0.0
        %4548 = vmatpush.msra.mxu0 0.0
        %4549 = vmatpush.msra.mxu0 0.0
        %4550 = vmatpush.msra.mxu0 0.0
        %4551 = vmatpush.msra.mxu0 0.0
        %4552 = vmatpush.msra.mxu0 0.0
        %4553 = vmatpush.msra.mxu0 %v4528
        %4554 = vmatpush.msra.mxu0 %v4527
        %4555 = vmatmul.f32.gmra.mxu0 %v4534
        %v4556 = vpop.f32.mrf.mxu0
        %v4557 = vadd.f32 %v4531, %v4556
        %4558 = vmatmul.f32.gmra.mxu0 %v4537
        %v4559 = vpop.f32.mrf.mxu0
        %v4560 = vadd.f32 %v4531, %v4559
        %4561 = vdwg.mxu0
        %v4562 = vmax.f32 %v4557, 0.0
        %v4563 = vmax.f32 %v4560, 0.0
        %4564 = vst.msk [vmem:[%s448] sm:$0xff] %vm472, %v4562
        %4565 = vst.msk [vmem:[%s448 + $0x8] sm:$0xff] %vm472, %v4563
        %s4566 = sand.u32 %s298, 1
        %s4567 = scalar_lea.sflag [#allocation8], %s4566
        %s4568 = sand.u32 %s298, 1
        %s4569 = smul.addr %s4568, 16
        %s4570 = scalar_lea.vmem [#allocation12], %s4569
        // Predicated region
        $region77: #{wavenet_encoder10_forward.5} parent=67 // pred_check
          %p4571 = pneg %p308
        $region78: #{wavenet_encoder10_forward.5} parent=67 // pred_check_branch
          %4573 = sbr.rel (%p4571) target = $region80
        $region79: #{wavenet_encoder10_forward.5} parent=67 // pred_region
          %4575 = vsyncadd %s4567, 0
          %s4576 = smul.addr %s28, 2
          %s4577 = smul.addr %s4576, 8
          %s4578 = scalar_lea.hbm %s12, %s4577
          %s4579 = sshll.u32 %s4570, 4
          %s4580 = int_to_ptr.vmem [resolvable:$true] %s4579
          %s4581 = sshll.u32 %s4578, 4
          %s4582 = int_to_ptr.hbm [resolvable:$true] %s4581
          %4587 = dma.vmem_to_hbm [thread:$0]  %s4580, 256, %s4582, %s4567, 128, 128, 8
        $region80: #{wavenet_encoder10_forward.5} parent=67 // pred_fallthru
          _
      $region68: #{wavenet_encoder10_forward.5} parent=5 // pred_fallthru
        _
      %p4588 = scmp.le.s32.totalorder 2, %s23
      // Predicated region
      $region81: #{wavenet_encoder10_forward.5} parent=5 // pred_check
        %p4589 = pneg %p4588
      $region82: #{wavenet_encoder10_forward.5} parent=5 // pred_check_branch
        %4591 = sbr.rel (%p4589) target = $region84
      $region83: #{wavenet_encoder10_forward.5} parent=5 // pred_region
        %s4592 = ssub.s32 %s23, 2
        // Predicated region
        $region85: #{wavenet_encoder10_forward.5} parent=83 // pred_check
          %p4593 = pneg %p314
        $region86: #{wavenet_encoder10_forward.5} parent=83 // pred_check_branch
          %4595 = sbr.rel (%p4593) target = $region88
        $region87: #{wavenet_encoder10_forward.5} parent=83 // pred_region
          %s4596 = sand.u32 %s299, 1
          %s4597 = scalar_lea.sflag [#allocation8], %s4596
          %s4598 = sand.u32 %s299, 1
          %s4599 = smul.addr %s4598, 16
          %s4600 = scalar_lea.vmem [#allocation12], %s4599
          %4602 = dma.done %s4597, 256
        $region88: #{wavenet_encoder10_forward.5} parent=83 // pred_fallthru
          _
      $region84: #{wavenet_encoder10_forward.5} parent=5 // pred_fallthru
        _
    $region6: #{wavenet_encoder10_forward.5} parent=1 // loop_footer
      %s27 = sadd.s32 1, %s23
    $region7: #{wavenet_encoder10_forward.5} parent=1 // loop_footer_branch
      %22 = sbr.rel target = $region3
    $region8: #{wavenet_encoder10_forward.5} parent=1 // loop_exit
      _
    %4603 = vsyncpa [#allocation8], 1
    %s4604 = scalar_lea.sflag [#allocation8], 1
    %4605 = vsyncpa %s4604, 1
    %4606 = vsyncpa [#allocation9], 1
    %s4607 = scalar_lea.sflag [#allocation9], 1
    %4608 = vsyncpa %s4607, 1
    %4609 = vsyncpa [#allocation11], 1

</llo_original>
